<compile_context>
chip_gen: v5e
topology: v5e:2x2
jax: 0.10.0
libtpu: 0.0.40
codegen_flags: <defaults>
</compile_context>

<pallas_src>
import jax
import jax.numpy as jnp
from jax.experimental import pallas as pl
from jax.experimental.pallas import tpu as pltpu


K1 = 6200          # layer-1 in_features
N1 = 3100          # layer-1 out_features
N2 = 2048          # layer-2 out_features
N1P = 3200         # N1 padded to a multiple of 128 (and of TN1)
TN1 = 640          # layer-1 N tile -> 5 tiles of (6200, 640) ~ 15.9 MiB each
TN2 = 1024         # layer-2 N tile -> 2 tiles of (3200, 1024) ~ 12.7 MiB each
VMEM_LIMIT = 48 * 1024 * 1024  # fits v7x 64 MiB physical, above v5e/v6e defaults


def _linear_kernel(x_ref, w_ref, b_ref, o_ref):
    """One (Mp, tn) output tile: full-K dot + bias, no accumulator needed."""
    o_ref[...] = (
        jnp.dot(x_ref[...], w_ref[...], preferred_element_type=jnp.float32)
        + b_ref[...]
    ).astype(o_ref.dtype)


def pallas_linear(x, w, b, *, tn):
    """y = x @ w + b with pre-padded operands.

    x: (Mp, K) with Mp % 8 == 0
    w: (K, Np) with Np % tn == 0, tn % 128 == 0
    b: (1, Np)
    K is taken as a single full block (no K grid axis).
    """
    Mp, K = x.shape
    Kw, Np = w.shape
    assert Kw == K and b.shape == (1, Np)
    assert Mp % 8 == 0 and tn % 128 == 0 and Np % tn == 0

    grid = (Np // tn,)  # 1-D grid over N tiles only
    return pl.pallas_call(
        _linear_kernel,
        out_shape=jax.ShapeDtypeStruct((Mp, Np), x.dtype),
        grid_spec=pltpu.PrefetchScalarGridSpec(
            num_scalar_prefetch=0,
            grid=grid,
            in_specs=[
                pl.BlockSpec((Mp, K), lambda j: (0, 0)),   # x: resident, fetched once
                pl.BlockSpec((K, tn), lambda j: (0, j)),   # w: streamed per N tile
                pl.BlockSpec((1, tn), lambda j: (0, j)),   # bias tile
            ],
            out_specs=pl.BlockSpec((Mp, tn), lambda j: (0, j)),
        ),
        compiler_params=pltpu.CompilerParams(
            dimension_semantics=("parallel",),
            vmem_limit_bytes=VMEM_LIMIT,
        ),
    )(x, w, b)


def _ceil_to(x, m):
    return -(-x // m) * m


def init_params(key):
    """Deterministic init matching torch.nn.Linear shapes (stored transposed)."""
    k1, k2, k3, k4 = jax.random.split(key, 4)
    s1 = 1.0 / jnp.sqrt(float(K1))
    s2 = 1.0 / jnp.sqrt(float(N1))
    return {
        "w1": jax.random.uniform(k1, (K1, N1), jnp.float32, -s1, s1),
        "b1": jax.random.uniform(k2, (N1,), jnp.float32, -s1, s1),
        "w2": jax.random.uniform(k3, (N1, N2), jnp.float32, -s2, s2),
        "b2": jax.random.uniform(k4, (N2,), jnp.float32, -s2, s2),
    }


def pad_params(params):
    """One-time padding of the weights for the kernel (done at init, not per call).

    - w1/b1: pad N 3100 -> 3200 with zeros (padded h columns are exactly zero).
    - w2: pad K 3100 -> 3200 with zero rows so the padded h feeds it directly.
    N2 = 2048 is already a multiple of 128; no padding needed.
    """
    w1p = jnp.pad(params["w1"], ((0, 0), (0, N1P - N1)))
    b1p = jnp.pad(params["b1"], (0, N1P - N1)).reshape(1, N1P)
    w2p = jnp.pad(params["w2"], ((0, N1P - N1), (0, 0)))
    b2p = params["b2"].reshape(1, N2)
    return {"w1": w1p, "b1": b1p, "w2": w2p, "b2": b2p}


def cnn_decoder_forward(x, padded_params):
    """x: (b, c, w) with c * w == 6200. Returns (b, 2, 1024)."""
    b = x.shape[0]
    xf = x.reshape(b, -1)  # flatten 'b c w -> b (c w)'
    assert xf.shape[1] == K1, f"expected c*w == {K1}, got {xf.shape[1]}"

    # Pad only the (tiny) activation rows to a sublane multiple.
    mp = _ceil_to(b, 8)
    xp = jnp.pad(xf, ((0, mp - b), (0, 0)))                       # (Mp, 6200)

    h = pallas_linear(xp, padded_params["w1"], padded_params["b1"], tn=TN1)  # (Mp, 3200)
    y = pallas_linear(h, padded_params["w2"], padded_params["b2"], tn=TN2)   # (Mp, 2048)

    # unflatten 'b (c w) -> b c w', c=2
    return y[:b].reshape(b, 2, N2 // 2)


def cnn_decoder_reference(x, params):
    b = x.shape[0]
    xf = x.reshape(b, -1)
    h = xf @ params["w1"] + params["b1"]
    y = h @ params["w2"] + params["b2"]
    return y.reshape(b, 2, N2 // 2)


if __name__ == "__main__":
    key = jax.random.PRNGKey(0)
    kx, kp = jax.random.split(key)

    # Input (b, c, w) with c * w == 6200 as required by the module.
    batch, c, w = 2, 8, 775
    x = jax.random.normal(kx, (batch, c, w), jnp.float32)

    params = init_params(kp)          # unpadded (torch-equivalent) parameters
    padded = pad_params(params)       # padded once; reused every forward

    out = cnn_decoder_forward(x, padded)
    out = jax.block_until_ready(out)
    assert out.shape == (batch, 2, 1024), out.shape

    ref = jax.block_until_ready(cnn_decoder_reference(x, params))
    if not jnp.allclose(out, ref, rtol=1e-2, atol=1e-2):
        raise AssertionError("Pallas result mismatch vs reference")

    print("KERNEL_OK")
</pallas_src>

<mosaic_0001>
module attributes {stable_mosaic.version = 11 : i64} {
  func.func @_linear_kernel(%arg0: i32, %arg1: memref<8x6200xf32, #tpu.memory_space<vmem>>, %arg2: memref<6200x640xf32, #tpu.memory_space<vmem>>, %arg3: memref<1x640xf32, #tpu.memory_space<vmem>>, %arg4: memref<8x640xf32, #tpu.memory_space<vmem>>) attributes {dimension_semantics = [#tpu.dimension_semantics<parallel>], iteration_bounds = array<i64: 5>, scalar_prefetch = 0 : i64, scratch_operands = 0 : i64, tpu.core_type = #tpu.core_type<tc>, window_params = [{pipeline_mode = #tpu.pipeline_mode<synchronous>, transform_indices = @transform_0, window_bounds = array<i64: 8, 6200>}, {transform_indices = @transform_1, window_bounds = array<i64: 6200, 640>}, {transform_indices = @transform_2, window_bounds = array<i64: 1, 640>}, {transform_indices = @transform_3, window_bounds = array<i64: 8, 640>}]} {
    %c0 = arith.constant 0 : index
    %c0_0 = arith.constant 0 : index
    %0 = vector.load %arg1[%c0, %c0_0] : memref<8x6200xf32, #tpu.memory_space<vmem>>, vector<8x6200xf32>
    %c0_1 = arith.constant 0 : index
    %c0_2 = arith.constant 0 : index
    %1 = vector.load %arg2[%c0_1, %c0_2] : memref<6200x640xf32, #tpu.memory_space<vmem>>, vector<6200x640xf32>
    %cst = arith.constant dense<0.000000e+00> : vector<8x640xf32>
    %2 = tpu.matmul %0, %1, %cst {dimension_numbers = #tpu.dot_dimension_numbers<[1], [0], [0], [1], [0, 0, 1, 1], [], []>} : vector<8x6200xf32>, vector<6200x640xf32>, vector<8x640xf32> -> vector<8x640xf32>
    %c0_3 = arith.constant 0 : index
    %c0_4 = arith.constant 0 : index
    %3 = vector.load %arg3[%c0_3, %c0_4] : memref<1x640xf32, #tpu.memory_space<vmem>>, vector<1x640xf32>
    %4 = vector.broadcast %3 : vector<1x640xf32> to vector<8x640xf32>
    %5 = arith.addf %2, %4 : vector<8x640xf32>
    %c0_5 = arith.constant 0 : index
    %c0_6 = arith.constant 0 : index
    %6 = vector.load %arg4[%c0_5, %c0_6] : memref<8x640xf32, #tpu.memory_space<vmem>>, vector<8x640xf32>
    tpu.vector_store %arg4[%c0_5, %c0_6], %5 {strides = array<i32>} : memref<8x640xf32, #tpu.memory_space<vmem>>, vector<8x640xf32>,
    return
  }
  func.func @transform_0(%arg0: i32) -> (i32, i32) {
    %c0_i32 = arith.constant 0 : i32
    %c0_i32_0 = arith.constant 0 : i32
    %c0_i32_1 = arith.constant 0 : i32
    return %c0_i32, %c0_i32_0 : i32, i32
  }
  func.func @transform_1(%arg0: i32) -> (i32, i32) {
    %c0_i32 = arith.constant 0 : i32
    %c0_i32_0 = arith.constant 0 : i32
    return %c0_i32, %arg0 : i32, i32
  }
  func.func @transform_2(%arg0: i32) -> (i32, i32) {
    %c0_i32 = arith.constant 0 : i32
    %c0_i32_0 = arith.constant 0 : i32
    return %c0_i32, %arg0 : i32, i32
  }
  func.func @transform_3(%arg0: i32) -> (i32, i32) {
    %c0_i32 = arith.constant 0 : i32
    %c0_i32_0 = arith.constant 0 : i32
    return %c0_i32, %arg0 : i32, i32
  }
}

</mosaic_0001>

<llo_original>
// kernel: tpu_custom_call.1
$region0: #{tpu_custom_call.1}
  #allocation0 [shape = 'u32[]', space=smem, size = 0x4, offset = 0x4, fixed_abs, tag = 'smem constant byte address 0x4 - core index']
  #allocation1 [shape = 'u32[72,128]{1,0:T(1,128)}', space=vmem, size = 0x9000, scoped, tag = 'internal scratch']
  %s0 = inlined_call_operand.hbm [shape: f32[8,6200], index: 0, kind: input, shape index: {}]
  %s1 = inlined_call_operand.hbm [shape: f32[6200,3200], index: 1, kind: input, shape index: {}]
  %s2 = inlined_call_operand.hbm [shape: f32[1,3200], index: 2, kind: input, shape index: {}]
  %s3 = inlined_call_operand.hbm [shape: f32[8,3200], index: 3, kind: output, shape index: {}]
  %s4 = sld [smem:[#allocation0]]
  $region57: #{tpu_custom_call.1} parent=0
    _
  %s6 = ssub.s32 1, %s4
  %s7 = scalar_select 0, %s6, %s4
  $region1: #{tpu_custom_call.1} parent=0
    #allocation2 [shape = 'u8[200704]{0}', space=vmem, size = 0x31000, scoped, tag = 'input window, operand 0, single buffered']
    #allocation3 [shape = 's32[2]{0}', space=sflag, size = 0x8, scoped, tag = 'scoped memory for tpu_custom_call.1']
    #allocation4 [shape = 's32[2]{0}', space=sflag, size = 0x8, scoped, tag = 'scoped memory for tpu_custom_call.1']
    #allocation5 [shape = 'u8[31744000]{0}', space=vmem, size = 0x1e46000, scoped, tag = 'input window, operand 1']
    #allocation6 [shape = 's32[2]{0}', space=sflag, size = 0x8, scoped, tag = 'scoped memory for tpu_custom_call.1']
    #allocation7 [shape = 'u8[5120]{0}', space=vmem, size = 0x1400, scoped, tag = 'input window, operand 2']
    #allocation8 [shape = 'u8[40960]{0}', space=vmem, size = 0xa000, scoped, tag = 'output window, operand 0']
    %8 = vsyncpa [#allocation3], 0
    %9 = vsyncpa [#allocation6], 0
    %s10 = scalar_lea.sflag [#allocation6], 1
    %11 = vsyncpa %s10, 0
    %12 = vsyncpa [#allocation4], 0
    %s13 = scalar_lea.sflag [#allocation4], 1
    %14 = vsyncpa %s13, 0
    loop: start=0, step=1, limit=7
    $region2: #{tpu_custom_call.1} parent=1 // loop_pre_header
      _
    $region3: #{tpu_custom_call.1} parent=1 // loop_header
      %s16 = sphi 0, %s20
      %p17 = scmp.ge.s32.totalorder %s16, 7
      %s24 = sphi 0, %s24
      %s26 = sphi 0, %s24
      %s27 = sphi 0, %s26
      %s41 = sphi 0, %s27
      %s47 = sphi 0, %s49
      %s50 = sphi 0, %s47
      %s51 = sphi 0, %s50
      %s67 = sphi 0, %s51
      %s73 = sphi 0, %s75
      %s76 = sphi 0, %s73
      %s77 = sphi 0, %s76
      %s93 = sphi 0, %s77
      %s99 = sphi 0, %s101
      %s102 = sphi 0, %s99
      %s103 = sphi 0, %s102
      %s119 = sphi 0, %s103
    $region4: #{tpu_custom_call.1} parent=1 // loop_header_branch
      %19 = sbr.rel (%p17) target = $region8
    $region5: #{tpu_custom_call.1} parent=1 // loop_body
      %s21 = ssub.s32 %s16, 1
      %s22 = ssub.s32 %s16, 2
      %s23 = sadd.s32 %s16, 1
      %s25 = sadd.s32 %s24, 1
      %p28 = scmp.eq.s32.totalorder %s16, 4
      %p29 = scmp.ne.s32.totalorder %s24, %s26
      %p30 = scmp.eq.s32.totalorder %s16, 0
      %p31 = por %p29, %p30
      %p32 = scmp.ne.s32.totalorder %s24, %s26
      %p33 = scmp.eq.s32.totalorder %s21, 4
      %p34 = por %p32, %p33
      %p35 = scmp.ne.s32.totalorder %s26, %s27
      %p36 = scmp.eq.s32.totalorder %s21, 0
      %p37 = por %p35, %p36
      %p38 = scmp.ne.s32.totalorder %s26, %s27
      %p39 = scmp.eq.s32.totalorder %s22, 4
      %p40 = por %p38, %p39
      %p42 = scmp.ne.s32.totalorder %s27, %s41
      %p43 = scmp.eq.s32.totalorder %s22, 0
      %p44 = por %p42, %p43
      %s45 = ssub.s32 %s16, %s23
      %p46 = scmp.eq.s32.totalorder %s45, 0
      %s48 = sadd.s32 %s47, 1
      %s49 = scalar_select %p46, %s47, %s48
      %p52 = pneg %p46
      %p53 = scmp.eq.s32.totalorder %s16, 4
      %p54 = por %p52, %p53
      %p55 = scmp.ne.s32.totalorder %s47, %s50
      %p56 = scmp.eq.s32.totalorder %s16, 0
      %p57 = por %p55, %p56
      %p58 = scmp.ne.s32.totalorder %s47, %s50
      %p59 = scmp.eq.s32.totalorder %s21, 4
      %p60 = por %p58, %p59
      %p61 = scmp.ne.s32.totalorder %s50, %s51
      %p62 = scmp.eq.s32.totalorder %s21, 0
      %p63 = por %p61, %p62
      %p64 = scmp.ne.s32.totalorder %s50, %s51
      %p65 = scmp.eq.s32.totalorder %s22, 4
      %p66 = por %p64, %p65
      %p68 = scmp.ne.s32.totalorder %s51, %s67
      %p69 = scmp.eq.s32.totalorder %s22, 0
      %p70 = por %p68, %p69
      %s71 = ssub.s32 %s16, %s23
      %p72 = scmp.eq.s32.totalorder %s71, 0
      %s74 = sadd.s32 %s73, 1
      %s75 = scalar_select %p72, %s73, %s74
      %p78 = pneg %p72
      %p79 = scmp.eq.s32.totalorder %s16, 4
      %p80 = por %p78, %p79
      %p81 = scmp.ne.s32.totalorder %s73, %s76
      %p82 = scmp.eq.s32.totalorder %s16, 0
      %p83 = por %p81, %p82
      %p84 = scmp.ne.s32.totalorder %s73, %s76
      %p85 = scmp.eq.s32.totalorder %s21, 4
      %p86 = por %p84, %p85
      %p87 = scmp.ne.s32.totalorder %s76, %s77
      %p88 = scmp.eq.s32.totalorder %s21, 0
      %p89 = por %p87, %p88
      %p90 = scmp.ne.s32.totalorder %s76, %s77
      %p91 = scmp.eq.s32.totalorder %s22, 4
      %p92 = por %p90, %p91
      %p94 = scmp.ne.s32.totalorder %s77, %s93
      %p95 = scmp.eq.s32.totalorder %s22, 0
      %p96 = por %p94, %p95
      %s97 = ssub.s32 %s16, %s23
      %p98 = scmp.eq.s32.totalorder %s97, 0
      %s100 = sadd.s32 %s99, 1
      %s101 = scalar_select %p98, %s99, %s100
      %p104 = pneg %p98
      %p105 = scmp.eq.s32.totalorder %s16, 4
      %p106 = por %p104, %p105
      %p107 = scmp.ne.s32.totalorder %s99, %s102
      %p108 = scmp.eq.s32.totalorder %s16, 0
      %p109 = por %p107, %p108
      %p110 = scmp.ne.s32.totalorder %s99, %s102
      %p111 = scmp.eq.s32.totalorder %s21, 4
      %p112 = por %p110, %p111
      %p113 = scmp.ne.s32.totalorder %s102, %s103
      %p114 = scmp.eq.s32.totalorder %s21, 0
      %p115 = por %p113, %p114
      %p116 = scmp.ne.s32.totalorder %s102, %s103
      %p117 = scmp.eq.s32.totalorder %s22, 4
      %p118 = por %p116, %p117
      %p120 = scmp.ne.s32.totalorder %s103, %s119
      %p121 = scmp.eq.s32.totalorder %s22, 0
      %p122 = por %p120, %p121
      %p123 = scmp.le.s32.totalorder 1, %s16
      %p124 = scmp.lt.s32.totalorder %s16, 6
      %p125 = pnand %p123, %p124
      %p126 = pneg %p125
      // Predicated region
      $region9: #{tpu_custom_call.1} parent=5 // pred_check
        _
      $region10: #{tpu_custom_call.1} parent=5 // pred_check_branch
        %128 = sbr.rel (%p125) target = $region12
      $region11: #{tpu_custom_call.1} parent=5 // pred_region
        %s129 = ssub.s32 %s16, 1
        // Predicated region
        $region13: #{tpu_custom_call.1} parent=11 // pred_check
          %p130 = pneg %p37
        $region14: #{tpu_custom_call.1} parent=11 // pred_check_branch
          %132 = sbr.rel (%p130) target = $region16
        $region15: #{tpu_custom_call.1} parent=11 // pred_region
          %134 = vsyncadd [#allocation3], 0
          %s136 = sshll.u32 %s0, 4
          %s137 = int_to_ptr.hbm [resolvable:$true] %s136
          %s138 = sshll.u32 [#allocation2], 4
          %s139 = int_to_ptr.vmem [resolvable:$true] %s138
          %141 = dma.hbm_to_vmem [thread:$0]  %s137, 6272, %s139, [#allocation3]
        $region16: #{tpu_custom_call.1} parent=11 // pred_fallthru
          _
      $region12: #{tpu_custom_call.1} parent=5 // pred_fallthru
        _
      %p142 = scmp.lt.s32.totalorder %s16, 5
      // Predicated region
      $region17: #{tpu_custom_call.1} parent=5 // pred_check
        %p143 = pneg %p142
      $region18: #{tpu_custom_call.1} parent=5 // pred_check_branch
        %145 = sbr.rel (%p143) target = $region20
      $region19: #{tpu_custom_call.1} parent=5 // pred_region
        // Predicated region
        $region21: #{tpu_custom_call.1} parent=19 // pred_check
          %p146 = pneg %p57
        $region22: #{tpu_custom_call.1} parent=19 // pred_check_branch
          %148 = sbr.rel (%p146) target = $region24
        $region23: #{tpu_custom_call.1} parent=19 // pred_region
          %s149 = sand.u32 %s16, 1
          %s150 = scalar_lea.sflag [#allocation6], %s149
          %s151 = sand.u32 %s47, 1
          %s152 = smul.addr %s151, 31000
          %s153 = scalar_lea.vmem [#allocation5], %s152
          %s154 = smul.u32 5, %s16
          %156 = vsyncadd %s150, 0
          %s157 = smul.addr %s154, 8
          %s158 = scalar_lea.hbm %s1, %s157
          %s159 = sshll.u32 %s158, 4
          %s160 = int_to_ptr.hbm [resolvable:$true] %s159
          %s161 = sshll.u32 %s153, 4
          %s162 = int_to_ptr.vmem [resolvable:$true] %s161
          %167 = dma.hbm_to_vmem [thread:$0]  %s160, 496000, %s162, %s150, 3200, 640, 40
        $region24: #{tpu_custom_call.1} parent=19 // pred_fallthru
          _
        // Predicated region
        $region25: #{tpu_custom_call.1} parent=19 // pred_check
          %p168 = pneg %p83
        $region26: #{tpu_custom_call.1} parent=19 // pred_check_branch
          %170 = sbr.rel (%p168) target = $region28
        $region27: #{tpu_custom_call.1} parent=19 // pred_region
          %s171 = sand.u32 %s16, 1
          %s172 = scalar_lea.sflag [#allocation6], %s171
          %s173 = sand.u32 %s73, 1
          %s174 = smul.addr %s173, 5
          %s175 = scalar_lea.vmem [#allocation7], %s174
          %s176 = smul.u32 5, %s16
          %178 = vsyncadd %s172, 0
          %s179 = scalar_lea.hbm %s2, %s176
          %s181 = sshll.u32 %s179, 4
          %s182 = int_to_ptr.hbm [resolvable:$true] %s181
          %s183 = sshll.u32 %s175, 4
          %s184 = int_to_ptr.vmem [resolvable:$true] %s183
          %186 = dma.hbm_to_vmem [thread:$0]  %s182, 80, %s184, %s172
        $region28: #{tpu_custom_call.1} parent=19 // pred_fallthru
          _
      $region20: #{tpu_custom_call.1} parent=5 // pred_fallthru
        _
      %p187 = scmp.le.s32.totalorder 1, %s16
      %p188 = scmp.lt.s32.totalorder %s16, 6
      %p189 = pnand %p187, %p188
      %p190 = pneg %p189
      // Predicated region
      $region29: #{tpu_custom_call.1} parent=5 // pred_check
        _
      $region30: #{tpu_custom_call.1} parent=5 // pred_check_branch
        %192 = sbr.rel (%p189) target = $region32
      $region31: #{tpu_custom_call.1} parent=5 // pred_region
        %s193 = ssub.s32 %s16, 1
        // Predicated region
        $region33: #{tpu_custom_call.1} parent=31 // pred_check
          %p194 = pneg %p37
        $region34: #{tpu_custom_call.1} parent=31 // pred_check_branch
          %196 = sbr.rel (%p194) target = $region36
        $region35: #{tpu_custom_call.1} parent=31 // pred_region
          %198 = dma.done [#allocation3], 6272
        $region36: #{tpu_custom_call.1} parent=31 // pred_fallthru
          _
        %s199 = sand.u32 %s21, 1
        %s200 = scalar_lea.sflag [#allocation6], %s199
        %s201 = sand.u32 %s50, 1
        %s202 = smul.addr %s201, 31000
        %s203 = scalar_lea.vmem [#allocation5], %s202
        // Predicated region
        $region37: #{tpu_custom_call.1} parent=31 // pred_check
          %p204 = pneg %p63
        $region38: #{tpu_custom_call.1} parent=31 // pred_check_branch
          %206 = sbr.rel (%p204) target = $region40
        $region39: #{tpu_custom_call.1} parent=31 // pred_region
          %208 = dma.done %s200, 496000
        $region40: #{tpu_custom_call.1} parent=31 // pred_fallthru
          _
        %s209 = sand.u32 %s21, 1
        %s210 = scalar_lea.sflag [#allocation6], %s209
        %s211 = sand.u32 %s76, 1
        %s212 = smul.addr %s211, 5
        %s213 = scalar_lea.vmem [#allocation7], %s212
        // Predicated region
        $region41: #{tpu_custom_call.1} parent=31 // pred_check
          %p214 = pneg %p89
        $region42: #{tpu_custom_call.1} parent=31 // pred_check_branch
          %216 = sbr.rel (%p214) target = $region44
        $region43: #{tpu_custom_call.1} parent=31 // pred_region
          %218 = dma.done %s210, 80
        $region44: #{tpu_custom_call.1} parent=31 // pred_fallthru
          _
        %p219 = pneg %p37
        %p220 = pneg %p34
        %s221 = sand.u32 %s21, 1
        %s222 = scalar_lea.sflag [#allocation6], %s221
        %s223 = sand.u32 %s50, 1
        %s224 = smul.addr %s223, 31000
        %s225 = scalar_lea.vmem [#allocation5], %s224
        %p226 = pneg %p63
        %p227 = pneg %p60
        %s228 = sand.u32 %s21, 1
        %s229 = scalar_lea.sflag [#allocation6], %s228
        %s230 = sand.u32 %s76, 1
        %s231 = smul.addr %s230, 5
        %s232 = scalar_lea.vmem [#allocation7], %s231
        %p233 = pneg %p89
        %p234 = pneg %p86
        %p235 = pneg %p115
        %p236 = pneg %p112
        %s237 = sand.u32 %s102, 1
        %s238 = scalar_lea.sflag [#allocation4], %s237
        %s239 = sand.u32 %s102, 1
        %s240 = smul.addr %s239, 40
        %s241 = scalar_lea.vmem [#allocation8], %s240
        %s242 = smul.u32 5, %s21
        %s243 = smul.u32 5, %s21
        %s244 = smul.u32 5, %s21
        %v245 = vld [vmem:[#allocation2] sm:$0xff]
        %v246 = vld [vmem:[#allocation2 + $0x8] sm:$0xff]
        %v247 = vld [vmem:[#allocation2 + $0x10] sm:$0xff]
        %v248 = vld [vmem:[#allocation2 + $0x18] sm:$0xff]
        %v249 = vld [vmem:[#allocation2 + $0x20] sm:$0xff]
        %v250 = vld [vmem:[#allocation2 + $0x28] sm:$0xff]
        %v251 = vld [vmem:[#allocation2 + $0x30] sm:$0xff]
        %v252 = vld [vmem:[#allocation2 + $0x38] sm:$0xff]
        %v253 = vld [vmem:[#allocation2 + $0x40] sm:$0xff]
        %v254 = vld [vmem:[#allocation2 + $0x48] sm:$0xff]
        %v255 = vld [vmem:[#allocation2 + $0x50] sm:$0xff]
        %v256 = vld [vmem:[#allocation2 + $0x58] sm:$0xff]
        %v257 = vld [vmem:[#allocation2 + $0x60] sm:$0xff]
        %v258 = vld [vmem:[#allocation2 + $0x68] sm:$0xff]
        %v259 = vld [vmem:[#allocation2 + $0x70] sm:$0xff]
        %v260 = vld [vmem:[#allocation2 + $0x78] sm:$0xff]
        %v261 = vld [vmem:[#allocation2 + $0x80] sm:$0xff]
        %v262 = vld [vmem:[#allocation2 + $0x88] sm:$0xff]
        %v263 = vld [vmem:[#allocation2 + $0x90] sm:$0xff]
        %v264 = vld [vmem:[#allocation2 + $0x98] sm:$0xff]
        %v265 = vld [vmem:[#allocation2 + $0xa0] sm:$0xff]
        %v266 = vld [vmem:[#allocation2 + $0xa8] sm:$0xff]
        %v267 = vld [vmem:[#allocation2 + $0xb0] sm:$0xff]
        %v268 = vld [vmem:[#allocation2 + $0xb8] sm:$0xff]
        %v269 = vld [vmem:[#allocation2 + $0xc0] sm:$0xff]
        %v270 = vld [vmem:[#allocation2 + $0xc8] sm:$0xff]
        %v271 = vld [vmem:[#allocation2 + $0xd0] sm:$0xff]
        %v272 = vld [vmem:[#allocation2 + $0xd8] sm:$0xff]
        %v273 = vld [vmem:[#allocation2 + $0xe0] sm:$0xff]
        %v274 = vld [vmem:[#allocation2 + $0xe8] sm:$0xff]
        %v275 = vld [vmem:[#allocation2 + $0xf0] sm:$0xff]
        %v276 = vld [vmem:[#allocation2 + $0xf8] sm:$0xff]
        %v277 = vld [vmem:[#allocation2 + $0x100] sm:$0xff]
        %v278 = vld [vmem:[#allocation2 + $0x108] sm:$0xff]
        %v279 = vld [vmem:[#allocation2 + $0x110] sm:$0xff]
        %v280 = vld [vmem:[#allocation2 + $0x118] sm:$0xff]
        %v281 = vld [vmem:[#allocation2 + $0x120] sm:$0xff]
        %v282 = vld [vmem:[#allocation2 + $0x128] sm:$0xff]
        %v283 = vld [vmem:[#allocation2 + $0x130] sm:$0xff]
        %v284 = vld [vmem:[#allocation2 + $0x138] sm:$0xff]
        %v285 = vld [vmem:[#allocation2 + $0x140] sm:$0xff]
        %v286 = vld [vmem:[#allocation2 + $0x148] sm:$0xff]
        %v287 = vld [vmem:[#allocation2 + $0x150] sm:$0xff]
        %v288 = vld [vmem:[#allocation2 + $0x158] sm:$0xff]
        %v289 = vld [vmem:[#allocation2 + $0x160] sm:$0xff]
        %v290 = vld [vmem:[#allocation2 + $0x168] sm:$0xff]
        %v291 = vld [vmem:[#allocation2 + $0x170] sm:$0xff]
        %v292 = vld [vmem:[#allocation2 + $0x178] sm:$0xff]
        %v293 = vld [vmem:[#allocation2 + $0x180] sm:$0xff]
        %v294 = vld [vmem:[%s203] sm:$0xff]
        %v295 = vld [vmem:[%s203 + $0x8] sm:$0xff]
        %v296 = vld [vmem:[%s203 + $0x10] sm:$0xff]
        %v297 = vld [vmem:[%s203 + $0x18] sm:$0xff]
        %v298 = vld [vmem:[%s203 + $0x20] sm:$0xff]
        %v299 = vld [vmem:[%s203 + $0x28] sm:$0xff]
        %v300 = vld [vmem:[%s203 + $0x30] sm:$0xff]
        %v301 = vld [vmem:[%s203 + $0x38] sm:$0xff]
        %v302 = vld [vmem:[%s203 + $0x40] sm:$0xff]
        %v303 = vld [vmem:[%s203 + $0x48] sm:$0xff]
        %v304 = vld [vmem:[%s203 + $0x50] sm:$0xff]
        %v305 = vld [vmem:[%s203 + $0x58] sm:$0xff]
        %v306 = vld [vmem:[%s203 + $0x60] sm:$0xff]
        %v307 = vld [vmem:[%s203 + $0x68] sm:$0xff]
        %v308 = vld [vmem:[%s203 + $0x70] sm:$0xff]
        %v309 = vld [vmem:[%s203 + $0x78] sm:$0xff]
        %v310 = vld [vmem:[%s203 + $0x80] sm:$0xff]
        %v311 = vld [vmem:[%s203 + $0x88] sm:$0xff]
        %v312 = vld [vmem:[%s203 + $0x90] sm:$0xff]
        %v313 = vld [vmem:[%s203 + $0x98] sm:$0xff]
        %v314 = vld [vmem:[%s203 + $0xa0] sm:$0xff]
        %v315 = vld [vmem:[%s203 + $0xa8] sm:$0xff]
        %v316 = vld [vmem:[%s203 + $0xb0] sm:$0xff]
        %v317 = vld [vmem:[%s203 + $0xb8] sm:$0xff]
        %v318 = vld [vmem:[%s203 + $0xc0] sm:$0xff]
        %v319 = vld [vmem:[%s203 + $0xc8] sm:$0xff]
        %v320 = vld [vmem:[%s203 + $0xd0] sm:$0xff]
        %v321 = vld [vmem:[%s203 + $0xd8] sm:$0xff]
        %v322 = vld [vmem:[%s203 + $0xe0] sm:$0xff]
        %v323 = vld [vmem:[%s203 + $0xe8] sm:$0xff]
        %v324 = vld [vmem:[%s203 + $0xf0] sm:$0xff]
        %v325 = vld [vmem:[%s203 + $0xf8] sm:$0xff]
        %v326 = vld [vmem:[%s203 + $0x100] sm:$0xff]
        %v327 = vld [vmem:[%s203 + $0x108] sm:$0xff]
        %v328 = vld [vmem:[%s203 + $0x110] sm:$0xff]
        %v329 = vld [vmem:[%s203 + $0x118] sm:$0xff]
        %v330 = vld [vmem:[%s203 + $0x120] sm:$0xff]
        %v331 = vld [vmem:[%s203 + $0x128] sm:$0xff]
        %v332 = vld [vmem:[%s203 + $0x130] sm:$0xff]
        %v333 = vld [vmem:[%s203 + $0x138] sm:$0xff]
        %v334 = vld [vmem:[%s203 + $0x140] sm:$0xff]
        %v335 = vld [vmem:[%s203 + $0x148] sm:$0xff]
        %v336 = vld [vmem:[%s203 + $0x150] sm:$0xff]
        %v337 = vld [vmem:[%s203 + $0x158] sm:$0xff]
        %v338 = vld [vmem:[%s203 + $0x160] sm:$0xff]
        %v339 = vld [vmem:[%s203 + $0x168] sm:$0xff]
        %v340 = vld [vmem:[%s203 + $0x170] sm:$0xff]
        %v341 = vld [vmem:[%s203 + $0x178] sm:$0xff]
        %v342 = vld [vmem:[%s203 + $0x180] sm:$0xff]
        %v343 = vld [vmem:[%s203 + $0x188] sm:$0xff]
        %v344 = vld [vmem:[%s203 + $0x190] sm:$0xff]
        %v345 = vld [vmem:[%s203 + $0x198] sm:$0xff]
        %v346 = vld [vmem:[%s203 + $0x1a0] sm:$0xff]
        %v347 = vld [vmem:[%s203 + $0x1a8] sm:$0xff]
        %v348 = vld [vmem:[%s203 + $0x1b0] sm:$0xff]
        %v349 = vld [vmem:[%s203 + $0x1b8] sm:$0xff]
        %v350 = vld [vmem:[%s203 + $0x1c0] sm:$0xff]
        %v351 = vld [vmem:[%s203 + $0x1c8] sm:$0xff]
        %v352 = vld [vmem:[%s203 + $0x1d0] sm:$0xff]
        %v353 = vld [vmem:[%s203 + $0x1d8] sm:$0xff]
        %v354 = vld [vmem:[%s203 + $0x1e0] sm:$0xff]
        %v355 = vld [vmem:[%s203 + $0x1e8] sm:$0xff]
        %v356 = vld [vmem:[%s203 + $0x1f0] sm:$0xff]
        %v357 = vld [vmem:[%s203 + $0x1f8] sm:$0xff]
        %v358 = vld [vmem:[%s203 + $0x200] sm:$0xff]
        %v359 = vld [vmem:[%s203 + $0x208] sm:$0xff]
        %v360 = vld [vmem:[%s203 + $0x210] sm:$0xff]
        %v361 = vld [vmem:[%s203 + $0x218] sm:$0xff]
        %v362 = vld [vmem:[%s203 + $0x220] sm:$0xff]
        %v363 = vld [vmem:[%s203 + $0x228] sm:$0xff]
        %v364 = vld [vmem:[%s203 + $0x230] sm:$0xff]
        %v365 = vld [vmem:[%s203 + $0x238] sm:$0xff]
        %v366 = vld [vmem:[%s203 + $0x240] sm:$0xff]
        %v367 = vld [vmem:[%s203 + $0x248] sm:$0xff]
        %v368 = vld [vmem:[%s203 + $0x250] sm:$0xff]
        %v369 = vld [vmem:[%s203 + $0x258] sm:$0xff]
        %v370 = vld [vmem:[%s203 + $0x260] sm:$0xff]
        %v371 = vld [vmem:[%s203 + $0x268] sm:$0xff]
        %v372 = vld [vmem:[%s203 + $0x270] sm:$0xff]
        %v373 = vld [vmem:[%s203 + $0x278] sm:$0xff]
        %v374 = vld [vmem:[%s203 + $0x280] sm:$0xff]
        %v375 = vld [vmem:[%s203 + $0x288] sm:$0xff]
        %v376 = vld [vmem:[%s203 + $0x290] sm:$0xff]
        %v377 = vld [vmem:[%s203 + $0x298] sm:$0xff]
        %v378 = vld [vmem:[%s203 + $0x2a0] sm:$0xff]
        %v379 = vld [vmem:[%s203 + $0x2a8] sm:$0xff]
        %v380 = vld [vmem:[%s203 + $0x2b0] sm:$0xff]
        %v381 = vld [vmem:[%s203 + $0x2b8] sm:$0xff]
        %v382 = vld [vmem:[%s203 + $0x2c0] sm:$0xff]
        %v383 = vld [vmem:[%s203 + $0x2c8] sm:$0xff]
        %v384 = vld [vmem:[%s203 + $0x2d0] sm:$0xff]
        %v385 = vld [vmem:[%s203 + $0x2d8] sm:$0xff]
        %v386 = vld [vmem:[%s203 + $0x2e0] sm:$0xff]
        %v387 = vld [vmem:[%s203 + $0x2e8] sm:$0xff]
        %v388 = vld [vmem:[%s203 + $0x2f0] sm:$0xff]
        %v389 = vld [vmem:[%s203 + $0x2f8] sm:$0xff]
        %v390 = vld [vmem:[%s203 + $0x300] sm:$0xff]
        %v391 = vld [vmem:[%s203 + $0x308] sm:$0xff]
        %v392 = vld [vmem:[%s203 + $0x310] sm:$0xff]
        %v393 = vld [vmem:[%s203 + $0x318] sm:$0xff]
        %v394 = vld [vmem:[%s203 + $0x320] sm:$0xff]
        %v395 = vld [vmem:[%s203 + $0x328] sm:$0xff]
        %v396 = vld [vmem:[%s203 + $0x330] sm:$0xff]
        %v397 = vld [vmem:[%s203 + $0x338] sm:$0xff]
        %v398 = vld [vmem:[%s203 + $0x340] sm:$0xff]
        %v399 = vld [vmem:[%s203 + $0x348] sm:$0xff]
        %v400 = vld [vmem:[%s203 + $0x350] sm:$0xff]
        %v401 = vld [vmem:[%s203 + $0x358] sm:$0xff]
        %v402 = vld [vmem:[%s203 + $0x360] sm:$0xff]
        %v403 = vld [vmem:[%s203 + $0x368] sm:$0xff]
        %v404 = vld [vmem:[%s203 + $0x370] sm:$0xff]
        %v405 = vld [vmem:[%s203 + $0x378] sm:$0xff]
        %v406 = vld [vmem:[%s203 + $0x380] sm:$0xff]
        %v407 = vld [vmem:[%s203 + $0x388] sm:$0xff]
        %v408 = vld [vmem:[%s203 + $0x390] sm:$0xff]
        %v409 = vld [vmem:[%s203 + $0x398] sm:$0xff]
        %v410 = vld [vmem:[%s203 + $0x3a0] sm:$0xff]
        %v411 = vld [vmem:[%s203 + $0x3a8] sm:$0xff]
        %v412 = vld [vmem:[%s203 + $0x3b0] sm:$0xff]
        %v413 = vld [vmem:[%s203 + $0x3b8] sm:$0xff]
        %v414 = vld [vmem:[%s203 + $0x3c0] sm:$0xff]
        %v415 = vld [vmem:[%s203 + $0x3c8] sm:$0xff]
        %v416 = vld [vmem:[%s203 + $0x3d0] sm:$0xff]
        %v417 = vld [vmem:[%s203 + $0x3d8] sm:$0xff]
        %v418 = vld [vmem:[%s203 + $0x3e0] sm:$0xff]
        %v419 = vld [vmem:[%s203 + $0x3e8] sm:$0xff]
        %v420 = vld [vmem:[%s203 + $0x3f0] sm:$0xff]
        %v421 = vld [vmem:[%s203 + $0x3f8] sm:$0xff]
        %v422 = vld [vmem:[%s203 + $0x400] sm:$0xff]
        %v423 = vld [vmem:[%s203 + $0x408] sm:$0xff]
        %v424 = vld [vmem:[%s203 + $0x410] sm:$0xff]
        %v425 = vld [vmem:[%s203 + $0x418] sm:$0xff]
        %v426 = vld [vmem:[%s203 + $0x420] sm:$0xff]
        %v427 = vld [vmem:[%s203 + $0x428] sm:$0xff]
        %v428 = vld [vmem:[%s203 + $0x430] sm:$0xff]
        %v429 = vld [vmem:[%s203 + $0x438] sm:$0xff]
        %v430 = vld [vmem:[%s203 + $0x440] sm:$0xff]
        %v431 = vld [vmem:[%s203 + $0x448] sm:$0xff]
        %v432 = vld [vmem:[%s203 + $0x450] sm:$0xff]
        %v433 = vld [vmem:[%s203 + $0x458] sm:$0xff]
        %v434 = vld [vmem:[%s203 + $0x460] sm:$0xff]
        %v435 = vld [vmem:[%s203 + $0x468] sm:$0xff]
        %v436 = vld [vmem:[%s203 + $0x470] sm:$0xff]
        %v437 = vld [vmem:[%s203 + $0x478] sm:$0xff]
        %v438 = vld [vmem:[%s203 + $0x480] sm:$0xff]
        %v439 = vld [vmem:[%s203 + $0x488] sm:$0xff]
        %v440 = vld [vmem:[%s203 + $0x490] sm:$0xff]
        %v441 = vld [vmem:[%s203 + $0x498] sm:$0xff]
        %v442 = vld [vmem:[%s203 + $0x4a0] sm:$0xff]
        %v443 = vld [vmem:[%s203 + $0x4a8] sm:$0xff]
        %v444 = vld [vmem:[%s203 + $0x4b0] sm:$0xff]
        %v445 = vld [vmem:[%s203 + $0x4b8] sm:$0xff]
        %v446 = vld [vmem:[%s203 + $0x4c0] sm:$0xff]
        %v447 = vld [vmem:[%s203 + $0x4c8] sm:$0xff]
        %v448 = vld [vmem:[%s203 + $0x4d0] sm:$0xff]
        %v449 = vld [vmem:[%s203 + $0x4d8] sm:$0xff]
        %v450 = vld [vmem:[%s203 + $0x4e0] sm:$0xff]
        %v451 = vld [vmem:[%s203 + $0x4e8] sm:$0xff]
        %v452 = vld [vmem:[%s203 + $0x4f0] sm:$0xff]
        %v453 = vld [vmem:[%s203 + $0x4f8] sm:$0xff]
        %v454 = vld [vmem:[%s203 + $0x500] sm:$0xff]
        %v455 = vld [vmem:[%s203 + $0x508] sm:$0xff]
        %v456 = vld [vmem:[%s203 + $0x510] sm:$0xff]
        %v457 = vld [vmem:[%s203 + $0x518] sm:$0xff]
        %v458 = vld [vmem:[%s203 + $0x520] sm:$0xff]
        %v459 = vld [vmem:[%s203 + $0x528] sm:$0xff]
        %v460 = vld [vmem:[%s203 + $0x530] sm:$0xff]
        %v461 = vld [vmem:[%s203 + $0x538] sm:$0xff]
        %v462 = vld [vmem:[%s203 + $0x540] sm:$0xff]
        %v463 = vld [vmem:[%s203 + $0x548] sm:$0xff]
        %v464 = vld [vmem:[%s203 + $0x550] sm:$0xff]
        %v465 = vld [vmem:[%s203 + $0x558] sm:$0xff]
        %v466 = vld [vmem:[%s203 + $0x560] sm:$0xff]
        %v467 = vld [vmem:[%s203 + $0x568] sm:$0xff]
        %v468 = vld [vmem:[%s203 + $0x570] sm:$0xff]
        %v469 = vld [vmem:[%s203 + $0x578] sm:$0xff]
        %v470 = vld [vmem:[%s203 + $0x580] sm:$0xff]
        %v471 = vld [vmem:[%s203 + $0x588] sm:$0xff]
        %v472 = vld [vmem:[%s203 + $0x590] sm:$0xff]
        %v473 = vld [vmem:[%s203 + $0x598] sm:$0xff]
        %v474 = vld [vmem:[%s203 + $0x5a0] sm:$0xff]
        %v475 = vld [vmem:[%s203 + $0x5a8] sm:$0xff]
        %v476 = vld [vmem:[%s203 + $0x5b0] sm:$0xff]
        %v477 = vld [vmem:[%s203 + $0x5b8] sm:$0xff]
        %v478 = vld [vmem:[%s203 + $0x5c0] sm:$0xff]
        %v479 = vld [vmem:[%s203 + $0x5c8] sm:$0xff]
        %v480 = vld [vmem:[%s203 + $0x5d0] sm:$0xff]
        %v481 = vld [vmem:[%s203 + $0x5d8] sm:$0xff]
        %v482 = vld [vmem:[%s203 + $0x5e0] sm:$0xff]
        %v483 = vld [vmem:[%s203 + $0x5e8] sm:$0xff]
        %v484 = vld [vmem:[%s203 + $0x5f0] sm:$0xff]
        %v485 = vld [vmem:[%s203 + $0x5f8] sm:$0xff]
        %v486 = vld [vmem:[%s203 + $0x600] sm:$0xff]
        %v487 = vld [vmem:[%s203 + $0x608] sm:$0xff]
        %v488 = vld [vmem:[%s203 + $0x610] sm:$0xff]
        %v489 = vld [vmem:[%s203 + $0x618] sm:$0xff]
        %v490 = vld [vmem:[%s203 + $0x620] sm:$0xff]
        %v491 = vld [vmem:[%s203 + $0x628] sm:$0xff]
        %v492 = vld [vmem:[%s203 + $0x630] sm:$0xff]
        %v493 = vld [vmem:[%s203 + $0x638] sm:$0xff]
        %v494 = vld [vmem:[%s203 + $0x640] sm:$0xff]
        %v495 = vld [vmem:[%s203 + $0x648] sm:$0xff]
        %v496 = vld [vmem:[%s203 + $0x650] sm:$0xff]
        %v497 = vld [vmem:[%s203 + $0x658] sm:$0xff]
        %v498 = vld [vmem:[%s203 + $0x660] sm:$0xff]
        %v499 = vld [vmem:[%s203 + $0x668] sm:$0xff]
        %v500 = vld [vmem:[%s203 + $0x670] sm:$0xff]
        %v501 = vld [vmem:[%s203 + $0x678] sm:$0xff]
        %v502 = vld [vmem:[%s203 + $0x680] sm:$0xff]
        %v503 = vld [vmem:[%s203 + $0x688] sm:$0xff]
        %v504 = vld [vmem:[%s203 + $0x690] sm:$0xff]
        %v505 = vld [vmem:[%s203 + $0x698] sm:$0xff]
        %v506 = vld [vmem:[%s203 + $0x6a0] sm:$0xff]
        %v507 = vld [vmem:[%s203 + $0x6a8] sm:$0xff]
        %v508 = vld [vmem:[%s203 + $0x6b0] sm:$0xff]
        %v509 = vld [vmem:[%s203 + $0x6b8] sm:$0xff]
        %v510 = vld [vmem:[%s203 + $0x6c0] sm:$0xff]
        %v511 = vld [vmem:[%s203 + $0x6c8] sm:$0xff]
        %v512 = vld [vmem:[%s203 + $0x6d0] sm:$0xff]
        %v513 = vld [vmem:[%s203 + $0x6d8] sm:$0xff]
        %v514 = vld [vmem:[%s203 + $0x6e0] sm:$0xff]
        %v515 = vld [vmem:[%s203 + $0x6e8] sm:$0xff]
        %v516 = vld [vmem:[%s203 + $0x6f0] sm:$0xff]
        %v517 = vld [vmem:[%s203 + $0x6f8] sm:$0xff]
        %v518 = vld [vmem:[%s203 + $0x700] sm:$0xff]
        %v519 = vld [vmem:[%s203 + $0x708] sm:$0xff]
        %v520 = vld [vmem:[%s203 + $0x710] sm:$0xff]
        %v521 = vld [vmem:[%s203 + $0x718] sm:$0xff]
        %v522 = vld [vmem:[%s203 + $0x720] sm:$0xff]
        %v523 = vld [vmem:[%s203 + $0x728] sm:$0xff]
        %v524 = vld [vmem:[%s203 + $0x730] sm:$0xff]
        %v525 = vld [vmem:[%s203 + $0x738] sm:$0xff]
        %v526 = vld [vmem:[%s203 + $0x740] sm:$0xff]
        %v527 = vld [vmem:[%s203 + $0x748] sm:$0xff]
        %v528 = vld [vmem:[%s203 + $0x750] sm:$0xff]
        %v529 = vld [vmem:[%s203 + $0x758] sm:$0xff]
        %v530 = vld [vmem:[%s203 + $0x760] sm:$0xff]
        %v531 = vld [vmem:[%s203 + $0x768] sm:$0xff]
        %v532 = vld [vmem:[%s203 + $0x770] sm:$0xff]
        %v533 = vld [vmem:[%s203 + $0x778] sm:$0xff]
        %v534 = vld [vmem:[%s203 + $0x780] sm:$0xff]
        %v535 = vld [vmem:[%s203 + $0x788] sm:$0xff]
        %v536 = vld [vmem:[%s203 + $0x790] sm:$0xff]
        %v537 = vld [vmem:[%s203 + $0x798] sm:$0xff]
        %v538 = vld [vmem:[%s203 + $0x7a0] sm:$0xff]
        %v539 = vld [vmem:[%s203 + $0x7a8] sm:$0xff]
        %v540 = vld [vmem:[%s203 + $0x7b0] sm:$0xff]
        %v541 = vld [vmem:[%s203 + $0x7b8] sm:$0xff]
        %v542 = vld [vmem:[%s203 + $0x7c0] sm:$0xff]
        %v543 = vld [vmem:[%s203 + $0x7c8] sm:$0xff]
        %v544 = vld [vmem:[%s203 + $0x7d0] sm:$0xff]
        %v545 = vld [vmem:[%s203 + $0x7d8] sm:$0xff]
        %v546 = vld [vmem:[%s203 + $0x7e0] sm:$0xff]
        %v547 = vld [vmem:[%s203 + $0x7e8] sm:$0xff]
        %v548 = vld [vmem:[%s203 + $0x7f0] sm:$0xff]
        %v549 = vld [vmem:[%s203 + $0x7f8] sm:$0xff]
        %v550 = vld [vmem:[%s203 + $0x800] sm:$0xff]
        %v551 = vld [vmem:[%s203 + $0x808] sm:$0xff]
        %v552 = vld [vmem:[%s203 + $0x810] sm:$0xff]
        %v553 = vld [vmem:[%s203 + $0x818] sm:$0xff]
        %v554 = vld [vmem:[%s203 + $0x820] sm:$0xff]
        %v555 = vld [vmem:[%s203 + $0x828] sm:$0xff]
        %v556 = vld [vmem:[%s203 + $0x830] sm:$0xff]
        %v557 = vld [vmem:[%s203 + $0x838] sm:$0xff]
        %v558 = vld [vmem:[%s203 + $0x840] sm:$0xff]
        %v559 = vld [vmem:[%s203 + $0x848] sm:$0xff]
        %v560 = vld [vmem:[%s203 + $0x850] sm:$0xff]
        %v561 = vld [vmem:[%s203 + $0x858] sm:$0xff]
        %v562 = vld [vmem:[%s203 + $0x860] sm:$0xff]
        %v563 = vld [vmem:[%s203 + $0x868] sm:$0xff]
        %v564 = vld [vmem:[%s203 + $0x870] sm:$0xff]
        %v565 = vld [vmem:[%s203 + $0x878] sm:$0xff]
        %v566 = vld [vmem:[%s203 + $0x880] sm:$0xff]
        %v567 = vld [vmem:[%s203 + $0x888] sm:$0xff]
        %v568 = vld [vmem:[%s203 + $0x890] sm:$0xff]
        %v569 = vld [vmem:[%s203 + $0x898] sm:$0xff]
        %v570 = vld [vmem:[%s203 + $0x8a0] sm:$0xff]
        %v571 = vld [vmem:[%s203 + $0x8a8] sm:$0xff]
        %v572 = vld [vmem:[%s203 + $0x8b0] sm:$0xff]
        %v573 = vld [vmem:[%s203 + $0x8b8] sm:$0xff]
        %v574 = vld [vmem:[%s203 + $0x8c0] sm:$0xff]
        %v575 = vld [vmem:[%s203 + $0x8c8] sm:$0xff]
        %v576 = vld [vmem:[%s203 + $0x8d0] sm:$0xff]
        %v577 = vld [vmem:[%s203 + $0x8d8] sm:$0xff]
        %v578 = vld [vmem:[%s203 + $0x8e0] sm:$0xff]
        %v579 = vld [vmem:[%s203 + $0x8e8] sm:$0xff]
        %v580 = vld [vmem:[%s203 + $0x8f0] sm:$0xff]
        %v581 = vld [vmem:[%s203 + $0x8f8] sm:$0xff]
        %v582 = vld [vmem:[%s203 + $0x900] sm:$0xff]
        %v583 = vld [vmem:[%s203 + $0x908] sm:$0xff]
        %v584 = vld [vmem:[%s203 + $0x910] sm:$0xff]
        %v585 = vld [vmem:[%s203 + $0x918] sm:$0xff]
        %v586 = vld [vmem:[%s203 + $0x920] sm:$0xff]
        %v587 = vld [vmem:[%s203 + $0x928] sm:$0xff]
        %v588 = vld [vmem:[%s203 + $0x930] sm:$0xff]
        %v589 = vld [vmem:[%s203 + $0x938] sm:$0xff]
        %v590 = vld [vmem:[%s203 + $0x940] sm:$0xff]
        %v591 = vld [vmem:[%s203 + $0x948] sm:$0xff]
        %v592 = vld [vmem:[%s203 + $0x950] sm:$0xff]
        %v593 = vld [vmem:[%s203 + $0x958] sm:$0xff]
        %v594 = vld [vmem:[%s203 + $0x960] sm:$0xff]
        %v595 = vld [vmem:[%s203 + $0x968] sm:$0xff]
        %v596 = vld [vmem:[%s203 + $0x970] sm:$0xff]
        %v597 = vld [vmem:[%s203 + $0x978] sm:$0xff]
        %v598 = vld [vmem:[%s203 + $0x980] sm:$0xff]
        %v599 = vld [vmem:[%s203 + $0x988] sm:$0xff]
        %v600 = vld [vmem:[%s203 + $0x990] sm:$0xff]
        %v601 = vld [vmem:[%s203 + $0x998] sm:$0xff]
        %v602 = vld [vmem:[%s203 + $0x9a0] sm:$0xff]
        %v603 = vld [vmem:[%s203 + $0x9a8] sm:$0xff]
        %v604 = vld [vmem:[%s203 + $0x9b0] sm:$0xff]
        %v605 = vld [vmem:[%s203 + $0x9b8] sm:$0xff]
        %v606 = vld [vmem:[%s203 + $0x9c0] sm:$0xff]
        %v607 = vld [vmem:[%s203 + $0x9c8] sm:$0xff]
        %v608 = vld [vmem:[%s203 + $0x9d0] sm:$0xff]
        %v609 = vld [vmem:[%s203 + $0x9d8] sm:$0xff]
        %v610 = vld [vmem:[%s203 + $0x9e0] sm:$0xff]
        %v611 = vld [vmem:[%s203 + $0x9e8] sm:$0xff]
        %v612 = vld [vmem:[%s203 + $0x9f0] sm:$0xff]
        %v613 = vld [vmem:[%s203 + $0x9f8] sm:$0xff]
        %v614 = vld [vmem:[%s203 + $0xa00] sm:$0xff]
        %v615 = vld [vmem:[%s203 + $0xa08] sm:$0xff]
        %v616 = vld [vmem:[%s203 + $0xa10] sm:$0xff]
        %v617 = vld [vmem:[%s203 + $0xa18] sm:$0xff]
        %v618 = vld [vmem:[%s203 + $0xa20] sm:$0xff]
        %v619 = vld [vmem:[%s203 + $0xa28] sm:$0xff]
        %v620 = vld [vmem:[%s203 + $0xa30] sm:$0xff]
        %v621 = vld [vmem:[%s203 + $0xa38] sm:$0xff]
        %v622 = vld [vmem:[%s203 + $0xa40] sm:$0xff]
        %v623 = vld [vmem:[%s203 + $0xa48] sm:$0xff]
        %v624 = vld [vmem:[%s203 + $0xa50] sm:$0xff]
        %v625 = vld [vmem:[%s203 + $0xa58] sm:$0xff]
        %v626 = vld [vmem:[%s203 + $0xa60] sm:$0xff]
        %v627 = vld [vmem:[%s203 + $0xa68] sm:$0xff]
        %v628 = vld [vmem:[%s203 + $0xa70] sm:$0xff]
        %v629 = vld [vmem:[%s203 + $0xa78] sm:$0xff]
        %v630 = vld [vmem:[%s203 + $0xa80] sm:$0xff]
        %v631 = vld [vmem:[%s203 + $0xa88] sm:$0xff]
        %v632 = vld [vmem:[%s203 + $0xa90] sm:$0xff]
        %v633 = vld [vmem:[%s203 + $0xa98] sm:$0xff]
        %v634 = vld [vmem:[%s203 + $0xaa0] sm:$0xff]
        %v635 = vld [vmem:[%s203 + $0xaa8] sm:$0xff]
        %v636 = vld [vmem:[%s203 + $0xab0] sm:$0xff]
        %v637 = vld [vmem:[%s203 + $0xab8] sm:$0xff]
        %v638 = vld [vmem:[%s203 + $0xac0] sm:$0xff]
        %v639 = vld [vmem:[%s203 + $0xac8] sm:$0xff]
        %v640 = vld [vmem:[%s203 + $0xad0] sm:$0xff]
        %v641 = vld [vmem:[%s203 + $0xad8] sm:$0xff]
        %v642 = vld [vmem:[%s203 + $0xae0] sm:$0xff]
        %v643 = vld [vmem:[%s203 + $0xae8] sm:$0xff]
        %v644 = vld [vmem:[%s203 + $0xaf0] sm:$0xff]
        %v645 = vld [vmem:[%s203 + $0xaf8] sm:$0xff]
        %v646 = vld [vmem:[%s203 + $0xb00] sm:$0xff]
        %v647 = vld [vmem:[%s203 + $0xb08] sm:$0xff]
        %v648 = vld [vmem:[%s203 + $0xb10] sm:$0xff]
        %v649 = vld [vmem:[%s203 + $0xb18] sm:$0xff]
        %v650 = vld [vmem:[%s203 + $0xb20] sm:$0xff]
        %v651 = vld [vmem:[%s203 + $0xb28] sm:$0xff]
        %v652 = vld [vmem:[%s203 + $0xb30] sm:$0xff]
        %v653 = vld [vmem:[%s203 + $0xb38] sm:$0xff]
        %v654 = vld [vmem:[%s203 + $0xb40] sm:$0xff]
        %v655 = vld [vmem:[%s203 + $0xb48] sm:$0xff]
        %v656 = vld [vmem:[%s203 + $0xb50] sm:$0xff]
        %v657 = vld [vmem:[%s203 + $0xb58] sm:$0xff]
        %v658 = vld [vmem:[%s203 + $0xb60] sm:$0xff]
        %v659 = vld [vmem:[%s203 + $0xb68] sm:$0xff]
        %v660 = vld [vmem:[%s203 + $0xb70] sm:$0xff]
        %v661 = vld [vmem:[%s203 + $0xb78] sm:$0xff]
        %v662 = vld [vmem:[%s203 + $0xb80] sm:$0xff]
        %v663 = vld [vmem:[%s203 + $0xb88] sm:$0xff]
        %v664 = vld [vmem:[%s203 + $0xb90] sm:$0xff]
        %v665 = vld [vmem:[%s203 + $0xb98] sm:$0xff]
        %v666 = vld [vmem:[%s203 + $0xba0] sm:$0xff]
        %v667 = vld [vmem:[%s203 + $0xba8] sm:$0xff]
        %v668 = vld [vmem:[%s203 + $0xbb0] sm:$0xff]
        %v669 = vld [vmem:[%s203 + $0xbb8] sm:$0xff]
        %v670 = vld [vmem:[%s203 + $0xbc0] sm:$0xff]
        %v671 = vld [vmem:[%s203 + $0xbc8] sm:$0xff]
        %v672 = vld [vmem:[%s203 + $0xbd0] sm:$0xff]
        %v673 = vld [vmem:[%s203 + $0xbd8] sm:$0xff]
        %v674 = vld [vmem:[%s203 + $0xbe0] sm:$0xff]
        %v675 = vld [vmem:[%s203 + $0xbe8] sm:$0xff]
        %v676 = vld [vmem:[%s203 + $0xbf0] sm:$0xff]
        %v677 = vld [vmem:[%s203 + $0xbf8] sm:$0xff]
        %v678 = vld [vmem:[%s203 + $0xc00] sm:$0xff]
        %v679 = vld [vmem:[%s203 + $0xc08] sm:$0xff]
        %v680 = vld [vmem:[%s203 + $0xc10] sm:$0xff]
        %v681 = vld [vmem:[%s203 + $0xc18] sm:$0xff]
        %v682 = vld [vmem:[%s203 + $0xc20] sm:$0xff]
        %v683 = vld [vmem:[%s203 + $0xc28] sm:$0xff]
        %v684 = vld [vmem:[%s203 + $0xc30] sm:$0xff]
        %v685 = vld [vmem:[%s203 + $0xc38] sm:$0xff]
        %v686 = vld [vmem:[%s203 + $0xc40] sm:$0xff]
        %v687 = vld [vmem:[%s203 + $0xc48] sm:$0xff]
        %v688 = vld [vmem:[%s203 + $0xc50] sm:$0xff]
        %v689 = vld [vmem:[%s203 + $0xc58] sm:$0xff]
        %v690 = vld [vmem:[%s203 + $0xc60] sm:$0xff]
        %v691 = vld [vmem:[%s203 + $0xc68] sm:$0xff]
        %v692 = vld [vmem:[%s203 + $0xc70] sm:$0xff]
        %v693 = vld [vmem:[%s203 + $0xc78] sm:$0xff]
        %v694 = vld [vmem:[%s203 + $0xc80] sm:$0xff]
        %v695 = vld [vmem:[%s203 + $0xc88] sm:$0xff]
        %v696 = vld [vmem:[%s203 + $0xc90] sm:$0xff]
        %v697 = vld [vmem:[%s203 + $0xc98] sm:$0xff]
        %v698 = vld [vmem:[%s203 + $0xca0] sm:$0xff]
        %v699 = vld [vmem:[%s203 + $0xca8] sm:$0xff]
        %v700 = vld [vmem:[%s203 + $0xcb0] sm:$0xff]
        %v701 = vld [vmem:[%s203 + $0xcb8] sm:$0xff]
        %v702 = vld [vmem:[%s203 + $0xcc0] sm:$0xff]
        %v703 = vld [vmem:[%s203 + $0xcc8] sm:$0xff]
        %v704 = vld [vmem:[%s203 + $0xcd0] sm:$0xff]
        %v705 = vld [vmem:[%s203 + $0xcd8] sm:$0xff]
        %v706 = vld [vmem:[%s203 + $0xce0] sm:$0xff]
        %v707 = vld [vmem:[%s203 + $0xce8] sm:$0xff]
        %v708 = vld [vmem:[%s203 + $0xcf0] sm:$0xff]
        %v709 = vld [vmem:[%s203 + $0xcf8] sm:$0xff]
        %v710 = vld [vmem:[%s203 + $0xd00] sm:$0xff]
        %v711 = vld [vmem:[%s203 + $0xd08] sm:$0xff]
        %v712 = vld [vmem:[%s203 + $0xd10] sm:$0xff]
        %v713 = vld [vmem:[%s203 + $0xd18] sm:$0xff]
        %v714 = vld [vmem:[%s203 + $0xd20] sm:$0xff]
        %v715 = vld [vmem:[%s203 + $0xd28] sm:$0xff]
        %v716 = vld [vmem:[%s203 + $0xd30] sm:$0xff]
        %v717 = vld [vmem:[%s203 + $0xd38] sm:$0xff]
        %v718 = vld [vmem:[%s203 + $0xd40] sm:$0xff]
        %v719 = vld [vmem:[%s203 + $0xd48] sm:$0xff]
        %v720 = vld [vmem:[%s203 + $0xd50] sm:$0xff]
        %v721 = vld [vmem:[%s203 + $0xd58] sm:$0xff]
        %v722 = vld [vmem:[%s203 + $0xd60] sm:$0xff]
        %v723 = vld [vmem:[%s203 + $0xd68] sm:$0xff]
        %v724 = vld [vmem:[%s203 + $0xd70] sm:$0xff]
        %v725 = vld [vmem:[%s203 + $0xd78] sm:$0xff]
        %v726 = vld [vmem:[%s203 + $0xd80] sm:$0xff]
        %v727 = vld [vmem:[%s203 + $0xd88] sm:$0xff]
        %v728 = vld [vmem:[%s203 + $0xd90] sm:$0xff]
        %v729 = vld [vmem:[%s203 + $0xd98] sm:$0xff]
        %v730 = vld [vmem:[%s203 + $0xda0] sm:$0xff]
        %v731 = vld [vmem:[%s203 + $0xda8] sm:$0xff]
        %v732 = vld [vmem:[%s203 + $0xdb0] sm:$0xff]
        %v733 = vld [vmem:[%s203 + $0xdb8] sm:$0xff]
        %v734 = vld [vmem:[%s203 + $0xdc0] sm:$0xff]
        %v735 = vld [vmem:[%s203 + $0xdc8] sm:$0xff]
        %v736 = vld [vmem:[%s203 + $0xdd0] sm:$0xff]
        %v737 = vld [vmem:[%s203 + $0xdd8] sm:$0xff]
        %v738 = vld [vmem:[%s203 + $0xde0] sm:$0xff]
        %v739 = vld [vmem:[%s203 + $0xde8] sm:$0xff]
        %v740 = vld [vmem:[%s203 + $0xdf0] sm:$0xff]
        %v741 = vld [vmem:[%s203 + $0xdf8] sm:$0xff]
        %v742 = vld [vmem:[%s203 + $0xe00] sm:$0xff]
        %v743 = vld [vmem:[%s203 + $0xe08] sm:$0xff]
        %v744 = vld [vmem:[%s203 + $0xe10] sm:$0xff]
        %v745 = vld [vmem:[%s203 + $0xe18] sm:$0xff]
        %v746 = vld [vmem:[%s203 + $0xe20] sm:$0xff]
        %v747 = vld [vmem:[%s203 + $0xe28] sm:$0xff]
        %v748 = vld [vmem:[%s203 + $0xe30] sm:$0xff]
        %v749 = vld [vmem:[%s203 + $0xe38] sm:$0xff]
        %v750 = vld [vmem:[%s203 + $0xe40] sm:$0xff]
        %v751 = vld [vmem:[%s203 + $0xe48] sm:$0xff]
        %v752 = vld [vmem:[%s203 + $0xe50] sm:$0xff]
        %v753 = vld [vmem:[%s203 + $0xe58] sm:$0xff]
        %v754 = vld [vmem:[%s203 + $0xe60] sm:$0xff]
        %v755 = vld [vmem:[%s203 + $0xe68] sm:$0xff]
        %v756 = vld [vmem:[%s203 + $0xe70] sm:$0xff]
        %v757 = vld [vmem:[%s203 + $0xe78] sm:$0xff]
        %v758 = vld [vmem:[%s203 + $0xe80] sm:$0xff]
        %v759 = vld [vmem:[%s203 + $0xe88] sm:$0xff]
        %v760 = vld [vmem:[%s203 + $0xe90] sm:$0xff]
        %v761 = vld [vmem:[%s203 + $0xe98] sm:$0xff]
        %v762 = vld [vmem:[%s203 + $0xea0] sm:$0xff]
        %v763 = vld [vmem:[%s203 + $0xea8] sm:$0xff]
        %v764 = vld [vmem:[%s203 + $0xeb0] sm:$0xff]
        %v765 = vld [vmem:[%s203 + $0xeb8] sm:$0xff]
        %v766 = vld [vmem:[%s203 + $0xec0] sm:$0xff]
        %v767 = vld [vmem:[%s203 + $0xec8] sm:$0xff]
        %v768 = vld [vmem:[%s203 + $0xed0] sm:$0xff]
        %v769 = vld [vmem:[%s203 + $0xed8] sm:$0xff]
        %v770 = vld [vmem:[%s203 + $0xee0] sm:$0xff]
        %v771 = vld [vmem:[%s203 + $0xee8] sm:$0xff]
        %v772 = vld [vmem:[%s203 + $0xef0] sm:$0xff]
        %v773 = vld [vmem:[%s203 + $0xef8] sm:$0xff]
        %v774 = vld [vmem:[%s203 + $0xf00] sm:$0xff]
        %v775 = vld [vmem:[%s203 + $0xf08] sm:$0xff]
        %v776 = vld [vmem:[%s203 + $0xf10] sm:$0xff]
        %v777 = vld [vmem:[%s203 + $0xf18] sm:$0xff]
        %v778 = vld [vmem:[%s203 + $0xf20] sm:$0xff]
        %v779 = vld [vmem:[%s203 + $0xf28] sm:$0xff]
        %v780 = vld [vmem:[%s203 + $0xf30] sm:$0xff]
        %v781 = vld [vmem:[%s203 + $0xf38] sm:$0xff]
        %v782 = vld [vmem:[%s203 + $0xf40] sm:$0xff]
        %v783 = vld [vmem:[%s203 + $0xf48] sm:$0xff]
        %v784 = vld [vmem:[%s203 + $0xf50] sm:$0xff]
        %v785 = vld [vmem:[%s203 + $0xf58] sm:$0xff]
        %v786 = vld [vmem:[%s203 + $0xf60] sm:$0xff]
        %v787 = vld [vmem:[%s203 + $0xf68] sm:$0xff]
        %v788 = vld [vmem:[%s203 + $0xf70] sm:$0xff]
        %v789 = vld [vmem:[%s203 + $0xf78] sm:$0xff]
        %v790 = vld [vmem:[%s203 + $0xf80] sm:$0xff]
        %v791 = vld [vmem:[%s203 + $0xf88] sm:$0xff]
        %v792 = vld [vmem:[%s203 + $0xf90] sm:$0xff]
        %v793 = vld [vmem:[%s203 + $0xf98] sm:$0xff]
        %v794 = vld [vmem:[%s203 + $0xfa0] sm:$0xff]
        %v795 = vld [vmem:[%s203 + $0xfa8] sm:$0xff]
        %v796 = vld [vmem:[%s203 + $0xfb0] sm:$0xff]
        %v797 = vld [vmem:[%s203 + $0xfb8] sm:$0xff]
        %v798 = vld [vmem:[%s203 + $0xfc0] sm:$0xff]
        %v799 = vld [vmem:[%s203 + $0xfc8] sm:$0xff]
        %v800 = vld [vmem:[%s203 + $0xfd0] sm:$0xff]
        %v801 = vld [vmem:[%s203 + $0xfd8] sm:$0xff]
        %v802 = vld [vmem:[%s203 + $0xfe0] sm:$0xff]
        %v803 = vld [vmem:[%s203 + $0xfe8] sm:$0xff]
        %v804 = vld [vmem:[%s203 + $0xff0] sm:$0xff]
        %v805 = vld [vmem:[%s203 + $0xff8] sm:$0xff]
        %v806 = vld [vmem:[%s203 + $0x1000] sm:$0xff]
        %v807 = vld [vmem:[%s203 + $0x1008] sm:$0xff]
        %v808 = vld [vmem:[%s203 + $0x1010] sm:$0xff]
        %v809 = vld [vmem:[%s203 + $0x1018] sm:$0xff]
        %v810 = vld [vmem:[%s203 + $0x1020] sm:$0xff]
        %v811 = vld [vmem:[%s203 + $0x1028] sm:$0xff]
        %v812 = vld [vmem:[%s203 + $0x1030] sm:$0xff]
        %v813 = vld [vmem:[%s203 + $0x1038] sm:$0xff]
        %v814 = vld [vmem:[%s203 + $0x1040] sm:$0xff]
        %v815 = vld [vmem:[%s203 + $0x1048] sm:$0xff]
        %v816 = vld [vmem:[%s203 + $0x1050] sm:$0xff]
        %v817 = vld [vmem:[%s203 + $0x1058] sm:$0xff]
        %v818 = vld [vmem:[%s203 + $0x1060] sm:$0xff]
        %v819 = vld [vmem:[%s203 + $0x1068] sm:$0xff]
        %v820 = vld [vmem:[%s203 + $0x1070] sm:$0xff]
        %v821 = vld [vmem:[%s203 + $0x1078] sm:$0xff]
        %v822 = vld [vmem:[%s203 + $0x1080] sm:$0xff]
        %v823 = vld [vmem:[%s203 + $0x1088] sm:$0xff]
        %v824 = vld [vmem:[%s203 + $0x1090] sm:$0xff]
        %v825 = vld [vmem:[%s203 + $0x1098] sm:$0xff]
        %v826 = vld [vmem:[%s203 + $0x10a0] sm:$0xff]
        %v827 = vld [vmem:[%s203 + $0x10a8] sm:$0xff]
        %v828 = vld [vmem:[%s203 + $0x10b0] sm:$0xff]
        %v829 = vld [vmem:[%s203 + $0x10b8] sm:$0xff]
        %v830 = vld [vmem:[%s203 + $0x10c0] sm:$0xff]
        %v831 = vld [vmem:[%s203 + $0x10c8] sm:$0xff]
        %v832 = vld [vmem:[%s203 + $0x10d0] sm:$0xff]
        %v833 = vld [vmem:[%s203 + $0x10d8] sm:$0xff]
        %v834 = vld [vmem:[%s203 + $0x10e0] sm:$0xff]
        %v835 = vld [vmem:[%s203 + $0x10e8] sm:$0xff]
        %v836 = vld [vmem:[%s203 + $0x10f0] sm:$0xff]
        %v837 = vld [vmem:[%s203 + $0x10f8] sm:$0xff]
        %v838 = vld [vmem:[%s203 + $0x1100] sm:$0xff]
        %v839 = vld [vmem:[%s203 + $0x1108] sm:$0xff]
        %v840 = vld [vmem:[%s203 + $0x1110] sm:$0xff]
        %v841 = vld [vmem:[%s203 + $0x1118] sm:$0xff]
        %v842 = vld [vmem:[%s203 + $0x1120] sm:$0xff]
        %v843 = vld [vmem:[%s203 + $0x1128] sm:$0xff]
        %v844 = vld [vmem:[%s203 + $0x1130] sm:$0xff]
        %v845 = vld [vmem:[%s203 + $0x1138] sm:$0xff]
        %v846 = vld [vmem:[%s203 + $0x1140] sm:$0xff]
        %v847 = vld [vmem:[%s203 + $0x1148] sm:$0xff]
        %v848 = vld [vmem:[%s203 + $0x1150] sm:$0xff]
        %v849 = vld [vmem:[%s203 + $0x1158] sm:$0xff]
        %v850 = vld [vmem:[%s203 + $0x1160] sm:$0xff]
        %v851 = vld [vmem:[%s203 + $0x1168] sm:$0xff]
        %v852 = vld [vmem:[%s203 + $0x1170] sm:$0xff]
        %v853 = vld [vmem:[%s203 + $0x1178] sm:$0xff]
        %v854 = vld [vmem:[%s203 + $0x1180] sm:$0xff]
        %v855 = vld [vmem:[%s203 + $0x1188] sm:$0xff]
        %v856 = vld [vmem:[%s203 + $0x1190] sm:$0xff]
        %v857 = vld [vmem:[%s203 + $0x1198] sm:$0xff]
        %v858 = vld [vmem:[%s203 + $0x11a0] sm:$0xff]
        %v859 = vld [vmem:[%s203 + $0x11a8] sm:$0xff]
        %v860 = vld [vmem:[%s203 + $0x11b0] sm:$0xff]
        %v861 = vld [vmem:[%s203 + $0x11b8] sm:$0xff]
        %v862 = vld [vmem:[%s203 + $0x11c0] sm:$0xff]
        %v863 = vld [vmem:[%s203 + $0x11c8] sm:$0xff]
        %v864 = vld [vmem:[%s203 + $0x11d0] sm:$0xff]
        %v865 = vld [vmem:[%s203 + $0x11d8] sm:$0xff]
        %v866 = vld [vmem:[%s203 + $0x11e0] sm:$0xff]
        %v867 = vld [vmem:[%s203 + $0x11e8] sm:$0xff]
        %v868 = vld [vmem:[%s203 + $0x11f0] sm:$0xff]
        %v869 = vld [vmem:[%s203 + $0x11f8] sm:$0xff]
        %v870 = vld [vmem:[%s203 + $0x1200] sm:$0xff]
        %v871 = vld [vmem:[%s203 + $0x1208] sm:$0xff]
        %v872 = vld [vmem:[%s203 + $0x1210] sm:$0xff]
        %v873 = vld [vmem:[%s203 + $0x1218] sm:$0xff]
        %v874 = vld [vmem:[%s203 + $0x1220] sm:$0xff]
        %v875 = vld [vmem:[%s203 + $0x1228] sm:$0xff]
        %v876 = vld [vmem:[%s203 + $0x1230] sm:$0xff]
        %v877 = vld [vmem:[%s203 + $0x1238] sm:$0xff]
        %v878 = vld [vmem:[%s203 + $0x1240] sm:$0xff]
        %v879 = vld [vmem:[%s203 + $0x1248] sm:$0xff]
        %v880 = vld [vmem:[%s203 + $0x1250] sm:$0xff]
        %v881 = vld [vmem:[%s203 + $0x1258] sm:$0xff]
        %v882 = vld [vmem:[%s203 + $0x1260] sm:$0xff]
        %v883 = vld [vmem:[%s203 + $0x1268] sm:$0xff]
        %v884 = vld [vmem:[%s203 + $0x1270] sm:$0xff]
        %v885 = vld [vmem:[%s203 + $0x1278] sm:$0xff]
        %v886 = vld [vmem:[%s203 + $0x1280] sm:$0xff]
        %v887 = vld [vmem:[%s203 + $0x1288] sm:$0xff]
        %v888 = vld [vmem:[%s203 + $0x1290] sm:$0xff]
        %v889 = vld [vmem:[%s203 + $0x1298] sm:$0xff]
        %v890 = vld [vmem:[%s203 + $0x12a0] sm:$0xff]
        %v891 = vld [vmem:[%s203 + $0x12a8] sm:$0xff]
        %v892 = vld [vmem:[%s203 + $0x12b0] sm:$0xff]
        %v893 = vld [vmem:[%s203 + $0x12b8] sm:$0xff]
        %v894 = vld [vmem:[%s203 + $0x12c0] sm:$0xff]
        %v895 = vld [vmem:[%s203 + $0x12c8] sm:$0xff]
        %v896 = vld [vmem:[%s203 + $0x12d0] sm:$0xff]
        %v897 = vld [vmem:[%s203 + $0x12d8] sm:$0xff]
        %v898 = vld [vmem:[%s203 + $0x12e0] sm:$0xff]
        %v899 = vld [vmem:[%s203 + $0x12e8] sm:$0xff]
        %v900 = vld [vmem:[%s203 + $0x12f0] sm:$0xff]
        %v901 = vld [vmem:[%s203 + $0x12f8] sm:$0xff]
        %v902 = vld [vmem:[%s203 + $0x1300] sm:$0xff]
        %v903 = vld [vmem:[%s203 + $0x1308] sm:$0xff]
        %v904 = vld [vmem:[%s203 + $0x1310] sm:$0xff]
        %v905 = vld [vmem:[%s203 + $0x1318] sm:$0xff]
        %v906 = vld [vmem:[%s203 + $0x1320] sm:$0xff]
        %v907 = vld [vmem:[%s203 + $0x1328] sm:$0xff]
        %v908 = vld [vmem:[%s203 + $0x1330] sm:$0xff]
        %v909 = vld [vmem:[%s203 + $0x1338] sm:$0xff]
        %v910 = vld [vmem:[%s203 + $0x1340] sm:$0xff]
        %v911 = vld [vmem:[%s203 + $0x1348] sm:$0xff]
        %v912 = vld [vmem:[%s203 + $0x1350] sm:$0xff]
        %v913 = vld [vmem:[%s203 + $0x1358] sm:$0xff]
        %v914 = vld [vmem:[%s203 + $0x1360] sm:$0xff]
        %v915 = vld [vmem:[%s203 + $0x1368] sm:$0xff]
        %v916 = vld [vmem:[%s203 + $0x1370] sm:$0xff]
        %v917 = vld [vmem:[%s203 + $0x1378] sm:$0xff]
        %v918 = vld [vmem:[%s203 + $0x1380] sm:$0xff]
        %v919 = vld [vmem:[%s203 + $0x1388] sm:$0xff]
        %v920 = vld [vmem:[%s203 + $0x1390] sm:$0xff]
        %v921 = vld [vmem:[%s203 + $0x1398] sm:$0xff]
        %v922 = vld [vmem:[%s203 + $0x13a0] sm:$0xff]
        %v923 = vld [vmem:[%s203 + $0x13a8] sm:$0xff]
        %v924 = vld [vmem:[%s203 + $0x13b0] sm:$0xff]
        %v925 = vld [vmem:[%s203 + $0x13b8] sm:$0xff]
        %v926 = vld [vmem:[%s203 + $0x13c0] sm:$0xff]
        %v927 = vld [vmem:[%s203 + $0x13c8] sm:$0xff]
        %v928 = vld [vmem:[%s203 + $0x13d0] sm:$0xff]
        %v929 = vld [vmem:[%s203 + $0x13d8] sm:$0xff]
        %v930 = vld [vmem:[%s203 + $0x13e0] sm:$0xff]
        %v931 = vld [vmem:[%s203 + $0x13e8] sm:$0xff]
        %v932 = vld [vmem:[%s203 + $0x13f0] sm:$0xff]
        %v933 = vld [vmem:[%s203 + $0x13f8] sm:$0xff]
        %v934 = vld [vmem:[%s203 + $0x1400] sm:$0xff]
        %v935 = vld [vmem:[%s203 + $0x1408] sm:$0xff]
        %v936 = vld [vmem:[%s203 + $0x1410] sm:$0xff]
        %v937 = vld [vmem:[%s203 + $0x1418] sm:$0xff]
        %v938 = vld [vmem:[%s203 + $0x1420] sm:$0xff]
        %v939 = vld [vmem:[%s203 + $0x1428] sm:$0xff]
        %v940 = vld [vmem:[%s203 + $0x1430] sm:$0xff]
        %v941 = vld [vmem:[%s203 + $0x1438] sm:$0xff]
        %v942 = vld [vmem:[%s203 + $0x1440] sm:$0xff]
        %v943 = vld [vmem:[%s203 + $0x1448] sm:$0xff]
        %v944 = vld [vmem:[%s203 + $0x1450] sm:$0xff]
        %v945 = vld [vmem:[%s203 + $0x1458] sm:$0xff]
        %v946 = vld [vmem:[%s203 + $0x1460] sm:$0xff]
        %v947 = vld [vmem:[%s203 + $0x1468] sm:$0xff]
        %v948 = vld [vmem:[%s203 + $0x1470] sm:$0xff]
        %v949 = vld [vmem:[%s203 + $0x1478] sm:$0xff]
        %v950 = vld [vmem:[%s203 + $0x1480] sm:$0xff]
        %v951 = vld [vmem:[%s203 + $0x1488] sm:$0xff]
        %v952 = vld [vmem:[%s203 + $0x1490] sm:$0xff]
        %v953 = vld [vmem:[%s203 + $0x1498] sm:$0xff]
        %v954 = vld [vmem:[%s203 + $0x14a0] sm:$0xff]
        %v955 = vld [vmem:[%s203 + $0x14a8] sm:$0xff]
        %v956 = vld [vmem:[%s203 + $0x14b0] sm:$0xff]
        %v957 = vld [vmem:[%s203 + $0x14b8] sm:$0xff]
        %v958 = vld [vmem:[%s203 + $0x14c0] sm:$0xff]
        %v959 = vld [vmem:[%s203 + $0x14c8] sm:$0xff]
        %v960 = vld [vmem:[%s203 + $0x14d0] sm:$0xff]
        %v961 = vld [vmem:[%s203 + $0x14d8] sm:$0xff]
        %v962 = vld [vmem:[%s203 + $0x14e0] sm:$0xff]
        %v963 = vld [vmem:[%s203 + $0x14e8] sm:$0xff]
        %v964 = vld [vmem:[%s203 + $0x14f0] sm:$0xff]
        %v965 = vld [vmem:[%s203 + $0x14f8] sm:$0xff]
        %v966 = vld [vmem:[%s203 + $0x1500] sm:$0xff]
        %v967 = vld [vmem:[%s203 + $0x1508] sm:$0xff]
        %v968 = vld [vmem:[%s203 + $0x1510] sm:$0xff]
        %v969 = vld [vmem:[%s203 + $0x1518] sm:$0xff]
        %v970 = vld [vmem:[%s203 + $0x1520] sm:$0xff]
        %v971 = vld [vmem:[%s203 + $0x1528] sm:$0xff]
        %v972 = vld [vmem:[%s203 + $0x1530] sm:$0xff]
        %v973 = vld [vmem:[%s203 + $0x1538] sm:$0xff]
        %v974 = vld [vmem:[%s203 + $0x1540] sm:$0xff]
        %v975 = vld [vmem:[%s203 + $0x1548] sm:$0xff]
        %v976 = vld [vmem:[%s203 + $0x1550] sm:$0xff]
        %v977 = vld [vmem:[%s203 + $0x1558] sm:$0xff]
        %v978 = vld [vmem:[%s203 + $0x1560] sm:$0xff]
        %v979 = vld [vmem:[%s203 + $0x1568] sm:$0xff]
        %v980 = vld [vmem:[%s203 + $0x1570] sm:$0xff]
        %v981 = vld [vmem:[%s203 + $0x1578] sm:$0xff]
        %v982 = vld [vmem:[%s203 + $0x1580] sm:$0xff]
        %v983 = vld [vmem:[%s203 + $0x1588] sm:$0xff]
        %v984 = vld [vmem:[%s203 + $0x1590] sm:$0xff]
        %v985 = vld [vmem:[%s203 + $0x1598] sm:$0xff]
        %v986 = vld [vmem:[%s203 + $0x15a0] sm:$0xff]
        %v987 = vld [vmem:[%s203 + $0x15a8] sm:$0xff]
        %v988 = vld [vmem:[%s203 + $0x15b0] sm:$0xff]
        %v989 = vld [vmem:[%s203 + $0x15b8] sm:$0xff]
        %v990 = vld [vmem:[%s203 + $0x15c0] sm:$0xff]
        %v991 = vld [vmem:[%s203 + $0x15c8] sm:$0xff]
        %v992 = vld [vmem:[%s203 + $0x15d0] sm:$0xff]
        %v993 = vld [vmem:[%s203 + $0x15d8] sm:$0xff]
        %v994 = vld [vmem:[%s203 + $0x15e0] sm:$0xff]
        %v995 = vld [vmem:[%s203 + $0x15e8] sm:$0xff]
        %v996 = vld [vmem:[%s203 + $0x15f0] sm:$0xff]
        %v997 = vld [vmem:[%s203 + $0x15f8] sm:$0xff]
        %v998 = vld [vmem:[%s203 + $0x1600] sm:$0xff]
        %v999 = vld [vmem:[%s203 + $0x1608] sm:$0xff]
        %v1000 = vld [vmem:[%s203 + $0x1610] sm:$0xff]
        %v1001 = vld [vmem:[%s203 + $0x1618] sm:$0xff]
        %v1002 = vld [vmem:[%s203 + $0x1620] sm:$0xff]
        %v1003 = vld [vmem:[%s203 + $0x1628] sm:$0xff]
        %v1004 = vld [vmem:[%s203 + $0x1630] sm:$0xff]
        %v1005 = vld [vmem:[%s203 + $0x1638] sm:$0xff]
        %v1006 = vld [vmem:[%s203 + $0x1640] sm:$0xff]
        %v1007 = vld [vmem:[%s203 + $0x1648] sm:$0xff]
        %v1008 = vld [vmem:[%s203 + $0x1650] sm:$0xff]
        %v1009 = vld [vmem:[%s203 + $0x1658] sm:$0xff]
        %v1010 = vld [vmem:[%s203 + $0x1660] sm:$0xff]
        %v1011 = vld [vmem:[%s203 + $0x1668] sm:$0xff]
        %v1012 = vld [vmem:[%s203 + $0x1670] sm:$0xff]
        %v1013 = vld [vmem:[%s203 + $0x1678] sm:$0xff]
        %v1014 = vld [vmem:[%s203 + $0x1680] sm:$0xff]
        %v1015 = vld [vmem:[%s203 + $0x1688] sm:$0xff]
        %v1016 = vld [vmem:[%s203 + $0x1690] sm:$0xff]
        %v1017 = vld [vmem:[%s203 + $0x1698] sm:$0xff]
        %v1018 = vld [vmem:[%s203 + $0x16a0] sm:$0xff]
        %v1019 = vld [vmem:[%s203 + $0x16a8] sm:$0xff]
        %v1020 = vld [vmem:[%s203 + $0x16b0] sm:$0xff]
        %v1021 = vld [vmem:[%s203 + $0x16b8] sm:$0xff]
        %v1022 = vld [vmem:[%s203 + $0x16c0] sm:$0xff]
        %v1023 = vld [vmem:[%s203 + $0x16c8] sm:$0xff]
        %v1024 = vld [vmem:[%s203 + $0x16d0] sm:$0xff]
        %v1025 = vld [vmem:[%s203 + $0x16d8] sm:$0xff]
        %v1026 = vld [vmem:[%s203 + $0x16e0] sm:$0xff]
        %v1027 = vld [vmem:[%s203 + $0x16e8] sm:$0xff]
        %v1028 = vld [vmem:[%s203 + $0x16f0] sm:$0xff]
        %v1029 = vld [vmem:[%s203 + $0x16f8] sm:$0xff]
        %v1030 = vld [vmem:[%s203 + $0x1700] sm:$0xff]
        %v1031 = vld [vmem:[%s203 + $0x1708] sm:$0xff]
        %v1032 = vld [vmem:[%s203 + $0x1710] sm:$0xff]
        %v1033 = vld [vmem:[%s203 + $0x1718] sm:$0xff]
        %v1034 = vld [vmem:[%s203 + $0x1720] sm:$0xff]
        %v1035 = vld [vmem:[%s203 + $0x1728] sm:$0xff]
        %v1036 = vld [vmem:[%s203 + $0x1730] sm:$0xff]
        %v1037 = vld [vmem:[%s203 + $0x1738] sm:$0xff]
        %v1038 = vld [vmem:[%s203 + $0x1740] sm:$0xff]
        %v1039 = vld [vmem:[%s203 + $0x1748] sm:$0xff]
        %v1040 = vld [vmem:[%s203 + $0x1750] sm:$0xff]
        %v1041 = vld [vmem:[%s203 + $0x1758] sm:$0xff]
        %v1042 = vld [vmem:[%s203 + $0x1760] sm:$0xff]
        %v1043 = vld [vmem:[%s203 + $0x1768] sm:$0xff]
        %v1044 = vld [vmem:[%s203 + $0x1770] sm:$0xff]
        %v1045 = vld [vmem:[%s203 + $0x1778] sm:$0xff]
        %v1046 = vld [vmem:[%s203 + $0x1780] sm:$0xff]
        %v1047 = vld [vmem:[%s203 + $0x1788] sm:$0xff]
        %v1048 = vld [vmem:[%s203 + $0x1790] sm:$0xff]
        %v1049 = vld [vmem:[%s203 + $0x1798] sm:$0xff]
        %v1050 = vld [vmem:[%s203 + $0x17a0] sm:$0xff]
        %v1051 = vld [vmem:[%s203 + $0x17a8] sm:$0xff]
        %v1052 = vld [vmem:[%s203 + $0x17b0] sm:$0xff]
        %v1053 = vld [vmem:[%s203 + $0x17b8] sm:$0xff]
        %v1054 = vld [vmem:[%s203 + $0x17c0] sm:$0xff]
        %v1055 = vld [vmem:[%s203 + $0x17c8] sm:$0xff]
        %v1056 = vld [vmem:[%s203 + $0x17d0] sm:$0xff]
        %v1057 = vld [vmem:[%s203 + $0x17d8] sm:$0xff]
        %v1058 = vld [vmem:[%s203 + $0x17e0] sm:$0xff]
        %v1059 = vld [vmem:[%s203 + $0x17e8] sm:$0xff]
        %v1060 = vld [vmem:[%s203 + $0x17f0] sm:$0xff]
        %v1061 = vld [vmem:[%s203 + $0x17f8] sm:$0xff]
        %v1062 = vld [vmem:[%s203 + $0x1800] sm:$0xff]
        %v1063 = vld [vmem:[%s203 + $0x1808] sm:$0xff]
        %v1064 = vld [vmem:[%s203 + $0x1810] sm:$0xff]
        %v1065 = vld [vmem:[%s203 + $0x1818] sm:$0xff]
        %v1066 = vld [vmem:[%s203 + $0x1820] sm:$0xff]
        %v1067 = vld [vmem:[%s203 + $0x1828] sm:$0xff]
        %v1068 = vld [vmem:[%s203 + $0x1830] sm:$0xff]
        %v1069 = vld [vmem:[%s203 + $0x1838] sm:$0xff]
        %v1070 = vld [vmem:[%s203 + $0x1840] sm:$0xff]
        %v1071 = vld [vmem:[%s203 + $0x1848] sm:$0xff]
        %v1072 = vld [vmem:[%s203 + $0x1850] sm:$0xff]
        %v1073 = vld [vmem:[%s203 + $0x1858] sm:$0xff]
        %v1074 = vld [vmem:[%s203 + $0x1860] sm:$0xff]
        %v1075 = vld [vmem:[%s203 + $0x1868] sm:$0xff]
        %v1076 = vld [vmem:[%s203 + $0x1870] sm:$0xff]
        %v1077 = vld [vmem:[%s203 + $0x1878] sm:$0xff]
        %v1078 = vld [vmem:[%s203 + $0x1880] sm:$0xff]
        %v1079 = vld [vmem:[%s203 + $0x1888] sm:$0xff]
        %v1080 = vld [vmem:[%s203 + $0x1890] sm:$0xff]
        %v1081 = vld [vmem:[%s203 + $0x1898] sm:$0xff]
        %v1082 = vld [vmem:[%s203 + $0x18a0] sm:$0xff]
        %v1083 = vld [vmem:[%s203 + $0x18a8] sm:$0xff]
        %v1084 = vld [vmem:[%s203 + $0x18b0] sm:$0xff]
        %v1085 = vld [vmem:[%s203 + $0x18b8] sm:$0xff]
        %v1086 = vld [vmem:[%s203 + $0x18c0] sm:$0xff]
        %v1087 = vld [vmem:[%s203 + $0x18c8] sm:$0xff]
        %v1088 = vld [vmem:[%s203 + $0x18d0] sm:$0xff]
        %v1089 = vld [vmem:[%s203 + $0x18d8] sm:$0xff]
        %v1090 = vld [vmem:[%s203 + $0x18e0] sm:$0xff]
        %v1091 = vld [vmem:[%s203 + $0x18e8] sm:$0xff]
        %v1092 = vld [vmem:[%s203 + $0x18f0] sm:$0xff]
        %v1093 = vld [vmem:[%s203 + $0x18f8] sm:$0xff]
        %v1094 = vld [vmem:[%s203 + $0x1900] sm:$0xff]
        %v1095 = vld [vmem:[%s203 + $0x1908] sm:$0xff]
        %v1096 = vld [vmem:[%s203 + $0x1910] sm:$0xff]
        %v1097 = vld [vmem:[%s203 + $0x1918] sm:$0xff]
        %v1098 = vld [vmem:[%s203 + $0x1920] sm:$0xff]
        %v1099 = vld [vmem:[%s203 + $0x1928] sm:$0xff]
        %v1100 = vld [vmem:[%s203 + $0x1930] sm:$0xff]
        %v1101 = vld [vmem:[%s203 + $0x1938] sm:$0xff]
        %v1102 = vld [vmem:[%s203 + $0x1940] sm:$0xff]
        %v1103 = vld [vmem:[%s203 + $0x1948] sm:$0xff]
        %v1104 = vld [vmem:[%s203 + $0x1950] sm:$0xff]
        %v1105 = vld [vmem:[%s203 + $0x1958] sm:$0xff]
        %v1106 = vld [vmem:[%s203 + $0x1960] sm:$0xff]
        %v1107 = vld [vmem:[%s203 + $0x1968] sm:$0xff]
        %v1108 = vld [vmem:[%s203 + $0x1970] sm:$0xff]
        %v1109 = vld [vmem:[%s203 + $0x1978] sm:$0xff]
        %v1110 = vld [vmem:[%s203 + $0x1980] sm:$0xff]
        %v1111 = vld [vmem:[%s203 + $0x1988] sm:$0xff]
        %v1112 = vld [vmem:[%s203 + $0x1990] sm:$0xff]
        %v1113 = vld [vmem:[%s203 + $0x1998] sm:$0xff]
        %v1114 = vld [vmem:[%s203 + $0x19a0] sm:$0xff]
        %v1115 = vld [vmem:[%s203 + $0x19a8] sm:$0xff]
        %v1116 = vld [vmem:[%s203 + $0x19b0] sm:$0xff]
        %v1117 = vld [vmem:[%s203 + $0x19b8] sm:$0xff]
        %v1118 = vld [vmem:[%s203 + $0x19c0] sm:$0xff]
        %v1119 = vld [vmem:[%s203 + $0x19c8] sm:$0xff]
        %v1120 = vld [vmem:[%s203 + $0x19d0] sm:$0xff]
        %v1121 = vld [vmem:[%s203 + $0x19d8] sm:$0xff]
        %v1122 = vld [vmem:[%s203 + $0x19e0] sm:$0xff]
        %v1123 = vld [vmem:[%s203 + $0x19e8] sm:$0xff]
        %v1124 = vld [vmem:[%s203 + $0x19f0] sm:$0xff]
        %v1125 = vld [vmem:[%s203 + $0x19f8] sm:$0xff]
        %v1126 = vld [vmem:[%s203 + $0x1a00] sm:$0xff]
        %v1127 = vld [vmem:[%s203 + $0x1a08] sm:$0xff]
        %v1128 = vld [vmem:[%s203 + $0x1a10] sm:$0xff]
        %v1129 = vld [vmem:[%s203 + $0x1a18] sm:$0xff]
        %v1130 = vld [vmem:[%s203 + $0x1a20] sm:$0xff]
        %v1131 = vld [vmem:[%s203 + $0x1a28] sm:$0xff]
        %v1132 = vld [vmem:[%s203 + $0x1a30] sm:$0xff]
        %v1133 = vld [vmem:[%s203 + $0x1a38] sm:$0xff]
        %v1134 = vld [vmem:[%s203 + $0x1a40] sm:$0xff]
        %v1135 = vld [vmem:[%s203 + $0x1a48] sm:$0xff]
        %v1136 = vld [vmem:[%s203 + $0x1a50] sm:$0xff]
        %v1137 = vld [vmem:[%s203 + $0x1a58] sm:$0xff]
        %v1138 = vld [vmem:[%s203 + $0x1a60] sm:$0xff]
        %v1139 = vld [vmem:[%s203 + $0x1a68] sm:$0xff]
        %v1140 = vld [vmem:[%s203 + $0x1a70] sm:$0xff]
        %v1141 = vld [vmem:[%s203 + $0x1a78] sm:$0xff]
        %v1142 = vld [vmem:[%s203 + $0x1a80] sm:$0xff]
        %v1143 = vld [vmem:[%s203 + $0x1a88] sm:$0xff]
        %v1144 = vld [vmem:[%s203 + $0x1a90] sm:$0xff]
        %v1145 = vld [vmem:[%s203 + $0x1a98] sm:$0xff]
        %v1146 = vld [vmem:[%s203 + $0x1aa0] sm:$0xff]
        %v1147 = vld [vmem:[%s203 + $0x1aa8] sm:$0xff]
        %v1148 = vld [vmem:[%s203 + $0x1ab0] sm:$0xff]
        %v1149 = vld [vmem:[%s203 + $0x1ab8] sm:$0xff]
        %v1150 = vld [vmem:[%s203 + $0x1ac0] sm:$0xff]
        %v1151 = vld [vmem:[%s203 + $0x1ac8] sm:$0xff]
        %v1152 = vld [vmem:[%s203 + $0x1ad0] sm:$0xff]
        %v1153 = vld [vmem:[%s203 + $0x1ad8] sm:$0xff]
        %v1154 = vld [vmem:[%s203 + $0x1ae0] sm:$0xff]
        %v1155 = vld [vmem:[%s203 + $0x1ae8] sm:$0xff]
        %v1156 = vld [vmem:[%s203 + $0x1af0] sm:$0xff]
        %v1157 = vld [vmem:[%s203 + $0x1af8] sm:$0xff]
        %v1158 = vld [vmem:[%s203 + $0x1b00] sm:$0xff]
        %v1159 = vld [vmem:[%s203 + $0x1b08] sm:$0xff]
        %v1160 = vld [vmem:[%s203 + $0x1b10] sm:$0xff]
        %v1161 = vld [vmem:[%s203 + $0x1b18] sm:$0xff]
        %v1162 = vld [vmem:[%s203 + $0x1b20] sm:$0xff]
        %v1163 = vld [vmem:[%s203 + $0x1b28] sm:$0xff]
        %v1164 = vld [vmem:[%s203 + $0x1b30] sm:$0xff]
        %v1165 = vld [vmem:[%s203 + $0x1b38] sm:$0xff]
        %v1166 = vld [vmem:[%s203 + $0x1b40] sm:$0xff]
        %v1167 = vld [vmem:[%s203 + $0x1b48] sm:$0xff]
        %v1168 = vld [vmem:[%s203 + $0x1b50] sm:$0xff]
        %v1169 = vld [vmem:[%s203 + $0x1b58] sm:$0xff]
        %v1170 = vld [vmem:[%s203 + $0x1b60] sm:$0xff]
        %v1171 = vld [vmem:[%s203 + $0x1b68] sm:$0xff]
        %v1172 = vld [vmem:[%s203 + $0x1b70] sm:$0xff]
        %v1173 = vld [vmem:[%s203 + $0x1b78] sm:$0xff]
        %v1174 = vld [vmem:[%s203 + $0x1b80] sm:$0xff]
        %v1175 = vld [vmem:[%s203 + $0x1b88] sm:$0xff]
        %v1176 = vld [vmem:[%s203 + $0x1b90] sm:$0xff]
        %v1177 = vld [vmem:[%s203 + $0x1b98] sm:$0xff]
        %v1178 = vld [vmem:[%s203 + $0x1ba0] sm:$0xff]
        %v1179 = vld [vmem:[%s203 + $0x1ba8] sm:$0xff]
        %v1180 = vld [vmem:[%s203 + $0x1bb0] sm:$0xff]
        %v1181 = vld [vmem:[%s203 + $0x1bb8] sm:$0xff]
        %v1182 = vld [vmem:[%s203 + $0x1bc0] sm:$0xff]
        %v1183 = vld [vmem:[%s203 + $0x1bc8] sm:$0xff]
        %v1184 = vld [vmem:[%s203 + $0x1bd0] sm:$0xff]
        %v1185 = vld [vmem:[%s203 + $0x1bd8] sm:$0xff]
        %v1186 = vld [vmem:[%s203 + $0x1be0] sm:$0xff]
        %v1187 = vld [vmem:[%s203 + $0x1be8] sm:$0xff]
        %v1188 = vld [vmem:[%s203 + $0x1bf0] sm:$0xff]
        %v1189 = vld [vmem:[%s203 + $0x1bf8] sm:$0xff]
        %v1190 = vld [vmem:[%s203 + $0x1c00] sm:$0xff]
        %v1191 = vld [vmem:[%s203 + $0x1c08] sm:$0xff]
        %v1192 = vld [vmem:[%s203 + $0x1c10] sm:$0xff]
        %v1193 = vld [vmem:[%s203 + $0x1c18] sm:$0xff]
        %v1194 = vld [vmem:[%s203 + $0x1c20] sm:$0xff]
        %v1195 = vld [vmem:[%s203 + $0x1c28] sm:$0xff]
        %v1196 = vld [vmem:[%s203 + $0x1c30] sm:$0xff]
        %v1197 = vld [vmem:[%s203 + $0x1c38] sm:$0xff]
        %v1198 = vld [vmem:[%s203 + $0x1c40] sm:$0xff]
        %v1199 = vld [vmem:[%s203 + $0x1c48] sm:$0xff]
        %v1200 = vld [vmem:[%s203 + $0x1c50] sm:$0xff]
        %v1201 = vld [vmem:[%s203 + $0x1c58] sm:$0xff]
        %v1202 = vld [vmem:[%s203 + $0x1c60] sm:$0xff]
        %v1203 = vld [vmem:[%s203 + $0x1c68] sm:$0xff]
        %v1204 = vld [vmem:[%s203 + $0x1c70] sm:$0xff]
        %v1205 = vld [vmem:[%s203 + $0x1c78] sm:$0xff]
        %v1206 = vld [vmem:[%s203 + $0x1c80] sm:$0xff]
        %v1207 = vld [vmem:[%s203 + $0x1c88] sm:$0xff]
        %v1208 = vld [vmem:[%s203 + $0x1c90] sm:$0xff]
        %v1209 = vld [vmem:[%s203 + $0x1c98] sm:$0xff]
        %v1210 = vld [vmem:[%s203 + $0x1ca0] sm:$0xff]
        %v1211 = vld [vmem:[%s203 + $0x1ca8] sm:$0xff]
        %v1212 = vld [vmem:[%s203 + $0x1cb0] sm:$0xff]
        %v1213 = vld [vmem:[%s203 + $0x1cb8] sm:$0xff]
        %v1214 = vld [vmem:[%s203 + $0x1cc0] sm:$0xff]
        %v1215 = vld [vmem:[%s203 + $0x1cc8] sm:$0xff]
        %v1216 = vld [vmem:[%s203 + $0x1cd0] sm:$0xff]
        %v1217 = vld [vmem:[%s203 + $0x1cd8] sm:$0xff]
        %v1218 = vld [vmem:[%s203 + $0x1ce0] sm:$0xff]
        %v1219 = vld [vmem:[%s203 + $0x1ce8] sm:$0xff]
        %v1220 = vld [vmem:[%s203 + $0x1cf0] sm:$0xff]
        %v1221 = vld [vmem:[%s203 + $0x1cf8] sm:$0xff]
        %v1222 = vld [vmem:[%s203 + $0x1d00] sm:$0xff]
        %v1223 = vld [vmem:[%s203 + $0x1d08] sm:$0xff]
        %v1224 = vld [vmem:[%s203 + $0x1d10] sm:$0xff]
        %v1225 = vld [vmem:[%s203 + $0x1d18] sm:$0xff]
        %v1226 = vld [vmem:[%s203 + $0x1d20] sm:$0xff]
        %v1227 = vld [vmem:[%s203 + $0x1d28] sm:$0xff]
        %v1228 = vld [vmem:[%s203 + $0x1d30] sm:$0xff]
        %v1229 = vld [vmem:[%s203 + $0x1d38] sm:$0xff]
        %v1230 = vld [vmem:[%s203 + $0x1d40] sm:$0xff]
        %v1231 = vld [vmem:[%s203 + $0x1d48] sm:$0xff]
        %v1232 = vld [vmem:[%s203 + $0x1d50] sm:$0xff]
        %v1233 = vld [vmem:[%s203 + $0x1d58] sm:$0xff]
        %v1234 = vld [vmem:[%s203 + $0x1d60] sm:$0xff]
        %v1235 = vld [vmem:[%s203 + $0x1d68] sm:$0xff]
        %v1236 = vld [vmem:[%s203 + $0x1d70] sm:$0xff]
        %v1237 = vld [vmem:[%s203 + $0x1d78] sm:$0xff]
        %v1238 = vld [vmem:[%s203 + $0x1d80] sm:$0xff]
        %v1239 = vld [vmem:[%s203 + $0x1d88] sm:$0xff]
        %v1240 = vld [vmem:[%s203 + $0x1d90] sm:$0xff]
        %v1241 = vld [vmem:[%s203 + $0x1d98] sm:$0xff]
        %v1242 = vld [vmem:[%s203 + $0x1da0] sm:$0xff]
        %v1243 = vld [vmem:[%s203 + $0x1da8] sm:$0xff]
        %v1244 = vld [vmem:[%s203 + $0x1db0] sm:$0xff]
        %v1245 = vld [vmem:[%s203 + $0x1db8] sm:$0xff]
        %v1246 = vld [vmem:[%s203 + $0x1dc0] sm:$0xff]
        %v1247 = vld [vmem:[%s203 + $0x1dc8] sm:$0xff]
        %v1248 = vld [vmem:[%s203 + $0x1dd0] sm:$0xff]
        %v1249 = vld [vmem:[%s203 + $0x1dd8] sm:$0xff]
        %v1250 = vld [vmem:[%s203 + $0x1de0] sm:$0xff]
        %v1251 = vld [vmem:[%s203 + $0x1de8] sm:$0xff]
        %v1252 = vld [vmem:[%s203 + $0x1df0] sm:$0xff]
        %v1253 = vld [vmem:[%s203 + $0x1df8] sm:$0xff]
        %v1254 = vld [vmem:[%s203 + $0x1e00] sm:$0xff]
        %v1255 = vld [vmem:[%s203 + $0x1e08] sm:$0xff]
        %v1256 = vld [vmem:[%s203 + $0x1e10] sm:$0xff]
        %v1257 = vld [vmem:[%s203 + $0x1e18] sm:$0xff]
        %v1258 = vld [vmem:[%s203 + $0x1e20] sm:$0xff]
        %v1259 = vld [vmem:[%s203 + $0x1e28] sm:$0xff]
        %v1260 = vld [vmem:[%s203 + $0x1e30] sm:$0xff]
        %v1261 = vld [vmem:[%s203 + $0x1e38] sm:$0xff]
        %v1262 = vld [vmem:[%s203 + $0x1e40] sm:$0xff]
        %v1263 = vld [vmem:[%s203 + $0x1e48] sm:$0xff]
        %v1264 = vld [vmem:[%s203 + $0x1e50] sm:$0xff]
        %v1265 = vld [vmem:[%s203 + $0x1e58] sm:$0xff]
        %v1266 = vld [vmem:[%s203 + $0x1e60] sm:$0xff]
        %v1267 = vld [vmem:[%s203 + $0x1e68] sm:$0xff]
        %v1268 = vld [vmem:[%s203 + $0x1e70] sm:$0xff]
        %v1269 = vld [vmem:[%s203 + $0x1e78] sm:$0xff]
        %v1270 = vld [vmem:[%s203 + $0x1e80] sm:$0xff]
        %v1271 = vld [vmem:[%s203 + $0x1e88] sm:$0xff]
        %v1272 = vld [vmem:[%s203 + $0x1e90] sm:$0xff]
        %v1273 = vld [vmem:[%s203 + $0x1e98] sm:$0xff]
        %v1274 = vld [vmem:[%s203 + $0x1ea0] sm:$0xff]
        %v1275 = vld [vmem:[%s203 + $0x1ea8] sm:$0xff]
        %v1276 = vld [vmem:[%s203 + $0x1eb0] sm:$0xff]
        %v1277 = vld [vmem:[%s203 + $0x1eb8] sm:$0xff]
        %v1278 = vld [vmem:[%s203 + $0x1ec0] sm:$0xff]
        %v1279 = vld [vmem:[%s203 + $0x1ec8] sm:$0xff]
        %v1280 = vld [vmem:[%s203 + $0x1ed0] sm:$0xff]
        %v1281 = vld [vmem:[%s203 + $0x1ed8] sm:$0xff]
        %v1282 = vld [vmem:[%s203 + $0x1ee0] sm:$0xff]
        %v1283 = vld [vmem:[%s203 + $0x1ee8] sm:$0xff]
        %v1284 = vld [vmem:[%s203 + $0x1ef0] sm:$0xff]
        %v1285 = vld [vmem:[%s203 + $0x1ef8] sm:$0xff]
        %v1286 = vld [vmem:[%s203 + $0x1f00] sm:$0xff]
        %v1287 = vld [vmem:[%s203 + $0x1f08] sm:$0xff]
        %v1288 = vld [vmem:[%s203 + $0x1f10] sm:$0xff]
        %v1289 = vld [vmem:[%s203 + $0x1f18] sm:$0xff]
        %v1290 = vld [vmem:[%s203 + $0x1f20] sm:$0xff]
        %v1291 = vld [vmem:[%s203 + $0x1f28] sm:$0xff]
        %v1292 = vld [vmem:[%s203 + $0x1f30] sm:$0xff]
        %v1293 = vld [vmem:[%s203 + $0x1f38] sm:$0xff]
        %v1294 = vld [vmem:[%s203 + $0x1f40] sm:$0xff]
        %v1295 = vld [vmem:[%s203 + $0x1f48] sm:$0xff]
        %v1296 = vld [vmem:[%s203 + $0x1f50] sm:$0xff]
        %v1297 = vld [vmem:[%s203 + $0x1f58] sm:$0xff]
        %v1298 = vld [vmem:[%s203 + $0x1f60] sm:$0xff]
        %v1299 = vld [vmem:[%s203 + $0x1f68] sm:$0xff]
        %v1300 = vld [vmem:[%s203 + $0x1f70] sm:$0xff]
        %v1301 = vld [vmem:[%s203 + $0x1f78] sm:$0xff]
        %v1302 = vld [vmem:[%s203 + $0x1f80] sm:$0xff]
        %v1303 = vld [vmem:[%s203 + $0x1f88] sm:$0xff]
        %v1304 = vld [vmem:[%s203 + $0x1f90] sm:$0xff]
        %v1305 = vld [vmem:[%s203 + $0x1f98] sm:$0xff]
        %v1306 = vld [vmem:[%s203 + $0x1fa0] sm:$0xff]
        %v1307 = vld [vmem:[%s203 + $0x1fa8] sm:$0xff]
        %v1308 = vld [vmem:[%s203 + $0x1fb0] sm:$0xff]
        %v1309 = vld [vmem:[%s203 + $0x1fb8] sm:$0xff]
        %v1310 = vld [vmem:[%s203 + $0x1fc0] sm:$0xff]
        %v1311 = vld [vmem:[%s203 + $0x1fc8] sm:$0xff]
        %v1312 = vld [vmem:[%s203 + $0x1fd0] sm:$0xff]
        %v1313 = vld [vmem:[%s203 + $0x1fd8] sm:$0xff]
        %v1314 = vld [vmem:[%s203 + $0x1fe0] sm:$0xff]
        %v1315 = vld [vmem:[%s203 + $0x1fe8] sm:$0xff]
        %v1316 = vld [vmem:[%s203 + $0x1ff0] sm:$0xff]
        %v1317 = vld [vmem:[%s203 + $0x1ff8] sm:$0xff]
        %v1318 = vld [vmem:[%s203 + $0x2000] sm:$0xff]
        %v1319 = vld [vmem:[%s203 + $0x2008] sm:$0xff]
        %v1320 = vld [vmem:[%s203 + $0x2010] sm:$0xff]
        %v1321 = vld [vmem:[%s203 + $0x2018] sm:$0xff]
        %v1322 = vld [vmem:[%s203 + $0x2020] sm:$0xff]
        %v1323 = vld [vmem:[%s203 + $0x2028] sm:$0xff]
        %v1324 = vld [vmem:[%s203 + $0x2030] sm:$0xff]
        %v1325 = vld [vmem:[%s203 + $0x2038] sm:$0xff]
        %v1326 = vld [vmem:[%s203 + $0x2040] sm:$0xff]
        %v1327 = vld [vmem:[%s203 + $0x2048] sm:$0xff]
        %v1328 = vld [vmem:[%s203 + $0x2050] sm:$0xff]
        %v1329 = vld [vmem:[%s203 + $0x2058] sm:$0xff]
        %v1330 = vld [vmem:[%s203 + $0x2060] sm:$0xff]
        %v1331 = vld [vmem:[%s203 + $0x2068] sm:$0xff]
        %v1332 = vld [vmem:[%s203 + $0x2070] sm:$0xff]
        %v1333 = vld [vmem:[%s203 + $0x2078] sm:$0xff]
        %v1334 = vld [vmem:[%s203 + $0x2080] sm:$0xff]
        %v1335 = vld [vmem:[%s203 + $0x2088] sm:$0xff]
        %v1336 = vld [vmem:[%s203 + $0x2090] sm:$0xff]
        %v1337 = vld [vmem:[%s203 + $0x2098] sm:$0xff]
        %v1338 = vld [vmem:[%s203 + $0x20a0] sm:$0xff]
        %v1339 = vld [vmem:[%s203 + $0x20a8] sm:$0xff]
        %v1340 = vld [vmem:[%s203 + $0x20b0] sm:$0xff]
        %v1341 = vld [vmem:[%s203 + $0x20b8] sm:$0xff]
        %v1342 = vld [vmem:[%s203 + $0x20c0] sm:$0xff]
        %v1343 = vld [vmem:[%s203 + $0x20c8] sm:$0xff]
        %v1344 = vld [vmem:[%s203 + $0x20d0] sm:$0xff]
        %v1345 = vld [vmem:[%s203 + $0x20d8] sm:$0xff]
        %v1346 = vld [vmem:[%s203 + $0x20e0] sm:$0xff]
        %v1347 = vld [vmem:[%s203 + $0x20e8] sm:$0xff]
        %v1348 = vld [vmem:[%s203 + $0x20f0] sm:$0xff]
        %v1349 = vld [vmem:[%s203 + $0x20f8] sm:$0xff]
        %v1350 = vld [vmem:[%s203 + $0x2100] sm:$0xff]
        %v1351 = vld [vmem:[%s203 + $0x2108] sm:$0xff]
        %v1352 = vld [vmem:[%s203 + $0x2110] sm:$0xff]
        %v1353 = vld [vmem:[%s203 + $0x2118] sm:$0xff]
        %v1354 = vld [vmem:[%s203 + $0x2120] sm:$0xff]
        %v1355 = vld [vmem:[%s203 + $0x2128] sm:$0xff]
        %v1356 = vld [vmem:[%s203 + $0x2130] sm:$0xff]
        %v1357 = vld [vmem:[%s203 + $0x2138] sm:$0xff]
        %v1358 = vld [vmem:[%s203 + $0x2140] sm:$0xff]
        %v1359 = vld [vmem:[%s203 + $0x2148] sm:$0xff]
        %v1360 = vld [vmem:[%s203 + $0x2150] sm:$0xff]
        %v1361 = vld [vmem:[%s203 + $0x2158] sm:$0xff]
        %v1362 = vld [vmem:[%s203 + $0x2160] sm:$0xff]
        %v1363 = vld [vmem:[%s203 + $0x2168] sm:$0xff]
        %v1364 = vld [vmem:[%s203 + $0x2170] sm:$0xff]
        %v1365 = vld [vmem:[%s203 + $0x2178] sm:$0xff]
        %v1366 = vld [vmem:[%s203 + $0x2180] sm:$0xff]
        %v1367 = vld [vmem:[%s203 + $0x2188] sm:$0xff]
        %v1368 = vld [vmem:[%s203 + $0x2190] sm:$0xff]
        %v1369 = vld [vmem:[%s203 + $0x2198] sm:$0xff]
        %v1370 = vld [vmem:[%s203 + $0x21a0] sm:$0xff]
        %v1371 = vld [vmem:[%s203 + $0x21a8] sm:$0xff]
        %v1372 = vld [vmem:[%s203 + $0x21b0] sm:$0xff]
        %v1373 = vld [vmem:[%s203 + $0x21b8] sm:$0xff]
        %v1374 = vld [vmem:[%s203 + $0x21c0] sm:$0xff]
        %v1375 = vld [vmem:[%s203 + $0x21c8] sm:$0xff]
        %v1376 = vld [vmem:[%s203 + $0x21d0] sm:$0xff]
        %v1377 = vld [vmem:[%s203 + $0x21d8] sm:$0xff]
        %v1378 = vld [vmem:[%s203 + $0x21e0] sm:$0xff]
        %v1379 = vld [vmem:[%s203 + $0x21e8] sm:$0xff]
        %v1380 = vld [vmem:[%s203 + $0x21f0] sm:$0xff]
        %v1381 = vld [vmem:[%s203 + $0x21f8] sm:$0xff]
        %v1382 = vld [vmem:[%s203 + $0x2200] sm:$0xff]
        %v1383 = vld [vmem:[%s203 + $0x2208] sm:$0xff]
        %v1384 = vld [vmem:[%s203 + $0x2210] sm:$0xff]
        %v1385 = vld [vmem:[%s203 + $0x2218] sm:$0xff]
        %v1386 = vld [vmem:[%s203 + $0x2220] sm:$0xff]
        %v1387 = vld [vmem:[%s203 + $0x2228] sm:$0xff]
        %v1388 = vld [vmem:[%s203 + $0x2230] sm:$0xff]
        %v1389 = vld [vmem:[%s203 + $0x2238] sm:$0xff]
        %v1390 = vld [vmem:[%s203 + $0x2240] sm:$0xff]
        %v1391 = vld [vmem:[%s203 + $0x2248] sm:$0xff]
        %v1392 = vld [vmem:[%s203 + $0x2250] sm:$0xff]
        %v1393 = vld [vmem:[%s203 + $0x2258] sm:$0xff]
        %v1394 = vld [vmem:[%s203 + $0x2260] sm:$0xff]
        %v1395 = vld [vmem:[%s203 + $0x2268] sm:$0xff]
        %v1396 = vld [vmem:[%s203 + $0x2270] sm:$0xff]
        %v1397 = vld [vmem:[%s203 + $0x2278] sm:$0xff]
        %v1398 = vld [vmem:[%s203 + $0x2280] sm:$0xff]
        %v1399 = vld [vmem:[%s203 + $0x2288] sm:$0xff]
        %v1400 = vld [vmem:[%s203 + $0x2290] sm:$0xff]
        %v1401 = vld [vmem:[%s203 + $0x2298] sm:$0xff]
        %v1402 = vld [vmem:[%s203 + $0x22a0] sm:$0xff]
        %v1403 = vld [vmem:[%s203 + $0x22a8] sm:$0xff]
        %v1404 = vld [vmem:[%s203 + $0x22b0] sm:$0xff]
        %v1405 = vld [vmem:[%s203 + $0x22b8] sm:$0xff]
        %v1406 = vld [vmem:[%s203 + $0x22c0] sm:$0xff]
        %v1407 = vld [vmem:[%s203 + $0x22c8] sm:$0xff]
        %v1408 = vld [vmem:[%s203 + $0x22d0] sm:$0xff]
        %v1409 = vld [vmem:[%s203 + $0x22d8] sm:$0xff]
        %v1410 = vld [vmem:[%s203 + $0x22e0] sm:$0xff]
        %v1411 = vld [vmem:[%s203 + $0x22e8] sm:$0xff]
        %v1412 = vld [vmem:[%s203 + $0x22f0] sm:$0xff]
        %v1413 = vld [vmem:[%s203 + $0x22f8] sm:$0xff]
        %v1414 = vld [vmem:[%s203 + $0x2300] sm:$0xff]
        %v1415 = vld [vmem:[%s203 + $0x2308] sm:$0xff]
        %v1416 = vld [vmem:[%s203 + $0x2310] sm:$0xff]
        %v1417 = vld [vmem:[%s203 + $0x2318] sm:$0xff]
        %v1418 = vld [vmem:[%s203 + $0x2320] sm:$0xff]
        %v1419 = vld [vmem:[%s203 + $0x2328] sm:$0xff]
        %v1420 = vld [vmem:[%s203 + $0x2330] sm:$0xff]
        %v1421 = vld [vmem:[%s203 + $0x2338] sm:$0xff]
        %v1422 = vld [vmem:[%s203 + $0x2340] sm:$0xff]
        %v1423 = vld [vmem:[%s203 + $0x2348] sm:$0xff]
        %v1424 = vld [vmem:[%s203 + $0x2350] sm:$0xff]
        %v1425 = vld [vmem:[%s203 + $0x2358] sm:$0xff]
        %v1426 = vld [vmem:[%s203 + $0x2360] sm:$0xff]
        %v1427 = vld [vmem:[%s203 + $0x2368] sm:$0xff]
        %v1428 = vld [vmem:[%s203 + $0x2370] sm:$0xff]
        %v1429 = vld [vmem:[%s203 + $0x2378] sm:$0xff]
        %v1430 = vld [vmem:[%s203 + $0x2380] sm:$0xff]
        %v1431 = vld [vmem:[%s203 + $0x2388] sm:$0xff]
        %v1432 = vld [vmem:[%s203 + $0x2390] sm:$0xff]
        %v1433 = vld [vmem:[%s203 + $0x2398] sm:$0xff]
        %v1434 = vld [vmem:[%s203 + $0x23a0] sm:$0xff]
        %v1435 = vld [vmem:[%s203 + $0x23a8] sm:$0xff]
        %v1436 = vld [vmem:[%s203 + $0x23b0] sm:$0xff]
        %v1437 = vld [vmem:[%s203 + $0x23b8] sm:$0xff]
        %v1438 = vld [vmem:[%s203 + $0x23c0] sm:$0xff]
        %v1439 = vld [vmem:[%s203 + $0x23c8] sm:$0xff]
        %v1440 = vld [vmem:[%s203 + $0x23d0] sm:$0xff]
        %v1441 = vld [vmem:[%s203 + $0x23d8] sm:$0xff]
        %v1442 = vld [vmem:[%s203 + $0x23e0] sm:$0xff]
        %v1443 = vld [vmem:[%s203 + $0x23e8] sm:$0xff]
        %v1444 = vld [vmem:[%s203 + $0x23f0] sm:$0xff]
        %v1445 = vld [vmem:[%s203 + $0x23f8] sm:$0xff]
        %v1446 = vld [vmem:[%s203 + $0x2400] sm:$0xff]
        %v1447 = vld [vmem:[%s203 + $0x2408] sm:$0xff]
        %v1448 = vld [vmem:[%s203 + $0x2410] sm:$0xff]
        %v1449 = vld [vmem:[%s203 + $0x2418] sm:$0xff]
        %v1450 = vld [vmem:[%s203 + $0x2420] sm:$0xff]
        %v1451 = vld [vmem:[%s203 + $0x2428] sm:$0xff]
        %v1452 = vld [vmem:[%s203 + $0x2430] sm:$0xff]
        %v1453 = vld [vmem:[%s203 + $0x2438] sm:$0xff]
        %v1454 = vld [vmem:[%s203 + $0x2440] sm:$0xff]
        %v1455 = vld [vmem:[%s203 + $0x2448] sm:$0xff]
        %v1456 = vld [vmem:[%s203 + $0x2450] sm:$0xff]
        %v1457 = vld [vmem:[%s203 + $0x2458] sm:$0xff]
        %v1458 = vld [vmem:[%s203 + $0x2460] sm:$0xff]
        %v1459 = vld [vmem:[%s203 + $0x2468] sm:$0xff]
        %v1460 = vld [vmem:[%s203 + $0x2470] sm:$0xff]
        %v1461 = vld [vmem:[%s203 + $0x2478] sm:$0xff]
        %v1462 = vld [vmem:[%s203 + $0x2480] sm:$0xff]
        %v1463 = vld [vmem:[%s203 + $0x2488] sm:$0xff]
        %v1464 = vld [vmem:[%s203 + $0x2490] sm:$0xff]
        %v1465 = vld [vmem:[%s203 + $0x2498] sm:$0xff]
        %v1466 = vld [vmem:[%s203 + $0x24a0] sm:$0xff]
        %v1467 = vld [vmem:[%s203 + $0x24a8] sm:$0xff]
        %v1468 = vld [vmem:[%s203 + $0x24b0] sm:$0xff]
        %v1469 = vld [vmem:[%s203 + $0x24b8] sm:$0xff]
        %v1470 = vld [vmem:[%s203 + $0x24c0] sm:$0xff]
        %v1471 = vld [vmem:[%s203 + $0x24c8] sm:$0xff]
        %v1472 = vld [vmem:[%s203 + $0x24d0] sm:$0xff]
        %v1473 = vld [vmem:[%s203 + $0x24d8] sm:$0xff]
        %v1474 = vld [vmem:[%s203 + $0x24e0] sm:$0xff]
        %v1475 = vld [vmem:[%s203 + $0x24e8] sm:$0xff]
        %v1476 = vld [vmem:[%s203 + $0x24f0] sm:$0xff]
        %v1477 = vld [vmem:[%s203 + $0x24f8] sm:$0xff]
        %v1478 = vld [vmem:[%s203 + $0x2500] sm:$0xff]
        %v1479 = vld [vmem:[%s203 + $0x2508] sm:$0xff]
        %v1480 = vld [vmem:[%s203 + $0x2510] sm:$0xff]
        %v1481 = vld [vmem:[%s203 + $0x2518] sm:$0xff]
        %v1482 = vld [vmem:[%s203 + $0x2520] sm:$0xff]
        %v1483 = vld [vmem:[%s203 + $0x2528] sm:$0xff]
        %v1484 = vld [vmem:[%s203 + $0x2530] sm:$0xff]
        %v1485 = vld [vmem:[%s203 + $0x2538] sm:$0xff]
        %v1486 = vld [vmem:[%s203 + $0x2540] sm:$0xff]
        %v1487 = vld [vmem:[%s203 + $0x2548] sm:$0xff]
        %v1488 = vld [vmem:[%s203 + $0x2550] sm:$0xff]
        %v1489 = vld [vmem:[%s203 + $0x2558] sm:$0xff]
        %v1490 = vld [vmem:[%s203 + $0x2560] sm:$0xff]
        %v1491 = vld [vmem:[%s203 + $0x2568] sm:$0xff]
        %v1492 = vld [vmem:[%s203 + $0x2570] sm:$0xff]
        %v1493 = vld [vmem:[%s203 + $0x2578] sm:$0xff]
        %v1494 = vld [vmem:[%s203 + $0x2580] sm:$0xff]
        %v1495 = vld [vmem:[%s203 + $0x2588] sm:$0xff]
        %v1496 = vld [vmem:[%s203 + $0x2590] sm:$0xff]
        %v1497 = vld [vmem:[%s203 + $0x2598] sm:$0xff]
        %v1498 = vld [vmem:[%s203 + $0x25a0] sm:$0xff]
        %v1499 = vld [vmem:[%s203 + $0x25a8] sm:$0xff]
        %v1500 = vld [vmem:[%s203 + $0x25b0] sm:$0xff]
        %v1501 = vld [vmem:[%s203 + $0x25b8] sm:$0xff]
        %v1502 = vld [vmem:[%s203 + $0x25c0] sm:$0xff]
        %v1503 = vld [vmem:[%s203 + $0x25c8] sm:$0xff]
        %v1504 = vld [vmem:[%s203 + $0x25d0] sm:$0xff]
        %v1505 = vld [vmem:[%s203 + $0x25d8] sm:$0xff]
        %v1506 = vld [vmem:[%s203 + $0x25e0] sm:$0xff]
        %v1507 = vld [vmem:[%s203 + $0x25e8] sm:$0xff]
        %v1508 = vld [vmem:[%s203 + $0x25f0] sm:$0xff]
        %v1509 = vld [vmem:[%s203 + $0x25f8] sm:$0xff]
        %v1510 = vld [vmem:[%s203 + $0x2600] sm:$0xff]
        %v1511 = vld [vmem:[%s203 + $0x2608] sm:$0xff]
        %v1512 = vld [vmem:[%s203 + $0x2610] sm:$0xff]
        %v1513 = vld [vmem:[%s203 + $0x2618] sm:$0xff]
        %v1514 = vld [vmem:[%s203 + $0x2620] sm:$0xff]
        %v1515 = vld [vmem:[%s203 + $0x2628] sm:$0xff]
        %v1516 = vld [vmem:[%s203 + $0x2630] sm:$0xff]
        %v1517 = vld [vmem:[%s203 + $0x2638] sm:$0xff]
        %v1518 = vld [vmem:[%s203 + $0x2640] sm:$0xff]
        %v1519 = vld [vmem:[%s203 + $0x2648] sm:$0xff]
        %v1520 = vld [vmem:[%s203 + $0x2650] sm:$0xff]
        %v1521 = vld [vmem:[%s203 + $0x2658] sm:$0xff]
        %v1522 = vld [vmem:[%s203 + $0x2660] sm:$0xff]
        %v1523 = vld [vmem:[%s203 + $0x2668] sm:$0xff]
        %v1524 = vld [vmem:[%s203 + $0x2670] sm:$0xff]
        %v1525 = vld [vmem:[%s203 + $0x2678] sm:$0xff]
        %v1526 = vld [vmem:[%s203 + $0x2680] sm:$0xff]
        %v1527 = vld [vmem:[%s203 + $0x2688] sm:$0xff]
        %v1528 = vld [vmem:[%s203 + $0x2690] sm:$0xff]
        %v1529 = vld [vmem:[%s203 + $0x2698] sm:$0xff]
        %v1530 = vld [vmem:[%s203 + $0x26a0] sm:$0xff]
        %v1531 = vld [vmem:[%s203 + $0x26a8] sm:$0xff]
        %v1532 = vld [vmem:[%s203 + $0x26b0] sm:$0xff]
        %v1533 = vld [vmem:[%s203 + $0x26b8] sm:$0xff]
        %v1534 = vld [vmem:[%s203 + $0x26c0] sm:$0xff]
        %v1535 = vld [vmem:[%s203 + $0x26c8] sm:$0xff]
        %v1536 = vld [vmem:[%s203 + $0x26d0] sm:$0xff]
        %v1537 = vld [vmem:[%s203 + $0x26d8] sm:$0xff]
        %v1538 = vld [vmem:[%s203 + $0x26e0] sm:$0xff]
        %v1539 = vld [vmem:[%s203 + $0x26e8] sm:$0xff]
        %v1540 = vld [vmem:[%s203 + $0x26f0] sm:$0xff]
        %v1541 = vld [vmem:[%s203 + $0x26f8] sm:$0xff]
        %v1542 = vld [vmem:[%s203 + $0x2700] sm:$0xff]
        %v1543 = vld [vmem:[%s203 + $0x2708] sm:$0xff]
        %v1544 = vld [vmem:[%s203 + $0x2710] sm:$0xff]
        %v1545 = vld [vmem:[%s203 + $0x2718] sm:$0xff]
        %v1546 = vld [vmem:[%s203 + $0x2720] sm:$0xff]
        %v1547 = vld [vmem:[%s203 + $0x2728] sm:$0xff]
        %v1548 = vld [vmem:[%s203 + $0x2730] sm:$0xff]
        %v1549 = vld [vmem:[%s203 + $0x2738] sm:$0xff]
        %v1550 = vld [vmem:[%s203 + $0x2740] sm:$0xff]
        %v1551 = vld [vmem:[%s203 + $0x2748] sm:$0xff]
        %v1552 = vld [vmem:[%s203 + $0x2750] sm:$0xff]
        %v1553 = vld [vmem:[%s203 + $0x2758] sm:$0xff]
        %v1554 = vld [vmem:[%s203 + $0x2760] sm:$0xff]
        %v1555 = vld [vmem:[%s203 + $0x2768] sm:$0xff]
        %v1556 = vld [vmem:[%s203 + $0x2770] sm:$0xff]
        %v1557 = vld [vmem:[%s203 + $0x2778] sm:$0xff]
        %v1558 = vld [vmem:[%s203 + $0x2780] sm:$0xff]
        %v1559 = vld [vmem:[%s203 + $0x2788] sm:$0xff]
        %v1560 = vld [vmem:[%s203 + $0x2790] sm:$0xff]
        %v1561 = vld [vmem:[%s203 + $0x2798] sm:$0xff]
        %v1562 = vld [vmem:[%s203 + $0x27a0] sm:$0xff]
        %v1563 = vld [vmem:[%s203 + $0x27a8] sm:$0xff]
        %v1564 = vld [vmem:[%s203 + $0x27b0] sm:$0xff]
        %v1565 = vld [vmem:[%s203 + $0x27b8] sm:$0xff]
        %v1566 = vld [vmem:[%s203 + $0x27c0] sm:$0xff]
        %v1567 = vld [vmem:[%s203 + $0x27c8] sm:$0xff]
        %v1568 = vld [vmem:[%s203 + $0x27d0] sm:$0xff]
        %v1569 = vld [vmem:[%s203 + $0x27d8] sm:$0xff]
        %v1570 = vld [vmem:[%s203 + $0x27e0] sm:$0xff]
        %v1571 = vld [vmem:[%s203 + $0x27e8] sm:$0xff]
        %v1572 = vld [vmem:[%s203 + $0x27f0] sm:$0xff]
        %v1573 = vld [vmem:[%s203 + $0x27f8] sm:$0xff]
        %v1574 = vld [vmem:[%s203 + $0x2800] sm:$0xff]
        %v1575 = vld [vmem:[%s203 + $0x2808] sm:$0xff]
        %v1576 = vld [vmem:[%s203 + $0x2810] sm:$0xff]
        %v1577 = vld [vmem:[%s203 + $0x2818] sm:$0xff]
        %v1578 = vld [vmem:[%s203 + $0x2820] sm:$0xff]
        %v1579 = vld [vmem:[%s203 + $0x2828] sm:$0xff]
        %v1580 = vld [vmem:[%s203 + $0x2830] sm:$0xff]
        %v1581 = vld [vmem:[%s203 + $0x2838] sm:$0xff]
        %v1582 = vld [vmem:[%s203 + $0x2840] sm:$0xff]
        %v1583 = vld [vmem:[%s203 + $0x2848] sm:$0xff]
        %v1584 = vld [vmem:[%s203 + $0x2850] sm:$0xff]
        %v1585 = vld [vmem:[%s203 + $0x2858] sm:$0xff]
        %v1586 = vld [vmem:[%s203 + $0x2860] sm:$0xff]
        %v1587 = vld [vmem:[%s203 + $0x2868] sm:$0xff]
        %v1588 = vld [vmem:[%s203 + $0x2870] sm:$0xff]
        %v1589 = vld [vmem:[%s203 + $0x2878] sm:$0xff]
        %v1590 = vld [vmem:[%s203 + $0x2880] sm:$0xff]
        %v1591 = vld [vmem:[%s203 + $0x2888] sm:$0xff]
        %v1592 = vld [vmem:[%s203 + $0x2890] sm:$0xff]
        %v1593 = vld [vmem:[%s203 + $0x2898] sm:$0xff]
        %v1594 = vld [vmem:[%s203 + $0x28a0] sm:$0xff]
        %v1595 = vld [vmem:[%s203 + $0x28a8] sm:$0xff]
        %v1596 = vld [vmem:[%s203 + $0x28b0] sm:$0xff]
        %v1597 = vld [vmem:[%s203 + $0x28b8] sm:$0xff]
        %v1598 = vld [vmem:[%s203 + $0x28c0] sm:$0xff]
        %v1599 = vld [vmem:[%s203 + $0x28c8] sm:$0xff]
        %v1600 = vld [vmem:[%s203 + $0x28d0] sm:$0xff]
        %v1601 = vld [vmem:[%s203 + $0x28d8] sm:$0xff]
        %v1602 = vld [vmem:[%s203 + $0x28e0] sm:$0xff]
        %v1603 = vld [vmem:[%s203 + $0x28e8] sm:$0xff]
        %v1604 = vld [vmem:[%s203 + $0x28f0] sm:$0xff]
        %v1605 = vld [vmem:[%s203 + $0x28f8] sm:$0xff]
        %v1606 = vld [vmem:[%s203 + $0x2900] sm:$0xff]
        %v1607 = vld [vmem:[%s203 + $0x2908] sm:$0xff]
        %v1608 = vld [vmem:[%s203 + $0x2910] sm:$0xff]
        %v1609 = vld [vmem:[%s203 + $0x2918] sm:$0xff]
        %v1610 = vld [vmem:[%s203 + $0x2920] sm:$0xff]
        %v1611 = vld [vmem:[%s203 + $0x2928] sm:$0xff]
        %v1612 = vld [vmem:[%s203 + $0x2930] sm:$0xff]
        %v1613 = vld [vmem:[%s203 + $0x2938] sm:$0xff]
        %v1614 = vld [vmem:[%s203 + $0x2940] sm:$0xff]
        %v1615 = vld [vmem:[%s203 + $0x2948] sm:$0xff]
        %v1616 = vld [vmem:[%s203 + $0x2950] sm:$0xff]
        %v1617 = vld [vmem:[%s203 + $0x2958] sm:$0xff]
        %v1618 = vld [vmem:[%s203 + $0x2960] sm:$0xff]
        %v1619 = vld [vmem:[%s203 + $0x2968] sm:$0xff]
        %v1620 = vld [vmem:[%s203 + $0x2970] sm:$0xff]
        %v1621 = vld [vmem:[%s203 + $0x2978] sm:$0xff]
        %v1622 = vld [vmem:[%s203 + $0x2980] sm:$0xff]
        %v1623 = vld [vmem:[%s203 + $0x2988] sm:$0xff]
        %v1624 = vld [vmem:[%s203 + $0x2990] sm:$0xff]
        %v1625 = vld [vmem:[%s203 + $0x2998] sm:$0xff]
        %v1626 = vld [vmem:[%s203 + $0x29a0] sm:$0xff]
        %v1627 = vld [vmem:[%s203 + $0x29a8] sm:$0xff]
        %v1628 = vld [vmem:[%s203 + $0x29b0] sm:$0xff]
        %v1629 = vld [vmem:[%s203 + $0x29b8] sm:$0xff]
        %v1630 = vld [vmem:[%s203 + $0x29c0] sm:$0xff]
        %v1631 = vld [vmem:[%s203 + $0x29c8] sm:$0xff]
        %v1632 = vld [vmem:[%s203 + $0x29d0] sm:$0xff]
        %v1633 = vld [vmem:[%s203 + $0x29d8] sm:$0xff]
        %v1634 = vld [vmem:[%s203 + $0x29e0] sm:$0xff]
        %v1635 = vld [vmem:[%s203 + $0x29e8] sm:$0xff]
        %v1636 = vld [vmem:[%s203 + $0x29f0] sm:$0xff]
        %v1637 = vld [vmem:[%s203 + $0x29f8] sm:$0xff]
        %v1638 = vld [vmem:[%s203 + $0x2a00] sm:$0xff]
        %v1639 = vld [vmem:[%s203 + $0x2a08] sm:$0xff]
        %v1640 = vld [vmem:[%s203 + $0x2a10] sm:$0xff]
        %v1641 = vld [vmem:[%s203 + $0x2a18] sm:$0xff]
        %v1642 = vld [vmem:[%s203 + $0x2a20] sm:$0xff]
        %v1643 = vld [vmem:[%s203 + $0x2a28] sm:$0xff]
        %v1644 = vld [vmem:[%s203 + $0x2a30] sm:$0xff]
        %v1645 = vld [vmem:[%s203 + $0x2a38] sm:$0xff]
        %v1646 = vld [vmem:[%s203 + $0x2a40] sm:$0xff]
        %v1647 = vld [vmem:[%s203 + $0x2a48] sm:$0xff]
        %v1648 = vld [vmem:[%s203 + $0x2a50] sm:$0xff]
        %v1649 = vld [vmem:[%s203 + $0x2a58] sm:$0xff]
        %v1650 = vld [vmem:[%s203 + $0x2a60] sm:$0xff]
        %v1651 = vld [vmem:[%s203 + $0x2a68] sm:$0xff]
        %v1652 = vld [vmem:[%s203 + $0x2a70] sm:$0xff]
        %v1653 = vld [vmem:[%s203 + $0x2a78] sm:$0xff]
        %v1654 = vld [vmem:[%s203 + $0x2a80] sm:$0xff]
        %v1655 = vld [vmem:[%s203 + $0x2a88] sm:$0xff]
        %v1656 = vld [vmem:[%s203 + $0x2a90] sm:$0xff]
        %v1657 = vld [vmem:[%s203 + $0x2a98] sm:$0xff]
        %v1658 = vld [vmem:[%s203 + $0x2aa0] sm:$0xff]
        %v1659 = vld [vmem:[%s203 + $0x2aa8] sm:$0xff]
        %v1660 = vld [vmem:[%s203 + $0x2ab0] sm:$0xff]
        %v1661 = vld [vmem:[%s203 + $0x2ab8] sm:$0xff]
        %v1662 = vld [vmem:[%s203 + $0x2ac0] sm:$0xff]
        %v1663 = vld [vmem:[%s203 + $0x2ac8] sm:$0xff]
        %v1664 = vld [vmem:[%s203 + $0x2ad0] sm:$0xff]
        %v1665 = vld [vmem:[%s203 + $0x2ad8] sm:$0xff]
        %v1666 = vld [vmem:[%s203 + $0x2ae0] sm:$0xff]
        %v1667 = vld [vmem:[%s203 + $0x2ae8] sm:$0xff]
        %v1668 = vld [vmem:[%s203 + $0x2af0] sm:$0xff]
        %v1669 = vld [vmem:[%s203 + $0x2af8] sm:$0xff]
        %v1670 = vld [vmem:[%s203 + $0x2b00] sm:$0xff]
        %v1671 = vld [vmem:[%s203 + $0x2b08] sm:$0xff]
        %v1672 = vld [vmem:[%s203 + $0x2b10] sm:$0xff]
        %v1673 = vld [vmem:[%s203 + $0x2b18] sm:$0xff]
        %v1674 = vld [vmem:[%s203 + $0x2b20] sm:$0xff]
        %v1675 = vld [vmem:[%s203 + $0x2b28] sm:$0xff]
        %v1676 = vld [vmem:[%s203 + $0x2b30] sm:$0xff]
        %v1677 = vld [vmem:[%s203 + $0x2b38] sm:$0xff]
        %v1678 = vld [vmem:[%s203 + $0x2b40] sm:$0xff]
        %v1679 = vld [vmem:[%s203 + $0x2b48] sm:$0xff]
        %v1680 = vld [vmem:[%s203 + $0x2b50] sm:$0xff]
        %v1681 = vld [vmem:[%s203 + $0x2b58] sm:$0xff]
        %v1682 = vld [vmem:[%s203 + $0x2b60] sm:$0xff]
        %v1683 = vld [vmem:[%s203 + $0x2b68] sm:$0xff]
        %v1684 = vld [vmem:[%s203 + $0x2b70] sm:$0xff]
        %v1685 = vld [vmem:[%s203 + $0x2b78] sm:$0xff]
        %v1686 = vld [vmem:[%s203 + $0x2b80] sm:$0xff]
        %v1687 = vld [vmem:[%s203 + $0x2b88] sm:$0xff]
        %v1688 = vld [vmem:[%s203 + $0x2b90] sm:$0xff]
        %v1689 = vld [vmem:[%s203 + $0x2b98] sm:$0xff]
        %v1690 = vld [vmem:[%s203 + $0x2ba0] sm:$0xff]
        %v1691 = vld [vmem:[%s203 + $0x2ba8] sm:$0xff]
        %v1692 = vld [vmem:[%s203 + $0x2bb0] sm:$0xff]
        %v1693 = vld [vmem:[%s203 + $0x2bb8] sm:$0xff]
        %v1694 = vld [vmem:[%s203 + $0x2bc0] sm:$0xff]
        %v1695 = vld [vmem:[%s203 + $0x2bc8] sm:$0xff]
        %v1696 = vld [vmem:[%s203 + $0x2bd0] sm:$0xff]
        %v1697 = vld [vmem:[%s203 + $0x2bd8] sm:$0xff]
        %v1698 = vld [vmem:[%s203 + $0x2be0] sm:$0xff]
        %v1699 = vld [vmem:[%s203 + $0x2be8] sm:$0xff]
        %v1700 = vld [vmem:[%s203 + $0x2bf0] sm:$0xff]
        %v1701 = vld [vmem:[%s203 + $0x2bf8] sm:$0xff]
        %v1702 = vld [vmem:[%s203 + $0x2c00] sm:$0xff]
        %v1703 = vld [vmem:[%s203 + $0x2c08] sm:$0xff]
        %v1704 = vld [vmem:[%s203 + $0x2c10] sm:$0xff]
        %v1705 = vld [vmem:[%s203 + $0x2c18] sm:$0xff]
        %v1706 = vld [vmem:[%s203 + $0x2c20] sm:$0xff]
        %v1707 = vld [vmem:[%s203 + $0x2c28] sm:$0xff]
        %v1708 = vld [vmem:[%s203 + $0x2c30] sm:$0xff]
        %v1709 = vld [vmem:[%s203 + $0x2c38] sm:$0xff]
        %v1710 = vld [vmem:[%s203 + $0x2c40] sm:$0xff]
        %v1711 = vld [vmem:[%s203 + $0x2c48] sm:$0xff]
        %v1712 = vld [vmem:[%s203 + $0x2c50] sm:$0xff]
        %v1713 = vld [vmem:[%s203 + $0x2c58] sm:$0xff]
        %v1714 = vld [vmem:[%s203 + $0x2c60] sm:$0xff]
        %v1715 = vld [vmem:[%s203 + $0x2c68] sm:$0xff]
        %v1716 = vld [vmem:[%s203 + $0x2c70] sm:$0xff]
        %v1717 = vld [vmem:[%s203 + $0x2c78] sm:$0xff]
        %v1718 = vld [vmem:[%s203 + $0x2c80] sm:$0xff]
        %v1719 = vld [vmem:[%s203 + $0x2c88] sm:$0xff]
        %v1720 = vld [vmem:[%s203 + $0x2c90] sm:$0xff]
        %v1721 = vld [vmem:[%s203 + $0x2c98] sm:$0xff]
        %v1722 = vld [vmem:[%s203 + $0x2ca0] sm:$0xff]
        %v1723 = vld [vmem:[%s203 + $0x2ca8] sm:$0xff]
        %v1724 = vld [vmem:[%s203 + $0x2cb0] sm:$0xff]
        %v1725 = vld [vmem:[%s203 + $0x2cb8] sm:$0xff]
        %v1726 = vld [vmem:[%s203 + $0x2cc0] sm:$0xff]
        %v1727 = vld [vmem:[%s203 + $0x2cc8] sm:$0xff]
        %v1728 = vld [vmem:[%s203 + $0x2cd0] sm:$0xff]
        %v1729 = vld [vmem:[%s203 + $0x2cd8] sm:$0xff]
        %v1730 = vld [vmem:[%s203 + $0x2ce0] sm:$0xff]
        %v1731 = vld [vmem:[%s203 + $0x2ce8] sm:$0xff]
        %v1732 = vld [vmem:[%s203 + $0x2cf0] sm:$0xff]
        %v1733 = vld [vmem:[%s203 + $0x2cf8] sm:$0xff]
        %v1734 = vld [vmem:[%s203 + $0x2d00] sm:$0xff]
        %v1735 = vld [vmem:[%s203 + $0x2d08] sm:$0xff]
        %v1736 = vld [vmem:[%s203 + $0x2d10] sm:$0xff]
        %v1737 = vld [vmem:[%s203 + $0x2d18] sm:$0xff]
        %v1738 = vld [vmem:[%s203 + $0x2d20] sm:$0xff]
        %v1739 = vld [vmem:[%s203 + $0x2d28] sm:$0xff]
        %v1740 = vld [vmem:[%s203 + $0x2d30] sm:$0xff]
        %v1741 = vld [vmem:[%s203 + $0x2d38] sm:$0xff]
        %v1742 = vld [vmem:[%s203 + $0x2d40] sm:$0xff]
        %v1743 = vld [vmem:[%s203 + $0x2d48] sm:$0xff]
        %v1744 = vld [vmem:[%s203 + $0x2d50] sm:$0xff]
        %v1745 = vld [vmem:[%s203 + $0x2d58] sm:$0xff]
        %v1746 = vld [vmem:[%s203 + $0x2d60] sm:$0xff]
        %v1747 = vld [vmem:[%s203 + $0x2d68] sm:$0xff]
        %v1748 = vld [vmem:[%s203 + $0x2d70] sm:$0xff]
        %v1749 = vld [vmem:[%s203 + $0x2d78] sm:$0xff]
        %v1750 = vld [vmem:[%s203 + $0x2d80] sm:$0xff]
        %v1751 = vld [vmem:[%s203 + $0x2d88] sm:$0xff]
        %v1752 = vld [vmem:[%s203 + $0x2d90] sm:$0xff]
        %v1753 = vld [vmem:[%s203 + $0x2d98] sm:$0xff]
        %v1754 = vld [vmem:[%s203 + $0x2da0] sm:$0xff]
        %v1755 = vld [vmem:[%s203 + $0x2da8] sm:$0xff]
        %v1756 = vld [vmem:[%s203 + $0x2db0] sm:$0xff]
        %v1757 = vld [vmem:[%s203 + $0x2db8] sm:$0xff]
        %v1758 = vld [vmem:[%s203 + $0x2dc0] sm:$0xff]
        %v1759 = vld [vmem:[%s203 + $0x2dc8] sm:$0xff]
        %v1760 = vld [vmem:[%s203 + $0x2dd0] sm:$0xff]
        %v1761 = vld [vmem:[%s203 + $0x2dd8] sm:$0xff]
        %v1762 = vld [vmem:[%s203 + $0x2de0] sm:$0xff]
        %v1763 = vld [vmem:[%s203 + $0x2de8] sm:$0xff]
        %v1764 = vld [vmem:[%s203 + $0x2df0] sm:$0xff]
        %v1765 = vld [vmem:[%s203 + $0x2df8] sm:$0xff]
        %v1766 = vld [vmem:[%s203 + $0x2e00] sm:$0xff]
        %v1767 = vld [vmem:[%s203 + $0x2e08] sm:$0xff]
        %v1768 = vld [vmem:[%s203 + $0x2e10] sm:$0xff]
        %v1769 = vld [vmem:[%s203 + $0x2e18] sm:$0xff]
        %v1770 = vld [vmem:[%s203 + $0x2e20] sm:$0xff]
        %v1771 = vld [vmem:[%s203 + $0x2e28] sm:$0xff]
        %v1772 = vld [vmem:[%s203 + $0x2e30] sm:$0xff]
        %v1773 = vld [vmem:[%s203 + $0x2e38] sm:$0xff]
        %v1774 = vld [vmem:[%s203 + $0x2e40] sm:$0xff]
        %v1775 = vld [vmem:[%s203 + $0x2e48] sm:$0xff]
        %v1776 = vld [vmem:[%s203 + $0x2e50] sm:$0xff]
        %v1777 = vld [vmem:[%s203 + $0x2e58] sm:$0xff]
        %v1778 = vld [vmem:[%s203 + $0x2e60] sm:$0xff]
        %v1779 = vld [vmem:[%s203 + $0x2e68] sm:$0xff]
        %v1780 = vld [vmem:[%s203 + $0x2e70] sm:$0xff]
        %v1781 = vld [vmem:[%s203 + $0x2e78] sm:$0xff]
        %v1782 = vld [vmem:[%s203 + $0x2e80] sm:$0xff]
        %v1783 = vld [vmem:[%s203 + $0x2e88] sm:$0xff]
        %v1784 = vld [vmem:[%s203 + $0x2e90] sm:$0xff]
        %v1785 = vld [vmem:[%s203 + $0x2e98] sm:$0xff]
        %v1786 = vld [vmem:[%s203 + $0x2ea0] sm:$0xff]
        %v1787 = vld [vmem:[%s203 + $0x2ea8] sm:$0xff]
        %v1788 = vld [vmem:[%s203 + $0x2eb0] sm:$0xff]
        %v1789 = vld [vmem:[%s203 + $0x2eb8] sm:$0xff]
        %v1790 = vld [vmem:[%s203 + $0x2ec0] sm:$0xff]
        %v1791 = vld [vmem:[%s203 + $0x2ec8] sm:$0xff]
        %v1792 = vld [vmem:[%s203 + $0x2ed0] sm:$0xff]
        %v1793 = vld [vmem:[%s203 + $0x2ed8] sm:$0xff]
        %v1794 = vld [vmem:[%s203 + $0x2ee0] sm:$0xff]
        %v1795 = vld [vmem:[%s203 + $0x2ee8] sm:$0xff]
        %v1796 = vld [vmem:[%s203 + $0x2ef0] sm:$0xff]
        %v1797 = vld [vmem:[%s203 + $0x2ef8] sm:$0xff]
        %v1798 = vld [vmem:[%s203 + $0x2f00] sm:$0xff]
        %v1799 = vld [vmem:[%s203 + $0x2f08] sm:$0xff]
        %v1800 = vld [vmem:[%s203 + $0x2f10] sm:$0xff]
        %v1801 = vld [vmem:[%s203 + $0x2f18] sm:$0xff]
        %v1802 = vld [vmem:[%s203 + $0x2f20] sm:$0xff]
        %v1803 = vld [vmem:[%s203 + $0x2f28] sm:$0xff]
        %v1804 = vld [vmem:[%s203 + $0x2f30] sm:$0xff]
        %v1805 = vld [vmem:[%s203 + $0x2f38] sm:$0xff]
        %v1806 = vld [vmem:[%s203 + $0x2f40] sm:$0xff]
        %v1807 = vld [vmem:[%s203 + $0x2f48] sm:$0xff]
        %v1808 = vld [vmem:[%s203 + $0x2f50] sm:$0xff]
        %v1809 = vld [vmem:[%s203 + $0x2f58] sm:$0xff]
        %v1810 = vld [vmem:[%s203 + $0x2f60] sm:$0xff]
        %v1811 = vld [vmem:[%s203 + $0x2f68] sm:$0xff]
        %v1812 = vld [vmem:[%s203 + $0x2f70] sm:$0xff]
        %v1813 = vld [vmem:[%s203 + $0x2f78] sm:$0xff]
        %v1814 = vld [vmem:[%s203 + $0x2f80] sm:$0xff]
        %v1815 = vld [vmem:[%s203 + $0x2f88] sm:$0xff]
        %v1816 = vld [vmem:[%s203 + $0x2f90] sm:$0xff]
        %v1817 = vld [vmem:[%s203 + $0x2f98] sm:$0xff]
        %v1818 = vld [vmem:[%s203 + $0x2fa0] sm:$0xff]
        %v1819 = vld [vmem:[%s203 + $0x2fa8] sm:$0xff]
        %v1820 = vld [vmem:[%s203 + $0x2fb0] sm:$0xff]
        %v1821 = vld [vmem:[%s203 + $0x2fb8] sm:$0xff]
        %v1822 = vld [vmem:[%s203 + $0x2fc0] sm:$0xff]
        %v1823 = vld [vmem:[%s203 + $0x2fc8] sm:$0xff]
        %v1824 = vld [vmem:[%s203 + $0x2fd0] sm:$0xff]
        %v1825 = vld [vmem:[%s203 + $0x2fd8] sm:$0xff]
        %v1826 = vld [vmem:[%s203 + $0x2fe0] sm:$0xff]
        %v1827 = vld [vmem:[%s203 + $0x2fe8] sm:$0xff]
        %v1828 = vld [vmem:[%s203 + $0x2ff0] sm:$0xff]
        %v1829 = vld [vmem:[%s203 + $0x2ff8] sm:$0xff]
        %v1830 = vld [vmem:[%s203 + $0x3000] sm:$0xff]
        %v1831 = vld [vmem:[%s203 + $0x3008] sm:$0xff]
        %v1832 = vld [vmem:[%s203 + $0x3010] sm:$0xff]
        %v1833 = vld [vmem:[%s203 + $0x3018] sm:$0xff]
        %v1834 = vld [vmem:[%s203 + $0x3020] sm:$0xff]
        %v1835 = vld [vmem:[%s203 + $0x3028] sm:$0xff]
        %v1836 = vld [vmem:[%s203 + $0x3030] sm:$0xff]
        %v1837 = vld [vmem:[%s203 + $0x3038] sm:$0xff]
        %v1838 = vld [vmem:[%s203 + $0x3040] sm:$0xff]
        %v1839 = vld [vmem:[%s203 + $0x3048] sm:$0xff]
        %v1840 = vld [vmem:[%s203 + $0x3050] sm:$0xff]
        %v1841 = vld [vmem:[%s203 + $0x3058] sm:$0xff]
        %v1842 = vld [vmem:[%s203 + $0x3060] sm:$0xff]
        %v1843 = vld [vmem:[%s203 + $0x3068] sm:$0xff]
        %v1844 = vld [vmem:[%s203 + $0x3070] sm:$0xff]
        %v1845 = vld [vmem:[%s203 + $0x3078] sm:$0xff]
        %v1846 = vld [vmem:[%s203 + $0x3080] sm:$0xff]
        %v1847 = vld [vmem:[%s203 + $0x3088] sm:$0xff]
        %v1848 = vld [vmem:[%s203 + $0x3090] sm:$0xff]
        %v1849 = vld [vmem:[%s203 + $0x3098] sm:$0xff]
        %v1850 = vld [vmem:[%s203 + $0x30a0] sm:$0xff]
        %v1851 = vld [vmem:[%s203 + $0x30a8] sm:$0xff]
        %v1852 = vld [vmem:[%s203 + $0x30b0] sm:$0xff]
        %v1853 = vld [vmem:[%s203 + $0x30b8] sm:$0xff]
        %v1854 = vld [vmem:[%s203 + $0x30c0] sm:$0xff]
        %v1855 = vld [vmem:[%s203 + $0x30c8] sm:$0xff]
        %v1856 = vld [vmem:[%s203 + $0x30d0] sm:$0xff]
        %v1857 = vld [vmem:[%s203 + $0x30d8] sm:$0xff]
        %v1858 = vld [vmem:[%s203 + $0x30e0] sm:$0xff]
        %v1859 = vld [vmem:[%s203 + $0x30e8] sm:$0xff]
        %v1860 = vld [vmem:[%s203 + $0x30f0] sm:$0xff]
        %v1861 = vld [vmem:[%s203 + $0x30f8] sm:$0xff]
        %v1862 = vld [vmem:[%s203 + $0x3100] sm:$0xff]
        %v1863 = vld [vmem:[%s203 + $0x3108] sm:$0xff]
        %v1864 = vld [vmem:[%s203 + $0x3110] sm:$0xff]
        %v1865 = vld [vmem:[%s203 + $0x3118] sm:$0xff]
        %v1866 = vld [vmem:[%s203 + $0x3120] sm:$0xff]
        %v1867 = vld [vmem:[%s203 + $0x3128] sm:$0xff]
        %v1868 = vld [vmem:[%s203 + $0x3130] sm:$0xff]
        %v1869 = vld [vmem:[%s203 + $0x3138] sm:$0xff]
        %v1870 = vld [vmem:[%s203 + $0x3140] sm:$0xff]
        %v1871 = vld [vmem:[%s203 + $0x3148] sm:$0xff]
        %v1872 = vld [vmem:[%s203 + $0x3150] sm:$0xff]
        %v1873 = vld [vmem:[%s203 + $0x3158] sm:$0xff]
        %v1874 = vld [vmem:[%s203 + $0x3160] sm:$0xff]
        %v1875 = vld [vmem:[%s203 + $0x3168] sm:$0xff]
        %v1876 = vld [vmem:[%s203 + $0x3170] sm:$0xff]
        %v1877 = vld [vmem:[%s203 + $0x3178] sm:$0xff]
        %v1878 = vld [vmem:[%s203 + $0x3180] sm:$0xff]
        %v1879 = vld [vmem:[%s203 + $0x3188] sm:$0xff]
        %v1880 = vld [vmem:[%s203 + $0x3190] sm:$0xff]
        %v1881 = vld [vmem:[%s203 + $0x3198] sm:$0xff]
        %v1882 = vld [vmem:[%s203 + $0x31a0] sm:$0xff]
        %v1883 = vld [vmem:[%s203 + $0x31a8] sm:$0xff]
        %v1884 = vld [vmem:[%s203 + $0x31b0] sm:$0xff]
        %v1885 = vld [vmem:[%s203 + $0x31b8] sm:$0xff]
        %v1886 = vld [vmem:[%s203 + $0x31c0] sm:$0xff]
        %v1887 = vld [vmem:[%s203 + $0x31c8] sm:$0xff]
        %v1888 = vld [vmem:[%s203 + $0x31d0] sm:$0xff]
        %v1889 = vld [vmem:[%s203 + $0x31d8] sm:$0xff]
        %v1890 = vld [vmem:[%s203 + $0x31e0] sm:$0xff]
        %v1891 = vld [vmem:[%s203 + $0x31e8] sm:$0xff]
        %v1892 = vld [vmem:[%s203 + $0x31f0] sm:$0xff]
        %v1893 = vld [vmem:[%s203 + $0x31f8] sm:$0xff]
        %v1894 = vld [vmem:[%s203 + $0x3200] sm:$0xff]
        %v1895 = vld [vmem:[%s203 + $0x3208] sm:$0xff]
        %v1896 = vld [vmem:[%s203 + $0x3210] sm:$0xff]
        %v1897 = vld [vmem:[%s203 + $0x3218] sm:$0xff]
        %v1898 = vld [vmem:[%s203 + $0x3220] sm:$0xff]
        %v1899 = vld [vmem:[%s203 + $0x3228] sm:$0xff]
        %v1900 = vld [vmem:[%s203 + $0x3230] sm:$0xff]
        %v1901 = vld [vmem:[%s203 + $0x3238] sm:$0xff]
        %v1902 = vld [vmem:[%s203 + $0x3240] sm:$0xff]
        %v1903 = vld [vmem:[%s203 + $0x3248] sm:$0xff]
        %v1904 = vld [vmem:[%s203 + $0x3250] sm:$0xff]
        %v1905 = vld [vmem:[%s203 + $0x3258] sm:$0xff]
        %v1906 = vld [vmem:[%s203 + $0x3260] sm:$0xff]
        %v1907 = vld [vmem:[%s203 + $0x3268] sm:$0xff]
        %v1908 = vld [vmem:[%s203 + $0x3270] sm:$0xff]
        %v1909 = vld [vmem:[%s203 + $0x3278] sm:$0xff]
        %v1910 = vld [vmem:[%s203 + $0x3280] sm:$0xff]
        %v1911 = vld [vmem:[%s203 + $0x3288] sm:$0xff]
        %v1912 = vld [vmem:[%s203 + $0x3290] sm:$0xff]
        %v1913 = vld [vmem:[%s203 + $0x3298] sm:$0xff]
        %v1914 = vld [vmem:[%s203 + $0x32a0] sm:$0xff]
        %v1915 = vld [vmem:[%s203 + $0x32a8] sm:$0xff]
        %v1916 = vld [vmem:[%s203 + $0x32b0] sm:$0xff]
        %v1917 = vld [vmem:[%s203 + $0x32b8] sm:$0xff]
        %v1918 = vld [vmem:[%s203 + $0x32c0] sm:$0xff]
        %v1919 = vld [vmem:[%s203 + $0x32c8] sm:$0xff]
        %v1920 = vld [vmem:[%s203 + $0x32d0] sm:$0xff]
        %v1921 = vld [vmem:[%s203 + $0x32d8] sm:$0xff]
        %v1922 = vld [vmem:[%s203 + $0x32e0] sm:$0xff]
        %v1923 = vld [vmem:[%s203 + $0x32e8] sm:$0xff]
        %v1924 = vld [vmem:[%s203 + $0x32f0] sm:$0xff]
        %v1925 = vld [vmem:[%s203 + $0x32f8] sm:$0xff]
        %v1926 = vld [vmem:[%s203 + $0x3300] sm:$0xff]
        %v1927 = vld [vmem:[%s203 + $0x3308] sm:$0xff]
        %v1928 = vld [vmem:[%s203 + $0x3310] sm:$0xff]
        %v1929 = vld [vmem:[%s203 + $0x3318] sm:$0xff]
        %v1930 = vld [vmem:[%s203 + $0x3320] sm:$0xff]
        %v1931 = vld [vmem:[%s203 + $0x3328] sm:$0xff]
        %v1932 = vld [vmem:[%s203 + $0x3330] sm:$0xff]
        %v1933 = vld [vmem:[%s203 + $0x3338] sm:$0xff]
        %v1934 = vld [vmem:[%s203 + $0x3340] sm:$0xff]
        %v1935 = vld [vmem:[%s203 + $0x3348] sm:$0xff]
        %v1936 = vld [vmem:[%s203 + $0x3350] sm:$0xff]
        %v1937 = vld [vmem:[%s203 + $0x3358] sm:$0xff]
        %v1938 = vld [vmem:[%s203 + $0x3360] sm:$0xff]
        %v1939 = vld [vmem:[%s203 + $0x3368] sm:$0xff]
        %v1940 = vld [vmem:[%s203 + $0x3370] sm:$0xff]
        %v1941 = vld [vmem:[%s203 + $0x3378] sm:$0xff]
        %v1942 = vld [vmem:[%s203 + $0x3380] sm:$0xff]
        %v1943 = vld [vmem:[%s203 + $0x3388] sm:$0xff]
        %v1944 = vld [vmem:[%s203 + $0x3390] sm:$0xff]
        %v1945 = vld [vmem:[%s203 + $0x3398] sm:$0xff]
        %v1946 = vld [vmem:[%s203 + $0x33a0] sm:$0xff]
        %v1947 = vld [vmem:[%s203 + $0x33a8] sm:$0xff]
        %v1948 = vld [vmem:[%s203 + $0x33b0] sm:$0xff]
        %v1949 = vld [vmem:[%s203 + $0x33b8] sm:$0xff]
        %v1950 = vld [vmem:[%s203 + $0x33c0] sm:$0xff]
        %v1951 = vld [vmem:[%s203 + $0x33c8] sm:$0xff]
        %v1952 = vld [vmem:[%s203 + $0x33d0] sm:$0xff]
        %v1953 = vld [vmem:[%s203 + $0x33d8] sm:$0xff]
        %v1954 = vld [vmem:[%s203 + $0x33e0] sm:$0xff]
        %v1955 = vld [vmem:[%s203 + $0x33e8] sm:$0xff]
        %v1956 = vld [vmem:[%s203 + $0x33f0] sm:$0xff]
        %v1957 = vld [vmem:[%s203 + $0x33f8] sm:$0xff]
        %v1958 = vld [vmem:[%s203 + $0x3400] sm:$0xff]
        %v1959 = vld [vmem:[%s203 + $0x3408] sm:$0xff]
        %v1960 = vld [vmem:[%s203 + $0x3410] sm:$0xff]
        %v1961 = vld [vmem:[%s203 + $0x3418] sm:$0xff]
        %v1962 = vld [vmem:[%s203 + $0x3420] sm:$0xff]
        %v1963 = vld [vmem:[%s203 + $0x3428] sm:$0xff]
        %v1964 = vld [vmem:[%s203 + $0x3430] sm:$0xff]
        %v1965 = vld [vmem:[%s203 + $0x3438] sm:$0xff]
        %v1966 = vld [vmem:[%s203 + $0x3440] sm:$0xff]
        %v1967 = vld [vmem:[%s203 + $0x3448] sm:$0xff]
        %v1968 = vld [vmem:[%s203 + $0x3450] sm:$0xff]
        %v1969 = vld [vmem:[%s203 + $0x3458] sm:$0xff]
        %v1970 = vld [vmem:[%s203 + $0x3460] sm:$0xff]
        %v1971 = vld [vmem:[%s203 + $0x3468] sm:$0xff]
        %v1972 = vld [vmem:[%s203 + $0x3470] sm:$0xff]
        %v1973 = vld [vmem:[%s203 + $0x3478] sm:$0xff]
        %v1974 = vld [vmem:[%s203 + $0x3480] sm:$0xff]
        %v1975 = vld [vmem:[%s203 + $0x3488] sm:$0xff]
        %v1976 = vld [vmem:[%s203 + $0x3490] sm:$0xff]
        %v1977 = vld [vmem:[%s203 + $0x3498] sm:$0xff]
        %v1978 = vld [vmem:[%s203 + $0x34a0] sm:$0xff]
        %v1979 = vld [vmem:[%s203 + $0x34a8] sm:$0xff]
        %v1980 = vld [vmem:[%s203 + $0x34b0] sm:$0xff]
        %v1981 = vld [vmem:[%s203 + $0x34b8] sm:$0xff]
        %v1982 = vld [vmem:[%s203 + $0x34c0] sm:$0xff]
        %v1983 = vld [vmem:[%s203 + $0x34c8] sm:$0xff]
        %v1984 = vld [vmem:[%s203 + $0x34d0] sm:$0xff]
        %v1985 = vld [vmem:[%s203 + $0x34d8] sm:$0xff]
        %v1986 = vld [vmem:[%s203 + $0x34e0] sm:$0xff]
        %v1987 = vld [vmem:[%s203 + $0x34e8] sm:$0xff]
        %v1988 = vld [vmem:[%s203 + $0x34f0] sm:$0xff]
        %v1989 = vld [vmem:[%s203 + $0x34f8] sm:$0xff]
        %v1990 = vld [vmem:[%s203 + $0x3500] sm:$0xff]
        %v1991 = vld [vmem:[%s203 + $0x3508] sm:$0xff]
        %v1992 = vld [vmem:[%s203 + $0x3510] sm:$0xff]
        %v1993 = vld [vmem:[%s203 + $0x3518] sm:$0xff]
        %v1994 = vld [vmem:[%s203 + $0x3520] sm:$0xff]
        %v1995 = vld [vmem:[%s203 + $0x3528] sm:$0xff]
        %v1996 = vld [vmem:[%s203 + $0x3530] sm:$0xff]
        %v1997 = vld [vmem:[%s203 + $0x3538] sm:$0xff]
        %v1998 = vld [vmem:[%s203 + $0x3540] sm:$0xff]
        %v1999 = vld [vmem:[%s203 + $0x3548] sm:$0xff]
        %v2000 = vld [vmem:[%s203 + $0x3550] sm:$0xff]
        %v2001 = vld [vmem:[%s203 + $0x3558] sm:$0xff]
        %v2002 = vld [vmem:[%s203 + $0x3560] sm:$0xff]
        %v2003 = vld [vmem:[%s203 + $0x3568] sm:$0xff]
        %v2004 = vld [vmem:[%s203 + $0x3570] sm:$0xff]
        %v2005 = vld [vmem:[%s203 + $0x3578] sm:$0xff]
        %v2006 = vld [vmem:[%s203 + $0x3580] sm:$0xff]
        %v2007 = vld [vmem:[%s203 + $0x3588] sm:$0xff]
        %v2008 = vld [vmem:[%s203 + $0x3590] sm:$0xff]
        %v2009 = vld [vmem:[%s203 + $0x3598] sm:$0xff]
        %v2010 = vld [vmem:[%s203 + $0x35a0] sm:$0xff]
        %v2011 = vld [vmem:[%s203 + $0x35a8] sm:$0xff]
        %v2012 = vld [vmem:[%s203 + $0x35b0] sm:$0xff]
        %v2013 = vld [vmem:[%s203 + $0x35b8] sm:$0xff]
        %v2014 = vld [vmem:[%s203 + $0x35c0] sm:$0xff]
        %v2015 = vld [vmem:[%s203 + $0x35c8] sm:$0xff]
        %v2016 = vld [vmem:[%s203 + $0x35d0] sm:$0xff]
        %v2017 = vld [vmem:[%s203 + $0x35d8] sm:$0xff]
        %v2018 = vld [vmem:[%s203 + $0x35e0] sm:$0xff]
        %v2019 = vld [vmem:[%s203 + $0x35e8] sm:$0xff]
        %v2020 = vld [vmem:[%s203 + $0x35f0] sm:$0xff]
        %v2021 = vld [vmem:[%s203 + $0x35f8] sm:$0xff]
        %v2022 = vld [vmem:[%s203 + $0x3600] sm:$0xff]
        %v2023 = vld [vmem:[%s203 + $0x3608] sm:$0xff]
        %v2024 = vld [vmem:[%s203 + $0x3610] sm:$0xff]
        %v2025 = vld [vmem:[%s203 + $0x3618] sm:$0xff]
        %v2026 = vld [vmem:[%s203 + $0x3620] sm:$0xff]
        %v2027 = vld [vmem:[%s203 + $0x3628] sm:$0xff]
        %v2028 = vld [vmem:[%s203 + $0x3630] sm:$0xff]
        %v2029 = vld [vmem:[%s203 + $0x3638] sm:$0xff]
        %v2030 = vld [vmem:[%s203 + $0x3640] sm:$0xff]
        %v2031 = vld [vmem:[%s203 + $0x3648] sm:$0xff]
        %v2032 = vld [vmem:[%s203 + $0x3650] sm:$0xff]
        %v2033 = vld [vmem:[%s203 + $0x3658] sm:$0xff]
        %v2034 = vld [vmem:[%s203 + $0x3660] sm:$0xff]
        %v2035 = vld [vmem:[%s203 + $0x3668] sm:$0xff]
        %v2036 = vld [vmem:[%s203 + $0x3670] sm:$0xff]
        %v2037 = vld [vmem:[%s203 + $0x3678] sm:$0xff]
        %v2038 = vld [vmem:[%s203 + $0x3680] sm:$0xff]
        %v2039 = vld [vmem:[%s203 + $0x3688] sm:$0xff]
        %v2040 = vld [vmem:[%s203 + $0x3690] sm:$0xff]
        %v2041 = vld [vmem:[%s203 + $0x3698] sm:$0xff]
        %v2042 = vld [vmem:[%s203 + $0x36a0] sm:$0xff]
        %v2043 = vld [vmem:[%s203 + $0x36a8] sm:$0xff]
        %v2044 = vld [vmem:[%s203 + $0x36b0] sm:$0xff]
        %v2045 = vld [vmem:[%s203 + $0x36b8] sm:$0xff]
        %v2046 = vld [vmem:[%s203 + $0x36c0] sm:$0xff]
        %v2047 = vld [vmem:[%s203 + $0x36c8] sm:$0xff]
        %v2048 = vld [vmem:[%s203 + $0x36d0] sm:$0xff]
        %v2049 = vld [vmem:[%s203 + $0x36d8] sm:$0xff]
        %v2050 = vld [vmem:[%s203 + $0x36e0] sm:$0xff]
        %v2051 = vld [vmem:[%s203 + $0x36e8] sm:$0xff]
        %v2052 = vld [vmem:[%s203 + $0x36f0] sm:$0xff]
        %v2053 = vld [vmem:[%s203 + $0x36f8] sm:$0xff]
        %v2054 = vld [vmem:[%s203 + $0x3700] sm:$0xff]
        %v2055 = vld [vmem:[%s203 + $0x3708] sm:$0xff]
        %v2056 = vld [vmem:[%s203 + $0x3710] sm:$0xff]
        %v2057 = vld [vmem:[%s203 + $0x3718] sm:$0xff]
        %v2058 = vld [vmem:[%s203 + $0x3720] sm:$0xff]
        %v2059 = vld [vmem:[%s203 + $0x3728] sm:$0xff]
        %v2060 = vld [vmem:[%s203 + $0x3730] sm:$0xff]
        %v2061 = vld [vmem:[%s203 + $0x3738] sm:$0xff]
        %v2062 = vld [vmem:[%s203 + $0x3740] sm:$0xff]
        %v2063 = vld [vmem:[%s203 + $0x3748] sm:$0xff]
        %v2064 = vld [vmem:[%s203 + $0x3750] sm:$0xff]
        %v2065 = vld [vmem:[%s203 + $0x3758] sm:$0xff]
        %v2066 = vld [vmem:[%s203 + $0x3760] sm:$0xff]
        %v2067 = vld [vmem:[%s203 + $0x3768] sm:$0xff]
        %v2068 = vld [vmem:[%s203 + $0x3770] sm:$0xff]
        %v2069 = vld [vmem:[%s203 + $0x3778] sm:$0xff]
        %v2070 = vld [vmem:[%s203 + $0x3780] sm:$0xff]
        %v2071 = vld [vmem:[%s203 + $0x3788] sm:$0xff]
        %v2072 = vld [vmem:[%s203 + $0x3790] sm:$0xff]
        %v2073 = vld [vmem:[%s203 + $0x3798] sm:$0xff]
        %v2074 = vld [vmem:[%s203 + $0x37a0] sm:$0xff]
        %v2075 = vld [vmem:[%s203 + $0x37a8] sm:$0xff]
        %v2076 = vld [vmem:[%s203 + $0x37b0] sm:$0xff]
        %v2077 = vld [vmem:[%s203 + $0x37b8] sm:$0xff]
        %v2078 = vld [vmem:[%s203 + $0x37c0] sm:$0xff]
        %v2079 = vld [vmem:[%s203 + $0x37c8] sm:$0xff]
        %v2080 = vld [vmem:[%s203 + $0x37d0] sm:$0xff]
        %v2081 = vld [vmem:[%s203 + $0x37d8] sm:$0xff]
        %v2082 = vld [vmem:[%s203 + $0x37e0] sm:$0xff]
        %v2083 = vld [vmem:[%s203 + $0x37e8] sm:$0xff]
        %v2084 = vld [vmem:[%s203 + $0x37f0] sm:$0xff]
        %v2085 = vld [vmem:[%s203 + $0x37f8] sm:$0xff]
        %v2086 = vld [vmem:[%s203 + $0x3800] sm:$0xff]
        %v2087 = vld [vmem:[%s203 + $0x3808] sm:$0xff]
        %v2088 = vld [vmem:[%s203 + $0x3810] sm:$0xff]
        %v2089 = vld [vmem:[%s203 + $0x3818] sm:$0xff]
        %v2090 = vld [vmem:[%s203 + $0x3820] sm:$0xff]
        %v2091 = vld [vmem:[%s203 + $0x3828] sm:$0xff]
        %v2092 = vld [vmem:[%s203 + $0x3830] sm:$0xff]
        %v2093 = vld [vmem:[%s203 + $0x3838] sm:$0xff]
        %v2094 = vld [vmem:[%s203 + $0x3840] sm:$0xff]
        %v2095 = vld [vmem:[%s203 + $0x3848] sm:$0xff]
        %v2096 = vld [vmem:[%s203 + $0x3850] sm:$0xff]
        %v2097 = vld [vmem:[%s203 + $0x3858] sm:$0xff]
        %v2098 = vld [vmem:[%s203 + $0x3860] sm:$0xff]
        %v2099 = vld [vmem:[%s203 + $0x3868] sm:$0xff]
        %v2100 = vld [vmem:[%s203 + $0x3870] sm:$0xff]
        %v2101 = vld [vmem:[%s203 + $0x3878] sm:$0xff]
        %v2102 = vld [vmem:[%s203 + $0x3880] sm:$0xff]
        %v2103 = vld [vmem:[%s203 + $0x3888] sm:$0xff]
        %v2104 = vld [vmem:[%s203 + $0x3890] sm:$0xff]
        %v2105 = vld [vmem:[%s203 + $0x3898] sm:$0xff]
        %v2106 = vld [vmem:[%s203 + $0x38a0] sm:$0xff]
        %v2107 = vld [vmem:[%s203 + $0x38a8] sm:$0xff]
        %v2108 = vld [vmem:[%s203 + $0x38b0] sm:$0xff]
        %v2109 = vld [vmem:[%s203 + $0x38b8] sm:$0xff]
        %v2110 = vld [vmem:[%s203 + $0x38c0] sm:$0xff]
        %v2111 = vld [vmem:[%s203 + $0x38c8] sm:$0xff]
        %v2112 = vld [vmem:[%s203 + $0x38d0] sm:$0xff]
        %v2113 = vld [vmem:[%s203 + $0x38d8] sm:$0xff]
        %v2114 = vld [vmem:[%s203 + $0x38e0] sm:$0xff]
        %v2115 = vld [vmem:[%s203 + $0x38e8] sm:$0xff]
        %v2116 = vld [vmem:[%s203 + $0x38f0] sm:$0xff]
        %v2117 = vld [vmem:[%s203 + $0x38f8] sm:$0xff]
        %v2118 = vld [vmem:[%s203 + $0x3900] sm:$0xff]
        %v2119 = vld [vmem:[%s203 + $0x3908] sm:$0xff]
        %v2120 = vld [vmem:[%s203 + $0x3910] sm:$0xff]
        %v2121 = vld [vmem:[%s203 + $0x3918] sm:$0xff]
        %v2122 = vld [vmem:[%s203 + $0x3920] sm:$0xff]
        %v2123 = vld [vmem:[%s203 + $0x3928] sm:$0xff]
        %v2124 = vld [vmem:[%s203 + $0x3930] sm:$0xff]
        %v2125 = vld [vmem:[%s203 + $0x3938] sm:$0xff]
        %v2126 = vld [vmem:[%s203 + $0x3940] sm:$0xff]
        %v2127 = vld [vmem:[%s203 + $0x3948] sm:$0xff]
        %v2128 = vld [vmem:[%s203 + $0x3950] sm:$0xff]
        %v2129 = vld [vmem:[%s203 + $0x3958] sm:$0xff]
        %v2130 = vld [vmem:[%s203 + $0x3960] sm:$0xff]
        %v2131 = vld [vmem:[%s203 + $0x3968] sm:$0xff]
        %v2132 = vld [vmem:[%s203 + $0x3970] sm:$0xff]
        %v2133 = vld [vmem:[%s203 + $0x3978] sm:$0xff]
        %v2134 = vld [vmem:[%s203 + $0x3980] sm:$0xff]
        %v2135 = vld [vmem:[%s203 + $0x3988] sm:$0xff]
        %v2136 = vld [vmem:[%s203 + $0x3990] sm:$0xff]
        %v2137 = vld [vmem:[%s203 + $0x3998] sm:$0xff]
        %v2138 = vld [vmem:[%s203 + $0x39a0] sm:$0xff]
        %v2139 = vld [vmem:[%s203 + $0x39a8] sm:$0xff]
        %v2140 = vld [vmem:[%s203 + $0x39b0] sm:$0xff]
        %v2141 = vld [vmem:[%s203 + $0x39b8] sm:$0xff]
        %v2142 = vld [vmem:[%s203 + $0x39c0] sm:$0xff]
        %v2143 = vld [vmem:[%s203 + $0x39c8] sm:$0xff]
        %v2144 = vld [vmem:[%s203 + $0x39d0] sm:$0xff]
        %v2145 = vld [vmem:[%s203 + $0x39d8] sm:$0xff]
        %v2146 = vld [vmem:[%s203 + $0x39e0] sm:$0xff]
        %v2147 = vld [vmem:[%s203 + $0x39e8] sm:$0xff]
        %v2148 = vld [vmem:[%s203 + $0x39f0] sm:$0xff]
        %v2149 = vld [vmem:[%s203 + $0x39f8] sm:$0xff]
        %v2150 = vld [vmem:[%s203 + $0x3a00] sm:$0xff]
        %v2151 = vld [vmem:[%s203 + $0x3a08] sm:$0xff]
        %v2152 = vld [vmem:[%s203 + $0x3a10] sm:$0xff]
        %v2153 = vld [vmem:[%s203 + $0x3a18] sm:$0xff]
        %v2154 = vld [vmem:[%s203 + $0x3a20] sm:$0xff]
        %v2155 = vld [vmem:[%s203 + $0x3a28] sm:$0xff]
        %v2156 = vld [vmem:[%s203 + $0x3a30] sm:$0xff]
        %v2157 = vld [vmem:[%s203 + $0x3a38] sm:$0xff]
        %v2158 = vld [vmem:[%s203 + $0x3a40] sm:$0xff]
        %v2159 = vld [vmem:[%s203 + $0x3a48] sm:$0xff]
        %v2160 = vld [vmem:[%s203 + $0x3a50] sm:$0xff]
        %v2161 = vld [vmem:[%s203 + $0x3a58] sm:$0xff]
        %v2162 = vld [vmem:[%s203 + $0x3a60] sm:$0xff]
        %v2163 = vld [vmem:[%s203 + $0x3a68] sm:$0xff]
        %v2164 = vld [vmem:[%s203 + $0x3a70] sm:$0xff]
        %v2165 = vld [vmem:[%s203 + $0x3a78] sm:$0xff]
        %v2166 = vld [vmem:[%s203 + $0x3a80] sm:$0xff]
        %v2167 = vld [vmem:[%s203 + $0x3a88] sm:$0xff]
        %v2168 = vld [vmem:[%s203 + $0x3a90] sm:$0xff]
        %v2169 = vld [vmem:[%s203 + $0x3a98] sm:$0xff]
        %v2170 = vld [vmem:[%s203 + $0x3aa0] sm:$0xff]
        %v2171 = vld [vmem:[%s203 + $0x3aa8] sm:$0xff]
        %v2172 = vld [vmem:[%s203 + $0x3ab0] sm:$0xff]
        %v2173 = vld [vmem:[%s203 + $0x3ab8] sm:$0xff]
        %v2174 = vld [vmem:[%s203 + $0x3ac0] sm:$0xff]
        %v2175 = vld [vmem:[%s203 + $0x3ac8] sm:$0xff]
        %v2176 = vld [vmem:[%s203 + $0x3ad0] sm:$0xff]
        %v2177 = vld [vmem:[%s203 + $0x3ad8] sm:$0xff]
        %v2178 = vld [vmem:[%s203 + $0x3ae0] sm:$0xff]
        %v2179 = vld [vmem:[%s203 + $0x3ae8] sm:$0xff]
        %v2180 = vld [vmem:[%s203 + $0x3af0] sm:$0xff]
        %v2181 = vld [vmem:[%s203 + $0x3af8] sm:$0xff]
        %v2182 = vld [vmem:[%s203 + $0x3b00] sm:$0xff]
        %v2183 = vld [vmem:[%s203 + $0x3b08] sm:$0xff]
        %v2184 = vld [vmem:[%s203 + $0x3b10] sm:$0xff]
        %v2185 = vld [vmem:[%s203 + $0x3b18] sm:$0xff]
        %v2186 = vld [vmem:[%s203 + $0x3b20] sm:$0xff]
        %v2187 = vld [vmem:[%s203 + $0x3b28] sm:$0xff]
        %v2188 = vld [vmem:[%s203 + $0x3b30] sm:$0xff]
        %v2189 = vld [vmem:[%s203 + $0x3b38] sm:$0xff]
        %v2190 = vld [vmem:[%s203 + $0x3b40] sm:$0xff]
        %v2191 = vld [vmem:[%s203 + $0x3b48] sm:$0xff]
        %v2192 = vld [vmem:[%s203 + $0x3b50] sm:$0xff]
        %v2193 = vld [vmem:[%s203 + $0x3b58] sm:$0xff]
        %v2194 = vld [vmem:[%s203 + $0x3b60] sm:$0xff]
        %v2195 = vld [vmem:[%s203 + $0x3b68] sm:$0xff]
        %v2196 = vld [vmem:[%s203 + $0x3b70] sm:$0xff]
        %v2197 = vld [vmem:[%s203 + $0x3b78] sm:$0xff]
        %v2198 = vld [vmem:[%s203 + $0x3b80] sm:$0xff]
        %v2199 = vld [vmem:[%s203 + $0x3b88] sm:$0xff]
        %v2200 = vld [vmem:[%s203 + $0x3b90] sm:$0xff]
        %v2201 = vld [vmem:[%s203 + $0x3b98] sm:$0xff]
        %v2202 = vld [vmem:[%s203 + $0x3ba0] sm:$0xff]
        %v2203 = vld [vmem:[%s203 + $0x3ba8] sm:$0xff]
        %v2204 = vld [vmem:[%s203 + $0x3bb0] sm:$0xff]
        %v2205 = vld [vmem:[%s203 + $0x3bb8] sm:$0xff]
        %v2206 = vld [vmem:[%s203 + $0x3bc0] sm:$0xff]
        %v2207 = vld [vmem:[%s203 + $0x3bc8] sm:$0xff]
        %v2208 = vld [vmem:[%s203 + $0x3bd0] sm:$0xff]
        %v2209 = vld [vmem:[%s203 + $0x3bd8] sm:$0xff]
        %v2210 = vld [vmem:[%s203 + $0x3be0] sm:$0xff]
        %v2211 = vld [vmem:[%s203 + $0x3be8] sm:$0xff]
        %v2212 = vld [vmem:[%s203 + $0x3bf0] sm:$0xff]
        %v2213 = vld [vmem:[%s203 + $0x3bf8] sm:$0xff]
        %v2214 = vld [vmem:[%s203 + $0x3c00] sm:$0xff]
        %v2215 = vld [vmem:[%s203 + $0x3c08] sm:$0xff]
        %v2216 = vld [vmem:[%s203 + $0x3c10] sm:$0xff]
        %v2217 = vld [vmem:[%s203 + $0x3c18] sm:$0xff]
        %v2218 = vld [vmem:[%s203 + $0x3c20] sm:$0xff]
        %v2219 = vld [vmem:[%s203 + $0x3c28] sm:$0xff]
        %v2220 = vld [vmem:[%s203 + $0x3c30] sm:$0xff]
        %v2221 = vld [vmem:[%s203 + $0x3c38] sm:$0xff]
        %v2222 = vld [vmem:[%s203 + $0x3c40] sm:$0xff]
        %v2223 = vld [vmem:[%s203 + $0x3c48] sm:$0xff]
        %v2224 = vld [vmem:[%s203 + $0x3c50] sm:$0xff]
        %v2225 = vld [vmem:[%s203 + $0x3c58] sm:$0xff]
        %v2226 = vld [vmem:[%s203 + $0x3c60] sm:$0xff]
        %v2227 = vld [vmem:[%s203 + $0x3c68] sm:$0xff]
        %v2228 = vld [vmem:[%s203 + $0x3c70] sm:$0xff]
        %v2229 = vld [vmem:[%s203 + $0x3c78] sm:$0xff]
        %v2230 = vld [vmem:[%s203 + $0x3c80] sm:$0xff]
        %v2231 = vld [vmem:[%s203 + $0x3c88] sm:$0xff]
        %v2232 = vld [vmem:[%s203 + $0x3c90] sm:$0xff]
        %v2233 = vld [vmem:[%s203 + $0x3c98] sm:$0xff]
        %v2234 = vld [vmem:[%s203 + $0x3ca0] sm:$0xff]
        %v2235 = vld [vmem:[%s203 + $0x3ca8] sm:$0xff]
        %v2236 = vld [vmem:[%s203 + $0x3cb0] sm:$0xff]
        %v2237 = vld [vmem:[%s203 + $0x3cb8] sm:$0xff]
        %v2238 = vld [vmem:[%s203 + $0x3cc0] sm:$0xff]
        %v2239 = vld [vmem:[%s203 + $0x3cc8] sm:$0xff]
        %v2240 = vld [vmem:[%s203 + $0x3cd0] sm:$0xff]
        %v2241 = vld [vmem:[%s203 + $0x3cd8] sm:$0xff]
        %v2242 = vld [vmem:[%s203 + $0x3ce0] sm:$0xff]
        %v2243 = vld [vmem:[%s203 + $0x3ce8] sm:$0xff]
        %v2244 = vld [vmem:[%s203 + $0x3cf0] sm:$0xff]
        %v2245 = vld [vmem:[%s203 + $0x3cf8] sm:$0xff]
        %v2246 = vld [vmem:[%s203 + $0x3d00] sm:$0xff]
        %v2247 = vld [vmem:[%s203 + $0x3d08] sm:$0xff]
        %v2248 = vld [vmem:[%s203 + $0x3d10] sm:$0xff]
        %v2249 = vld [vmem:[%s203 + $0x3d18] sm:$0xff]
        %v2250 = vld [vmem:[%s203 + $0x3d20] sm:$0xff]
        %v2251 = vld [vmem:[%s203 + $0x3d28] sm:$0xff]
        %v2252 = vld [vmem:[%s203 + $0x3d30] sm:$0xff]
        %v2253 = vld [vmem:[%s203 + $0x3d38] sm:$0xff]
        %v2254 = vld [vmem:[%s203 + $0x3d40] sm:$0xff]
        %v2255 = vld [vmem:[%s203 + $0x3d48] sm:$0xff]
        %v2256 = vld [vmem:[%s203 + $0x3d50] sm:$0xff]
        %v2257 = vld [vmem:[%s203 + $0x3d58] sm:$0xff]
        %v2258 = vld [vmem:[%s203 + $0x3d60] sm:$0xff]
        %v2259 = vld [vmem:[%s203 + $0x3d68] sm:$0xff]
        %v2260 = vld [vmem:[%s203 + $0x3d70] sm:$0xff]
        %v2261 = vld [vmem:[%s203 + $0x3d78] sm:$0xff]
        %v2262 = vld [vmem:[%s203 + $0x3d80] sm:$0xff]
        %v2263 = vld [vmem:[%s203 + $0x3d88] sm:$0xff]
        %v2264 = vld [vmem:[%s203 + $0x3d90] sm:$0xff]
        %v2265 = vld [vmem:[%s203 + $0x3d98] sm:$0xff]
        %v2266 = vld [vmem:[%s203 + $0x3da0] sm:$0xff]
        %v2267 = vld [vmem:[%s203 + $0x3da8] sm:$0xff]
        %v2268 = vld [vmem:[%s203 + $0x3db0] sm:$0xff]
        %v2269 = vld [vmem:[%s203 + $0x3db8] sm:$0xff]
        %v2270 = vld [vmem:[%s203 + $0x3dc0] sm:$0xff]
        %v2271 = vld [vmem:[%s203 + $0x3dc8] sm:$0xff]
        %v2272 = vld [vmem:[%s203 + $0x3dd0] sm:$0xff]
        %v2273 = vld [vmem:[%s203 + $0x3dd8] sm:$0xff]
        %v2274 = vld [vmem:[%s203 + $0x3de0] sm:$0xff]
        %v2275 = vld [vmem:[%s203 + $0x3de8] sm:$0xff]
        %v2276 = vld [vmem:[%s203 + $0x3df0] sm:$0xff]
        %v2277 = vld [vmem:[%s203 + $0x3df8] sm:$0xff]
        %v2278 = vld [vmem:[%s203 + $0x3e00] sm:$0xff]
        %v2279 = vld [vmem:[%s203 + $0x3e08] sm:$0xff]
        %v2280 = vld [vmem:[%s203 + $0x3e10] sm:$0xff]
        %v2281 = vld [vmem:[%s203 + $0x3e18] sm:$0xff]
        %v2282 = vld [vmem:[%s203 + $0x3e20] sm:$0xff]
        %v2283 = vld [vmem:[%s203 + $0x3e28] sm:$0xff]
        %v2284 = vld [vmem:[%s203 + $0x3e30] sm:$0xff]
        %v2285 = vld [vmem:[%s203 + $0x3e38] sm:$0xff]
        %v2286 = vld [vmem:[%s203 + $0x3e40] sm:$0xff]
        %v2287 = vld [vmem:[%s203 + $0x3e48] sm:$0xff]
        %v2288 = vld [vmem:[%s203 + $0x3e50] sm:$0xff]
        %v2289 = vld [vmem:[%s203 + $0x3e58] sm:$0xff]
        %v2290 = vld [vmem:[%s203 + $0x3e60] sm:$0xff]
        %v2291 = vld [vmem:[%s203 + $0x3e68] sm:$0xff]
        %v2292 = vld [vmem:[%s203 + $0x3e70] sm:$0xff]
        %v2293 = vld [vmem:[%s203 + $0x3e78] sm:$0xff]
        %v2294 = vld [vmem:[%s203 + $0x3e80] sm:$0xff]
        %v2295 = vld [vmem:[%s203 + $0x3e88] sm:$0xff]
        %v2296 = vld [vmem:[%s203 + $0x3e90] sm:$0xff]
        %v2297 = vld [vmem:[%s203 + $0x3e98] sm:$0xff]
        %v2298 = vld [vmem:[%s203 + $0x3ea0] sm:$0xff]
        %v2299 = vld [vmem:[%s203 + $0x3ea8] sm:$0xff]
        %v2300 = vld [vmem:[%s203 + $0x3eb0] sm:$0xff]
        %v2301 = vld [vmem:[%s203 + $0x3eb8] sm:$0xff]
        %v2302 = vld [vmem:[%s203 + $0x3ec0] sm:$0xff]
        %v2303 = vld [vmem:[%s203 + $0x3ec8] sm:$0xff]
        %v2304 = vld [vmem:[%s203 + $0x3ed0] sm:$0xff]
        %v2305 = vld [vmem:[%s203 + $0x3ed8] sm:$0xff]
        %v2306 = vld [vmem:[%s203 + $0x3ee0] sm:$0xff]
        %v2307 = vld [vmem:[%s203 + $0x3ee8] sm:$0xff]
        %v2308 = vld [vmem:[%s203 + $0x3ef0] sm:$0xff]
        %v2309 = vld [vmem:[%s203 + $0x3ef8] sm:$0xff]
        %v2310 = vld [vmem:[%s203 + $0x3f00] sm:$0xff]
        %v2311 = vld [vmem:[%s203 + $0x3f08] sm:$0xff]
        %v2312 = vld [vmem:[%s203 + $0x3f10] sm:$0xff]
        %v2313 = vld [vmem:[%s203 + $0x3f18] sm:$0xff]
        %v2314 = vld [vmem:[%s203 + $0x3f20] sm:$0xff]
        %v2315 = vld [vmem:[%s203 + $0x3f28] sm:$0xff]
        %v2316 = vld [vmem:[%s203 + $0x3f30] sm:$0xff]
        %v2317 = vld [vmem:[%s203 + $0x3f38] sm:$0xff]
        %v2318 = vld [vmem:[%s203 + $0x3f40] sm:$0xff]
        %v2319 = vld [vmem:[%s203 + $0x3f48] sm:$0xff]
        %v2320 = vld [vmem:[%s203 + $0x3f50] sm:$0xff]
        %v2321 = vld [vmem:[%s203 + $0x3f58] sm:$0xff]
        %v2322 = vld [vmem:[%s203 + $0x3f60] sm:$0xff]
        %v2323 = vld [vmem:[%s203 + $0x3f68] sm:$0xff]
        %v2324 = vld [vmem:[%s203 + $0x3f70] sm:$0xff]
        %v2325 = vld [vmem:[%s203 + $0x3f78] sm:$0xff]
        %v2326 = vld [vmem:[%s203 + $0x3f80] sm:$0xff]
        %v2327 = vld [vmem:[%s203 + $0x3f88] sm:$0xff]
        %v2328 = vld [vmem:[%s203 + $0x3f90] sm:$0xff]
        %v2329 = vld [vmem:[%s203 + $0x3f98] sm:$0xff]
        %v2330 = vld [vmem:[%s203 + $0x3fa0] sm:$0xff]
        %v2331 = vld [vmem:[%s203 + $0x3fa8] sm:$0xff]
        %v2332 = vld [vmem:[%s203 + $0x3fb0] sm:$0xff]
        %v2333 = vld [vmem:[%s203 + $0x3fb8] sm:$0xff]
        %v2334 = vld [vmem:[%s203 + $0x3fc0] sm:$0xff]
        %v2335 = vld [vmem:[%s203 + $0x3fc8] sm:$0xff]
        %v2336 = vld [vmem:[%s203 + $0x3fd0] sm:$0xff]
        %v2337 = vld [vmem:[%s203 + $0x3fd8] sm:$0xff]
        %v2338 = vld [vmem:[%s203 + $0x3fe0] sm:$0xff]
        %v2339 = vld [vmem:[%s203 + $0x3fe8] sm:$0xff]
        %v2340 = vld [vmem:[%s203 + $0x3ff0] sm:$0xff]
        %v2341 = vld [vmem:[%s203 + $0x3ff8] sm:$0xff]
        %v2342 = vld [vmem:[%s203 + $0x4000] sm:$0xff]
        %v2343 = vld [vmem:[%s203 + $0x4008] sm:$0xff]
        %v2344 = vld [vmem:[%s203 + $0x4010] sm:$0xff]
        %v2345 = vld [vmem:[%s203 + $0x4018] sm:$0xff]
        %v2346 = vld [vmem:[%s203 + $0x4020] sm:$0xff]
        %v2347 = vld [vmem:[%s203 + $0x4028] sm:$0xff]
        %v2348 = vld [vmem:[%s203 + $0x4030] sm:$0xff]
        %v2349 = vld [vmem:[%s203 + $0x4038] sm:$0xff]
        %v2350 = vld [vmem:[%s203 + $0x4040] sm:$0xff]
        %v2351 = vld [vmem:[%s203 + $0x4048] sm:$0xff]
        %v2352 = vld [vmem:[%s203 + $0x4050] sm:$0xff]
        %v2353 = vld [vmem:[%s203 + $0x4058] sm:$0xff]
        %v2354 = vld [vmem:[%s203 + $0x4060] sm:$0xff]
        %v2355 = vld [vmem:[%s203 + $0x4068] sm:$0xff]
        %v2356 = vld [vmem:[%s203 + $0x4070] sm:$0xff]
        %v2357 = vld [vmem:[%s203 + $0x4078] sm:$0xff]
        %v2358 = vld [vmem:[%s203 + $0x4080] sm:$0xff]
        %v2359 = vld [vmem:[%s203 + $0x4088] sm:$0xff]
        %v2360 = vld [vmem:[%s203 + $0x4090] sm:$0xff]
        %v2361 = vld [vmem:[%s203 + $0x4098] sm:$0xff]
        %v2362 = vld [vmem:[%s203 + $0x40a0] sm:$0xff]
        %v2363 = vld [vmem:[%s203 + $0x40a8] sm:$0xff]
        %v2364 = vld [vmem:[%s203 + $0x40b0] sm:$0xff]
        %v2365 = vld [vmem:[%s203 + $0x40b8] sm:$0xff]
        %v2366 = vld [vmem:[%s203 + $0x40c0] sm:$0xff]
        %v2367 = vld [vmem:[%s203 + $0x40c8] sm:$0xff]
        %v2368 = vld [vmem:[%s203 + $0x40d0] sm:$0xff]
        %v2369 = vld [vmem:[%s203 + $0x40d8] sm:$0xff]
        %v2370 = vld [vmem:[%s203 + $0x40e0] sm:$0xff]
        %v2371 = vld [vmem:[%s203 + $0x40e8] sm:$0xff]
        %v2372 = vld [vmem:[%s203 + $0x40f0] sm:$0xff]
        %v2373 = vld [vmem:[%s203 + $0x40f8] sm:$0xff]
        %v2374 = vld [vmem:[%s203 + $0x4100] sm:$0xff]
        %v2375 = vld [vmem:[%s203 + $0x4108] sm:$0xff]
        %v2376 = vld [vmem:[%s203 + $0x4110] sm:$0xff]
        %v2377 = vld [vmem:[%s203 + $0x4118] sm:$0xff]
        %v2378 = vld [vmem:[%s203 + $0x4120] sm:$0xff]
        %v2379 = vld [vmem:[%s203 + $0x4128] sm:$0xff]
        %v2380 = vld [vmem:[%s203 + $0x4130] sm:$0xff]
        %v2381 = vld [vmem:[%s203 + $0x4138] sm:$0xff]
        %v2382 = vld [vmem:[%s203 + $0x4140] sm:$0xff]
        %v2383 = vld [vmem:[%s203 + $0x4148] sm:$0xff]
        %v2384 = vld [vmem:[%s203 + $0x4150] sm:$0xff]
        %v2385 = vld [vmem:[%s203 + $0x4158] sm:$0xff]
        %v2386 = vld [vmem:[%s203 + $0x4160] sm:$0xff]
        %v2387 = vld [vmem:[%s203 + $0x4168] sm:$0xff]
        %v2388 = vld [vmem:[%s203 + $0x4170] sm:$0xff]
        %v2389 = vld [vmem:[%s203 + $0x4178] sm:$0xff]
        %v2390 = vld [vmem:[%s203 + $0x4180] sm:$0xff]
        %v2391 = vld [vmem:[%s203 + $0x4188] sm:$0xff]
        %v2392 = vld [vmem:[%s203 + $0x4190] sm:$0xff]
        %v2393 = vld [vmem:[%s203 + $0x4198] sm:$0xff]
        %v2394 = vld [vmem:[%s203 + $0x41a0] sm:$0xff]
        %v2395 = vld [vmem:[%s203 + $0x41a8] sm:$0xff]
        %v2396 = vld [vmem:[%s203 + $0x41b0] sm:$0xff]
        %v2397 = vld [vmem:[%s203 + $0x41b8] sm:$0xff]
        %v2398 = vld [vmem:[%s203 + $0x41c0] sm:$0xff]
        %v2399 = vld [vmem:[%s203 + $0x41c8] sm:$0xff]
        %v2400 = vld [vmem:[%s203 + $0x41d0] sm:$0xff]
        %v2401 = vld [vmem:[%s203 + $0x41d8] sm:$0xff]
        %v2402 = vld [vmem:[%s203 + $0x41e0] sm:$0xff]
        %v2403 = vld [vmem:[%s203 + $0x41e8] sm:$0xff]
        %v2404 = vld [vmem:[%s203 + $0x41f0] sm:$0xff]
        %v2405 = vld [vmem:[%s203 + $0x41f8] sm:$0xff]
        %v2406 = vld [vmem:[%s203 + $0x4200] sm:$0xff]
        %v2407 = vld [vmem:[%s203 + $0x4208] sm:$0xff]
        %v2408 = vld [vmem:[%s203 + $0x4210] sm:$0xff]
        %v2409 = vld [vmem:[%s203 + $0x4218] sm:$0xff]
        %v2410 = vld [vmem:[%s203 + $0x4220] sm:$0xff]
        %v2411 = vld [vmem:[%s203 + $0x4228] sm:$0xff]
        %v2412 = vld [vmem:[%s203 + $0x4230] sm:$0xff]
        %v2413 = vld [vmem:[%s203 + $0x4238] sm:$0xff]
        %v2414 = vld [vmem:[%s203 + $0x4240] sm:$0xff]
        %v2415 = vld [vmem:[%s203 + $0x4248] sm:$0xff]
        %v2416 = vld [vmem:[%s203 + $0x4250] sm:$0xff]
        %v2417 = vld [vmem:[%s203 + $0x4258] sm:$0xff]
        %v2418 = vld [vmem:[%s203 + $0x4260] sm:$0xff]
        %v2419 = vld [vmem:[%s203 + $0x4268] sm:$0xff]
        %v2420 = vld [vmem:[%s203 + $0x4270] sm:$0xff]
        %v2421 = vld [vmem:[%s203 + $0x4278] sm:$0xff]
        %v2422 = vld [vmem:[%s203 + $0x4280] sm:$0xff]
        %v2423 = vld [vmem:[%s203 + $0x4288] sm:$0xff]
        %v2424 = vld [vmem:[%s203 + $0x4290] sm:$0xff]
        %v2425 = vld [vmem:[%s203 + $0x4298] sm:$0xff]
        %v2426 = vld [vmem:[%s203 + $0x42a0] sm:$0xff]
        %v2427 = vld [vmem:[%s203 + $0x42a8] sm:$0xff]
        %v2428 = vld [vmem:[%s203 + $0x42b0] sm:$0xff]
        %v2429 = vld [vmem:[%s203 + $0x42b8] sm:$0xff]
        %v2430 = vld [vmem:[%s203 + $0x42c0] sm:$0xff]
        %v2431 = vld [vmem:[%s203 + $0x42c8] sm:$0xff]
        %v2432 = vld [vmem:[%s203 + $0x42d0] sm:$0xff]
        %v2433 = vld [vmem:[%s203 + $0x42d8] sm:$0xff]
        %v2434 = vld [vmem:[%s203 + $0x42e0] sm:$0xff]
        %v2435 = vld [vmem:[%s203 + $0x42e8] sm:$0xff]
        %v2436 = vld [vmem:[%s203 + $0x42f0] sm:$0xff]
        %v2437 = vld [vmem:[%s203 + $0x42f8] sm:$0xff]
        %v2438 = vld [vmem:[%s203 + $0x4300] sm:$0xff]
        %v2439 = vld [vmem:[%s203 + $0x4308] sm:$0xff]
        %v2440 = vld [vmem:[%s203 + $0x4310] sm:$0xff]
        %v2441 = vld [vmem:[%s203 + $0x4318] sm:$0xff]
        %v2442 = vld [vmem:[%s203 + $0x4320] sm:$0xff]
        %v2443 = vld [vmem:[%s203 + $0x4328] sm:$0xff]
        %v2444 = vld [vmem:[%s203 + $0x4330] sm:$0xff]
        %v2445 = vld [vmem:[%s203 + $0x4338] sm:$0xff]
        %v2446 = vld [vmem:[%s203 + $0x4340] sm:$0xff]
        %v2447 = vld [vmem:[%s203 + $0x4348] sm:$0xff]
        %v2448 = vld [vmem:[%s203 + $0x4350] sm:$0xff]
        %v2449 = vld [vmem:[%s203 + $0x4358] sm:$0xff]
        %v2450 = vld [vmem:[%s203 + $0x4360] sm:$0xff]
        %v2451 = vld [vmem:[%s203 + $0x4368] sm:$0xff]
        %v2452 = vld [vmem:[%s203 + $0x4370] sm:$0xff]
        %v2453 = vld [vmem:[%s203 + $0x4378] sm:$0xff]
        %v2454 = vld [vmem:[%s203 + $0x4380] sm:$0xff]
        %v2455 = vld [vmem:[%s203 + $0x4388] sm:$0xff]
        %v2456 = vld [vmem:[%s203 + $0x4390] sm:$0xff]
        %v2457 = vld [vmem:[%s203 + $0x4398] sm:$0xff]
        %v2458 = vld [vmem:[%s203 + $0x43a0] sm:$0xff]
        %v2459 = vld [vmem:[%s203 + $0x43a8] sm:$0xff]
        %v2460 = vld [vmem:[%s203 + $0x43b0] sm:$0xff]
        %v2461 = vld [vmem:[%s203 + $0x43b8] sm:$0xff]
        %v2462 = vld [vmem:[%s203 + $0x43c0] sm:$0xff]
        %v2463 = vld [vmem:[%s203 + $0x43c8] sm:$0xff]
        %v2464 = vld [vmem:[%s203 + $0x43d0] sm:$0xff]
        %v2465 = vld [vmem:[%s203 + $0x43d8] sm:$0xff]
        %v2466 = vld [vmem:[%s203 + $0x43e0] sm:$0xff]
        %v2467 = vld [vmem:[%s203 + $0x43e8] sm:$0xff]
        %v2468 = vld [vmem:[%s203 + $0x43f0] sm:$0xff]
        %v2469 = vld [vmem:[%s203 + $0x43f8] sm:$0xff]
        %v2470 = vld [vmem:[%s203 + $0x4400] sm:$0xff]
        %v2471 = vld [vmem:[%s203 + $0x4408] sm:$0xff]
        %v2472 = vld [vmem:[%s203 + $0x4410] sm:$0xff]
        %v2473 = vld [vmem:[%s203 + $0x4418] sm:$0xff]
        %v2474 = vld [vmem:[%s203 + $0x4420] sm:$0xff]
        %v2475 = vld [vmem:[%s203 + $0x4428] sm:$0xff]
        %v2476 = vld [vmem:[%s203 + $0x4430] sm:$0xff]
        %v2477 = vld [vmem:[%s203 + $0x4438] sm:$0xff]
        %v2478 = vld [vmem:[%s203 + $0x4440] sm:$0xff]
        %v2479 = vld [vmem:[%s203 + $0x4448] sm:$0xff]
        %v2480 = vld [vmem:[%s203 + $0x4450] sm:$0xff]
        %v2481 = vld [vmem:[%s203 + $0x4458] sm:$0xff]
        %v2482 = vld [vmem:[%s203 + $0x4460] sm:$0xff]
        %v2483 = vld [vmem:[%s203 + $0x4468] sm:$0xff]
        %v2484 = vld [vmem:[%s203 + $0x4470] sm:$0xff]
        %v2485 = vld [vmem:[%s203 + $0x4478] sm:$0xff]
        %v2486 = vld [vmem:[%s203 + $0x4480] sm:$0xff]
        %v2487 = vld [vmem:[%s203 + $0x4488] sm:$0xff]
        %v2488 = vld [vmem:[%s203 + $0x4490] sm:$0xff]
        %v2489 = vld [vmem:[%s203 + $0x4498] sm:$0xff]
        %v2490 = vld [vmem:[%s203 + $0x44a0] sm:$0xff]
        %v2491 = vld [vmem:[%s203 + $0x44a8] sm:$0xff]
        %v2492 = vld [vmem:[%s203 + $0x44b0] sm:$0xff]
        %v2493 = vld [vmem:[%s203 + $0x44b8] sm:$0xff]
        %v2494 = vld [vmem:[%s203 + $0x44c0] sm:$0xff]
        %v2495 = vld [vmem:[%s203 + $0x44c8] sm:$0xff]
        %v2496 = vld [vmem:[%s203 + $0x44d0] sm:$0xff]
        %v2497 = vld [vmem:[%s203 + $0x44d8] sm:$0xff]
        %v2498 = vld [vmem:[%s203 + $0x44e0] sm:$0xff]
        %v2499 = vld [vmem:[%s203 + $0x44e8] sm:$0xff]
        %v2500 = vld [vmem:[%s203 + $0x44f0] sm:$0xff]
        %v2501 = vld [vmem:[%s203 + $0x44f8] sm:$0xff]
        %v2502 = vld [vmem:[%s203 + $0x4500] sm:$0xff]
        %v2503 = vld [vmem:[%s203 + $0x4508] sm:$0xff]
        %v2504 = vld [vmem:[%s203 + $0x4510] sm:$0xff]
        %v2505 = vld [vmem:[%s203 + $0x4518] sm:$0xff]
        %v2506 = vld [vmem:[%s203 + $0x4520] sm:$0xff]
        %v2507 = vld [vmem:[%s203 + $0x4528] sm:$0xff]
        %v2508 = vld [vmem:[%s203 + $0x4530] sm:$0xff]
        %v2509 = vld [vmem:[%s203 + $0x4538] sm:$0xff]
        %v2510 = vld [vmem:[%s203 + $0x4540] sm:$0xff]
        %v2511 = vld [vmem:[%s203 + $0x4548] sm:$0xff]
        %v2512 = vld [vmem:[%s203 + $0x4550] sm:$0xff]
        %v2513 = vld [vmem:[%s203 + $0x4558] sm:$0xff]
        %v2514 = vld [vmem:[%s203 + $0x4560] sm:$0xff]
        %v2515 = vld [vmem:[%s203 + $0x4568] sm:$0xff]
        %v2516 = vld [vmem:[%s203 + $0x4570] sm:$0xff]
        %v2517 = vld [vmem:[%s203 + $0x4578] sm:$0xff]
        %v2518 = vld [vmem:[%s203 + $0x4580] sm:$0xff]
        %v2519 = vld [vmem:[%s203 + $0x4588] sm:$0xff]
        %v2520 = vld [vmem:[%s203 + $0x4590] sm:$0xff]
        %v2521 = vld [vmem:[%s203 + $0x4598] sm:$0xff]
        %v2522 = vld [vmem:[%s203 + $0x45a0] sm:$0xff]
        %v2523 = vld [vmem:[%s203 + $0x45a8] sm:$0xff]
        %v2524 = vld [vmem:[%s203 + $0x45b0] sm:$0xff]
        %v2525 = vld [vmem:[%s203 + $0x45b8] sm:$0xff]
        %v2526 = vld [vmem:[%s203 + $0x45c0] sm:$0xff]
        %v2527 = vld [vmem:[%s203 + $0x45c8] sm:$0xff]
        %v2528 = vld [vmem:[%s203 + $0x45d0] sm:$0xff]
        %v2529 = vld [vmem:[%s203 + $0x45d8] sm:$0xff]
        %v2530 = vld [vmem:[%s203 + $0x45e0] sm:$0xff]
        %v2531 = vld [vmem:[%s203 + $0x45e8] sm:$0xff]
        %v2532 = vld [vmem:[%s203 + $0x45f0] sm:$0xff]
        %v2533 = vld [vmem:[%s203 + $0x45f8] sm:$0xff]
        %v2534 = vld [vmem:[%s203 + $0x4600] sm:$0xff]
        %v2535 = vld [vmem:[%s203 + $0x4608] sm:$0xff]
        %v2536 = vld [vmem:[%s203 + $0x4610] sm:$0xff]
        %v2537 = vld [vmem:[%s203 + $0x4618] sm:$0xff]
        %v2538 = vld [vmem:[%s203 + $0x4620] sm:$0xff]
        %v2539 = vld [vmem:[%s203 + $0x4628] sm:$0xff]
        %v2540 = vld [vmem:[%s203 + $0x4630] sm:$0xff]
        %v2541 = vld [vmem:[%s203 + $0x4638] sm:$0xff]
        %v2542 = vld [vmem:[%s203 + $0x4640] sm:$0xff]
        %v2543 = vld [vmem:[%s203 + $0x4648] sm:$0xff]
        %v2544 = vld [vmem:[%s203 + $0x4650] sm:$0xff]
        %v2545 = vld [vmem:[%s203 + $0x4658] sm:$0xff]
        %v2546 = vld [vmem:[%s203 + $0x4660] sm:$0xff]
        %v2547 = vld [vmem:[%s203 + $0x4668] sm:$0xff]
        %v2548 = vld [vmem:[%s203 + $0x4670] sm:$0xff]
        %v2549 = vld [vmem:[%s203 + $0x4678] sm:$0xff]
        %v2550 = vld [vmem:[%s203 + $0x4680] sm:$0xff]
        %v2551 = vld [vmem:[%s203 + $0x4688] sm:$0xff]
        %v2552 = vld [vmem:[%s203 + $0x4690] sm:$0xff]
        %v2553 = vld [vmem:[%s203 + $0x4698] sm:$0xff]
        %v2554 = vld [vmem:[%s203 + $0x46a0] sm:$0xff]
        %v2555 = vld [vmem:[%s203 + $0x46a8] sm:$0xff]
        %v2556 = vld [vmem:[%s203 + $0x46b0] sm:$0xff]
        %v2557 = vld [vmem:[%s203 + $0x46b8] sm:$0xff]
        %v2558 = vld [vmem:[%s203 + $0x46c0] sm:$0xff]
        %v2559 = vld [vmem:[%s203 + $0x46c8] sm:$0xff]
        %v2560 = vld [vmem:[%s203 + $0x46d0] sm:$0xff]
        %v2561 = vld [vmem:[%s203 + $0x46d8] sm:$0xff]
        %v2562 = vld [vmem:[%s203 + $0x46e0] sm:$0xff]
        %v2563 = vld [vmem:[%s203 + $0x46e8] sm:$0xff]
        %v2564 = vld [vmem:[%s203 + $0x46f0] sm:$0xff]
        %v2565 = vld [vmem:[%s203 + $0x46f8] sm:$0xff]
        %v2566 = vld [vmem:[%s203 + $0x4700] sm:$0xff]
        %v2567 = vld [vmem:[%s203 + $0x4708] sm:$0xff]
        %v2568 = vld [vmem:[%s203 + $0x4710] sm:$0xff]
        %v2569 = vld [vmem:[%s203 + $0x4718] sm:$0xff]
        %v2570 = vld [vmem:[%s203 + $0x4720] sm:$0xff]
        %v2571 = vld [vmem:[%s203 + $0x4728] sm:$0xff]
        %v2572 = vld [vmem:[%s203 + $0x4730] sm:$0xff]
        %v2573 = vld [vmem:[%s203 + $0x4738] sm:$0xff]
        %v2574 = vld [vmem:[%s203 + $0x4740] sm:$0xff]
        %v2575 = vld [vmem:[%s203 + $0x4748] sm:$0xff]
        %v2576 = vld [vmem:[%s203 + $0x4750] sm:$0xff]
        %v2577 = vld [vmem:[%s203 + $0x4758] sm:$0xff]
        %v2578 = vld [vmem:[%s203 + $0x4760] sm:$0xff]
        %v2579 = vld [vmem:[%s203 + $0x4768] sm:$0xff]
        %v2580 = vld [vmem:[%s203 + $0x4770] sm:$0xff]
        %v2581 = vld [vmem:[%s203 + $0x4778] sm:$0xff]
        %v2582 = vld [vmem:[%s203 + $0x4780] sm:$0xff]
        %v2583 = vld [vmem:[%s203 + $0x4788] sm:$0xff]
        %v2584 = vld [vmem:[%s203 + $0x4790] sm:$0xff]
        %v2585 = vld [vmem:[%s203 + $0x4798] sm:$0xff]
        %v2586 = vld [vmem:[%s203 + $0x47a0] sm:$0xff]
        %v2587 = vld [vmem:[%s203 + $0x47a8] sm:$0xff]
        %v2588 = vld [vmem:[%s203 + $0x47b0] sm:$0xff]
        %v2589 = vld [vmem:[%s203 + $0x47b8] sm:$0xff]
        %v2590 = vld [vmem:[%s203 + $0x47c0] sm:$0xff]
        %v2591 = vld [vmem:[%s203 + $0x47c8] sm:$0xff]
        %v2592 = vld [vmem:[%s203 + $0x47d0] sm:$0xff]
        %v2593 = vld [vmem:[%s203 + $0x47d8] sm:$0xff]
        %v2594 = vld [vmem:[%s203 + $0x47e0] sm:$0xff]
        %v2595 = vld [vmem:[%s203 + $0x47e8] sm:$0xff]
        %v2596 = vld [vmem:[%s203 + $0x47f0] sm:$0xff]
        %v2597 = vld [vmem:[%s203 + $0x47f8] sm:$0xff]
        %v2598 = vld [vmem:[%s203 + $0x4800] sm:$0xff]
        %v2599 = vld [vmem:[%s203 + $0x4808] sm:$0xff]
        %v2600 = vld [vmem:[%s203 + $0x4810] sm:$0xff]
        %v2601 = vld [vmem:[%s203 + $0x4818] sm:$0xff]
        %v2602 = vld [vmem:[%s203 + $0x4820] sm:$0xff]
        %v2603 = vld [vmem:[%s203 + $0x4828] sm:$0xff]
        %v2604 = vld [vmem:[%s203 + $0x4830] sm:$0xff]
        %v2605 = vld [vmem:[%s203 + $0x4838] sm:$0xff]
        %v2606 = vld [vmem:[%s203 + $0x4840] sm:$0xff]
        %v2607 = vld [vmem:[%s203 + $0x4848] sm:$0xff]
        %v2608 = vld [vmem:[%s203 + $0x4850] sm:$0xff]
        %v2609 = vld [vmem:[%s203 + $0x4858] sm:$0xff]
        %v2610 = vld [vmem:[%s203 + $0x4860] sm:$0xff]
        %v2611 = vld [vmem:[%s203 + $0x4868] sm:$0xff]
        %v2612 = vld [vmem:[%s203 + $0x4870] sm:$0xff]
        %v2613 = vld [vmem:[%s203 + $0x4878] sm:$0xff]
        %v2614 = vld [vmem:[%s203 + $0x4880] sm:$0xff]
        %v2615 = vld [vmem:[%s203 + $0x4888] sm:$0xff]
        %v2616 = vld [vmem:[%s203 + $0x4890] sm:$0xff]
        %v2617 = vld [vmem:[%s203 + $0x4898] sm:$0xff]
        %v2618 = vld [vmem:[%s203 + $0x48a0] sm:$0xff]
        %v2619 = vld [vmem:[%s203 + $0x48a8] sm:$0xff]
        %v2620 = vld [vmem:[%s203 + $0x48b0] sm:$0xff]
        %v2621 = vld [vmem:[%s203 + $0x48b8] sm:$0xff]
        %v2622 = vld [vmem:[%s203 + $0x48c0] sm:$0xff]
        %v2623 = vld [vmem:[%s203 + $0x48c8] sm:$0xff]
        %v2624 = vld [vmem:[%s203 + $0x48d0] sm:$0xff]
        %v2625 = vld [vmem:[%s203 + $0x48d8] sm:$0xff]
        %v2626 = vld [vmem:[%s203 + $0x48e0] sm:$0xff]
        %v2627 = vld [vmem:[%s203 + $0x48e8] sm:$0xff]
        %v2628 = vld [vmem:[%s203 + $0x48f0] sm:$0xff]
        %v2629 = vld [vmem:[%s203 + $0x48f8] sm:$0xff]
        %v2630 = vld [vmem:[%s203 + $0x4900] sm:$0xff]
        %v2631 = vld [vmem:[%s203 + $0x4908] sm:$0xff]
        %v2632 = vld [vmem:[%s203 + $0x4910] sm:$0xff]
        %v2633 = vld [vmem:[%s203 + $0x4918] sm:$0xff]
        %v2634 = vld [vmem:[%s203 + $0x4920] sm:$0xff]
        %v2635 = vld [vmem:[%s203 + $0x4928] sm:$0xff]
        %v2636 = vld [vmem:[%s203 + $0x4930] sm:$0xff]
        %v2637 = vld [vmem:[%s203 + $0x4938] sm:$0xff]
        %v2638 = vld [vmem:[%s203 + $0x4940] sm:$0xff]
        %v2639 = vld [vmem:[%s203 + $0x4948] sm:$0xff]
        %v2640 = vld [vmem:[%s203 + $0x4950] sm:$0xff]
        %v2641 = vld [vmem:[%s203 + $0x4958] sm:$0xff]
        %v2642 = vld [vmem:[%s203 + $0x4960] sm:$0xff]
        %v2643 = vld [vmem:[%s203 + $0x4968] sm:$0xff]
        %v2644 = vld [vmem:[%s203 + $0x4970] sm:$0xff]
        %v2645 = vld [vmem:[%s203 + $0x4978] sm:$0xff]
        %v2646 = vld [vmem:[%s203 + $0x4980] sm:$0xff]
        %v2647 = vld [vmem:[%s203 + $0x4988] sm:$0xff]
        %v2648 = vld [vmem:[%s203 + $0x4990] sm:$0xff]
        %v2649 = vld [vmem:[%s203 + $0x4998] sm:$0xff]
        %v2650 = vld [vmem:[%s203 + $0x49a0] sm:$0xff]
        %v2651 = vld [vmem:[%s203 + $0x49a8] sm:$0xff]
        %v2652 = vld [vmem:[%s203 + $0x49b0] sm:$0xff]
        %v2653 = vld [vmem:[%s203 + $0x49b8] sm:$0xff]
        %v2654 = vld [vmem:[%s203 + $0x49c0] sm:$0xff]
        %v2655 = vld [vmem:[%s203 + $0x49c8] sm:$0xff]
        %v2656 = vld [vmem:[%s203 + $0x49d0] sm:$0xff]
        %v2657 = vld [vmem:[%s203 + $0x49d8] sm:$0xff]
        %v2658 = vld [vmem:[%s203 + $0x49e0] sm:$0xff]
        %v2659 = vld [vmem:[%s203 + $0x49e8] sm:$0xff]
        %v2660 = vld [vmem:[%s203 + $0x49f0] sm:$0xff]
        %v2661 = vld [vmem:[%s203 + $0x49f8] sm:$0xff]
        %v2662 = vld [vmem:[%s203 + $0x4a00] sm:$0xff]
        %v2663 = vld [vmem:[%s203 + $0x4a08] sm:$0xff]
        %v2664 = vld [vmem:[%s203 + $0x4a10] sm:$0xff]
        %v2665 = vld [vmem:[%s203 + $0x4a18] sm:$0xff]
        %v2666 = vld [vmem:[%s203 + $0x4a20] sm:$0xff]
        %v2667 = vld [vmem:[%s203 + $0x4a28] sm:$0xff]
        %v2668 = vld [vmem:[%s203 + $0x4a30] sm:$0xff]
        %v2669 = vld [vmem:[%s203 + $0x4a38] sm:$0xff]
        %v2670 = vld [vmem:[%s203 + $0x4a40] sm:$0xff]
        %v2671 = vld [vmem:[%s203 + $0x4a48] sm:$0xff]
        %v2672 = vld [vmem:[%s203 + $0x4a50] sm:$0xff]
        %v2673 = vld [vmem:[%s203 + $0x4a58] sm:$0xff]
        %v2674 = vld [vmem:[%s203 + $0x4a60] sm:$0xff]
        %v2675 = vld [vmem:[%s203 + $0x4a68] sm:$0xff]
        %v2676 = vld [vmem:[%s203 + $0x4a70] sm:$0xff]
        %v2677 = vld [vmem:[%s203 + $0x4a78] sm:$0xff]
        %v2678 = vld [vmem:[%s203 + $0x4a80] sm:$0xff]
        %v2679 = vld [vmem:[%s203 + $0x4a88] sm:$0xff]
        %v2680 = vld [vmem:[%s203 + $0x4a90] sm:$0xff]
        %v2681 = vld [vmem:[%s203 + $0x4a98] sm:$0xff]
        %v2682 = vld [vmem:[%s203 + $0x4aa0] sm:$0xff]
        %v2683 = vld [vmem:[%s203 + $0x4aa8] sm:$0xff]
        %v2684 = vld [vmem:[%s203 + $0x4ab0] sm:$0xff]
        %v2685 = vld [vmem:[%s203 + $0x4ab8] sm:$0xff]
        %v2686 = vld [vmem:[%s203 + $0x4ac0] sm:$0xff]
        %v2687 = vld [vmem:[%s203 + $0x4ac8] sm:$0xff]
        %v2688 = vld [vmem:[%s203 + $0x4ad0] sm:$0xff]
        %v2689 = vld [vmem:[%s203 + $0x4ad8] sm:$0xff]
        %v2690 = vld [vmem:[%s203 + $0x4ae0] sm:$0xff]
        %v2691 = vld [vmem:[%s203 + $0x4ae8] sm:$0xff]
        %v2692 = vld [vmem:[%s203 + $0x4af0] sm:$0xff]
        %v2693 = vld [vmem:[%s203 + $0x4af8] sm:$0xff]
        %v2694 = vld [vmem:[%s203 + $0x4b00] sm:$0xff]
        %v2695 = vld [vmem:[%s203 + $0x4b08] sm:$0xff]
        %v2696 = vld [vmem:[%s203 + $0x4b10] sm:$0xff]
        %v2697 = vld [vmem:[%s203 + $0x4b18] sm:$0xff]
        %v2698 = vld [vmem:[%s203 + $0x4b20] sm:$0xff]
        %v2699 = vld [vmem:[%s203 + $0x4b28] sm:$0xff]
        %v2700 = vld [vmem:[%s203 + $0x4b30] sm:$0xff]
        %v2701 = vld [vmem:[%s203 + $0x4b38] sm:$0xff]
        %v2702 = vld [vmem:[%s203 + $0x4b40] sm:$0xff]
        %v2703 = vld [vmem:[%s203 + $0x4b48] sm:$0xff]
        %v2704 = vld [vmem:[%s203 + $0x4b50] sm:$0xff]
        %v2705 = vld [vmem:[%s203 + $0x4b58] sm:$0xff]
        %v2706 = vld [vmem:[%s203 + $0x4b60] sm:$0xff]
        %v2707 = vld [vmem:[%s203 + $0x4b68] sm:$0xff]
        %v2708 = vld [vmem:[%s203 + $0x4b70] sm:$0xff]
        %v2709 = vld [vmem:[%s203 + $0x4b78] sm:$0xff]
        %v2710 = vld [vmem:[%s203 + $0x4b80] sm:$0xff]
        %v2711 = vld [vmem:[%s203 + $0x4b88] sm:$0xff]
        %v2712 = vld [vmem:[%s203 + $0x4b90] sm:$0xff]
        %v2713 = vld [vmem:[%s203 + $0x4b98] sm:$0xff]
        %v2714 = vld [vmem:[%s203 + $0x4ba0] sm:$0xff]
        %v2715 = vld [vmem:[%s203 + $0x4ba8] sm:$0xff]
        %v2716 = vld [vmem:[%s203 + $0x4bb0] sm:$0xff]
        %v2717 = vld [vmem:[%s203 + $0x4bb8] sm:$0xff]
        %v2718 = vld [vmem:[%s203 + $0x4bc0] sm:$0xff]
        %v2719 = vld [vmem:[%s203 + $0x4bc8] sm:$0xff]
        %v2720 = vld [vmem:[%s203 + $0x4bd0] sm:$0xff]
        %v2721 = vld [vmem:[%s203 + $0x4bd8] sm:$0xff]
        %v2722 = vld [vmem:[%s203 + $0x4be0] sm:$0xff]
        %v2723 = vld [vmem:[%s203 + $0x4be8] sm:$0xff]
        %v2724 = vld [vmem:[%s203 + $0x4bf0] sm:$0xff]
        %v2725 = vld [vmem:[%s203 + $0x4bf8] sm:$0xff]
        %v2726 = vld [vmem:[%s203 + $0x4c00] sm:$0xff]
        %v2727 = vld [vmem:[%s203 + $0x4c08] sm:$0xff]
        %v2728 = vld [vmem:[%s203 + $0x4c10] sm:$0xff]
        %v2729 = vld [vmem:[%s203 + $0x4c18] sm:$0xff]
        %v2730 = vld [vmem:[%s203 + $0x4c20] sm:$0xff]
        %v2731 = vld [vmem:[%s203 + $0x4c28] sm:$0xff]
        %v2732 = vld [vmem:[%s203 + $0x4c30] sm:$0xff]
        %v2733 = vld [vmem:[%s203 + $0x4c38] sm:$0xff]
        %v2734 = vld [vmem:[%s203 + $0x4c40] sm:$0xff]
        %v2735 = vld [vmem:[%s203 + $0x4c48] sm:$0xff]
        %v2736 = vld [vmem:[%s203 + $0x4c50] sm:$0xff]
        %v2737 = vld [vmem:[%s203 + $0x4c58] sm:$0xff]
        %v2738 = vld [vmem:[%s203 + $0x4c60] sm:$0xff]
        %v2739 = vld [vmem:[%s203 + $0x4c68] sm:$0xff]
        %v2740 = vld [vmem:[%s203 + $0x4c70] sm:$0xff]
        %v2741 = vld [vmem:[%s203 + $0x4c78] sm:$0xff]
        %v2742 = vld [vmem:[%s203 + $0x4c80] sm:$0xff]
        %v2743 = vld [vmem:[%s203 + $0x4c88] sm:$0xff]
        %v2744 = vld [vmem:[%s203 + $0x4c90] sm:$0xff]
        %v2745 = vld [vmem:[%s203 + $0x4c98] sm:$0xff]
        %v2746 = vld [vmem:[%s203 + $0x4ca0] sm:$0xff]
        %v2747 = vld [vmem:[%s203 + $0x4ca8] sm:$0xff]
        %v2748 = vld [vmem:[%s203 + $0x4cb0] sm:$0xff]
        %v2749 = vld [vmem:[%s203 + $0x4cb8] sm:$0xff]
        %v2750 = vld [vmem:[%s203 + $0x4cc0] sm:$0xff]
        %v2751 = vld [vmem:[%s203 + $0x4cc8] sm:$0xff]
        %v2752 = vld [vmem:[%s203 + $0x4cd0] sm:$0xff]
        %v2753 = vld [vmem:[%s203 + $0x4cd8] sm:$0xff]
        %v2754 = vld [vmem:[%s203 + $0x4ce0] sm:$0xff]
        %v2755 = vld [vmem:[%s203 + $0x4ce8] sm:$0xff]
        %v2756 = vld [vmem:[%s203 + $0x4cf0] sm:$0xff]
        %v2757 = vld [vmem:[%s203 + $0x4cf8] sm:$0xff]
        %v2758 = vld [vmem:[%s203 + $0x4d00] sm:$0xff]
        %v2759 = vld [vmem:[%s203 + $0x4d08] sm:$0xff]
        %v2760 = vld [vmem:[%s203 + $0x4d10] sm:$0xff]
        %v2761 = vld [vmem:[%s203 + $0x4d18] sm:$0xff]
        %v2762 = vld [vmem:[%s203 + $0x4d20] sm:$0xff]
        %v2763 = vld [vmem:[%s203 + $0x4d28] sm:$0xff]
        %v2764 = vld [vmem:[%s203 + $0x4d30] sm:$0xff]
        %v2765 = vld [vmem:[%s203 + $0x4d38] sm:$0xff]
        %v2766 = vld [vmem:[%s203 + $0x4d40] sm:$0xff]
        %v2767 = vld [vmem:[%s203 + $0x4d48] sm:$0xff]
        %v2768 = vld [vmem:[%s203 + $0x4d50] sm:$0xff]
        %v2769 = vld [vmem:[%s203 + $0x4d58] sm:$0xff]
        %v2770 = vld [vmem:[%s203 + $0x4d60] sm:$0xff]
        %v2771 = vld [vmem:[%s203 + $0x4d68] sm:$0xff]
        %v2772 = vld [vmem:[%s203 + $0x4d70] sm:$0xff]
        %v2773 = vld [vmem:[%s203 + $0x4d78] sm:$0xff]
        %v2774 = vld [vmem:[%s203 + $0x4d80] sm:$0xff]
        %v2775 = vld [vmem:[%s203 + $0x4d88] sm:$0xff]
        %v2776 = vld [vmem:[%s203 + $0x4d90] sm:$0xff]
        %v2777 = vld [vmem:[%s203 + $0x4d98] sm:$0xff]
        %v2778 = vld [vmem:[%s203 + $0x4da0] sm:$0xff]
        %v2779 = vld [vmem:[%s203 + $0x4da8] sm:$0xff]
        %v2780 = vld [vmem:[%s203 + $0x4db0] sm:$0xff]
        %v2781 = vld [vmem:[%s203 + $0x4db8] sm:$0xff]
        %v2782 = vld [vmem:[%s203 + $0x4dc0] sm:$0xff]
        %v2783 = vld [vmem:[%s203 + $0x4dc8] sm:$0xff]
        %v2784 = vld [vmem:[%s203 + $0x4dd0] sm:$0xff]
        %v2785 = vld [vmem:[%s203 + $0x4dd8] sm:$0xff]
        %v2786 = vld [vmem:[%s203 + $0x4de0] sm:$0xff]
        %v2787 = vld [vmem:[%s203 + $0x4de8] sm:$0xff]
        %v2788 = vld [vmem:[%s203 + $0x4df0] sm:$0xff]
        %v2789 = vld [vmem:[%s203 + $0x4df8] sm:$0xff]
        %v2790 = vld [vmem:[%s203 + $0x4e00] sm:$0xff]
        %v2791 = vld [vmem:[%s203 + $0x4e08] sm:$0xff]
        %v2792 = vld [vmem:[%s203 + $0x4e10] sm:$0xff]
        %v2793 = vld [vmem:[%s203 + $0x4e18] sm:$0xff]
        %v2794 = vld [vmem:[%s203 + $0x4e20] sm:$0xff]
        %v2795 = vld [vmem:[%s203 + $0x4e28] sm:$0xff]
        %v2796 = vld [vmem:[%s203 + $0x4e30] sm:$0xff]
        %v2797 = vld [vmem:[%s203 + $0x4e38] sm:$0xff]
        %v2798 = vld [vmem:[%s203 + $0x4e40] sm:$0xff]
        %v2799 = vld [vmem:[%s203 + $0x4e48] sm:$0xff]
        %v2800 = vld [vmem:[%s203 + $0x4e50] sm:$0xff]
        %v2801 = vld [vmem:[%s203 + $0x4e58] sm:$0xff]
        %v2802 = vld [vmem:[%s203 + $0x4e60] sm:$0xff]
        %v2803 = vld [vmem:[%s203 + $0x4e68] sm:$0xff]
        %v2804 = vld [vmem:[%s203 + $0x4e70] sm:$0xff]
        %v2805 = vld [vmem:[%s203 + $0x4e78] sm:$0xff]
        %v2806 = vld [vmem:[%s203 + $0x4e80] sm:$0xff]
        %v2807 = vld [vmem:[%s203 + $0x4e88] sm:$0xff]
        %v2808 = vld [vmem:[%s203 + $0x4e90] sm:$0xff]
        %v2809 = vld [vmem:[%s203 + $0x4e98] sm:$0xff]
        %v2810 = vld [vmem:[%s203 + $0x4ea0] sm:$0xff]
        %v2811 = vld [vmem:[%s203 + $0x4ea8] sm:$0xff]
        %v2812 = vld [vmem:[%s203 + $0x4eb0] sm:$0xff]
        %v2813 = vld [vmem:[%s203 + $0x4eb8] sm:$0xff]
        %v2814 = vld [vmem:[%s203 + $0x4ec0] sm:$0xff]
        %v2815 = vld [vmem:[%s203 + $0x4ec8] sm:$0xff]
        %v2816 = vld [vmem:[%s203 + $0x4ed0] sm:$0xff]
        %v2817 = vld [vmem:[%s203 + $0x4ed8] sm:$0xff]
        %v2818 = vld [vmem:[%s203 + $0x4ee0] sm:$0xff]
        %v2819 = vld [vmem:[%s203 + $0x4ee8] sm:$0xff]
        %v2820 = vld [vmem:[%s203 + $0x4ef0] sm:$0xff]
        %v2821 = vld [vmem:[%s203 + $0x4ef8] sm:$0xff]
        %v2822 = vld [vmem:[%s203 + $0x4f00] sm:$0xff]
        %v2823 = vld [vmem:[%s203 + $0x4f08] sm:$0xff]
        %v2824 = vld [vmem:[%s203 + $0x4f10] sm:$0xff]
        %v2825 = vld [vmem:[%s203 + $0x4f18] sm:$0xff]
        %v2826 = vld [vmem:[%s203 + $0x4f20] sm:$0xff]
        %v2827 = vld [vmem:[%s203 + $0x4f28] sm:$0xff]
        %v2828 = vld [vmem:[%s203 + $0x4f30] sm:$0xff]
        %v2829 = vld [vmem:[%s203 + $0x4f38] sm:$0xff]
        %v2830 = vld [vmem:[%s203 + $0x4f40] sm:$0xff]
        %v2831 = vld [vmem:[%s203 + $0x4f48] sm:$0xff]
        %v2832 = vld [vmem:[%s203 + $0x4f50] sm:$0xff]
        %v2833 = vld [vmem:[%s203 + $0x4f58] sm:$0xff]
        %v2834 = vld [vmem:[%s203 + $0x4f60] sm:$0xff]
        %v2835 = vld [vmem:[%s203 + $0x4f68] sm:$0xff]
        %v2836 = vld [vmem:[%s203 + $0x4f70] sm:$0xff]
        %v2837 = vld [vmem:[%s203 + $0x4f78] sm:$0xff]
        %v2838 = vld [vmem:[%s203 + $0x4f80] sm:$0xff]
        %v2839 = vld [vmem:[%s203 + $0x4f88] sm:$0xff]
        %v2840 = vld [vmem:[%s203 + $0x4f90] sm:$0xff]
        %v2841 = vld [vmem:[%s203 + $0x4f98] sm:$0xff]
        %v2842 = vld [vmem:[%s203 + $0x4fa0] sm:$0xff]
        %v2843 = vld [vmem:[%s203 + $0x4fa8] sm:$0xff]
        %v2844 = vld [vmem:[%s203 + $0x4fb0] sm:$0xff]
        %v2845 = vld [vmem:[%s203 + $0x4fb8] sm:$0xff]
        %v2846 = vld [vmem:[%s203 + $0x4fc0] sm:$0xff]
        %v2847 = vld [vmem:[%s203 + $0x4fc8] sm:$0xff]
        %v2848 = vld [vmem:[%s203 + $0x4fd0] sm:$0xff]
        %v2849 = vld [vmem:[%s203 + $0x4fd8] sm:$0xff]
        %v2850 = vld [vmem:[%s203 + $0x4fe0] sm:$0xff]
        %v2851 = vld [vmem:[%s203 + $0x4fe8] sm:$0xff]
        %v2852 = vld [vmem:[%s203 + $0x4ff0] sm:$0xff]
        %v2853 = vld [vmem:[%s203 + $0x4ff8] sm:$0xff]
        %v2854 = vld [vmem:[%s203 + $0x5000] sm:$0xff]
        %v2855 = vld [vmem:[%s203 + $0x5008] sm:$0xff]
        %v2856 = vld [vmem:[%s203 + $0x5010] sm:$0xff]
        %v2857 = vld [vmem:[%s203 + $0x5018] sm:$0xff]
        %v2858 = vld [vmem:[%s203 + $0x5020] sm:$0xff]
        %v2859 = vld [vmem:[%s203 + $0x5028] sm:$0xff]
        %v2860 = vld [vmem:[%s203 + $0x5030] sm:$0xff]
        %v2861 = vld [vmem:[%s203 + $0x5038] sm:$0xff]
        %v2862 = vld [vmem:[%s203 + $0x5040] sm:$0xff]
        %v2863 = vld [vmem:[%s203 + $0x5048] sm:$0xff]
        %v2864 = vld [vmem:[%s203 + $0x5050] sm:$0xff]
        %v2865 = vld [vmem:[%s203 + $0x5058] sm:$0xff]
        %v2866 = vld [vmem:[%s203 + $0x5060] sm:$0xff]
        %v2867 = vld [vmem:[%s203 + $0x5068] sm:$0xff]
        %v2868 = vld [vmem:[%s203 + $0x5070] sm:$0xff]
        %v2869 = vld [vmem:[%s203 + $0x5078] sm:$0xff]
        %v2870 = vld [vmem:[%s203 + $0x5080] sm:$0xff]
        %v2871 = vld [vmem:[%s203 + $0x5088] sm:$0xff]
        %v2872 = vld [vmem:[%s203 + $0x5090] sm:$0xff]
        %v2873 = vld [vmem:[%s203 + $0x5098] sm:$0xff]
        %v2874 = vld [vmem:[%s203 + $0x50a0] sm:$0xff]
        %v2875 = vld [vmem:[%s203 + $0x50a8] sm:$0xff]
        %v2876 = vld [vmem:[%s203 + $0x50b0] sm:$0xff]
        %v2877 = vld [vmem:[%s203 + $0x50b8] sm:$0xff]
        %v2878 = vld [vmem:[%s203 + $0x50c0] sm:$0xff]
        %v2879 = vld [vmem:[%s203 + $0x50c8] sm:$0xff]
        %v2880 = vld [vmem:[%s203 + $0x50d0] sm:$0xff]
        %v2881 = vld [vmem:[%s203 + $0x50d8] sm:$0xff]
        %v2882 = vld [vmem:[%s203 + $0x50e0] sm:$0xff]
        %v2883 = vld [vmem:[%s203 + $0x50e8] sm:$0xff]
        %v2884 = vld [vmem:[%s203 + $0x50f0] sm:$0xff]
        %v2885 = vld [vmem:[%s203 + $0x50f8] sm:$0xff]
        %v2886 = vld [vmem:[%s203 + $0x5100] sm:$0xff]
        %v2887 = vld [vmem:[%s203 + $0x5108] sm:$0xff]
        %v2888 = vld [vmem:[%s203 + $0x5110] sm:$0xff]
        %v2889 = vld [vmem:[%s203 + $0x5118] sm:$0xff]
        %v2890 = vld [vmem:[%s203 + $0x5120] sm:$0xff]
        %v2891 = vld [vmem:[%s203 + $0x5128] sm:$0xff]
        %v2892 = vld [vmem:[%s203 + $0x5130] sm:$0xff]
        %v2893 = vld [vmem:[%s203 + $0x5138] sm:$0xff]
        %v2894 = vld [vmem:[%s203 + $0x5140] sm:$0xff]
        %v2895 = vld [vmem:[%s203 + $0x5148] sm:$0xff]
        %v2896 = vld [vmem:[%s203 + $0x5150] sm:$0xff]
        %v2897 = vld [vmem:[%s203 + $0x5158] sm:$0xff]
        %v2898 = vld [vmem:[%s203 + $0x5160] sm:$0xff]
        %v2899 = vld [vmem:[%s203 + $0x5168] sm:$0xff]
        %v2900 = vld [vmem:[%s203 + $0x5170] sm:$0xff]
        %v2901 = vld [vmem:[%s203 + $0x5178] sm:$0xff]
        %v2902 = vld [vmem:[%s203 + $0x5180] sm:$0xff]
        %v2903 = vld [vmem:[%s203 + $0x5188] sm:$0xff]
        %v2904 = vld [vmem:[%s203 + $0x5190] sm:$0xff]
        %v2905 = vld [vmem:[%s203 + $0x5198] sm:$0xff]
        %v2906 = vld [vmem:[%s203 + $0x51a0] sm:$0xff]
        %v2907 = vld [vmem:[%s203 + $0x51a8] sm:$0xff]
        %v2908 = vld [vmem:[%s203 + $0x51b0] sm:$0xff]
        %v2909 = vld [vmem:[%s203 + $0x51b8] sm:$0xff]
        %v2910 = vld [vmem:[%s203 + $0x51c0] sm:$0xff]
        %v2911 = vld [vmem:[%s203 + $0x51c8] sm:$0xff]
        %v2912 = vld [vmem:[%s203 + $0x51d0] sm:$0xff]
        %v2913 = vld [vmem:[%s203 + $0x51d8] sm:$0xff]
        %v2914 = vld [vmem:[%s203 + $0x51e0] sm:$0xff]
        %v2915 = vld [vmem:[%s203 + $0x51e8] sm:$0xff]
        %v2916 = vld [vmem:[%s203 + $0x51f0] sm:$0xff]
        %v2917 = vld [vmem:[%s203 + $0x51f8] sm:$0xff]
        %v2918 = vld [vmem:[%s203 + $0x5200] sm:$0xff]
        %v2919 = vld [vmem:[%s203 + $0x5208] sm:$0xff]
        %v2920 = vld [vmem:[%s203 + $0x5210] sm:$0xff]
        %v2921 = vld [vmem:[%s203 + $0x5218] sm:$0xff]
        %v2922 = vld [vmem:[%s203 + $0x5220] sm:$0xff]
        %v2923 = vld [vmem:[%s203 + $0x5228] sm:$0xff]
        %v2924 = vld [vmem:[%s203 + $0x5230] sm:$0xff]
        %v2925 = vld [vmem:[%s203 + $0x5238] sm:$0xff]
        %v2926 = vld [vmem:[%s203 + $0x5240] sm:$0xff]
        %v2927 = vld [vmem:[%s203 + $0x5248] sm:$0xff]
        %v2928 = vld [vmem:[%s203 + $0x5250] sm:$0xff]
        %v2929 = vld [vmem:[%s203 + $0x5258] sm:$0xff]
        %v2930 = vld [vmem:[%s203 + $0x5260] sm:$0xff]
        %v2931 = vld [vmem:[%s203 + $0x5268] sm:$0xff]
        %v2932 = vld [vmem:[%s203 + $0x5270] sm:$0xff]
        %v2933 = vld [vmem:[%s203 + $0x5278] sm:$0xff]
        %v2934 = vld [vmem:[%s203 + $0x5280] sm:$0xff]
        %v2935 = vld [vmem:[%s203 + $0x5288] sm:$0xff]
        %v2936 = vld [vmem:[%s203 + $0x5290] sm:$0xff]
        %v2937 = vld [vmem:[%s203 + $0x5298] sm:$0xff]
        %v2938 = vld [vmem:[%s203 + $0x52a0] sm:$0xff]
        %v2939 = vld [vmem:[%s203 + $0x52a8] sm:$0xff]
        %v2940 = vld [vmem:[%s203 + $0x52b0] sm:$0xff]
        %v2941 = vld [vmem:[%s203 + $0x52b8] sm:$0xff]
        %v2942 = vld [vmem:[%s203 + $0x52c0] sm:$0xff]
        %v2943 = vld [vmem:[%s203 + $0x52c8] sm:$0xff]
        %v2944 = vld [vmem:[%s203 + $0x52d0] sm:$0xff]
        %v2945 = vld [vmem:[%s203 + $0x52d8] sm:$0xff]
        %v2946 = vld [vmem:[%s203 + $0x52e0] sm:$0xff]
        %v2947 = vld [vmem:[%s203 + $0x52e8] sm:$0xff]
        %v2948 = vld [vmem:[%s203 + $0x52f0] sm:$0xff]
        %v2949 = vld [vmem:[%s203 + $0x52f8] sm:$0xff]
        %v2950 = vld [vmem:[%s203 + $0x5300] sm:$0xff]
        %v2951 = vld [vmem:[%s203 + $0x5308] sm:$0xff]
        %v2952 = vld [vmem:[%s203 + $0x5310] sm:$0xff]
        %v2953 = vld [vmem:[%s203 + $0x5318] sm:$0xff]
        %v2954 = vld [vmem:[%s203 + $0x5320] sm:$0xff]
        %v2955 = vld [vmem:[%s203 + $0x5328] sm:$0xff]
        %v2956 = vld [vmem:[%s203 + $0x5330] sm:$0xff]
        %v2957 = vld [vmem:[%s203 + $0x5338] sm:$0xff]
        %v2958 = vld [vmem:[%s203 + $0x5340] sm:$0xff]
        %v2959 = vld [vmem:[%s203 + $0x5348] sm:$0xff]
        %v2960 = vld [vmem:[%s203 + $0x5350] sm:$0xff]
        %v2961 = vld [vmem:[%s203 + $0x5358] sm:$0xff]
        %v2962 = vld [vmem:[%s203 + $0x5360] sm:$0xff]
        %v2963 = vld [vmem:[%s203 + $0x5368] sm:$0xff]
        %v2964 = vld [vmem:[%s203 + $0x5370] sm:$0xff]
        %v2965 = vld [vmem:[%s203 + $0x5378] sm:$0xff]
        %v2966 = vld [vmem:[%s203 + $0x5380] sm:$0xff]
        %v2967 = vld [vmem:[%s203 + $0x5388] sm:$0xff]
        %v2968 = vld [vmem:[%s203 + $0x5390] sm:$0xff]
        %v2969 = vld [vmem:[%s203 + $0x5398] sm:$0xff]
        %v2970 = vld [vmem:[%s203 + $0x53a0] sm:$0xff]
        %v2971 = vld [vmem:[%s203 + $0x53a8] sm:$0xff]
        %v2972 = vld [vmem:[%s203 + $0x53b0] sm:$0xff]
        %v2973 = vld [vmem:[%s203 + $0x53b8] sm:$0xff]
        %v2974 = vld [vmem:[%s203 + $0x53c0] sm:$0xff]
        %v2975 = vld [vmem:[%s203 + $0x53c8] sm:$0xff]
        %v2976 = vld [vmem:[%s203 + $0x53d0] sm:$0xff]
        %v2977 = vld [vmem:[%s203 + $0x53d8] sm:$0xff]
        %v2978 = vld [vmem:[%s203 + $0x53e0] sm:$0xff]
        %v2979 = vld [vmem:[%s203 + $0x53e8] sm:$0xff]
        %v2980 = vld [vmem:[%s203 + $0x53f0] sm:$0xff]
        %v2981 = vld [vmem:[%s203 + $0x53f8] sm:$0xff]
        %v2982 = vld [vmem:[%s203 + $0x5400] sm:$0xff]
        %v2983 = vld [vmem:[%s203 + $0x5408] sm:$0xff]
        %v2984 = vld [vmem:[%s203 + $0x5410] sm:$0xff]
        %v2985 = vld [vmem:[%s203 + $0x5418] sm:$0xff]
        %v2986 = vld [vmem:[%s203 + $0x5420] sm:$0xff]
        %v2987 = vld [vmem:[%s203 + $0x5428] sm:$0xff]
        %v2988 = vld [vmem:[%s203 + $0x5430] sm:$0xff]
        %v2989 = vld [vmem:[%s203 + $0x5438] sm:$0xff]
        %v2990 = vld [vmem:[%s203 + $0x5440] sm:$0xff]
        %v2991 = vld [vmem:[%s203 + $0x5448] sm:$0xff]
        %v2992 = vld [vmem:[%s203 + $0x5450] sm:$0xff]
        %v2993 = vld [vmem:[%s203 + $0x5458] sm:$0xff]
        %v2994 = vld [vmem:[%s203 + $0x5460] sm:$0xff]
        %v2995 = vld [vmem:[%s203 + $0x5468] sm:$0xff]
        %v2996 = vld [vmem:[%s203 + $0x5470] sm:$0xff]
        %v2997 = vld [vmem:[%s203 + $0x5478] sm:$0xff]
        %v2998 = vld [vmem:[%s203 + $0x5480] sm:$0xff]
        %v2999 = vld [vmem:[%s203 + $0x5488] sm:$0xff]
        %v3000 = vld [vmem:[%s203 + $0x5490] sm:$0xff]
        %v3001 = vld [vmem:[%s203 + $0x5498] sm:$0xff]
        %v3002 = vld [vmem:[%s203 + $0x54a0] sm:$0xff]
        %v3003 = vld [vmem:[%s203 + $0x54a8] sm:$0xff]
        %v3004 = vld [vmem:[%s203 + $0x54b0] sm:$0xff]
        %v3005 = vld [vmem:[%s203 + $0x54b8] sm:$0xff]
        %v3006 = vld [vmem:[%s203 + $0x54c0] sm:$0xff]
        %v3007 = vld [vmem:[%s203 + $0x54c8] sm:$0xff]
        %v3008 = vld [vmem:[%s203 + $0x54d0] sm:$0xff]
        %v3009 = vld [vmem:[%s203 + $0x54d8] sm:$0xff]
        %v3010 = vld [vmem:[%s203 + $0x54e0] sm:$0xff]
        %v3011 = vld [vmem:[%s203 + $0x54e8] sm:$0xff]
        %v3012 = vld [vmem:[%s203 + $0x54f0] sm:$0xff]
        %v3013 = vld [vmem:[%s203 + $0x54f8] sm:$0xff]
        %v3014 = vld [vmem:[%s203 + $0x5500] sm:$0xff]
        %v3015 = vld [vmem:[%s203 + $0x5508] sm:$0xff]
        %v3016 = vld [vmem:[%s203 + $0x5510] sm:$0xff]
        %v3017 = vld [vmem:[%s203 + $0x5518] sm:$0xff]
        %v3018 = vld [vmem:[%s203 + $0x5520] sm:$0xff]
        %v3019 = vld [vmem:[%s203 + $0x5528] sm:$0xff]
        %v3020 = vld [vmem:[%s203 + $0x5530] sm:$0xff]
        %v3021 = vld [vmem:[%s203 + $0x5538] sm:$0xff]
        %v3022 = vld [vmem:[%s203 + $0x5540] sm:$0xff]
        %v3023 = vld [vmem:[%s203 + $0x5548] sm:$0xff]
        %v3024 = vld [vmem:[%s203 + $0x5550] sm:$0xff]
        %v3025 = vld [vmem:[%s203 + $0x5558] sm:$0xff]
        %v3026 = vld [vmem:[%s203 + $0x5560] sm:$0xff]
        %v3027 = vld [vmem:[%s203 + $0x5568] sm:$0xff]
        %v3028 = vld [vmem:[%s203 + $0x5570] sm:$0xff]
        %v3029 = vld [vmem:[%s203 + $0x5578] sm:$0xff]
        %v3030 = vld [vmem:[%s203 + $0x5580] sm:$0xff]
        %v3031 = vld [vmem:[%s203 + $0x5588] sm:$0xff]
        %v3032 = vld [vmem:[%s203 + $0x5590] sm:$0xff]
        %v3033 = vld [vmem:[%s203 + $0x5598] sm:$0xff]
        %v3034 = vld [vmem:[%s203 + $0x55a0] sm:$0xff]
        %v3035 = vld [vmem:[%s203 + $0x55a8] sm:$0xff]
        %v3036 = vld [vmem:[%s203 + $0x55b0] sm:$0xff]
        %v3037 = vld [vmem:[%s203 + $0x55b8] sm:$0xff]
        %v3038 = vld [vmem:[%s203 + $0x55c0] sm:$0xff]
        %v3039 = vld [vmem:[%s203 + $0x55c8] sm:$0xff]
        %v3040 = vld [vmem:[%s203 + $0x55d0] sm:$0xff]
        %v3041 = vld [vmem:[%s203 + $0x55d8] sm:$0xff]
        %v3042 = vld [vmem:[%s203 + $0x55e0] sm:$0xff]
        %v3043 = vld [vmem:[%s203 + $0x55e8] sm:$0xff]
        %v3044 = vld [vmem:[%s203 + $0x55f0] sm:$0xff]
        %v3045 = vld [vmem:[%s203 + $0x55f8] sm:$0xff]
        %v3046 = vld [vmem:[%s203 + $0x5600] sm:$0xff]
        %v3047 = vld [vmem:[%s203 + $0x5608] sm:$0xff]
        %v3048 = vld [vmem:[%s203 + $0x5610] sm:$0xff]
        %v3049 = vld [vmem:[%s203 + $0x5618] sm:$0xff]
        %v3050 = vld [vmem:[%s203 + $0x5620] sm:$0xff]
        %v3051 = vld [vmem:[%s203 + $0x5628] sm:$0xff]
        %v3052 = vld [vmem:[%s203 + $0x5630] sm:$0xff]
        %v3053 = vld [vmem:[%s203 + $0x5638] sm:$0xff]
        %v3054 = vld [vmem:[%s203 + $0x5640] sm:$0xff]
        %v3055 = vld [vmem:[%s203 + $0x5648] sm:$0xff]
        %v3056 = vld [vmem:[%s203 + $0x5650] sm:$0xff]
        %v3057 = vld [vmem:[%s203 + $0x5658] sm:$0xff]
        %v3058 = vld [vmem:[%s203 + $0x5660] sm:$0xff]
        %v3059 = vld [vmem:[%s203 + $0x5668] sm:$0xff]
        %v3060 = vld [vmem:[%s203 + $0x5670] sm:$0xff]
        %v3061 = vld [vmem:[%s203 + $0x5678] sm:$0xff]
        %v3062 = vld [vmem:[%s203 + $0x5680] sm:$0xff]
        %v3063 = vld [vmem:[%s203 + $0x5688] sm:$0xff]
        %v3064 = vld [vmem:[%s203 + $0x5690] sm:$0xff]
        %v3065 = vld [vmem:[%s203 + $0x5698] sm:$0xff]
        %v3066 = vld [vmem:[%s203 + $0x56a0] sm:$0xff]
        %v3067 = vld [vmem:[%s203 + $0x56a8] sm:$0xff]
        %v3068 = vld [vmem:[%s203 + $0x56b0] sm:$0xff]
        %v3069 = vld [vmem:[%s203 + $0x56b8] sm:$0xff]
        %v3070 = vld [vmem:[%s203 + $0x56c0] sm:$0xff]
        %v3071 = vld [vmem:[%s203 + $0x56c8] sm:$0xff]
        %v3072 = vld [vmem:[%s203 + $0x56d0] sm:$0xff]
        %v3073 = vld [vmem:[%s203 + $0x56d8] sm:$0xff]
        %v3074 = vld [vmem:[%s203 + $0x56e0] sm:$0xff]
        %v3075 = vld [vmem:[%s203 + $0x56e8] sm:$0xff]
        %v3076 = vld [vmem:[%s203 + $0x56f0] sm:$0xff]
        %v3077 = vld [vmem:[%s203 + $0x56f8] sm:$0xff]
        %v3078 = vld [vmem:[%s203 + $0x5700] sm:$0xff]
        %v3079 = vld [vmem:[%s203 + $0x5708] sm:$0xff]
        %v3080 = vld [vmem:[%s203 + $0x5710] sm:$0xff]
        %v3081 = vld [vmem:[%s203 + $0x5718] sm:$0xff]
        %v3082 = vld [vmem:[%s203 + $0x5720] sm:$0xff]
        %v3083 = vld [vmem:[%s203 + $0x5728] sm:$0xff]
        %v3084 = vld [vmem:[%s203 + $0x5730] sm:$0xff]
        %v3085 = vld [vmem:[%s203 + $0x5738] sm:$0xff]
        %v3086 = vld [vmem:[%s203 + $0x5740] sm:$0xff]
        %v3087 = vld [vmem:[%s203 + $0x5748] sm:$0xff]
        %v3088 = vld [vmem:[%s203 + $0x5750] sm:$0xff]
        %v3089 = vld [vmem:[%s203 + $0x5758] sm:$0xff]
        %v3090 = vld [vmem:[%s203 + $0x5760] sm:$0xff]
        %v3091 = vld [vmem:[%s203 + $0x5768] sm:$0xff]
        %v3092 = vld [vmem:[%s203 + $0x5770] sm:$0xff]
        %v3093 = vld [vmem:[%s203 + $0x5778] sm:$0xff]
        %v3094 = vld [vmem:[%s203 + $0x5780] sm:$0xff]
        %v3095 = vld [vmem:[%s203 + $0x5788] sm:$0xff]
        %v3096 = vld [vmem:[%s203 + $0x5790] sm:$0xff]
        %v3097 = vld [vmem:[%s203 + $0x5798] sm:$0xff]
        %v3098 = vld [vmem:[%s203 + $0x57a0] sm:$0xff]
        %v3099 = vld [vmem:[%s203 + $0x57a8] sm:$0xff]
        %v3100 = vld [vmem:[%s203 + $0x57b0] sm:$0xff]
        %v3101 = vld [vmem:[%s203 + $0x57b8] sm:$0xff]
        %v3102 = vld [vmem:[%s203 + $0x57c0] sm:$0xff]
        %v3103 = vld [vmem:[%s203 + $0x57c8] sm:$0xff]
        %v3104 = vld [vmem:[%s203 + $0x57d0] sm:$0xff]
        %v3105 = vld [vmem:[%s203 + $0x57d8] sm:$0xff]
        %v3106 = vld [vmem:[%s203 + $0x57e0] sm:$0xff]
        %v3107 = vld [vmem:[%s203 + $0x57e8] sm:$0xff]
        %v3108 = vld [vmem:[%s203 + $0x57f0] sm:$0xff]
        %v3109 = vld [vmem:[%s203 + $0x57f8] sm:$0xff]
        %v3110 = vld [vmem:[%s203 + $0x5800] sm:$0xff]
        %v3111 = vld [vmem:[%s203 + $0x5808] sm:$0xff]
        %v3112 = vld [vmem:[%s203 + $0x5810] sm:$0xff]
        %v3113 = vld [vmem:[%s203 + $0x5818] sm:$0xff]
        %v3114 = vld [vmem:[%s203 + $0x5820] sm:$0xff]
        %v3115 = vld [vmem:[%s203 + $0x5828] sm:$0xff]
        %v3116 = vld [vmem:[%s203 + $0x5830] sm:$0xff]
        %v3117 = vld [vmem:[%s203 + $0x5838] sm:$0xff]
        %v3118 = vld [vmem:[%s203 + $0x5840] sm:$0xff]
        %v3119 = vld [vmem:[%s203 + $0x5848] sm:$0xff]
        %v3120 = vld [vmem:[%s203 + $0x5850] sm:$0xff]
        %v3121 = vld [vmem:[%s203 + $0x5858] sm:$0xff]
        %v3122 = vld [vmem:[%s203 + $0x5860] sm:$0xff]
        %v3123 = vld [vmem:[%s203 + $0x5868] sm:$0xff]
        %v3124 = vld [vmem:[%s203 + $0x5870] sm:$0xff]
        %v3125 = vld [vmem:[%s203 + $0x5878] sm:$0xff]
        %v3126 = vld [vmem:[%s203 + $0x5880] sm:$0xff]
        %v3127 = vld [vmem:[%s203 + $0x5888] sm:$0xff]
        %v3128 = vld [vmem:[%s203 + $0x5890] sm:$0xff]
        %v3129 = vld [vmem:[%s203 + $0x5898] sm:$0xff]
        %v3130 = vld [vmem:[%s203 + $0x58a0] sm:$0xff]
        %v3131 = vld [vmem:[%s203 + $0x58a8] sm:$0xff]
        %v3132 = vld [vmem:[%s203 + $0x58b0] sm:$0xff]
        %v3133 = vld [vmem:[%s203 + $0x58b8] sm:$0xff]
        %v3134 = vld [vmem:[%s203 + $0x58c0] sm:$0xff]
        %v3135 = vld [vmem:[%s203 + $0x58c8] sm:$0xff]
        %v3136 = vld [vmem:[%s203 + $0x58d0] sm:$0xff]
        %v3137 = vld [vmem:[%s203 + $0x58d8] sm:$0xff]
        %v3138 = vld [vmem:[%s203 + $0x58e0] sm:$0xff]
        %v3139 = vld [vmem:[%s203 + $0x58e8] sm:$0xff]
        %v3140 = vld [vmem:[%s203 + $0x58f0] sm:$0xff]
        %v3141 = vld [vmem:[%s203 + $0x58f8] sm:$0xff]
        %v3142 = vld [vmem:[%s203 + $0x5900] sm:$0xff]
        %v3143 = vld [vmem:[%s203 + $0x5908] sm:$0xff]
        %v3144 = vld [vmem:[%s203 + $0x5910] sm:$0xff]
        %v3145 = vld [vmem:[%s203 + $0x5918] sm:$0xff]
        %v3146 = vld [vmem:[%s203 + $0x5920] sm:$0xff]
        %v3147 = vld [vmem:[%s203 + $0x5928] sm:$0xff]
        %v3148 = vld [vmem:[%s203 + $0x5930] sm:$0xff]
        %v3149 = vld [vmem:[%s203 + $0x5938] sm:$0xff]
        %v3150 = vld [vmem:[%s203 + $0x5940] sm:$0xff]
        %v3151 = vld [vmem:[%s203 + $0x5948] sm:$0xff]
        %v3152 = vld [vmem:[%s203 + $0x5950] sm:$0xff]
        %v3153 = vld [vmem:[%s203 + $0x5958] sm:$0xff]
        %v3154 = vld [vmem:[%s203 + $0x5960] sm:$0xff]
        %v3155 = vld [vmem:[%s203 + $0x5968] sm:$0xff]
        %v3156 = vld [vmem:[%s203 + $0x5970] sm:$0xff]
        %v3157 = vld [vmem:[%s203 + $0x5978] sm:$0xff]
        %v3158 = vld [vmem:[%s203 + $0x5980] sm:$0xff]
        %v3159 = vld [vmem:[%s203 + $0x5988] sm:$0xff]
        %v3160 = vld [vmem:[%s203 + $0x5990] sm:$0xff]
        %v3161 = vld [vmem:[%s203 + $0x5998] sm:$0xff]
        %v3162 = vld [vmem:[%s203 + $0x59a0] sm:$0xff]
        %v3163 = vld [vmem:[%s203 + $0x59a8] sm:$0xff]
        %v3164 = vld [vmem:[%s203 + $0x59b0] sm:$0xff]
        %v3165 = vld [vmem:[%s203 + $0x59b8] sm:$0xff]
        %v3166 = vld [vmem:[%s203 + $0x59c0] sm:$0xff]
        %v3167 = vld [vmem:[%s203 + $0x59c8] sm:$0xff]
        %v3168 = vld [vmem:[%s203 + $0x59d0] sm:$0xff]
        %v3169 = vld [vmem:[%s203 + $0x59d8] sm:$0xff]
        %v3170 = vld [vmem:[%s203 + $0x59e0] sm:$0xff]
        %v3171 = vld [vmem:[%s203 + $0x59e8] sm:$0xff]
        %v3172 = vld [vmem:[%s203 + $0x59f0] sm:$0xff]
        %v3173 = vld [vmem:[%s203 + $0x59f8] sm:$0xff]
        %v3174 = vld [vmem:[%s203 + $0x5a00] sm:$0xff]
        %v3175 = vld [vmem:[%s203 + $0x5a08] sm:$0xff]
        %v3176 = vld [vmem:[%s203 + $0x5a10] sm:$0xff]
        %v3177 = vld [vmem:[%s203 + $0x5a18] sm:$0xff]
        %v3178 = vld [vmem:[%s203 + $0x5a20] sm:$0xff]
        %v3179 = vld [vmem:[%s203 + $0x5a28] sm:$0xff]
        %v3180 = vld [vmem:[%s203 + $0x5a30] sm:$0xff]
        %v3181 = vld [vmem:[%s203 + $0x5a38] sm:$0xff]
        %v3182 = vld [vmem:[%s203 + $0x5a40] sm:$0xff]
        %v3183 = vld [vmem:[%s203 + $0x5a48] sm:$0xff]
        %v3184 = vld [vmem:[%s203 + $0x5a50] sm:$0xff]
        %v3185 = vld [vmem:[%s203 + $0x5a58] sm:$0xff]
        %v3186 = vld [vmem:[%s203 + $0x5a60] sm:$0xff]
        %v3187 = vld [vmem:[%s203 + $0x5a68] sm:$0xff]
        %v3188 = vld [vmem:[%s203 + $0x5a70] sm:$0xff]
        %v3189 = vld [vmem:[%s203 + $0x5a78] sm:$0xff]
        %v3190 = vld [vmem:[%s203 + $0x5a80] sm:$0xff]
        %v3191 = vld [vmem:[%s203 + $0x5a88] sm:$0xff]
        %v3192 = vld [vmem:[%s203 + $0x5a90] sm:$0xff]
        %v3193 = vld [vmem:[%s203 + $0x5a98] sm:$0xff]
        %v3194 = vld [vmem:[%s203 + $0x5aa0] sm:$0xff]
        %v3195 = vld [vmem:[%s203 + $0x5aa8] sm:$0xff]
        %v3196 = vld [vmem:[%s203 + $0x5ab0] sm:$0xff]
        %v3197 = vld [vmem:[%s203 + $0x5ab8] sm:$0xff]
        %v3198 = vld [vmem:[%s203 + $0x5ac0] sm:$0xff]
        %v3199 = vld [vmem:[%s203 + $0x5ac8] sm:$0xff]
        %v3200 = vld [vmem:[%s203 + $0x5ad0] sm:$0xff]
        %v3201 = vld [vmem:[%s203 + $0x5ad8] sm:$0xff]
        %v3202 = vld [vmem:[%s203 + $0x5ae0] sm:$0xff]
        %v3203 = vld [vmem:[%s203 + $0x5ae8] sm:$0xff]
        %v3204 = vld [vmem:[%s203 + $0x5af0] sm:$0xff]
        %v3205 = vld [vmem:[%s203 + $0x5af8] sm:$0xff]
        %v3206 = vld [vmem:[%s203 + $0x5b00] sm:$0xff]
        %v3207 = vld [vmem:[%s203 + $0x5b08] sm:$0xff]
        %v3208 = vld [vmem:[%s203 + $0x5b10] sm:$0xff]
        %v3209 = vld [vmem:[%s203 + $0x5b18] sm:$0xff]
        %v3210 = vld [vmem:[%s203 + $0x5b20] sm:$0xff]
        %v3211 = vld [vmem:[%s203 + $0x5b28] sm:$0xff]
        %v3212 = vld [vmem:[%s203 + $0x5b30] sm:$0xff]
        %v3213 = vld [vmem:[%s203 + $0x5b38] sm:$0xff]
        %v3214 = vld [vmem:[%s203 + $0x5b40] sm:$0xff]
        %v3215 = vld [vmem:[%s203 + $0x5b48] sm:$0xff]
        %v3216 = vld [vmem:[%s203 + $0x5b50] sm:$0xff]
        %v3217 = vld [vmem:[%s203 + $0x5b58] sm:$0xff]
        %v3218 = vld [vmem:[%s203 + $0x5b60] sm:$0xff]
        %v3219 = vld [vmem:[%s203 + $0x5b68] sm:$0xff]
        %v3220 = vld [vmem:[%s203 + $0x5b70] sm:$0xff]
        %v3221 = vld [vmem:[%s203 + $0x5b78] sm:$0xff]
        %v3222 = vld [vmem:[%s203 + $0x5b80] sm:$0xff]
        %v3223 = vld [vmem:[%s203 + $0x5b88] sm:$0xff]
        %v3224 = vld [vmem:[%s203 + $0x5b90] sm:$0xff]
        %v3225 = vld [vmem:[%s203 + $0x5b98] sm:$0xff]
        %v3226 = vld [vmem:[%s203 + $0x5ba0] sm:$0xff]
        %v3227 = vld [vmem:[%s203 + $0x5ba8] sm:$0xff]
        %v3228 = vld [vmem:[%s203 + $0x5bb0] sm:$0xff]
        %v3229 = vld [vmem:[%s203 + $0x5bb8] sm:$0xff]
        %v3230 = vld [vmem:[%s203 + $0x5bc0] sm:$0xff]
        %v3231 = vld [vmem:[%s203 + $0x5bc8] sm:$0xff]
        %v3232 = vld [vmem:[%s203 + $0x5bd0] sm:$0xff]
        %v3233 = vld [vmem:[%s203 + $0x5bd8] sm:$0xff]
        %v3234 = vld [vmem:[%s203 + $0x5be0] sm:$0xff]
        %v3235 = vld [vmem:[%s203 + $0x5be8] sm:$0xff]
        %v3236 = vld [vmem:[%s203 + $0x5bf0] sm:$0xff]
        %v3237 = vld [vmem:[%s203 + $0x5bf8] sm:$0xff]
        %v3238 = vld [vmem:[%s203 + $0x5c00] sm:$0xff]
        %v3239 = vld [vmem:[%s203 + $0x5c08] sm:$0xff]
        %v3240 = vld [vmem:[%s203 + $0x5c10] sm:$0xff]
        %v3241 = vld [vmem:[%s203 + $0x5c18] sm:$0xff]
        %v3242 = vld [vmem:[%s203 + $0x5c20] sm:$0xff]
        %v3243 = vld [vmem:[%s203 + $0x5c28] sm:$0xff]
        %v3244 = vld [vmem:[%s203 + $0x5c30] sm:$0xff]
        %v3245 = vld [vmem:[%s203 + $0x5c38] sm:$0xff]
        %v3246 = vld [vmem:[%s203 + $0x5c40] sm:$0xff]
        %v3247 = vld [vmem:[%s203 + $0x5c48] sm:$0xff]
        %v3248 = vld [vmem:[%s203 + $0x5c50] sm:$0xff]
        %v3249 = vld [vmem:[%s203 + $0x5c58] sm:$0xff]
        %v3250 = vld [vmem:[%s203 + $0x5c60] sm:$0xff]
        %v3251 = vld [vmem:[%s203 + $0x5c68] sm:$0xff]
        %v3252 = vld [vmem:[%s203 + $0x5c70] sm:$0xff]
        %v3253 = vld [vmem:[%s203 + $0x5c78] sm:$0xff]
        %v3254 = vld [vmem:[%s203 + $0x5c80] sm:$0xff]
        %v3255 = vld [vmem:[%s203 + $0x5c88] sm:$0xff]
        %v3256 = vld [vmem:[%s203 + $0x5c90] sm:$0xff]
        %v3257 = vld [vmem:[%s203 + $0x5c98] sm:$0xff]
        %v3258 = vld [vmem:[%s203 + $0x5ca0] sm:$0xff]
        %v3259 = vld [vmem:[%s203 + $0x5ca8] sm:$0xff]
        %v3260 = vld [vmem:[%s203 + $0x5cb0] sm:$0xff]
        %v3261 = vld [vmem:[%s203 + $0x5cb8] sm:$0xff]
        %v3262 = vld [vmem:[%s203 + $0x5cc0] sm:$0xff]
        %v3263 = vld [vmem:[%s203 + $0x5cc8] sm:$0xff]
        %v3264 = vld [vmem:[%s203 + $0x5cd0] sm:$0xff]
        %v3265 = vld [vmem:[%s203 + $0x5cd8] sm:$0xff]
        %v3266 = vld [vmem:[%s203 + $0x5ce0] sm:$0xff]
        %v3267 = vld [vmem:[%s203 + $0x5ce8] sm:$0xff]
        %v3268 = vld [vmem:[%s203 + $0x5cf0] sm:$0xff]
        %v3269 = vld [vmem:[%s203 + $0x5cf8] sm:$0xff]
        %v3270 = vld [vmem:[%s203 + $0x5d00] sm:$0xff]
        %v3271 = vld [vmem:[%s203 + $0x5d08] sm:$0xff]
        %v3272 = vld [vmem:[%s203 + $0x5d10] sm:$0xff]
        %v3273 = vld [vmem:[%s203 + $0x5d18] sm:$0xff]
        %v3274 = vld [vmem:[%s203 + $0x5d20] sm:$0xff]
        %v3275 = vld [vmem:[%s203 + $0x5d28] sm:$0xff]
        %v3276 = vld [vmem:[%s203 + $0x5d30] sm:$0xff]
        %v3277 = vld [vmem:[%s203 + $0x5d38] sm:$0xff]
        %v3278 = vld [vmem:[%s203 + $0x5d40] sm:$0xff]
        %v3279 = vld [vmem:[%s203 + $0x5d48] sm:$0xff]
        %v3280 = vld [vmem:[%s203 + $0x5d50] sm:$0xff]
        %v3281 = vld [vmem:[%s203 + $0x5d58] sm:$0xff]
        %v3282 = vld [vmem:[%s203 + $0x5d60] sm:$0xff]
        %v3283 = vld [vmem:[%s203 + $0x5d68] sm:$0xff]
        %v3284 = vld [vmem:[%s203 + $0x5d70] sm:$0xff]
        %v3285 = vld [vmem:[%s203 + $0x5d78] sm:$0xff]
        %v3286 = vld [vmem:[%s203 + $0x5d80] sm:$0xff]
        %v3287 = vld [vmem:[%s203 + $0x5d88] sm:$0xff]
        %v3288 = vld [vmem:[%s203 + $0x5d90] sm:$0xff]
        %v3289 = vld [vmem:[%s203 + $0x5d98] sm:$0xff]
        %v3290 = vld [vmem:[%s203 + $0x5da0] sm:$0xff]
        %v3291 = vld [vmem:[%s203 + $0x5da8] sm:$0xff]
        %v3292 = vld [vmem:[%s203 + $0x5db0] sm:$0xff]
        %v3293 = vld [vmem:[%s203 + $0x5db8] sm:$0xff]
        %v3294 = vld [vmem:[%s203 + $0x5dc0] sm:$0xff]
        %v3295 = vld [vmem:[%s203 + $0x5dc8] sm:$0xff]
        %v3296 = vld [vmem:[%s203 + $0x5dd0] sm:$0xff]
        %v3297 = vld [vmem:[%s203 + $0x5dd8] sm:$0xff]
        %v3298 = vld [vmem:[%s203 + $0x5de0] sm:$0xff]
        %v3299 = vld [vmem:[%s203 + $0x5de8] sm:$0xff]
        %v3300 = vld [vmem:[%s203 + $0x5df0] sm:$0xff]
        %v3301 = vld [vmem:[%s203 + $0x5df8] sm:$0xff]
        %v3302 = vld [vmem:[%s203 + $0x5e00] sm:$0xff]
        %v3303 = vld [vmem:[%s203 + $0x5e08] sm:$0xff]
        %v3304 = vld [vmem:[%s203 + $0x5e10] sm:$0xff]
        %v3305 = vld [vmem:[%s203 + $0x5e18] sm:$0xff]
        %v3306 = vld [vmem:[%s203 + $0x5e20] sm:$0xff]
        %v3307 = vld [vmem:[%s203 + $0x5e28] sm:$0xff]
        %v3308 = vld [vmem:[%s203 + $0x5e30] sm:$0xff]
        %v3309 = vld [vmem:[%s203 + $0x5e38] sm:$0xff]
        %v3310 = vld [vmem:[%s203 + $0x5e40] sm:$0xff]
        %v3311 = vld [vmem:[%s203 + $0x5e48] sm:$0xff]
        %v3312 = vld [vmem:[%s203 + $0x5e50] sm:$0xff]
        %v3313 = vld [vmem:[%s203 + $0x5e58] sm:$0xff]
        %v3314 = vld [vmem:[%s203 + $0x5e60] sm:$0xff]
        %v3315 = vld [vmem:[%s203 + $0x5e68] sm:$0xff]
        %v3316 = vld [vmem:[%s203 + $0x5e70] sm:$0xff]
        %v3317 = vld [vmem:[%s203 + $0x5e78] sm:$0xff]
        %v3318 = vld [vmem:[%s203 + $0x5e80] sm:$0xff]
        %v3319 = vld [vmem:[%s203 + $0x5e88] sm:$0xff]
        %v3320 = vld [vmem:[%s203 + $0x5e90] sm:$0xff]
        %v3321 = vld [vmem:[%s203 + $0x5e98] sm:$0xff]
        %v3322 = vld [vmem:[%s203 + $0x5ea0] sm:$0xff]
        %v3323 = vld [vmem:[%s203 + $0x5ea8] sm:$0xff]
        %v3324 = vld [vmem:[%s203 + $0x5eb0] sm:$0xff]
        %v3325 = vld [vmem:[%s203 + $0x5eb8] sm:$0xff]
        %v3326 = vld [vmem:[%s203 + $0x5ec0] sm:$0xff]
        %v3327 = vld [vmem:[%s203 + $0x5ec8] sm:$0xff]
        %v3328 = vld [vmem:[%s203 + $0x5ed0] sm:$0xff]
        %v3329 = vld [vmem:[%s203 + $0x5ed8] sm:$0xff]
        %v3330 = vld [vmem:[%s203 + $0x5ee0] sm:$0xff]
        %v3331 = vld [vmem:[%s203 + $0x5ee8] sm:$0xff]
        %v3332 = vld [vmem:[%s203 + $0x5ef0] sm:$0xff]
        %v3333 = vld [vmem:[%s203 + $0x5ef8] sm:$0xff]
        %v3334 = vld [vmem:[%s203 + $0x5f00] sm:$0xff]
        %v3335 = vld [vmem:[%s203 + $0x5f08] sm:$0xff]
        %v3336 = vld [vmem:[%s203 + $0x5f10] sm:$0xff]
        %v3337 = vld [vmem:[%s203 + $0x5f18] sm:$0xff]
        %v3338 = vld [vmem:[%s203 + $0x5f20] sm:$0xff]
        %v3339 = vld [vmem:[%s203 + $0x5f28] sm:$0xff]
        %v3340 = vld [vmem:[%s203 + $0x5f30] sm:$0xff]
        %v3341 = vld [vmem:[%s203 + $0x5f38] sm:$0xff]
        %v3342 = vld [vmem:[%s203 + $0x5f40] sm:$0xff]
        %v3343 = vld [vmem:[%s203 + $0x5f48] sm:$0xff]
        %v3344 = vld [vmem:[%s203 + $0x5f50] sm:$0xff]
        %v3345 = vld [vmem:[%s203 + $0x5f58] sm:$0xff]
        %v3346 = vld [vmem:[%s203 + $0x5f60] sm:$0xff]
        %v3347 = vld [vmem:[%s203 + $0x5f68] sm:$0xff]
        %v3348 = vld [vmem:[%s203 + $0x5f70] sm:$0xff]
        %v3349 = vld [vmem:[%s203 + $0x5f78] sm:$0xff]
        %v3350 = vld [vmem:[%s203 + $0x5f80] sm:$0xff]
        %v3351 = vld [vmem:[%s203 + $0x5f88] sm:$0xff]
        %v3352 = vld [vmem:[%s203 + $0x5f90] sm:$0xff]
        %v3353 = vld [vmem:[%s203 + $0x5f98] sm:$0xff]
        %v3354 = vld [vmem:[%s203 + $0x5fa0] sm:$0xff]
        %v3355 = vld [vmem:[%s203 + $0x5fa8] sm:$0xff]
        %v3356 = vld [vmem:[%s203 + $0x5fb0] sm:$0xff]
        %v3357 = vld [vmem:[%s203 + $0x5fb8] sm:$0xff]
        %v3358 = vld [vmem:[%s203 + $0x5fc0] sm:$0xff]
        %v3359 = vld [vmem:[%s203 + $0x5fc8] sm:$0xff]
        %v3360 = vld [vmem:[%s203 + $0x5fd0] sm:$0xff]
        %v3361 = vld [vmem:[%s203 + $0x5fd8] sm:$0xff]
        %v3362 = vld [vmem:[%s203 + $0x5fe0] sm:$0xff]
        %v3363 = vld [vmem:[%s203 + $0x5fe8] sm:$0xff]
        %v3364 = vld [vmem:[%s203 + $0x5ff0] sm:$0xff]
        %v3365 = vld [vmem:[%s203 + $0x5ff8] sm:$0xff]
        %v3366 = vld [vmem:[%s203 + $0x6000] sm:$0xff]
        %v3367 = vld [vmem:[%s203 + $0x6008] sm:$0xff]
        %v3368 = vld [vmem:[%s203 + $0x6010] sm:$0xff]
        %v3369 = vld [vmem:[%s203 + $0x6018] sm:$0xff]
        %v3370 = vld [vmem:[%s203 + $0x6020] sm:$0xff]
        %v3371 = vld [vmem:[%s203 + $0x6028] sm:$0xff]
        %v3372 = vld [vmem:[%s203 + $0x6030] sm:$0xff]
        %v3373 = vld [vmem:[%s203 + $0x6038] sm:$0xff]
        %v3374 = vld [vmem:[%s203 + $0x6040] sm:$0xff]
        %v3375 = vld [vmem:[%s203 + $0x6048] sm:$0xff]
        %v3376 = vld [vmem:[%s203 + $0x6050] sm:$0xff]
        %v3377 = vld [vmem:[%s203 + $0x6058] sm:$0xff]
        %v3378 = vld [vmem:[%s203 + $0x6060] sm:$0xff]
        %v3379 = vld [vmem:[%s203 + $0x6068] sm:$0xff]
        %v3380 = vld [vmem:[%s203 + $0x6070] sm:$0xff]
        %v3381 = vld [vmem:[%s203 + $0x6078] sm:$0xff]
        %v3382 = vld [vmem:[%s203 + $0x6080] sm:$0xff]
        %v3383 = vld [vmem:[%s203 + $0x6088] sm:$0xff]
        %v3384 = vld [vmem:[%s203 + $0x6090] sm:$0xff]
        %v3385 = vld [vmem:[%s203 + $0x6098] sm:$0xff]
        %v3386 = vld [vmem:[%s203 + $0x60a0] sm:$0xff]
        %v3387 = vld [vmem:[%s203 + $0x60a8] sm:$0xff]
        %v3388 = vld [vmem:[%s203 + $0x60b0] sm:$0xff]
        %v3389 = vld [vmem:[%s203 + $0x60b8] sm:$0xff]
        %v3390 = vld [vmem:[%s203 + $0x60c0] sm:$0xff]
        %v3391 = vld [vmem:[%s203 + $0x60c8] sm:$0xff]
        %v3392 = vld [vmem:[%s203 + $0x60d0] sm:$0xff]
        %v3393 = vld [vmem:[%s203 + $0x60d8] sm:$0xff]
        %v3394 = vld [vmem:[%s203 + $0x60e0] sm:$0xff]
        %v3395 = vld [vmem:[%s203 + $0x60e8] sm:$0xff]
        %v3396 = vld [vmem:[%s203 + $0x60f0] sm:$0xff]
        %v3397 = vld [vmem:[%s203 + $0x60f8] sm:$0xff]
        %v3398 = vld [vmem:[%s203 + $0x6100] sm:$0xff]
        %v3399 = vld [vmem:[%s203 + $0x6108] sm:$0xff]
        %v3400 = vld [vmem:[%s203 + $0x6110] sm:$0xff]
        %v3401 = vld [vmem:[%s203 + $0x6118] sm:$0xff]
        %v3402 = vld [vmem:[%s203 + $0x6120] sm:$0xff]
        %v3403 = vld [vmem:[%s203 + $0x6128] sm:$0xff]
        %v3404 = vld [vmem:[%s203 + $0x6130] sm:$0xff]
        %v3405 = vld [vmem:[%s203 + $0x6138] sm:$0xff]
        %v3406 = vld [vmem:[%s203 + $0x6140] sm:$0xff]
        %v3407 = vld [vmem:[%s203 + $0x6148] sm:$0xff]
        %v3408 = vld [vmem:[%s203 + $0x6150] sm:$0xff]
        %v3409 = vld [vmem:[%s203 + $0x6158] sm:$0xff]
        %v3410 = vld [vmem:[%s203 + $0x6160] sm:$0xff]
        %v3411 = vld [vmem:[%s203 + $0x6168] sm:$0xff]
        %v3412 = vld [vmem:[%s203 + $0x6170] sm:$0xff]
        %v3413 = vld [vmem:[%s203 + $0x6178] sm:$0xff]
        %v3414 = vld [vmem:[%s203 + $0x6180] sm:$0xff]
        %v3415 = vld [vmem:[%s203 + $0x6188] sm:$0xff]
        %v3416 = vld [vmem:[%s203 + $0x6190] sm:$0xff]
        %v3417 = vld [vmem:[%s203 + $0x6198] sm:$0xff]
        %v3418 = vld [vmem:[%s203 + $0x61a0] sm:$0xff]
        %v3419 = vld [vmem:[%s203 + $0x61a8] sm:$0xff]
        %v3420 = vld [vmem:[%s203 + $0x61b0] sm:$0xff]
        %v3421 = vld [vmem:[%s203 + $0x61b8] sm:$0xff]
        %v3422 = vld [vmem:[%s203 + $0x61c0] sm:$0xff]
        %v3423 = vld [vmem:[%s203 + $0x61c8] sm:$0xff]
        %v3424 = vld [vmem:[%s203 + $0x61d0] sm:$0xff]
        %v3425 = vld [vmem:[%s203 + $0x61d8] sm:$0xff]
        %v3426 = vld [vmem:[%s203 + $0x61e0] sm:$0xff]
        %v3427 = vld [vmem:[%s203 + $0x61e8] sm:$0xff]
        %v3428 = vld [vmem:[%s203 + $0x61f0] sm:$0xff]
        %v3429 = vld [vmem:[%s203 + $0x61f8] sm:$0xff]
        %v3430 = vld [vmem:[%s203 + $0x6200] sm:$0xff]
        %v3431 = vld [vmem:[%s203 + $0x6208] sm:$0xff]
        %v3432 = vld [vmem:[%s203 + $0x6210] sm:$0xff]
        %v3433 = vld [vmem:[%s203 + $0x6218] sm:$0xff]
        %v3434 = vld [vmem:[%s203 + $0x6220] sm:$0xff]
        %v3435 = vld [vmem:[%s203 + $0x6228] sm:$0xff]
        %v3436 = vld [vmem:[%s203 + $0x6230] sm:$0xff]
        %v3437 = vld [vmem:[%s203 + $0x6238] sm:$0xff]
        %v3438 = vld [vmem:[%s203 + $0x6240] sm:$0xff]
        %v3439 = vld [vmem:[%s203 + $0x6248] sm:$0xff]
        %v3440 = vld [vmem:[%s203 + $0x6250] sm:$0xff]
        %v3441 = vld [vmem:[%s203 + $0x6258] sm:$0xff]
        %v3442 = vld [vmem:[%s203 + $0x6260] sm:$0xff]
        %v3443 = vld [vmem:[%s203 + $0x6268] sm:$0xff]
        %v3444 = vld [vmem:[%s203 + $0x6270] sm:$0xff]
        %v3445 = vld [vmem:[%s203 + $0x6278] sm:$0xff]
        %v3446 = vld [vmem:[%s203 + $0x6280] sm:$0xff]
        %v3447 = vld [vmem:[%s203 + $0x6288] sm:$0xff]
        %v3448 = vld [vmem:[%s203 + $0x6290] sm:$0xff]
        %v3449 = vld [vmem:[%s203 + $0x6298] sm:$0xff]
        %v3450 = vld [vmem:[%s203 + $0x62a0] sm:$0xff]
        %v3451 = vld [vmem:[%s203 + $0x62a8] sm:$0xff]
        %v3452 = vld [vmem:[%s203 + $0x62b0] sm:$0xff]
        %v3453 = vld [vmem:[%s203 + $0x62b8] sm:$0xff]
        %v3454 = vld [vmem:[%s203 + $0x62c0] sm:$0xff]
        %v3455 = vld [vmem:[%s203 + $0x62c8] sm:$0xff]
        %v3456 = vld [vmem:[%s203 + $0x62d0] sm:$0xff]
        %v3457 = vld [vmem:[%s203 + $0x62d8] sm:$0xff]
        %v3458 = vld [vmem:[%s203 + $0x62e0] sm:$0xff]
        %v3459 = vld [vmem:[%s203 + $0x62e8] sm:$0xff]
        %v3460 = vld [vmem:[%s203 + $0x62f0] sm:$0xff]
        %v3461 = vld [vmem:[%s203 + $0x62f8] sm:$0xff]
        %v3462 = vld [vmem:[%s203 + $0x6300] sm:$0xff]
        %v3463 = vld [vmem:[%s203 + $0x6308] sm:$0xff]
        %v3464 = vld [vmem:[%s203 + $0x6310] sm:$0xff]
        %v3465 = vld [vmem:[%s203 + $0x6318] sm:$0xff]
        %v3466 = vld [vmem:[%s203 + $0x6320] sm:$0xff]
        %v3467 = vld [vmem:[%s203 + $0x6328] sm:$0xff]
        %v3468 = vld [vmem:[%s203 + $0x6330] sm:$0xff]
        %v3469 = vld [vmem:[%s203 + $0x6338] sm:$0xff]
        %v3470 = vld [vmem:[%s203 + $0x6340] sm:$0xff]
        %v3471 = vld [vmem:[%s203 + $0x6348] sm:$0xff]
        %v3472 = vld [vmem:[%s203 + $0x6350] sm:$0xff]
        %v3473 = vld [vmem:[%s203 + $0x6358] sm:$0xff]
        %v3474 = vld [vmem:[%s203 + $0x6360] sm:$0xff]
        %v3475 = vld [vmem:[%s203 + $0x6368] sm:$0xff]
        %v3476 = vld [vmem:[%s203 + $0x6370] sm:$0xff]
        %v3477 = vld [vmem:[%s203 + $0x6378] sm:$0xff]
        %v3478 = vld [vmem:[%s203 + $0x6380] sm:$0xff]
        %v3479 = vld [vmem:[%s203 + $0x6388] sm:$0xff]
        %v3480 = vld [vmem:[%s203 + $0x6390] sm:$0xff]
        %v3481 = vld [vmem:[%s203 + $0x6398] sm:$0xff]
        %v3482 = vld [vmem:[%s203 + $0x63a0] sm:$0xff]
        %v3483 = vld [vmem:[%s203 + $0x63a8] sm:$0xff]
        %v3484 = vld [vmem:[%s203 + $0x63b0] sm:$0xff]
        %v3485 = vld [vmem:[%s203 + $0x63b8] sm:$0xff]
        %v3486 = vld [vmem:[%s203 + $0x63c0] sm:$0xff]
        %v3487 = vld [vmem:[%s203 + $0x63c8] sm:$0xff]
        %v3488 = vld [vmem:[%s203 + $0x63d0] sm:$0xff]
        %v3489 = vld [vmem:[%s203 + $0x63d8] sm:$0xff]
        %v3490 = vld [vmem:[%s203 + $0x63e0] sm:$0xff]
        %v3491 = vld [vmem:[%s203 + $0x63e8] sm:$0xff]
        %v3492 = vld [vmem:[%s203 + $0x63f0] sm:$0xff]
        %v3493 = vld [vmem:[%s203 + $0x63f8] sm:$0xff]
        %v3494 = vld [vmem:[%s203 + $0x6400] sm:$0xff]
        %v3495 = vld [vmem:[%s203 + $0x6408] sm:$0xff]
        %v3496 = vld [vmem:[%s203 + $0x6410] sm:$0xff]
        %v3497 = vld [vmem:[%s203 + $0x6418] sm:$0xff]
        %v3498 = vld [vmem:[%s203 + $0x6420] sm:$0xff]
        %v3499 = vld [vmem:[%s203 + $0x6428] sm:$0xff]
        %v3500 = vld [vmem:[%s203 + $0x6430] sm:$0xff]
        %v3501 = vld [vmem:[%s203 + $0x6438] sm:$0xff]
        %v3502 = vld [vmem:[%s203 + $0x6440] sm:$0xff]
        %v3503 = vld [vmem:[%s203 + $0x6448] sm:$0xff]
        %v3504 = vld [vmem:[%s203 + $0x6450] sm:$0xff]
        %v3505 = vld [vmem:[%s203 + $0x6458] sm:$0xff]
        %v3506 = vld [vmem:[%s203 + $0x6460] sm:$0xff]
        %v3507 = vld [vmem:[%s203 + $0x6468] sm:$0xff]
        %v3508 = vld [vmem:[%s203 + $0x6470] sm:$0xff]
        %v3509 = vld [vmem:[%s203 + $0x6478] sm:$0xff]
        %v3510 = vld [vmem:[%s203 + $0x6480] sm:$0xff]
        %v3511 = vld [vmem:[%s203 + $0x6488] sm:$0xff]
        %v3512 = vld [vmem:[%s203 + $0x6490] sm:$0xff]
        %v3513 = vld [vmem:[%s203 + $0x6498] sm:$0xff]
        %v3514 = vld [vmem:[%s203 + $0x64a0] sm:$0xff]
        %v3515 = vld [vmem:[%s203 + $0x64a8] sm:$0xff]
        %v3516 = vld [vmem:[%s203 + $0x64b0] sm:$0xff]
        %v3517 = vld [vmem:[%s203 + $0x64b8] sm:$0xff]
        %v3518 = vld [vmem:[%s203 + $0x64c0] sm:$0xff]
        %v3519 = vld [vmem:[%s203 + $0x64c8] sm:$0xff]
        %v3520 = vld [vmem:[%s203 + $0x64d0] sm:$0xff]
        %v3521 = vld [vmem:[%s203 + $0x64d8] sm:$0xff]
        %v3522 = vld [vmem:[%s203 + $0x64e0] sm:$0xff]
        %v3523 = vld [vmem:[%s203 + $0x64e8] sm:$0xff]
        %v3524 = vld [vmem:[%s203 + $0x64f0] sm:$0xff]
        %v3525 = vld [vmem:[%s203 + $0x64f8] sm:$0xff]
        %v3526 = vld [vmem:[%s203 + $0x6500] sm:$0xff]
        %v3527 = vld [vmem:[%s203 + $0x6508] sm:$0xff]
        %v3528 = vld [vmem:[%s203 + $0x6510] sm:$0xff]
        %v3529 = vld [vmem:[%s203 + $0x6518] sm:$0xff]
        %v3530 = vld [vmem:[%s203 + $0x6520] sm:$0xff]
        %v3531 = vld [vmem:[%s203 + $0x6528] sm:$0xff]
        %v3532 = vld [vmem:[%s203 + $0x6530] sm:$0xff]
        %v3533 = vld [vmem:[%s203 + $0x6538] sm:$0xff]
        %v3534 = vld [vmem:[%s203 + $0x6540] sm:$0xff]
        %v3535 = vld [vmem:[%s203 + $0x6548] sm:$0xff]
        %v3536 = vld [vmem:[%s203 + $0x6550] sm:$0xff]
        %v3537 = vld [vmem:[%s203 + $0x6558] sm:$0xff]
        %v3538 = vld [vmem:[%s203 + $0x6560] sm:$0xff]
        %v3539 = vld [vmem:[%s203 + $0x6568] sm:$0xff]
        %v3540 = vld [vmem:[%s203 + $0x6570] sm:$0xff]
        %v3541 = vld [vmem:[%s203 + $0x6578] sm:$0xff]
        %v3542 = vld [vmem:[%s203 + $0x6580] sm:$0xff]
        %v3543 = vld [vmem:[%s203 + $0x6588] sm:$0xff]
        %v3544 = vld [vmem:[%s203 + $0x6590] sm:$0xff]
        %v3545 = vld [vmem:[%s203 + $0x6598] sm:$0xff]
        %v3546 = vld [vmem:[%s203 + $0x65a0] sm:$0xff]
        %v3547 = vld [vmem:[%s203 + $0x65a8] sm:$0xff]
        %v3548 = vld [vmem:[%s203 + $0x65b0] sm:$0xff]
        %v3549 = vld [vmem:[%s203 + $0x65b8] sm:$0xff]
        %v3550 = vld [vmem:[%s203 + $0x65c0] sm:$0xff]
        %v3551 = vld [vmem:[%s203 + $0x65c8] sm:$0xff]
        %v3552 = vld [vmem:[%s203 + $0x65d0] sm:$0xff]
        %v3553 = vld [vmem:[%s203 + $0x65d8] sm:$0xff]
        %v3554 = vld [vmem:[%s203 + $0x65e0] sm:$0xff]
        %v3555 = vld [vmem:[%s203 + $0x65e8] sm:$0xff]
        %v3556 = vld [vmem:[%s203 + $0x65f0] sm:$0xff]
        %v3557 = vld [vmem:[%s203 + $0x65f8] sm:$0xff]
        %v3558 = vld [vmem:[%s203 + $0x6600] sm:$0xff]
        %v3559 = vld [vmem:[%s203 + $0x6608] sm:$0xff]
        %v3560 = vld [vmem:[%s203 + $0x6610] sm:$0xff]
        %v3561 = vld [vmem:[%s203 + $0x6618] sm:$0xff]
        %v3562 = vld [vmem:[%s203 + $0x6620] sm:$0xff]
        %v3563 = vld [vmem:[%s203 + $0x6628] sm:$0xff]
        %v3564 = vld [vmem:[%s203 + $0x6630] sm:$0xff]
        %v3565 = vld [vmem:[%s203 + $0x6638] sm:$0xff]
        %v3566 = vld [vmem:[%s203 + $0x6640] sm:$0xff]
        %v3567 = vld [vmem:[%s203 + $0x6648] sm:$0xff]
        %v3568 = vld [vmem:[%s203 + $0x6650] sm:$0xff]
        %v3569 = vld [vmem:[%s203 + $0x6658] sm:$0xff]
        %v3570 = vld [vmem:[%s203 + $0x6660] sm:$0xff]
        %v3571 = vld [vmem:[%s203 + $0x6668] sm:$0xff]
        %v3572 = vld [vmem:[%s203 + $0x6670] sm:$0xff]
        %v3573 = vld [vmem:[%s203 + $0x6678] sm:$0xff]
        %v3574 = vld [vmem:[%s203 + $0x6680] sm:$0xff]
        %v3575 = vld [vmem:[%s203 + $0x6688] sm:$0xff]
        %v3576 = vld [vmem:[%s203 + $0x6690] sm:$0xff]
        %v3577 = vld [vmem:[%s203 + $0x6698] sm:$0xff]
        %v3578 = vld [vmem:[%s203 + $0x66a0] sm:$0xff]
        %v3579 = vld [vmem:[%s203 + $0x66a8] sm:$0xff]
        %v3580 = vld [vmem:[%s203 + $0x66b0] sm:$0xff]
        %v3581 = vld [vmem:[%s203 + $0x66b8] sm:$0xff]
        %v3582 = vld [vmem:[%s203 + $0x66c0] sm:$0xff]
        %v3583 = vld [vmem:[%s203 + $0x66c8] sm:$0xff]
        %v3584 = vld [vmem:[%s203 + $0x66d0] sm:$0xff]
        %v3585 = vld [vmem:[%s203 + $0x66d8] sm:$0xff]
        %v3586 = vld [vmem:[%s203 + $0x66e0] sm:$0xff]
        %v3587 = vld [vmem:[%s203 + $0x66e8] sm:$0xff]
        %v3588 = vld [vmem:[%s203 + $0x66f0] sm:$0xff]
        %v3589 = vld [vmem:[%s203 + $0x66f8] sm:$0xff]
        %v3590 = vld [vmem:[%s203 + $0x6700] sm:$0xff]
        %v3591 = vld [vmem:[%s203 + $0x6708] sm:$0xff]
        %v3592 = vld [vmem:[%s203 + $0x6710] sm:$0xff]
        %v3593 = vld [vmem:[%s203 + $0x6718] sm:$0xff]
        %v3594 = vld [vmem:[%s203 + $0x6720] sm:$0xff]
        %v3595 = vld [vmem:[%s203 + $0x6728] sm:$0xff]
        %v3596 = vld [vmem:[%s203 + $0x6730] sm:$0xff]
        %v3597 = vld [vmem:[%s203 + $0x6738] sm:$0xff]
        %v3598 = vld [vmem:[%s203 + $0x6740] sm:$0xff]
        %v3599 = vld [vmem:[%s203 + $0x6748] sm:$0xff]
        %v3600 = vld [vmem:[%s203 + $0x6750] sm:$0xff]
        %v3601 = vld [vmem:[%s203 + $0x6758] sm:$0xff]
        %v3602 = vld [vmem:[%s203 + $0x6760] sm:$0xff]
        %v3603 = vld [vmem:[%s203 + $0x6768] sm:$0xff]
        %v3604 = vld [vmem:[%s203 + $0x6770] sm:$0xff]
        %v3605 = vld [vmem:[%s203 + $0x6778] sm:$0xff]
        %v3606 = vld [vmem:[%s203 + $0x6780] sm:$0xff]
        %v3607 = vld [vmem:[%s203 + $0x6788] sm:$0xff]
        %v3608 = vld [vmem:[%s203 + $0x6790] sm:$0xff]
        %v3609 = vld [vmem:[%s203 + $0x6798] sm:$0xff]
        %v3610 = vld [vmem:[%s203 + $0x67a0] sm:$0xff]
        %v3611 = vld [vmem:[%s203 + $0x67a8] sm:$0xff]
        %v3612 = vld [vmem:[%s203 + $0x67b0] sm:$0xff]
        %v3613 = vld [vmem:[%s203 + $0x67b8] sm:$0xff]
        %v3614 = vld [vmem:[%s203 + $0x67c0] sm:$0xff]
        %v3615 = vld [vmem:[%s203 + $0x67c8] sm:$0xff]
        %v3616 = vld [vmem:[%s203 + $0x67d0] sm:$0xff]
        %v3617 = vld [vmem:[%s203 + $0x67d8] sm:$0xff]
        %v3618 = vld [vmem:[%s203 + $0x67e0] sm:$0xff]
        %v3619 = vld [vmem:[%s203 + $0x67e8] sm:$0xff]
        %v3620 = vld [vmem:[%s203 + $0x67f0] sm:$0xff]
        %v3621 = vld [vmem:[%s203 + $0x67f8] sm:$0xff]
        %v3622 = vld [vmem:[%s203 + $0x6800] sm:$0xff]
        %v3623 = vld [vmem:[%s203 + $0x6808] sm:$0xff]
        %v3624 = vld [vmem:[%s203 + $0x6810] sm:$0xff]
        %v3625 = vld [vmem:[%s203 + $0x6818] sm:$0xff]
        %v3626 = vld [vmem:[%s203 + $0x6820] sm:$0xff]
        %v3627 = vld [vmem:[%s203 + $0x6828] sm:$0xff]
        %v3628 = vld [vmem:[%s203 + $0x6830] sm:$0xff]
        %v3629 = vld [vmem:[%s203 + $0x6838] sm:$0xff]
        %v3630 = vld [vmem:[%s203 + $0x6840] sm:$0xff]
        %v3631 = vld [vmem:[%s203 + $0x6848] sm:$0xff]
        %v3632 = vld [vmem:[%s203 + $0x6850] sm:$0xff]
        %v3633 = vld [vmem:[%s203 + $0x6858] sm:$0xff]
        %v3634 = vld [vmem:[%s203 + $0x6860] sm:$0xff]
        %v3635 = vld [vmem:[%s203 + $0x6868] sm:$0xff]
        %v3636 = vld [vmem:[%s203 + $0x6870] sm:$0xff]
        %v3637 = vld [vmem:[%s203 + $0x6878] sm:$0xff]
        %v3638 = vld [vmem:[%s203 + $0x6880] sm:$0xff]
        %v3639 = vld [vmem:[%s203 + $0x6888] sm:$0xff]
        %v3640 = vld [vmem:[%s203 + $0x6890] sm:$0xff]
        %v3641 = vld [vmem:[%s203 + $0x6898] sm:$0xff]
        %v3642 = vld [vmem:[%s203 + $0x68a0] sm:$0xff]
        %v3643 = vld [vmem:[%s203 + $0x68a8] sm:$0xff]
        %v3644 = vld [vmem:[%s203 + $0x68b0] sm:$0xff]
        %v3645 = vld [vmem:[%s203 + $0x68b8] sm:$0xff]
        %v3646 = vld [vmem:[%s203 + $0x68c0] sm:$0xff]
        %v3647 = vld [vmem:[%s203 + $0x68c8] sm:$0xff]
        %v3648 = vld [vmem:[%s203 + $0x68d0] sm:$0xff]
        %v3649 = vld [vmem:[%s203 + $0x68d8] sm:$0xff]
        %v3650 = vld [vmem:[%s203 + $0x68e0] sm:$0xff]
        %v3651 = vld [vmem:[%s203 + $0x68e8] sm:$0xff]
        %v3652 = vld [vmem:[%s203 + $0x68f0] sm:$0xff]
        %v3653 = vld [vmem:[%s203 + $0x68f8] sm:$0xff]
        %v3654 = vld [vmem:[%s203 + $0x6900] sm:$0xff]
        %v3655 = vld [vmem:[%s203 + $0x6908] sm:$0xff]
        %v3656 = vld [vmem:[%s203 + $0x6910] sm:$0xff]
        %v3657 = vld [vmem:[%s203 + $0x6918] sm:$0xff]
        %v3658 = vld [vmem:[%s203 + $0x6920] sm:$0xff]
        %v3659 = vld [vmem:[%s203 + $0x6928] sm:$0xff]
        %v3660 = vld [vmem:[%s203 + $0x6930] sm:$0xff]
        %v3661 = vld [vmem:[%s203 + $0x6938] sm:$0xff]
        %v3662 = vld [vmem:[%s203 + $0x6940] sm:$0xff]
        %v3663 = vld [vmem:[%s203 + $0x6948] sm:$0xff]
        %v3664 = vld [vmem:[%s203 + $0x6950] sm:$0xff]
        %v3665 = vld [vmem:[%s203 + $0x6958] sm:$0xff]
        %v3666 = vld [vmem:[%s203 + $0x6960] sm:$0xff]
        %v3667 = vld [vmem:[%s203 + $0x6968] sm:$0xff]
        %v3668 = vld [vmem:[%s203 + $0x6970] sm:$0xff]
        %v3669 = vld [vmem:[%s203 + $0x6978] sm:$0xff]
        %v3670 = vld [vmem:[%s203 + $0x6980] sm:$0xff]
        %v3671 = vld [vmem:[%s203 + $0x6988] sm:$0xff]
        %v3672 = vld [vmem:[%s203 + $0x6990] sm:$0xff]
        %v3673 = vld [vmem:[%s203 + $0x6998] sm:$0xff]
        %v3674 = vld [vmem:[%s203 + $0x69a0] sm:$0xff]
        %v3675 = vld [vmem:[%s203 + $0x69a8] sm:$0xff]
        %v3676 = vld [vmem:[%s203 + $0x69b0] sm:$0xff]
        %v3677 = vld [vmem:[%s203 + $0x69b8] sm:$0xff]
        %v3678 = vld [vmem:[%s203 + $0x69c0] sm:$0xff]
        %v3679 = vld [vmem:[%s203 + $0x69c8] sm:$0xff]
        %v3680 = vld [vmem:[%s203 + $0x69d0] sm:$0xff]
        %v3681 = vld [vmem:[%s203 + $0x69d8] sm:$0xff]
        %v3682 = vld [vmem:[%s203 + $0x69e0] sm:$0xff]
        %v3683 = vld [vmem:[%s203 + $0x69e8] sm:$0xff]
        %v3684 = vld [vmem:[%s203 + $0x69f0] sm:$0xff]
        %v3685 = vld [vmem:[%s203 + $0x69f8] sm:$0xff]
        %v3686 = vld [vmem:[%s203 + $0x6a00] sm:$0xff]
        %v3687 = vld [vmem:[%s203 + $0x6a08] sm:$0xff]
        %v3688 = vld [vmem:[%s203 + $0x6a10] sm:$0xff]
        %v3689 = vld [vmem:[%s203 + $0x6a18] sm:$0xff]
        %v3690 = vld [vmem:[%s203 + $0x6a20] sm:$0xff]
        %v3691 = vld [vmem:[%s203 + $0x6a28] sm:$0xff]
        %v3692 = vld [vmem:[%s203 + $0x6a30] sm:$0xff]
        %v3693 = vld [vmem:[%s203 + $0x6a38] sm:$0xff]
        %v3694 = vld [vmem:[%s203 + $0x6a40] sm:$0xff]
        %v3695 = vld [vmem:[%s203 + $0x6a48] sm:$0xff]
        %v3696 = vld [vmem:[%s203 + $0x6a50] sm:$0xff]
        %v3697 = vld [vmem:[%s203 + $0x6a58] sm:$0xff]
        %v3698 = vld [vmem:[%s203 + $0x6a60] sm:$0xff]
        %v3699 = vld [vmem:[%s203 + $0x6a68] sm:$0xff]
        %v3700 = vld [vmem:[%s203 + $0x6a70] sm:$0xff]
        %v3701 = vld [vmem:[%s203 + $0x6a78] sm:$0xff]
        %v3702 = vld [vmem:[%s203 + $0x6a80] sm:$0xff]
        %v3703 = vld [vmem:[%s203 + $0x6a88] sm:$0xff]
        %v3704 = vld [vmem:[%s203 + $0x6a90] sm:$0xff]
        %v3705 = vld [vmem:[%s203 + $0x6a98] sm:$0xff]
        %v3706 = vld [vmem:[%s203 + $0x6aa0] sm:$0xff]
        %v3707 = vld [vmem:[%s203 + $0x6aa8] sm:$0xff]
        %v3708 = vld [vmem:[%s203 + $0x6ab0] sm:$0xff]
        %v3709 = vld [vmem:[%s203 + $0x6ab8] sm:$0xff]
        %v3710 = vld [vmem:[%s203 + $0x6ac0] sm:$0xff]
        %v3711 = vld [vmem:[%s203 + $0x6ac8] sm:$0xff]
        %v3712 = vld [vmem:[%s203 + $0x6ad0] sm:$0xff]
        %v3713 = vld [vmem:[%s203 + $0x6ad8] sm:$0xff]
        %v3714 = vld [vmem:[%s203 + $0x6ae0] sm:$0xff]
        %v3715 = vld [vmem:[%s203 + $0x6ae8] sm:$0xff]
        %v3716 = vld [vmem:[%s203 + $0x6af0] sm:$0xff]
        %v3717 = vld [vmem:[%s203 + $0x6af8] sm:$0xff]
        %v3718 = vld [vmem:[%s203 + $0x6b00] sm:$0xff]
        %v3719 = vld [vmem:[%s203 + $0x6b08] sm:$0xff]
        %v3720 = vld [vmem:[%s203 + $0x6b10] sm:$0xff]
        %v3721 = vld [vmem:[%s203 + $0x6b18] sm:$0xff]
        %v3722 = vld [vmem:[%s203 + $0x6b20] sm:$0xff]
        %v3723 = vld [vmem:[%s203 + $0x6b28] sm:$0xff]
        %v3724 = vld [vmem:[%s203 + $0x6b30] sm:$0xff]
        %v3725 = vld [vmem:[%s203 + $0x6b38] sm:$0xff]
        %v3726 = vld [vmem:[%s203 + $0x6b40] sm:$0xff]
        %v3727 = vld [vmem:[%s203 + $0x6b48] sm:$0xff]
        %v3728 = vld [vmem:[%s203 + $0x6b50] sm:$0xff]
        %v3729 = vld [vmem:[%s203 + $0x6b58] sm:$0xff]
        %v3730 = vld [vmem:[%s203 + $0x6b60] sm:$0xff]
        %v3731 = vld [vmem:[%s203 + $0x6b68] sm:$0xff]
        %v3732 = vld [vmem:[%s203 + $0x6b70] sm:$0xff]
        %v3733 = vld [vmem:[%s203 + $0x6b78] sm:$0xff]
        %v3734 = vld [vmem:[%s203 + $0x6b80] sm:$0xff]
        %v3735 = vld [vmem:[%s203 + $0x6b88] sm:$0xff]
        %v3736 = vld [vmem:[%s203 + $0x6b90] sm:$0xff]
        %v3737 = vld [vmem:[%s203 + $0x6b98] sm:$0xff]
        %v3738 = vld [vmem:[%s203 + $0x6ba0] sm:$0xff]
        %v3739 = vld [vmem:[%s203 + $0x6ba8] sm:$0xff]
        %v3740 = vld [vmem:[%s203 + $0x6bb0] sm:$0xff]
        %v3741 = vld [vmem:[%s203 + $0x6bb8] sm:$0xff]
        %v3742 = vld [vmem:[%s203 + $0x6bc0] sm:$0xff]
        %v3743 = vld [vmem:[%s203 + $0x6bc8] sm:$0xff]
        %v3744 = vld [vmem:[%s203 + $0x6bd0] sm:$0xff]
        %v3745 = vld [vmem:[%s203 + $0x6bd8] sm:$0xff]
        %v3746 = vld [vmem:[%s203 + $0x6be0] sm:$0xff]
        %v3747 = vld [vmem:[%s203 + $0x6be8] sm:$0xff]
        %v3748 = vld [vmem:[%s203 + $0x6bf0] sm:$0xff]
        %v3749 = vld [vmem:[%s203 + $0x6bf8] sm:$0xff]
        %v3750 = vld [vmem:[%s203 + $0x6c00] sm:$0xff]
        %v3751 = vld [vmem:[%s203 + $0x6c08] sm:$0xff]
        %v3752 = vld [vmem:[%s203 + $0x6c10] sm:$0xff]
        %v3753 = vld [vmem:[%s203 + $0x6c18] sm:$0xff]
        %v3754 = vld [vmem:[%s203 + $0x6c20] sm:$0xff]
        %v3755 = vld [vmem:[%s203 + $0x6c28] sm:$0xff]
        %v3756 = vld [vmem:[%s203 + $0x6c30] sm:$0xff]
        %v3757 = vld [vmem:[%s203 + $0x6c38] sm:$0xff]
        %v3758 = vld [vmem:[%s203 + $0x6c40] sm:$0xff]
        %v3759 = vld [vmem:[%s203 + $0x6c48] sm:$0xff]
        %v3760 = vld [vmem:[%s203 + $0x6c50] sm:$0xff]
        %v3761 = vld [vmem:[%s203 + $0x6c58] sm:$0xff]
        %v3762 = vld [vmem:[%s203 + $0x6c60] sm:$0xff]
        %v3763 = vld [vmem:[%s203 + $0x6c68] sm:$0xff]
        %v3764 = vld [vmem:[%s203 + $0x6c70] sm:$0xff]
        %v3765 = vld [vmem:[%s203 + $0x6c78] sm:$0xff]
        %v3766 = vld [vmem:[%s203 + $0x6c80] sm:$0xff]
        %v3767 = vld [vmem:[%s203 + $0x6c88] sm:$0xff]
        %v3768 = vld [vmem:[%s203 + $0x6c90] sm:$0xff]
        %v3769 = vld [vmem:[%s203 + $0x6c98] sm:$0xff]
        %v3770 = vld [vmem:[%s203 + $0x6ca0] sm:$0xff]
        %v3771 = vld [vmem:[%s203 + $0x6ca8] sm:$0xff]
        %v3772 = vld [vmem:[%s203 + $0x6cb0] sm:$0xff]
        %v3773 = vld [vmem:[%s203 + $0x6cb8] sm:$0xff]
        %v3774 = vld [vmem:[%s203 + $0x6cc0] sm:$0xff]
        %v3775 = vld [vmem:[%s203 + $0x6cc8] sm:$0xff]
        %v3776 = vld [vmem:[%s203 + $0x6cd0] sm:$0xff]
        %v3777 = vld [vmem:[%s203 + $0x6cd8] sm:$0xff]
        %v3778 = vld [vmem:[%s203 + $0x6ce0] sm:$0xff]
        %v3779 = vld [vmem:[%s203 + $0x6ce8] sm:$0xff]
        %v3780 = vld [vmem:[%s203 + $0x6cf0] sm:$0xff]
        %v3781 = vld [vmem:[%s203 + $0x6cf8] sm:$0xff]
        %v3782 = vld [vmem:[%s203 + $0x6d00] sm:$0xff]
        %v3783 = vld [vmem:[%s203 + $0x6d08] sm:$0xff]
        %v3784 = vld [vmem:[%s203 + $0x6d10] sm:$0xff]
        %v3785 = vld [vmem:[%s203 + $0x6d18] sm:$0xff]
        %v3786 = vld [vmem:[%s203 + $0x6d20] sm:$0xff]
        %v3787 = vld [vmem:[%s203 + $0x6d28] sm:$0xff]
        %v3788 = vld [vmem:[%s203 + $0x6d30] sm:$0xff]
        %v3789 = vld [vmem:[%s203 + $0x6d38] sm:$0xff]
        %v3790 = vld [vmem:[%s203 + $0x6d40] sm:$0xff]
        %v3791 = vld [vmem:[%s203 + $0x6d48] sm:$0xff]
        %v3792 = vld [vmem:[%s203 + $0x6d50] sm:$0xff]
        %v3793 = vld [vmem:[%s203 + $0x6d58] sm:$0xff]
        %v3794 = vld [vmem:[%s203 + $0x6d60] sm:$0xff]
        %v3795 = vld [vmem:[%s203 + $0x6d68] sm:$0xff]
        %v3796 = vld [vmem:[%s203 + $0x6d70] sm:$0xff]
        %v3797 = vld [vmem:[%s203 + $0x6d78] sm:$0xff]
        %v3798 = vld [vmem:[%s203 + $0x6d80] sm:$0xff]
        %v3799 = vld [vmem:[%s203 + $0x6d88] sm:$0xff]
        %v3800 = vld [vmem:[%s203 + $0x6d90] sm:$0xff]
        %v3801 = vld [vmem:[%s203 + $0x6d98] sm:$0xff]
        %v3802 = vld [vmem:[%s203 + $0x6da0] sm:$0xff]
        %v3803 = vld [vmem:[%s203 + $0x6da8] sm:$0xff]
        %v3804 = vld [vmem:[%s203 + $0x6db0] sm:$0xff]
        %v3805 = vld [vmem:[%s203 + $0x6db8] sm:$0xff]
        %v3806 = vld [vmem:[%s203 + $0x6dc0] sm:$0xff]
        %v3807 = vld [vmem:[%s203 + $0x6dc8] sm:$0xff]
        %v3808 = vld [vmem:[%s203 + $0x6dd0] sm:$0xff]
        %v3809 = vld [vmem:[%s203 + $0x6dd8] sm:$0xff]
        %v3810 = vld [vmem:[%s203 + $0x6de0] sm:$0xff]
        %v3811 = vld [vmem:[%s203 + $0x6de8] sm:$0xff]
        %v3812 = vld [vmem:[%s203 + $0x6df0] sm:$0xff]
        %v3813 = vld [vmem:[%s203 + $0x6df8] sm:$0xff]
        %v3814 = vld [vmem:[%s203 + $0x6e00] sm:$0xff]
        %v3815 = vld [vmem:[%s203 + $0x6e08] sm:$0xff]
        %v3816 = vld [vmem:[%s203 + $0x6e10] sm:$0xff]
        %v3817 = vld [vmem:[%s203 + $0x6e18] sm:$0xff]
        %v3818 = vld [vmem:[%s203 + $0x6e20] sm:$0xff]
        %v3819 = vld [vmem:[%s203 + $0x6e28] sm:$0xff]
        %v3820 = vld [vmem:[%s203 + $0x6e30] sm:$0xff]
        %v3821 = vld [vmem:[%s203 + $0x6e38] sm:$0xff]
        %v3822 = vld [vmem:[%s203 + $0x6e40] sm:$0xff]
        %v3823 = vld [vmem:[%s203 + $0x6e48] sm:$0xff]
        %v3824 = vld [vmem:[%s203 + $0x6e50] sm:$0xff]
        %v3825 = vld [vmem:[%s203 + $0x6e58] sm:$0xff]
        %v3826 = vld [vmem:[%s203 + $0x6e60] sm:$0xff]
        %v3827 = vld [vmem:[%s203 + $0x6e68] sm:$0xff]
        %v3828 = vld [vmem:[%s203 + $0x6e70] sm:$0xff]
        %v3829 = vld [vmem:[%s203 + $0x6e78] sm:$0xff]
        %v3830 = vld [vmem:[%s203 + $0x6e80] sm:$0xff]
        %v3831 = vld [vmem:[%s203 + $0x6e88] sm:$0xff]
        %v3832 = vld [vmem:[%s203 + $0x6e90] sm:$0xff]
        %v3833 = vld [vmem:[%s203 + $0x6e98] sm:$0xff]
        %v3834 = vld [vmem:[%s203 + $0x6ea0] sm:$0xff]
        %v3835 = vld [vmem:[%s203 + $0x6ea8] sm:$0xff]
        %v3836 = vld [vmem:[%s203 + $0x6eb0] sm:$0xff]
        %v3837 = vld [vmem:[%s203 + $0x6eb8] sm:$0xff]
        %v3838 = vld [vmem:[%s203 + $0x6ec0] sm:$0xff]
        %v3839 = vld [vmem:[%s203 + $0x6ec8] sm:$0xff]
        %v3840 = vld [vmem:[%s203 + $0x6ed0] sm:$0xff]
        %v3841 = vld [vmem:[%s203 + $0x6ed8] sm:$0xff]
        %v3842 = vld [vmem:[%s203 + $0x6ee0] sm:$0xff]
        %v3843 = vld [vmem:[%s203 + $0x6ee8] sm:$0xff]
        %v3844 = vld [vmem:[%s203 + $0x6ef0] sm:$0xff]
        %v3845 = vld [vmem:[%s203 + $0x6ef8] sm:$0xff]
        %v3846 = vld [vmem:[%s203 + $0x6f00] sm:$0xff]
        %v3847 = vld [vmem:[%s203 + $0x6f08] sm:$0xff]
        %v3848 = vld [vmem:[%s203 + $0x6f10] sm:$0xff]
        %v3849 = vld [vmem:[%s203 + $0x6f18] sm:$0xff]
        %v3850 = vld [vmem:[%s203 + $0x6f20] sm:$0xff]
        %v3851 = vld [vmem:[%s203 + $0x6f28] sm:$0xff]
        %v3852 = vld [vmem:[%s203 + $0x6f30] sm:$0xff]
        %v3853 = vld [vmem:[%s203 + $0x6f38] sm:$0xff]
        %v3854 = vld [vmem:[%s203 + $0x6f40] sm:$0xff]
        %v3855 = vld [vmem:[%s203 + $0x6f48] sm:$0xff]
        %v3856 = vld [vmem:[%s203 + $0x6f50] sm:$0xff]
        %v3857 = vld [vmem:[%s203 + $0x6f58] sm:$0xff]
        %v3858 = vld [vmem:[%s203 + $0x6f60] sm:$0xff]
        %v3859 = vld [vmem:[%s203 + $0x6f68] sm:$0xff]
        %v3860 = vld [vmem:[%s203 + $0x6f70] sm:$0xff]
        %v3861 = vld [vmem:[%s203 + $0x6f78] sm:$0xff]
        %v3862 = vld [vmem:[%s203 + $0x6f80] sm:$0xff]
        %v3863 = vld [vmem:[%s203 + $0x6f88] sm:$0xff]
        %v3864 = vld [vmem:[%s203 + $0x6f90] sm:$0xff]
        %v3865 = vld [vmem:[%s203 + $0x6f98] sm:$0xff]
        %v3866 = vld [vmem:[%s203 + $0x6fa0] sm:$0xff]
        %v3867 = vld [vmem:[%s203 + $0x6fa8] sm:$0xff]
        %v3868 = vld [vmem:[%s203 + $0x6fb0] sm:$0xff]
        %v3869 = vld [vmem:[%s203 + $0x6fb8] sm:$0xff]
        %v3870 = vld [vmem:[%s203 + $0x6fc0] sm:$0xff]
        %v3871 = vld [vmem:[%s203 + $0x6fc8] sm:$0xff]
        %v3872 = vld [vmem:[%s203 + $0x6fd0] sm:$0xff]
        %v3873 = vld [vmem:[%s203 + $0x6fd8] sm:$0xff]
        %v3874 = vld [vmem:[%s203 + $0x6fe0] sm:$0xff]
        %v3875 = vld [vmem:[%s203 + $0x6fe8] sm:$0xff]
        %v3876 = vld [vmem:[%s203 + $0x6ff0] sm:$0xff]
        %v3877 = vld [vmem:[%s203 + $0x6ff8] sm:$0xff]
        %v3878 = vld [vmem:[%s203 + $0x7000] sm:$0xff]
        %v3879 = vld [vmem:[%s203 + $0x7008] sm:$0xff]
        %v3880 = vld [vmem:[%s203 + $0x7010] sm:$0xff]
        %v3881 = vld [vmem:[%s203 + $0x7018] sm:$0xff]
        %v3882 = vld [vmem:[%s203 + $0x7020] sm:$0xff]
        %v3883 = vld [vmem:[%s203 + $0x7028] sm:$0xff]
        %v3884 = vld [vmem:[%s203 + $0x7030] sm:$0xff]
        %v3885 = vld [vmem:[%s203 + $0x7038] sm:$0xff]
        %v3886 = vld [vmem:[%s203 + $0x7040] sm:$0xff]
        %v3887 = vld [vmem:[%s203 + $0x7048] sm:$0xff]
        %v3888 = vld [vmem:[%s203 + $0x7050] sm:$0xff]
        %v3889 = vld [vmem:[%s203 + $0x7058] sm:$0xff]
        %v3890 = vld [vmem:[%s203 + $0x7060] sm:$0xff]
        %v3891 = vld [vmem:[%s203 + $0x7068] sm:$0xff]
        %v3892 = vld [vmem:[%s203 + $0x7070] sm:$0xff]
        %v3893 = vld [vmem:[%s203 + $0x7078] sm:$0xff]
        %v3894 = vld [vmem:[%s203 + $0x7080] sm:$0xff]
        %v3895 = vld [vmem:[%s203 + $0x7088] sm:$0xff]
        %v3896 = vld [vmem:[%s203 + $0x7090] sm:$0xff]
        %v3897 = vld [vmem:[%s203 + $0x7098] sm:$0xff]
        %v3898 = vld [vmem:[%s203 + $0x70a0] sm:$0xff]
        %v3899 = vld [vmem:[%s203 + $0x70a8] sm:$0xff]
        %v3900 = vld [vmem:[%s203 + $0x70b0] sm:$0xff]
        %v3901 = vld [vmem:[%s203 + $0x70b8] sm:$0xff]
        %v3902 = vld [vmem:[%s203 + $0x70c0] sm:$0xff]
        %v3903 = vld [vmem:[%s203 + $0x70c8] sm:$0xff]
        %v3904 = vld [vmem:[%s203 + $0x70d0] sm:$0xff]
        %v3905 = vld [vmem:[%s203 + $0x70d8] sm:$0xff]
        %v3906 = vld [vmem:[%s203 + $0x70e0] sm:$0xff]
        %v3907 = vld [vmem:[%s203 + $0x70e8] sm:$0xff]
        %v3908 = vld [vmem:[%s203 + $0x70f0] sm:$0xff]
        %v3909 = vld [vmem:[%s203 + $0x70f8] sm:$0xff]
        %v3910 = vld [vmem:[%s203 + $0x7100] sm:$0xff]
        %v3911 = vld [vmem:[%s203 + $0x7108] sm:$0xff]
        %v3912 = vld [vmem:[%s203 + $0x7110] sm:$0xff]
        %v3913 = vld [vmem:[%s203 + $0x7118] sm:$0xff]
        %v3914 = vld [vmem:[%s203 + $0x7120] sm:$0xff]
        %v3915 = vld [vmem:[%s203 + $0x7128] sm:$0xff]
        %v3916 = vld [vmem:[%s203 + $0x7130] sm:$0xff]
        %v3917 = vld [vmem:[%s203 + $0x7138] sm:$0xff]
        %v3918 = vld [vmem:[%s203 + $0x7140] sm:$0xff]
        %v3919 = vld [vmem:[%s203 + $0x7148] sm:$0xff]
        %v3920 = vld [vmem:[%s203 + $0x7150] sm:$0xff]
        %v3921 = vld [vmem:[%s203 + $0x7158] sm:$0xff]
        %v3922 = vld [vmem:[%s203 + $0x7160] sm:$0xff]
        %v3923 = vld [vmem:[%s203 + $0x7168] sm:$0xff]
        %v3924 = vld [vmem:[%s203 + $0x7170] sm:$0xff]
        %v3925 = vld [vmem:[%s203 + $0x7178] sm:$0xff]
        %v3926 = vld [vmem:[%s203 + $0x7180] sm:$0xff]
        %v3927 = vld [vmem:[%s203 + $0x7188] sm:$0xff]
        %v3928 = vld [vmem:[%s203 + $0x7190] sm:$0xff]
        %v3929 = vld [vmem:[%s203 + $0x7198] sm:$0xff]
        %v3930 = vld [vmem:[%s203 + $0x71a0] sm:$0xff]
        %v3931 = vld [vmem:[%s203 + $0x71a8] sm:$0xff]
        %v3932 = vld [vmem:[%s203 + $0x71b0] sm:$0xff]
        %v3933 = vld [vmem:[%s203 + $0x71b8] sm:$0xff]
        %v3934 = vld [vmem:[%s203 + $0x71c0] sm:$0xff]
        %v3935 = vld [vmem:[%s203 + $0x71c8] sm:$0xff]
        %v3936 = vld [vmem:[%s203 + $0x71d0] sm:$0xff]
        %v3937 = vld [vmem:[%s203 + $0x71d8] sm:$0xff]
        %v3938 = vld [vmem:[%s203 + $0x71e0] sm:$0xff]
        %v3939 = vld [vmem:[%s203 + $0x71e8] sm:$0xff]
        %v3940 = vld [vmem:[%s203 + $0x71f0] sm:$0xff]
        %v3941 = vld [vmem:[%s203 + $0x71f8] sm:$0xff]
        %v3942 = vld [vmem:[%s203 + $0x7200] sm:$0xff]
        %v3943 = vld [vmem:[%s203 + $0x7208] sm:$0xff]
        %v3944 = vld [vmem:[%s203 + $0x7210] sm:$0xff]
        %v3945 = vld [vmem:[%s203 + $0x7218] sm:$0xff]
        %v3946 = vld [vmem:[%s203 + $0x7220] sm:$0xff]
        %v3947 = vld [vmem:[%s203 + $0x7228] sm:$0xff]
        %v3948 = vld [vmem:[%s203 + $0x7230] sm:$0xff]
        %v3949 = vld [vmem:[%s203 + $0x7238] sm:$0xff]
        %v3950 = vld [vmem:[%s203 + $0x7240] sm:$0xff]
        %v3951 = vld [vmem:[%s203 + $0x7248] sm:$0xff]
        %v3952 = vld [vmem:[%s203 + $0x7250] sm:$0xff]
        %v3953 = vld [vmem:[%s203 + $0x7258] sm:$0xff]
        %v3954 = vld [vmem:[%s203 + $0x7260] sm:$0xff]
        %v3955 = vld [vmem:[%s203 + $0x7268] sm:$0xff]
        %v3956 = vld [vmem:[%s203 + $0x7270] sm:$0xff]
        %v3957 = vld [vmem:[%s203 + $0x7278] sm:$0xff]
        %v3958 = vld [vmem:[%s203 + $0x7280] sm:$0xff]
        %v3959 = vld [vmem:[%s203 + $0x7288] sm:$0xff]
        %v3960 = vld [vmem:[%s203 + $0x7290] sm:$0xff]
        %v3961 = vld [vmem:[%s203 + $0x7298] sm:$0xff]
        %v3962 = vld [vmem:[%s203 + $0x72a0] sm:$0xff]
        %v3963 = vld [vmem:[%s203 + $0x72a8] sm:$0xff]
        %v3964 = vld [vmem:[%s203 + $0x72b0] sm:$0xff]
        %v3965 = vld [vmem:[%s203 + $0x72b8] sm:$0xff]
        %v3966 = vld [vmem:[%s203 + $0x72c0] sm:$0xff]
        %v3967 = vld [vmem:[%s203 + $0x72c8] sm:$0xff]
        %v3968 = vld [vmem:[%s203 + $0x72d0] sm:$0xff]
        %v3969 = vld [vmem:[%s203 + $0x72d8] sm:$0xff]
        %v3970 = vld [vmem:[%s203 + $0x72e0] sm:$0xff]
        %v3971 = vld [vmem:[%s203 + $0x72e8] sm:$0xff]
        %v3972 = vld [vmem:[%s203 + $0x72f0] sm:$0xff]
        %v3973 = vld [vmem:[%s203 + $0x72f8] sm:$0xff]
        %v3974 = vld [vmem:[%s203 + $0x7300] sm:$0xff]
        %v3975 = vld [vmem:[%s203 + $0x7308] sm:$0xff]
        %v3976 = vld [vmem:[%s203 + $0x7310] sm:$0xff]
        %v3977 = vld [vmem:[%s203 + $0x7318] sm:$0xff]
        %v3978 = vld [vmem:[%s203 + $0x7320] sm:$0xff]
        %v3979 = vld [vmem:[%s203 + $0x7328] sm:$0xff]
        %v3980 = vld [vmem:[%s203 + $0x7330] sm:$0xff]
        %v3981 = vld [vmem:[%s203 + $0x7338] sm:$0xff]
        %v3982 = vld [vmem:[%s203 + $0x7340] sm:$0xff]
        %v3983 = vld [vmem:[%s203 + $0x7348] sm:$0xff]
        %v3984 = vld [vmem:[%s203 + $0x7350] sm:$0xff]
        %v3985 = vld [vmem:[%s203 + $0x7358] sm:$0xff]
        %v3986 = vld [vmem:[%s203 + $0x7360] sm:$0xff]
        %v3987 = vld [vmem:[%s203 + $0x7368] sm:$0xff]
        %v3988 = vld [vmem:[%s203 + $0x7370] sm:$0xff]
        %v3989 = vld [vmem:[%s203 + $0x7378] sm:$0xff]
        %v3990 = vld [vmem:[%s203 + $0x7380] sm:$0xff]
        %v3991 = vld [vmem:[%s203 + $0x7388] sm:$0xff]
        %v3992 = vld [vmem:[%s203 + $0x7390] sm:$0xff]
        %v3993 = vld [vmem:[%s203 + $0x7398] sm:$0xff]
        %v3994 = vld [vmem:[%s203 + $0x73a0] sm:$0xff]
        %v3995 = vld [vmem:[%s203 + $0x73a8] sm:$0xff]
        %v3996 = vld [vmem:[%s203 + $0x73b0] sm:$0xff]
        %v3997 = vld [vmem:[%s203 + $0x73b8] sm:$0xff]
        %v3998 = vld [vmem:[%s203 + $0x73c0] sm:$0xff]
        %v3999 = vld [vmem:[%s203 + $0x73c8] sm:$0xff]
        %v4000 = vld [vmem:[%s203 + $0x73d0] sm:$0xff]
        %v4001 = vld [vmem:[%s203 + $0x73d8] sm:$0xff]
        %v4002 = vld [vmem:[%s203 + $0x73e0] sm:$0xff]
        %v4003 = vld [vmem:[%s203 + $0x73e8] sm:$0xff]
        %v4004 = vld [vmem:[%s203 + $0x73f0] sm:$0xff]
        %v4005 = vld [vmem:[%s203 + $0x73f8] sm:$0xff]
        %v4006 = vld [vmem:[%s203 + $0x7400] sm:$0xff]
        %v4007 = vld [vmem:[%s203 + $0x7408] sm:$0xff]
        %v4008 = vld [vmem:[%s203 + $0x7410] sm:$0xff]
        %v4009 = vld [vmem:[%s203 + $0x7418] sm:$0xff]
        %v4010 = vld [vmem:[%s203 + $0x7420] sm:$0xff]
        %v4011 = vld [vmem:[%s203 + $0x7428] sm:$0xff]
        %v4012 = vld [vmem:[%s203 + $0x7430] sm:$0xff]
        %v4013 = vld [vmem:[%s203 + $0x7438] sm:$0xff]
        %v4014 = vld [vmem:[%s203 + $0x7440] sm:$0xff]
        %v4015 = vld [vmem:[%s203 + $0x7448] sm:$0xff]
        %v4016 = vld [vmem:[%s203 + $0x7450] sm:$0xff]
        %v4017 = vld [vmem:[%s203 + $0x7458] sm:$0xff]
        %v4018 = vld [vmem:[%s203 + $0x7460] sm:$0xff]
        %v4019 = vld [vmem:[%s203 + $0x7468] sm:$0xff]
        %v4020 = vld [vmem:[%s203 + $0x7470] sm:$0xff]
        %v4021 = vld [vmem:[%s203 + $0x7478] sm:$0xff]
        %v4022 = vld [vmem:[%s203 + $0x7480] sm:$0xff]
        %v4023 = vld [vmem:[%s203 + $0x7488] sm:$0xff]
        %v4024 = vld [vmem:[%s203 + $0x7490] sm:$0xff]
        %v4025 = vld [vmem:[%s203 + $0x7498] sm:$0xff]
        %v4026 = vld [vmem:[%s203 + $0x74a0] sm:$0xff]
        %v4027 = vld [vmem:[%s203 + $0x74a8] sm:$0xff]
        %v4028 = vld [vmem:[%s203 + $0x74b0] sm:$0xff]
        %v4029 = vld [vmem:[%s203 + $0x74b8] sm:$0xff]
        %v4030 = vld [vmem:[%s203 + $0x74c0] sm:$0xff]
        %v4031 = vld [vmem:[%s203 + $0x74c8] sm:$0xff]
        %v4032 = vld [vmem:[%s203 + $0x74d0] sm:$0xff]
        %v4033 = vld [vmem:[%s203 + $0x74d8] sm:$0xff]
        %v4034 = vld [vmem:[%s203 + $0x74e0] sm:$0xff]
        %v4035 = vld [vmem:[%s203 + $0x74e8] sm:$0xff]
        %v4036 = vld [vmem:[%s203 + $0x74f0] sm:$0xff]
        %v4037 = vld [vmem:[%s203 + $0x74f8] sm:$0xff]
        %v4038 = vld [vmem:[%s203 + $0x7500] sm:$0xff]
        %v4039 = vld [vmem:[%s203 + $0x7508] sm:$0xff]
        %v4040 = vld [vmem:[%s203 + $0x7510] sm:$0xff]
        %v4041 = vld [vmem:[%s203 + $0x7518] sm:$0xff]
        %v4042 = vld [vmem:[%s203 + $0x7520] sm:$0xff]
        %v4043 = vld [vmem:[%s203 + $0x7528] sm:$0xff]
        %v4044 = vld [vmem:[%s203 + $0x7530] sm:$0xff]
        %v4045 = vld [vmem:[%s203 + $0x7538] sm:$0xff]
        %v4046 = vld [vmem:[%s203 + $0x7540] sm:$0xff]
        %v4047 = vld [vmem:[%s203 + $0x7548] sm:$0xff]
        %v4048 = vld [vmem:[%s203 + $0x7550] sm:$0xff]
        %v4049 = vld [vmem:[%s203 + $0x7558] sm:$0xff]
        %v4050 = vld [vmem:[%s203 + $0x7560] sm:$0xff]
        %v4051 = vld [vmem:[%s203 + $0x7568] sm:$0xff]
        %v4052 = vld [vmem:[%s203 + $0x7570] sm:$0xff]
        %v4053 = vld [vmem:[%s203 + $0x7578] sm:$0xff]
        %v4054 = vld [vmem:[%s203 + $0x7580] sm:$0xff]
        %v4055 = vld [vmem:[%s203 + $0x7588] sm:$0xff]
        %v4056 = vld [vmem:[%s203 + $0x7590] sm:$0xff]
        %v4057 = vld [vmem:[%s203 + $0x7598] sm:$0xff]
        %v4058 = vld [vmem:[%s203 + $0x75a0] sm:$0xff]
        %v4059 = vld [vmem:[%s203 + $0x75a8] sm:$0xff]
        %v4060 = vld [vmem:[%s203 + $0x75b0] sm:$0xff]
        %v4061 = vld [vmem:[%s203 + $0x75b8] sm:$0xff]
        %v4062 = vld [vmem:[%s203 + $0x75c0] sm:$0xff]
        %v4063 = vld [vmem:[%s203 + $0x75c8] sm:$0xff]
        %v4064 = vld [vmem:[%s203 + $0x75d0] sm:$0xff]
        %v4065 = vld [vmem:[%s203 + $0x75d8] sm:$0xff]
        %v4066 = vld [vmem:[%s203 + $0x75e0] sm:$0xff]
        %v4067 = vld [vmem:[%s203 + $0x75e8] sm:$0xff]
        %v4068 = vld [vmem:[%s203 + $0x75f0] sm:$0xff]
        %v4069 = vld [vmem:[%s203 + $0x75f8] sm:$0xff]
        %v4070 = vld [vmem:[%s203 + $0x7600] sm:$0xff]
        %v4071 = vld [vmem:[%s203 + $0x7608] sm:$0xff]
        %v4072 = vld [vmem:[%s203 + $0x7610] sm:$0xff]
        %v4073 = vld [vmem:[%s203 + $0x7618] sm:$0xff]
        %v4074 = vld [vmem:[%s203 + $0x7620] sm:$0xff]
        %v4075 = vld [vmem:[%s203 + $0x7628] sm:$0xff]
        %v4076 = vld [vmem:[%s203 + $0x7630] sm:$0xff]
        %v4077 = vld [vmem:[%s203 + $0x7638] sm:$0xff]
        %v4078 = vld [vmem:[%s203 + $0x7640] sm:$0xff]
        %v4079 = vld [vmem:[%s203 + $0x7648] sm:$0xff]
        %v4080 = vld [vmem:[%s203 + $0x7650] sm:$0xff]
        %v4081 = vld [vmem:[%s203 + $0x7658] sm:$0xff]
        %v4082 = vld [vmem:[%s203 + $0x7660] sm:$0xff]
        %v4083 = vld [vmem:[%s203 + $0x7668] sm:$0xff]
        %v4084 = vld [vmem:[%s203 + $0x7670] sm:$0xff]
        %v4085 = vld [vmem:[%s203 + $0x7678] sm:$0xff]
        %v4086 = vld [vmem:[%s203 + $0x7680] sm:$0xff]
        %v4087 = vld [vmem:[%s203 + $0x7688] sm:$0xff]
        %v4088 = vld [vmem:[%s203 + $0x7690] sm:$0xff]
        %v4089 = vld [vmem:[%s203 + $0x7698] sm:$0xff]
        %v4090 = vld [vmem:[%s203 + $0x76a0] sm:$0xff]
        %v4091 = vld [vmem:[%s203 + $0x76a8] sm:$0xff]
        %v4092 = vld [vmem:[%s203 + $0x76b0] sm:$0xff]
        %v4093 = vld [vmem:[%s203 + $0x76b8] sm:$0xff]
        %v4094 = vld [vmem:[%s203 + $0x76c0] sm:$0xff]
        %v4095 = vld [vmem:[%s203 + $0x76c8] sm:$0xff]
        %v4096 = vld [vmem:[%s203 + $0x76d0] sm:$0xff]
        %v4097 = vld [vmem:[%s203 + $0x76d8] sm:$0xff]
        %v4098 = vld [vmem:[%s203 + $0x76e0] sm:$0xff]
        %v4099 = vld [vmem:[%s203 + $0x76e8] sm:$0xff]
        %v4100 = vld [vmem:[%s203 + $0x76f0] sm:$0xff]
        %v4101 = vld [vmem:[%s203 + $0x76f8] sm:$0xff]
        %v4102 = vld [vmem:[%s203 + $0x7700] sm:$0xff]
        %v4103 = vld [vmem:[%s203 + $0x7708] sm:$0xff]
        %v4104 = vld [vmem:[%s203 + $0x7710] sm:$0xff]
        %v4105 = vld [vmem:[%s203 + $0x7718] sm:$0xff]
        %v4106 = vld [vmem:[%s203 + $0x7720] sm:$0xff]
        %v4107 = vld [vmem:[%s203 + $0x7728] sm:$0xff]
        %v4108 = vld [vmem:[%s203 + $0x7730] sm:$0xff]
        %v4109 = vld [vmem:[%s203 + $0x7738] sm:$0xff]
        %v4110 = vld [vmem:[%s203 + $0x7740] sm:$0xff]
        %v4111 = vld [vmem:[%s203 + $0x7748] sm:$0xff]
        %v4112 = vld [vmem:[%s203 + $0x7750] sm:$0xff]
        %v4113 = vld [vmem:[%s203 + $0x7758] sm:$0xff]
        %v4114 = vld [vmem:[%s203 + $0x7760] sm:$0xff]
        %v4115 = vld [vmem:[%s203 + $0x7768] sm:$0xff]
        %v4116 = vld [vmem:[%s203 + $0x7770] sm:$0xff]
        %v4117 = vld [vmem:[%s203 + $0x7778] sm:$0xff]
        %v4118 = vld [vmem:[%s203 + $0x7780] sm:$0xff]
        %v4119 = vld [vmem:[%s203 + $0x7788] sm:$0xff]
        %v4120 = vld [vmem:[%s203 + $0x7790] sm:$0xff]
        %v4121 = vld [vmem:[%s203 + $0x7798] sm:$0xff]
        %v4122 = vld [vmem:[%s203 + $0x77a0] sm:$0xff]
        %v4123 = vld [vmem:[%s203 + $0x77a8] sm:$0xff]
        %v4124 = vld [vmem:[%s203 + $0x77b0] sm:$0xff]
        %v4125 = vld [vmem:[%s203 + $0x77b8] sm:$0xff]
        %v4126 = vld [vmem:[%s203 + $0x77c0] sm:$0xff]
        %v4127 = vld [vmem:[%s203 + $0x77c8] sm:$0xff]
        %v4128 = vld [vmem:[%s203 + $0x77d0] sm:$0xff]
        %v4129 = vld [vmem:[%s203 + $0x77d8] sm:$0xff]
        %v4130 = vld [vmem:[%s203 + $0x77e0] sm:$0xff]
        %v4131 = vld [vmem:[%s203 + $0x77e8] sm:$0xff]
        %v4132 = vld [vmem:[%s203 + $0x77f0] sm:$0xff]
        %v4133 = vld [vmem:[%s203 + $0x77f8] sm:$0xff]
        %v4134 = vld [vmem:[%s203 + $0x7800] sm:$0xff]
        %v4135 = vld [vmem:[%s203 + $0x7808] sm:$0xff]
        %v4136 = vld [vmem:[%s203 + $0x7810] sm:$0xff]
        %v4137 = vld [vmem:[%s203 + $0x7818] sm:$0xff]
        %v4138 = vld [vmem:[%s203 + $0x7820] sm:$0xff]
        %v4139 = vld [vmem:[%s203 + $0x7828] sm:$0xff]
        %v4140 = vld [vmem:[%s203 + $0x7830] sm:$0xff]
        %v4141 = vld [vmem:[%s203 + $0x7838] sm:$0xff]
        %v4142 = vld [vmem:[%s203 + $0x7840] sm:$0xff]
        %v4143 = vld [vmem:[%s203 + $0x7848] sm:$0xff]
        %v4144 = vld [vmem:[%s203 + $0x7850] sm:$0xff]
        %v4145 = vld [vmem:[%s203 + $0x7858] sm:$0xff]
        %v4146 = vld [vmem:[%s203 + $0x7860] sm:$0xff]
        %v4147 = vld [vmem:[%s203 + $0x7868] sm:$0xff]
        %v4148 = vld [vmem:[%s203 + $0x7870] sm:$0xff]
        %v4149 = vld [vmem:[%s203 + $0x7878] sm:$0xff]
        %v4150 = vld [vmem:[%s203 + $0x7880] sm:$0xff]
        %v4151 = vld [vmem:[%s203 + $0x7888] sm:$0xff]
        %v4152 = vld [vmem:[%s203 + $0x7890] sm:$0xff]
        %v4153 = vld [vmem:[%s203 + $0x7898] sm:$0xff]
        %v4154 = vld [vmem:[%s203 + $0x78a0] sm:$0xff]
        %v4155 = vld [vmem:[%s203 + $0x78a8] sm:$0xff]
        %v4156 = vld [vmem:[%s203 + $0x78b0] sm:$0xff]
        %v4157 = vld [vmem:[%s203 + $0x78b8] sm:$0xff]
        %v4158 = vld [vmem:[%s203 + $0x78c0] sm:$0xff]
        %v4159 = vld [vmem:[%s203 + $0x78c8] sm:$0xff]
        %v4160 = vld [vmem:[%s203 + $0x78d0] sm:$0xff]
        %v4161 = vld [vmem:[%s203 + $0x78d8] sm:$0xff]
        %v4162 = vld [vmem:[%s203 + $0x78e0] sm:$0xff]
        %v4163 = vld [vmem:[%s203 + $0x78e8] sm:$0xff]
        %v4164 = vld [vmem:[%s203 + $0x78f0] sm:$0xff]
        %v4165 = vld [vmem:[%s203 + $0x78f8] sm:$0xff]
        %v4166 = vld [vmem:[%s203 + $0x7900] sm:$0xff]
        %v4167 = vld [vmem:[%s203 + $0x7908] sm:$0xff]
        %v4168 = vld [vmem:[%s203 + $0x7910] sm:$0xff]
        %v4169 = vld [vmem:[%s213] sm:$0x1f]
        %v4171 = vperm.slane %v4169, 0
        %v4172 = vperm.slane %v4169, 1
        %v4173 = vperm.slane %v4169, 2
        %v4174 = vperm.slane %v4169, 3
        %v4175 = vperm.slane %v4169, 4
        %vm4181 = vcmask 457728
        %v4183 = vsel %vm4181, %v293, 0
        %4185 = vmatpush.msra.mxu0 %v369
        %4186 = vmatpush.msra.mxu0 %v364
        %4187 = vmatpush.msra.mxu0 %v359
        %4188 = vmatpush.msra.mxu0 %v354
        %4189 = vmatpush.msra.mxu0 %v349
        %4190 = vmatpush.msra.mxu0 %v344
        %4191 = vmatpush.msra.mxu0 %v339
        %4192 = vmatpush.msra.mxu0 %v334
        %4193 = vmatpush.msra.mxu0 %v329
        %4194 = vmatpush.msra.mxu0 %v324
        %4195 = vmatpush.msra.mxu0 %v319
        %4196 = vmatpush.msra.mxu0 %v314
        %4197 = vmatpush.msra.mxu0 %v309
        %4198 = vmatpush.msra.mxu0 %v304
        %4199 = vmatpush.msra.mxu0 %v299
        %4200 = vmatpush.msra.mxu0 %v294
        %4201 = vmatmul.f32.gmra.mxu0 %v245
        %v4202 = vpop.f32.mrf.mxu0
        %v4203 = vadd.f32 %v4171, %v4202
        %4204 = vdwg.mxu0
        %4205 = vmatpush.msra.mxu0 %v449
        %4206 = vmatpush.msra.mxu0 %v444
        %4207 = vmatpush.msra.mxu0 %v439
        %4208 = vmatpush.msra.mxu0 %v434
        %4209 = vmatpush.msra.mxu0 %v429
        %4210 = vmatpush.msra.mxu0 %v424
        %4211 = vmatpush.msra.mxu0 %v419
        %4212 = vmatpush.msra.mxu0 %v414
        %4213 = vmatpush.msra.mxu0 %v409
        %4214 = vmatpush.msra.mxu0 %v404
        %4215 = vmatpush.msra.mxu0 %v399
        %4216 = vmatpush.msra.mxu0 %v394
        %4217 = vmatpush.msra.mxu0 %v389
        %4218 = vmatpush.msra.mxu0 %v384
        %4219 = vmatpush.msra.mxu0 %v379
        %4220 = vmatpush.msra.mxu0 %v374
        %4221 = vmatmul.f32.gmra.mxu0 %v246
        %v4222 = vpop.f32.mrf.mxu0
        %v4223 = vadd.f32 %v4203, %v4222
        %4224 = vdwg.mxu0
        %4225 = vmatpush.msra.mxu0 %v529
        %4226 = vmatpush.msra.mxu0 %v524
        %4227 = vmatpush.msra.mxu0 %v519
        %4228 = vmatpush.msra.mxu0 %v514
        %4229 = vmatpush.msra.mxu0 %v509
        %4230 = vmatpush.msra.mxu0 %v504
        %4231 = vmatpush.msra.mxu0 %v499
        %4232 = vmatpush.msra.mxu0 %v494
        %4233 = vmatpush.msra.mxu0 %v489
        %4234 = vmatpush.msra.mxu0 %v484
        %4235 = vmatpush.msra.mxu0 %v479
        %4236 = vmatpush.msra.mxu0 %v474
        %4237 = vmatpush.msra.mxu0 %v469
        %4238 = vmatpush.msra.mxu0 %v464
        %4239 = vmatpush.msra.mxu0 %v459
        %4240 = vmatpush.msra.mxu0 %v454
        %4241 = vmatmul.f32.gmra.mxu0 %v247
        %v4242 = vpop.f32.mrf.mxu0
        %v4243 = vadd.f32 %v4223, %v4242
        %4244 = vdwg.mxu0
        %4245 = vmatpush.msra.mxu0 %v609
        %4246 = vmatpush.msra.mxu0 %v604
        %4247 = vmatpush.msra.mxu0 %v599
        %4248 = vmatpush.msra.mxu0 %v594
        %4249 = vmatpush.msra.mxu0 %v589
        %4250 = vmatpush.msra.mxu0 %v584
        %4251 = vmatpush.msra.mxu0 %v579
        %4252 = vmatpush.msra.mxu0 %v574
        %4253 = vmatpush.msra.mxu0 %v569
        %4254 = vmatpush.msra.mxu0 %v564
        %4255 = vmatpush.msra.mxu0 %v559
        %4256 = vmatpush.msra.mxu0 %v554
        %4257 = vmatpush.msra.mxu0 %v549
        %4258 = vmatpush.msra.mxu0 %v544
        %4259 = vmatpush.msra.mxu0 %v539
        %4260 = vmatpush.msra.mxu0 %v534
        %4261 = vmatmul.f32.gmra.mxu0 %v248
        %v4262 = vpop.f32.mrf.mxu0
        %v4263 = vadd.f32 %v4243, %v4262
        %4264 = vdwg.mxu0
        %4265 = vmatpush.msra.mxu0 %v689
        %4266 = vmatpush.msra.mxu0 %v684
        %4267 = vmatpush.msra.mxu0 %v679
        %4268 = vmatpush.msra.mxu0 %v674
        %4269 = vmatpush.msra.mxu0 %v669
        %4270 = vmatpush.msra.mxu0 %v664
        %4271 = vmatpush.msra.mxu0 %v659
        %4272 = vmatpush.msra.mxu0 %v654
        %4273 = vmatpush.msra.mxu0 %v649
        %4274 = vmatpush.msra.mxu0 %v644
        %4275 = vmatpush.msra.mxu0 %v639
        %4276 = vmatpush.msra.mxu0 %v634
        %4277 = vmatpush.msra.mxu0 %v629
        %4278 = vmatpush.msra.mxu0 %v624
        %4279 = vmatpush.msra.mxu0 %v619
        %4280 = vmatpush.msra.mxu0 %v614
        %4281 = vmatmul.f32.gmra.mxu0 %v249
        %v4282 = vpop.f32.mrf.mxu0
        %v4283 = vadd.f32 %v4263, %v4282
        %4284 = vdwg.mxu0
        %4285 = vmatpush.msra.mxu0 %v769
        %4286 = vmatpush.msra.mxu0 %v764
        %4287 = vmatpush.msra.mxu0 %v759
        %4288 = vmatpush.msra.mxu0 %v754
        %4289 = vmatpush.msra.mxu0 %v749
        %4290 = vmatpush.msra.mxu0 %v744
        %4291 = vmatpush.msra.mxu0 %v739
        %4292 = vmatpush.msra.mxu0 %v734
        %4293 = vmatpush.msra.mxu0 %v729
        %4294 = vmatpush.msra.mxu0 %v724
        %4295 = vmatpush.msra.mxu0 %v719
        %4296 = vmatpush.msra.mxu0 %v714
        %4297 = vmatpush.msra.mxu0 %v709
        %4298 = vmatpush.msra.mxu0 %v704
        %4299 = vmatpush.msra.mxu0 %v699
        %4300 = vmatpush.msra.mxu0 %v694
        %4301 = vmatmul.f32.gmra.mxu0 %v250
        %v4302 = vpop.f32.mrf.mxu0
        %v4303 = vadd.f32 %v4283, %v4302
        %4304 = vdwg.mxu0
        %4305 = vmatpush.msra.mxu0 %v849
        %4306 = vmatpush.msra.mxu0 %v844
        %4307 = vmatpush.msra.mxu0 %v839
        %4308 = vmatpush.msra.mxu0 %v834
        %4309 = vmatpush.msra.mxu0 %v829
        %4310 = vmatpush.msra.mxu0 %v824
        %4311 = vmatpush.msra.mxu0 %v819
        %4312 = vmatpush.msra.mxu0 %v814
        %4313 = vmatpush.msra.mxu0 %v809
        %4314 = vmatpush.msra.mxu0 %v804
        %4315 = vmatpush.msra.mxu0 %v799
        %4316 = vmatpush.msra.mxu0 %v794
        %4317 = vmatpush.msra.mxu0 %v789
        %4318 = vmatpush.msra.mxu0 %v784
        %4319 = vmatpush.msra.mxu0 %v779
        %4320 = vmatpush.msra.mxu0 %v774
        %4321 = vmatmul.f32.gmra.mxu0 %v251
        %v4322 = vpop.f32.mrf.mxu0
        %v4323 = vadd.f32 %v4303, %v4322
        %4324 = vdwg.mxu0
        %4325 = vmatpush.msra.mxu0 %v929
        %4326 = vmatpush.msra.mxu0 %v924
        %4327 = vmatpush.msra.mxu0 %v919
        %4328 = vmatpush.msra.mxu0 %v914
        %4329 = vmatpush.msra.mxu0 %v909
        %4330 = vmatpush.msra.mxu0 %v904
        %4331 = vmatpush.msra.mxu0 %v899
        %4332 = vmatpush.msra.mxu0 %v894
        %4333 = vmatpush.msra.mxu0 %v889
        %4334 = vmatpush.msra.mxu0 %v884
        %4335 = vmatpush.msra.mxu0 %v879
        %4336 = vmatpush.msra.mxu0 %v874
        %4337 = vmatpush.msra.mxu0 %v869
        %4338 = vmatpush.msra.mxu0 %v864
        %4339 = vmatpush.msra.mxu0 %v859
        %4340 = vmatpush.msra.mxu0 %v854
        %4341 = vmatmul.f32.gmra.mxu0 %v252
        %v4342 = vpop.f32.mrf.mxu0
        %v4343 = vadd.f32 %v4323, %v4342
        %4344 = vdwg.mxu0
        %4345 = vmatpush.msra.mxu0 %v1009
        %4346 = vmatpush.msra.mxu0 %v1004
        %4347 = vmatpush.msra.mxu0 %v999
        %4348 = vmatpush.msra.mxu0 %v994
        %4349 = vmatpush.msra.mxu0 %v989
        %4350 = vmatpush.msra.mxu0 %v984
        %4351 = vmatpush.msra.mxu0 %v979
        %4352 = vmatpush.msra.mxu0 %v974
        %4353 = vmatpush.msra.mxu0 %v969
        %4354 = vmatpush.msra.mxu0 %v964
        %4355 = vmatpush.msra.mxu0 %v959
        %4356 = vmatpush.msra.mxu0 %v954
        %4357 = vmatpush.msra.mxu0 %v949
        %4358 = vmatpush.msra.mxu0 %v944
        %4359 = vmatpush.msra.mxu0 %v939
        %4360 = vmatpush.msra.mxu0 %v934
        %4361 = vmatmul.f32.gmra.mxu0 %v253
        %v4362 = vpop.f32.mrf.mxu0
        %v4363 = vadd.f32 %v4343, %v4362
        %4364 = vdwg.mxu0
        %4365 = vmatpush.msra.mxu0 %v1089
        %4366 = vmatpush.msra.mxu0 %v1084
        %4367 = vmatpush.msra.mxu0 %v1079
        %4368 = vmatpush.msra.mxu0 %v1074
        %4369 = vmatpush.msra.mxu0 %v1069
        %4370 = vmatpush.msra.mxu0 %v1064
        %4371 = vmatpush.msra.mxu0 %v1059
        %4372 = vmatpush.msra.mxu0 %v1054
        %4373 = vmatpush.msra.mxu0 %v1049
        %4374 = vmatpush.msra.mxu0 %v1044
        %4375 = vmatpush.msra.mxu0 %v1039
        %4376 = vmatpush.msra.mxu0 %v1034
        %4377 = vmatpush.msra.mxu0 %v1029
        %4378 = vmatpush.msra.mxu0 %v1024
        %4379 = vmatpush.msra.mxu0 %v1019
        %4380 = vmatpush.msra.mxu0 %v1014
        %4381 = vmatmul.f32.gmra.mxu0 %v254
        %v4382 = vpop.f32.mrf.mxu0
        %v4383 = vadd.f32 %v4363, %v4382
        %4384 = vdwg.mxu0
        %4385 = vmatpush.msra.mxu0 %v1169
        %4386 = vmatpush.msra.mxu0 %v1164
        %4387 = vmatpush.msra.mxu0 %v1159
        %4388 = vmatpush.msra.mxu0 %v1154
        %4389 = vmatpush.msra.mxu0 %v1149
        %4390 = vmatpush.msra.mxu0 %v1144
        %4391 = vmatpush.msra.mxu0 %v1139
        %4392 = vmatpush.msra.mxu0 %v1134
        %4393 = vmatpush.msra.mxu0 %v1129
        %4394 = vmatpush.msra.mxu0 %v1124
        %4395 = vmatpush.msra.mxu0 %v1119
        %4396 = vmatpush.msra.mxu0 %v1114
        %4397 = vmatpush.msra.mxu0 %v1109
        %4398 = vmatpush.msra.mxu0 %v1104
        %4399 = vmatpush.msra.mxu0 %v1099
        %4400 = vmatpush.msra.mxu0 %v1094
        %4401 = vmatmul.f32.gmra.mxu0 %v255
        %v4402 = vpop.f32.mrf.mxu0
        %v4403 = vadd.f32 %v4383, %v4402
        %4404 = vdwg.mxu0
        %4405 = vmatpush.msra.mxu0 %v1249
        %4406 = vmatpush.msra.mxu0 %v1244
        %4407 = vmatpush.msra.mxu0 %v1239
        %4408 = vmatpush.msra.mxu0 %v1234
        %4409 = vmatpush.msra.mxu0 %v1229
        %4410 = vmatpush.msra.mxu0 %v1224
        %4411 = vmatpush.msra.mxu0 %v1219
        %4412 = vmatpush.msra.mxu0 %v1214
        %4413 = vmatpush.msra.mxu0 %v1209
        %4414 = vmatpush.msra.mxu0 %v1204
        %4415 = vmatpush.msra.mxu0 %v1199
        %4416 = vmatpush.msra.mxu0 %v1194
        %4417 = vmatpush.msra.mxu0 %v1189
        %4418 = vmatpush.msra.mxu0 %v1184
        %4419 = vmatpush.msra.mxu0 %v1179
        %4420 = vmatpush.msra.mxu0 %v1174
        %4421 = vmatmul.f32.gmra.mxu0 %v256
        %v4422 = vpop.f32.mrf.mxu0
        %v4423 = vadd.f32 %v4403, %v4422
        %4424 = vdwg.mxu0
        %4425 = vmatpush.msra.mxu0 %v1329
        %4426 = vmatpush.msra.mxu0 %v1324
        %4427 = vmatpush.msra.mxu0 %v1319
        %4428 = vmatpush.msra.mxu0 %v1314
        %4429 = vmatpush.msra.mxu0 %v1309
        %4430 = vmatpush.msra.mxu0 %v1304
        %4431 = vmatpush.msra.mxu0 %v1299
        %4432 = vmatpush.msra.mxu0 %v1294
        %4433 = vmatpush.msra.mxu0 %v1289
        %4434 = vmatpush.msra.mxu0 %v1284
        %4435 = vmatpush.msra.mxu0 %v1279
        %4436 = vmatpush.msra.mxu0 %v1274
        %4437 = vmatpush.msra.mxu0 %v1269
        %4438 = vmatpush.msra.mxu0 %v1264
        %4439 = vmatpush.msra.mxu0 %v1259
        %4440 = vmatpush.msra.mxu0 %v1254
        %4441 = vmatmul.f32.gmra.mxu0 %v257
        %v4442 = vpop.f32.mrf.mxu0
        %v4443 = vadd.f32 %v4423, %v4442
        %4444 = vdwg.mxu0
        %4445 = vmatpush.msra.mxu0 %v1409
        %4446 = vmatpush.msra.mxu0 %v1404
        %4447 = vmatpush.msra.mxu0 %v1399
        %4448 = vmatpush.msra.mxu0 %v1394
        %4449 = vmatpush.msra.mxu0 %v1389
        %4450 = vmatpush.msra.mxu0 %v1384
        %4451 = vmatpush.msra.mxu0 %v1379
        %4452 = vmatpush.msra.mxu0 %v1374
        %4453 = vmatpush.msra.mxu0 %v1369
        %4454 = vmatpush.msra.mxu0 %v1364
        %4455 = vmatpush.msra.mxu0 %v1359
        %4456 = vmatpush.msra.mxu0 %v1354
        %4457 = vmatpush.msra.mxu0 %v1349
        %4458 = vmatpush.msra.mxu0 %v1344
        %4459 = vmatpush.msra.mxu0 %v1339
        %4460 = vmatpush.msra.mxu0 %v1334
        %4461 = vmatmul.f32.gmra.mxu0 %v258
        %v4462 = vpop.f32.mrf.mxu0
        %v4463 = vadd.f32 %v4443, %v4462
        %4464 = vdwg.mxu0
        %4465 = vmatpush.msra.mxu0 %v1489
        %4466 = vmatpush.msra.mxu0 %v1484
        %4467 = vmatpush.msra.mxu0 %v1479
        %4468 = vmatpush.msra.mxu0 %v1474
        %4469 = vmatpush.msra.mxu0 %v1469
        %4470 = vmatpush.msra.mxu0 %v1464
        %4471 = vmatpush.msra.mxu0 %v1459
        %4472 = vmatpush.msra.mxu0 %v1454
        %4473 = vmatpush.msra.mxu0 %v1449
        %4474 = vmatpush.msra.mxu0 %v1444
        %4475 = vmatpush.msra.mxu0 %v1439
        %4476 = vmatpush.msra.mxu0 %v1434
        %4477 = vmatpush.msra.mxu0 %v1429
        %4478 = vmatpush.msra.mxu0 %v1424
        %4479 = vmatpush.msra.mxu0 %v1419
        %4480 = vmatpush.msra.mxu0 %v1414
        %4481 = vmatmul.f32.gmra.mxu0 %v259
        %v4482 = vpop.f32.mrf.mxu0
        %v4483 = vadd.f32 %v4463, %v4482
        %4484 = vdwg.mxu0
        %4485 = vmatpush.msra.mxu0 %v1569
        %4486 = vmatpush.msra.mxu0 %v1564
        %4487 = vmatpush.msra.mxu0 %v1559
        %4488 = vmatpush.msra.mxu0 %v1554
        %4489 = vmatpush.msra.mxu0 %v1549
        %4490 = vmatpush.msra.mxu0 %v1544
        %4491 = vmatpush.msra.mxu0 %v1539
        %4492 = vmatpush.msra.mxu0 %v1534
        %4493 = vmatpush.msra.mxu0 %v1529
        %4494 = vmatpush.msra.mxu0 %v1524
        %4495 = vmatpush.msra.mxu0 %v1519
        %4496 = vmatpush.msra.mxu0 %v1514
        %4497 = vmatpush.msra.mxu0 %v1509
        %4498 = vmatpush.msra.mxu0 %v1504
        %4499 = vmatpush.msra.mxu0 %v1499
        %4500 = vmatpush.msra.mxu0 %v1494
        %4501 = vmatmul.f32.gmra.mxu0 %v260
        %v4502 = vpop.f32.mrf.mxu0
        %v4503 = vadd.f32 %v4483, %v4502
        %4504 = vdwg.mxu0
        %4505 = vmatpush.msra.mxu0 %v1649
        %4506 = vmatpush.msra.mxu0 %v1644
        %4507 = vmatpush.msra.mxu0 %v1639
        %4508 = vmatpush.msra.mxu0 %v1634
        %4509 = vmatpush.msra.mxu0 %v1629
        %4510 = vmatpush.msra.mxu0 %v1624
        %4511 = vmatpush.msra.mxu0 %v1619
        %4512 = vmatpush.msra.mxu0 %v1614
        %4513 = vmatpush.msra.mxu0 %v1609
        %4514 = vmatpush.msra.mxu0 %v1604
        %4515 = vmatpush.msra.mxu0 %v1599
        %4516 = vmatpush.msra.mxu0 %v1594
        %4517 = vmatpush.msra.mxu0 %v1589
        %4518 = vmatpush.msra.mxu0 %v1584
        %4519 = vmatpush.msra.mxu0 %v1579
        %4520 = vmatpush.msra.mxu0 %v1574
        %4521 = vmatmul.f32.gmra.mxu0 %v261
        %v4522 = vpop.f32.mrf.mxu0
        %v4523 = vadd.f32 %v4503, %v4522
        %4524 = vdwg.mxu0
        %4525 = vmatpush.msra.mxu0 %v1729
        %4526 = vmatpush.msra.mxu0 %v1724
        %4527 = vmatpush.msra.mxu0 %v1719
        %4528 = vmatpush.msra.mxu0 %v1714
        %4529 = vmatpush.msra.mxu0 %v1709
        %4530 = vmatpush.msra.mxu0 %v1704
        %4531 = vmatpush.msra.mxu0 %v1699
        %4532 = vmatpush.msra.mxu0 %v1694
        %4533 = vmatpush.msra.mxu0 %v1689
        %4534 = vmatpush.msra.mxu0 %v1684
        %4535 = vmatpush.msra.mxu0 %v1679
        %4536 = vmatpush.msra.mxu0 %v1674
        %4537 = vmatpush.msra.mxu0 %v1669
        %4538 = vmatpush.msra.mxu0 %v1664
        %4539 = vmatpush.msra.mxu0 %v1659
        %4540 = vmatpush.msra.mxu0 %v1654
        %4541 = vmatmul.f32.gmra.mxu0 %v262
        %v4542 = vpop.f32.mrf.mxu0
        %v4543 = vadd.f32 %v4523, %v4542
        %4544 = vdwg.mxu0
        %4545 = vmatpush.msra.mxu0 %v1809
        %4546 = vmatpush.msra.mxu0 %v1804
        %4547 = vmatpush.msra.mxu0 %v1799
        %4548 = vmatpush.msra.mxu0 %v1794
        %4549 = vmatpush.msra.mxu0 %v1789
        %4550 = vmatpush.msra.mxu0 %v1784
        %4551 = vmatpush.msra.mxu0 %v1779
        %4552 = vmatpush.msra.mxu0 %v1774
        %4553 = vmatpush.msra.mxu0 %v1769
        %4554 = vmatpush.msra.mxu0 %v1764
        %4555 = vmatpush.msra.mxu0 %v1759
        %4556 = vmatpush.msra.mxu0 %v1754
        %4557 = vmatpush.msra.mxu0 %v1749
        %4558 = vmatpush.msra.mxu0 %v1744
        %4559 = vmatpush.msra.mxu0 %v1739
        %4560 = vmatpush.msra.mxu0 %v1734
        %4561 = vmatmul.f32.gmra.mxu0 %v263
        %v4562 = vpop.f32.mrf.mxu0
        %v4563 = vadd.f32 %v4543, %v4562
        %4564 = vdwg.mxu0
        %4565 = vmatpush.msra.mxu0 %v1889
        %4566 = vmatpush.msra.mxu0 %v1884
        %4567 = vmatpush.msra.mxu0 %v1879
        %4568 = vmatpush.msra.mxu0 %v1874
        %4569 = vmatpush.msra.mxu0 %v1869
        %4570 = vmatpush.msra.mxu0 %v1864
        %4571 = vmatpush.msra.mxu0 %v1859
        %4572 = vmatpush.msra.mxu0 %v1854
        %4573 = vmatpush.msra.mxu0 %v1849
        %4574 = vmatpush.msra.mxu0 %v1844
        %4575 = vmatpush.msra.mxu0 %v1839
        %4576 = vmatpush.msra.mxu0 %v1834
        %4577 = vmatpush.msra.mxu0 %v1829
        %4578 = vmatpush.msra.mxu0 %v1824
        %4579 = vmatpush.msra.mxu0 %v1819
        %4580 = vmatpush.msra.mxu0 %v1814
        %4581 = vmatmul.f32.gmra.mxu0 %v264
        %v4582 = vpop.f32.mrf.mxu0
        %v4583 = vadd.f32 %v4563, %v4582
        %4584 = vdwg.mxu0
        %4585 = vmatpush.msra.mxu0 %v1969
        %4586 = vmatpush.msra.mxu0 %v1964
        %4587 = vmatpush.msra.mxu0 %v1959
        %4588 = vmatpush.msra.mxu0 %v1954
        %4589 = vmatpush.msra.mxu0 %v1949
        %4590 = vmatpush.msra.mxu0 %v1944
        %4591 = vmatpush.msra.mxu0 %v1939
        %4592 = vmatpush.msra.mxu0 %v1934
        %4593 = vmatpush.msra.mxu0 %v1929
        %4594 = vmatpush.msra.mxu0 %v1924
        %4595 = vmatpush.msra.mxu0 %v1919
        %4596 = vmatpush.msra.mxu0 %v1914
        %4597 = vmatpush.msra.mxu0 %v1909
        %4598 = vmatpush.msra.mxu0 %v1904
        %4599 = vmatpush.msra.mxu0 %v1899
        %4600 = vmatpush.msra.mxu0 %v1894
        %4601 = vmatmul.f32.gmra.mxu0 %v265
        %v4602 = vpop.f32.mrf.mxu0
        %v4603 = vadd.f32 %v4583, %v4602
        %4604 = vdwg.mxu0
        %4605 = vmatpush.msra.mxu0 %v2049
        %4606 = vmatpush.msra.mxu0 %v2044
        %4607 = vmatpush.msra.mxu0 %v2039
        %4608 = vmatpush.msra.mxu0 %v2034
        %4609 = vmatpush.msra.mxu0 %v2029
        %4610 = vmatpush.msra.mxu0 %v2024
        %4611 = vmatpush.msra.mxu0 %v2019
        %4612 = vmatpush.msra.mxu0 %v2014
        %4613 = vmatpush.msra.mxu0 %v2009
        %4614 = vmatpush.msra.mxu0 %v2004
        %4615 = vmatpush.msra.mxu0 %v1999
        %4616 = vmatpush.msra.mxu0 %v1994
        %4617 = vmatpush.msra.mxu0 %v1989
        %4618 = vmatpush.msra.mxu0 %v1984
        %4619 = vmatpush.msra.mxu0 %v1979
        %4620 = vmatpush.msra.mxu0 %v1974
        %4621 = vmatmul.f32.gmra.mxu0 %v266
        %v4622 = vpop.f32.mrf.mxu0
        %v4623 = vadd.f32 %v4603, %v4622
        %4624 = vdwg.mxu0
        %4625 = vmatpush.msra.mxu0 %v2129
        %4626 = vmatpush.msra.mxu0 %v2124
        %4627 = vmatpush.msra.mxu0 %v2119
        %4628 = vmatpush.msra.mxu0 %v2114
        %4629 = vmatpush.msra.mxu0 %v2109
        %4630 = vmatpush.msra.mxu0 %v2104
        %4631 = vmatpush.msra.mxu0 %v2099
        %4632 = vmatpush.msra.mxu0 %v2094
        %4633 = vmatpush.msra.mxu0 %v2089
        %4634 = vmatpush.msra.mxu0 %v2084
        %4635 = vmatpush.msra.mxu0 %v2079
        %4636 = vmatpush.msra.mxu0 %v2074
        %4637 = vmatpush.msra.mxu0 %v2069
        %4638 = vmatpush.msra.mxu0 %v2064
        %4639 = vmatpush.msra.mxu0 %v2059
        %4640 = vmatpush.msra.mxu0 %v2054
        %4641 = vmatmul.f32.gmra.mxu0 %v267
        %v4642 = vpop.f32.mrf.mxu0
        %v4643 = vadd.f32 %v4623, %v4642
        %4644 = vdwg.mxu0
        %4645 = vmatpush.msra.mxu0 %v2209
        %4646 = vmatpush.msra.mxu0 %v2204
        %4647 = vmatpush.msra.mxu0 %v2199
        %4648 = vmatpush.msra.mxu0 %v2194
        %4649 = vmatpush.msra.mxu0 %v2189
        %4650 = vmatpush.msra.mxu0 %v2184
        %4651 = vmatpush.msra.mxu0 %v2179
        %4652 = vmatpush.msra.mxu0 %v2174
        %4653 = vmatpush.msra.mxu0 %v2169
        %4654 = vmatpush.msra.mxu0 %v2164
        %4655 = vmatpush.msra.mxu0 %v2159
        %4656 = vmatpush.msra.mxu0 %v2154
        %4657 = vmatpush.msra.mxu0 %v2149
        %4658 = vmatpush.msra.mxu0 %v2144
        %4659 = vmatpush.msra.mxu0 %v2139
        %4660 = vmatpush.msra.mxu0 %v2134
        %4661 = vmatmul.f32.gmra.mxu0 %v268
        %v4662 = vpop.f32.mrf.mxu0
        %v4663 = vadd.f32 %v4643, %v4662
        %4664 = vdwg.mxu0
        %4665 = vmatpush.msra.mxu0 %v2289
        %4666 = vmatpush.msra.mxu0 %v2284
        %4667 = vmatpush.msra.mxu0 %v2279
        %4668 = vmatpush.msra.mxu0 %v2274
        %4669 = vmatpush.msra.mxu0 %v2269
        %4670 = vmatpush.msra.mxu0 %v2264
        %4671 = vmatpush.msra.mxu0 %v2259
        %4672 = vmatpush.msra.mxu0 %v2254
        %4673 = vmatpush.msra.mxu0 %v2249
        %4674 = vmatpush.msra.mxu0 %v2244
        %4675 = vmatpush.msra.mxu0 %v2239
        %4676 = vmatpush.msra.mxu0 %v2234
        %4677 = vmatpush.msra.mxu0 %v2229
        %4678 = vmatpush.msra.mxu0 %v2224
        %4679 = vmatpush.msra.mxu0 %v2219
        %4680 = vmatpush.msra.mxu0 %v2214
        %4681 = vmatmul.f32.gmra.mxu0 %v269
        %v4682 = vpop.f32.mrf.mxu0
        %v4683 = vadd.f32 %v4663, %v4682
        %4684 = vdwg.mxu0
        %4685 = vmatpush.msra.mxu0 %v2369
        %4686 = vmatpush.msra.mxu0 %v2364
        %4687 = vmatpush.msra.mxu0 %v2359
        %4688 = vmatpush.msra.mxu0 %v2354
        %4689 = vmatpush.msra.mxu0 %v2349
        %4690 = vmatpush.msra.mxu0 %v2344
        %4691 = vmatpush.msra.mxu0 %v2339
        %4692 = vmatpush.msra.mxu0 %v2334
        %4693 = vmatpush.msra.mxu0 %v2329
        %4694 = vmatpush.msra.mxu0 %v2324
        %4695 = vmatpush.msra.mxu0 %v2319
        %4696 = vmatpush.msra.mxu0 %v2314
        %4697 = vmatpush.msra.mxu0 %v2309
        %4698 = vmatpush.msra.mxu0 %v2304
        %4699 = vmatpush.msra.mxu0 %v2299
        %4700 = vmatpush.msra.mxu0 %v2294
        %4701 = vmatmul.f32.gmra.mxu0 %v270
        %v4702 = vpop.f32.mrf.mxu0
        %v4703 = vadd.f32 %v4683, %v4702
        %4704 = vdwg.mxu0
        %4705 = vmatpush.msra.mxu0 %v2449
        %4706 = vmatpush.msra.mxu0 %v2444
        %4707 = vmatpush.msra.mxu0 %v2439
        %4708 = vmatpush.msra.mxu0 %v2434
        %4709 = vmatpush.msra.mxu0 %v2429
        %4710 = vmatpush.msra.mxu0 %v2424
        %4711 = vmatpush.msra.mxu0 %v2419
        %4712 = vmatpush.msra.mxu0 %v2414
        %4713 = vmatpush.msra.mxu0 %v2409
        %4714 = vmatpush.msra.mxu0 %v2404
        %4715 = vmatpush.msra.mxu0 %v2399
        %4716 = vmatpush.msra.mxu0 %v2394
        %4717 = vmatpush.msra.mxu0 %v2389
        %4718 = vmatpush.msra.mxu0 %v2384
        %4719 = vmatpush.msra.mxu0 %v2379
        %4720 = vmatpush.msra.mxu0 %v2374
        %4721 = vmatmul.f32.gmra.mxu0 %v271
        %v4722 = vpop.f32.mrf.mxu0
        %v4723 = vadd.f32 %v4703, %v4722
        %4724 = vdwg.mxu0
        %4725 = vmatpush.msra.mxu0 %v2529
        %4726 = vmatpush.msra.mxu0 %v2524
        %4727 = vmatpush.msra.mxu0 %v2519
        %4728 = vmatpush.msra.mxu0 %v2514
        %4729 = vmatpush.msra.mxu0 %v2509
        %4730 = vmatpush.msra.mxu0 %v2504
        %4731 = vmatpush.msra.mxu0 %v2499
        %4732 = vmatpush.msra.mxu0 %v2494
        %4733 = vmatpush.msra.mxu0 %v2489
        %4734 = vmatpush.msra.mxu0 %v2484
        %4735 = vmatpush.msra.mxu0 %v2479
        %4736 = vmatpush.msra.mxu0 %v2474
        %4737 = vmatpush.msra.mxu0 %v2469
        %4738 = vmatpush.msra.mxu0 %v2464
        %4739 = vmatpush.msra.mxu0 %v2459
        %4740 = vmatpush.msra.mxu0 %v2454
        %4741 = vmatmul.f32.gmra.mxu0 %v272
        %v4742 = vpop.f32.mrf.mxu0
        %v4743 = vadd.f32 %v4723, %v4742
        %4744 = vdwg.mxu0
        %4745 = vmatpush.msra.mxu0 %v2609
        %4746 = vmatpush.msra.mxu0 %v2604
        %4747 = vmatpush.msra.mxu0 %v2599
        %4748 = vmatpush.msra.mxu0 %v2594
        %4749 = vmatpush.msra.mxu0 %v2589
        %4750 = vmatpush.msra.mxu0 %v2584
        %4751 = vmatpush.msra.mxu0 %v2579
        %4752 = vmatpush.msra.mxu0 %v2574
        %4753 = vmatpush.msra.mxu0 %v2569
        %4754 = vmatpush.msra.mxu0 %v2564
        %4755 = vmatpush.msra.mxu0 %v2559
        %4756 = vmatpush.msra.mxu0 %v2554
        %4757 = vmatpush.msra.mxu0 %v2549
        %4758 = vmatpush.msra.mxu0 %v2544
        %4759 = vmatpush.msra.mxu0 %v2539
        %4760 = vmatpush.msra.mxu0 %v2534
        %4761 = vmatmul.f32.gmra.mxu0 %v273
        %v4762 = vpop.f32.mrf.mxu0
        %v4763 = vadd.f32 %v4743, %v4762
        %4764 = vdwg.mxu0
        %4765 = vmatpush.msra.mxu0 %v2689
        %4766 = vmatpush.msra.mxu0 %v2684
        %4767 = vmatpush.msra.mxu0 %v2679
        %4768 = vmatpush.msra.mxu0 %v2674
        %4769 = vmatpush.msra.mxu0 %v2669
        %4770 = vmatpush.msra.mxu0 %v2664
        %4771 = vmatpush.msra.mxu0 %v2659
        %4772 = vmatpush.msra.mxu0 %v2654
        %4773 = vmatpush.msra.mxu0 %v2649
        %4774 = vmatpush.msra.mxu0 %v2644
        %4775 = vmatpush.msra.mxu0 %v2639
        %4776 = vmatpush.msra.mxu0 %v2634
        %4777 = vmatpush.msra.mxu0 %v2629
        %4778 = vmatpush.msra.mxu0 %v2624
        %4779 = vmatpush.msra.mxu0 %v2619
        %4780 = vmatpush.msra.mxu0 %v2614
        %4781 = vmatmul.f32.gmra.mxu0 %v274
        %v4782 = vpop.f32.mrf.mxu0
        %v4783 = vadd.f32 %v4763, %v4782
        %4784 = vdwg.mxu0
        %4785 = vmatpush.msra.mxu0 %v2769
        %4786 = vmatpush.msra.mxu0 %v2764
        %4787 = vmatpush.msra.mxu0 %v2759
        %4788 = vmatpush.msra.mxu0 %v2754
        %4789 = vmatpush.msra.mxu0 %v2749
        %4790 = vmatpush.msra.mxu0 %v2744
        %4791 = vmatpush.msra.mxu0 %v2739
        %4792 = vmatpush.msra.mxu0 %v2734
        %4793 = vmatpush.msra.mxu0 %v2729
        %4794 = vmatpush.msra.mxu0 %v2724
        %4795 = vmatpush.msra.mxu0 %v2719
        %4796 = vmatpush.msra.mxu0 %v2714
        %4797 = vmatpush.msra.mxu0 %v2709
        %4798 = vmatpush.msra.mxu0 %v2704
        %4799 = vmatpush.msra.mxu0 %v2699
        %4800 = vmatpush.msra.mxu0 %v2694
        %4801 = vmatmul.f32.gmra.mxu0 %v275
        %v4802 = vpop.f32.mrf.mxu0
        %v4803 = vadd.f32 %v4783, %v4802
        %4804 = vdwg.mxu0
        %4805 = vmatpush.msra.mxu0 %v2849
        %4806 = vmatpush.msra.mxu0 %v2844
        %4807 = vmatpush.msra.mxu0 %v2839
        %4808 = vmatpush.msra.mxu0 %v2834
        %4809 = vmatpush.msra.mxu0 %v2829
        %4810 = vmatpush.msra.mxu0 %v2824
        %4811 = vmatpush.msra.mxu0 %v2819
        %4812 = vmatpush.msra.mxu0 %v2814
        %4813 = vmatpush.msra.mxu0 %v2809
        %4814 = vmatpush.msra.mxu0 %v2804
        %4815 = vmatpush.msra.mxu0 %v2799
        %4816 = vmatpush.msra.mxu0 %v2794
        %4817 = vmatpush.msra.mxu0 %v2789
        %4818 = vmatpush.msra.mxu0 %v2784
        %4819 = vmatpush.msra.mxu0 %v2779
        %4820 = vmatpush.msra.mxu0 %v2774
        %4821 = vmatmul.f32.gmra.mxu0 %v276
        %v4822 = vpop.f32.mrf.mxu0
        %v4823 = vadd.f32 %v4803, %v4822
        %4824 = vdwg.mxu0
        %4825 = vmatpush.msra.mxu0 %v2929
        %4826 = vmatpush.msra.mxu0 %v2924
        %4827 = vmatpush.msra.mxu0 %v2919
        %4828 = vmatpush.msra.mxu0 %v2914
        %4829 = vmatpush.msra.mxu0 %v2909
        %4830 = vmatpush.msra.mxu0 %v2904
        %4831 = vmatpush.msra.mxu0 %v2899
        %4832 = vmatpush.msra.mxu0 %v2894
        %4833 = vmatpush.msra.mxu0 %v2889
        %4834 = vmatpush.msra.mxu0 %v2884
        %4835 = vmatpush.msra.mxu0 %v2879
        %4836 = vmatpush.msra.mxu0 %v2874
        %4837 = vmatpush.msra.mxu0 %v2869
        %4838 = vmatpush.msra.mxu0 %v2864
        %4839 = vmatpush.msra.mxu0 %v2859
        %4840 = vmatpush.msra.mxu0 %v2854
        %4841 = vmatmul.f32.gmra.mxu0 %v277
        %v4842 = vpop.f32.mrf.mxu0
        %v4843 = vadd.f32 %v4823, %v4842
        %4844 = vdwg.mxu0
        %4845 = vmatpush.msra.mxu0 %v3009
        %4846 = vmatpush.msra.mxu0 %v3004
        %4847 = vmatpush.msra.mxu0 %v2999
        %4848 = vmatpush.msra.mxu0 %v2994
        %4849 = vmatpush.msra.mxu0 %v2989
        %4850 = vmatpush.msra.mxu0 %v2984
        %4851 = vmatpush.msra.mxu0 %v2979
        %4852 = vmatpush.msra.mxu0 %v2974
        %4853 = vmatpush.msra.mxu0 %v2969
        %4854 = vmatpush.msra.mxu0 %v2964
        %4855 = vmatpush.msra.mxu0 %v2959
        %4856 = vmatpush.msra.mxu0 %v2954
        %4857 = vmatpush.msra.mxu0 %v2949
        %4858 = vmatpush.msra.mxu0 %v2944
        %4859 = vmatpush.msra.mxu0 %v2939
        %4860 = vmatpush.msra.mxu0 %v2934
        %4861 = vmatmul.f32.gmra.mxu0 %v278
        %v4862 = vpop.f32.mrf.mxu0
        %v4863 = vadd.f32 %v4843, %v4862
        %4864 = vdwg.mxu0
        %4865 = vmatpush.msra.mxu0 %v3089
        %4866 = vmatpush.msra.mxu0 %v3084
        %4867 = vmatpush.msra.mxu0 %v3079
        %4868 = vmatpush.msra.mxu0 %v3074
        %4869 = vmatpush.msra.mxu0 %v3069
        %4870 = vmatpush.msra.mxu0 %v3064
        %4871 = vmatpush.msra.mxu0 %v3059
        %4872 = vmatpush.msra.mxu0 %v3054
        %4873 = vmatpush.msra.mxu0 %v3049
        %4874 = vmatpush.msra.mxu0 %v3044
        %4875 = vmatpush.msra.mxu0 %v3039
        %4876 = vmatpush.msra.mxu0 %v3034
        %4877 = vmatpush.msra.mxu0 %v3029
        %4878 = vmatpush.msra.mxu0 %v3024
        %4879 = vmatpush.msra.mxu0 %v3019
        %4880 = vmatpush.msra.mxu0 %v3014
        %4881 = vmatmul.f32.gmra.mxu0 %v279
        %v4882 = vpop.f32.mrf.mxu0
        %v4883 = vadd.f32 %v4863, %v4882
        %4884 = vdwg.mxu0
        %4885 = vmatpush.msra.mxu0 %v3169
        %4886 = vmatpush.msra.mxu0 %v3164
        %4887 = vmatpush.msra.mxu0 %v3159
        %4888 = vmatpush.msra.mxu0 %v3154
        %4889 = vmatpush.msra.mxu0 %v3149
        %4890 = vmatpush.msra.mxu0 %v3144
        %4891 = vmatpush.msra.mxu0 %v3139
        %4892 = vmatpush.msra.mxu0 %v3134
        %4893 = vmatpush.msra.mxu0 %v3129
        %4894 = vmatpush.msra.mxu0 %v3124
        %4895 = vmatpush.msra.mxu0 %v3119
        %4896 = vmatpush.msra.mxu0 %v3114
        %4897 = vmatpush.msra.mxu0 %v3109
        %4898 = vmatpush.msra.mxu0 %v3104
        %4899 = vmatpush.msra.mxu0 %v3099
        %4900 = vmatpush.msra.mxu0 %v3094
        %4901 = vmatmul.f32.gmra.mxu0 %v280
        %v4902 = vpop.f32.mrf.mxu0
        %v4903 = vadd.f32 %v4883, %v4902
        %4904 = vdwg.mxu0
        %4905 = vmatpush.msra.mxu0 %v3249
        %4906 = vmatpush.msra.mxu0 %v3244
        %4907 = vmatpush.msra.mxu0 %v3239
        %4908 = vmatpush.msra.mxu0 %v3234
        %4909 = vmatpush.msra.mxu0 %v3229
        %4910 = vmatpush.msra.mxu0 %v3224
        %4911 = vmatpush.msra.mxu0 %v3219
        %4912 = vmatpush.msra.mxu0 %v3214
        %4913 = vmatpush.msra.mxu0 %v3209
        %4914 = vmatpush.msra.mxu0 %v3204
        %4915 = vmatpush.msra.mxu0 %v3199
        %4916 = vmatpush.msra.mxu0 %v3194
        %4917 = vmatpush.msra.mxu0 %v3189
        %4918 = vmatpush.msra.mxu0 %v3184
        %4919 = vmatpush.msra.mxu0 %v3179
        %4920 = vmatpush.msra.mxu0 %v3174
        %4921 = vmatmul.f32.gmra.mxu0 %v281
        %v4922 = vpop.f32.mrf.mxu0
        %v4923 = vadd.f32 %v4903, %v4922
        %4924 = vdwg.mxu0
        %4925 = vmatpush.msra.mxu0 %v3329
        %4926 = vmatpush.msra.mxu0 %v3324
        %4927 = vmatpush.msra.mxu0 %v3319
        %4928 = vmatpush.msra.mxu0 %v3314
        %4929 = vmatpush.msra.mxu0 %v3309
        %4930 = vmatpush.msra.mxu0 %v3304
        %4931 = vmatpush.msra.mxu0 %v3299
        %4932 = vmatpush.msra.mxu0 %v3294
        %4933 = vmatpush.msra.mxu0 %v3289
        %4934 = vmatpush.msra.mxu0 %v3284
        %4935 = vmatpush.msra.mxu0 %v3279
        %4936 = vmatpush.msra.mxu0 %v3274
        %4937 = vmatpush.msra.mxu0 %v3269
        %4938 = vmatpush.msra.mxu0 %v3264
        %4939 = vmatpush.msra.mxu0 %v3259
        %4940 = vmatpush.msra.mxu0 %v3254
        %4941 = vmatmul.f32.gmra.mxu0 %v282
        %v4942 = vpop.f32.mrf.mxu0
        %v4943 = vadd.f32 %v4923, %v4942
        %4944 = vdwg.mxu0
        %4945 = vmatpush.msra.mxu0 %v3409
        %4946 = vmatpush.msra.mxu0 %v3404
        %4947 = vmatpush.msra.mxu0 %v3399
        %4948 = vmatpush.msra.mxu0 %v3394
        %4949 = vmatpush.msra.mxu0 %v3389
        %4950 = vmatpush.msra.mxu0 %v3384
        %4951 = vmatpush.msra.mxu0 %v3379
        %4952 = vmatpush.msra.mxu0 %v3374
        %4953 = vmatpush.msra.mxu0 %v3369
        %4954 = vmatpush.msra.mxu0 %v3364
        %4955 = vmatpush.msra.mxu0 %v3359
        %4956 = vmatpush.msra.mxu0 %v3354
        %4957 = vmatpush.msra.mxu0 %v3349
        %4958 = vmatpush.msra.mxu0 %v3344
        %4959 = vmatpush.msra.mxu0 %v3339
        %4960 = vmatpush.msra.mxu0 %v3334
        %4961 = vmatmul.f32.gmra.mxu0 %v283
        %v4962 = vpop.f32.mrf.mxu0
        %v4963 = vadd.f32 %v4943, %v4962
        %4964 = vdwg.mxu0
        %4965 = vmatpush.msra.mxu0 %v3489
        %4966 = vmatpush.msra.mxu0 %v3484
        %4967 = vmatpush.msra.mxu0 %v3479
        %4968 = vmatpush.msra.mxu0 %v3474
        %4969 = vmatpush.msra.mxu0 %v3469
        %4970 = vmatpush.msra.mxu0 %v3464
        %4971 = vmatpush.msra.mxu0 %v3459
        %4972 = vmatpush.msra.mxu0 %v3454
        %4973 = vmatpush.msra.mxu0 %v3449
        %4974 = vmatpush.msra.mxu0 %v3444
        %4975 = vmatpush.msra.mxu0 %v3439
        %4976 = vmatpush.msra.mxu0 %v3434
        %4977 = vmatpush.msra.mxu0 %v3429
        %4978 = vmatpush.msra.mxu0 %v3424
        %4979 = vmatpush.msra.mxu0 %v3419
        %4980 = vmatpush.msra.mxu0 %v3414
        %4981 = vmatmul.f32.gmra.mxu0 %v284
        %v4982 = vpop.f32.mrf.mxu0
        %v4983 = vadd.f32 %v4963, %v4982
        %4984 = vdwg.mxu0
        %4985 = vmatpush.msra.mxu0 %v3569
        %4986 = vmatpush.msra.mxu0 %v3564
        %4987 = vmatpush.msra.mxu0 %v3559
        %4988 = vmatpush.msra.mxu0 %v3554
        %4989 = vmatpush.msra.mxu0 %v3549
        %4990 = vmatpush.msra.mxu0 %v3544
        %4991 = vmatpush.msra.mxu0 %v3539
        %4992 = vmatpush.msra.mxu0 %v3534
        %4993 = vmatpush.msra.mxu0 %v3529
        %4994 = vmatpush.msra.mxu0 %v3524
        %4995 = vmatpush.msra.mxu0 %v3519
        %4996 = vmatpush.msra.mxu0 %v3514
        %4997 = vmatpush.msra.mxu0 %v3509
        %4998 = vmatpush.msra.mxu0 %v3504
        %4999 = vmatpush.msra.mxu0 %v3499
        %5000 = vmatpush.msra.mxu0 %v3494
        %5001 = vmatmul.f32.gmra.mxu0 %v285
        %v5002 = vpop.f32.mrf.mxu0
        %v5003 = vadd.f32 %v4983, %v5002
        %5004 = vdwg.mxu0
        %5005 = vmatpush.msra.mxu0 %v3649
        %5006 = vmatpush.msra.mxu0 %v3644
        %5007 = vmatpush.msra.mxu0 %v3639
        %5008 = vmatpush.msra.mxu0 %v3634
        %5009 = vmatpush.msra.mxu0 %v3629
        %5010 = vmatpush.msra.mxu0 %v3624
        %5011 = vmatpush.msra.mxu0 %v3619
        %5012 = vmatpush.msra.mxu0 %v3614
        %5013 = vmatpush.msra.mxu0 %v3609
        %5014 = vmatpush.msra.mxu0 %v3604
        %5015 = vmatpush.msra.mxu0 %v3599
        %5016 = vmatpush.msra.mxu0 %v3594
        %5017 = vmatpush.msra.mxu0 %v3589
        %5018 = vmatpush.msra.mxu0 %v3584
        %5019 = vmatpush.msra.mxu0 %v3579
        %5020 = vmatpush.msra.mxu0 %v3574
        %5021 = vmatmul.f32.gmra.mxu0 %v286
        %v5022 = vpop.f32.mrf.mxu0
        %v5023 = vadd.f32 %v5003, %v5022
        %5024 = vdwg.mxu0
        %5025 = vmatpush.msra.mxu0 %v3729
        %5026 = vmatpush.msra.mxu0 %v3724
        %5027 = vmatpush.msra.mxu0 %v3719
        %5028 = vmatpush.msra.mxu0 %v3714
        %5029 = vmatpush.msra.mxu0 %v3709
        %5030 = vmatpush.msra.mxu0 %v3704
        %5031 = vmatpush.msra.mxu0 %v3699
        %5032 = vmatpush.msra.mxu0 %v3694
        %5033 = vmatpush.msra.mxu0 %v3689
        %5034 = vmatpush.msra.mxu0 %v3684
        %5035 = vmatpush.msra.mxu0 %v3679
        %5036 = vmatpush.msra.mxu0 %v3674
        %5037 = vmatpush.msra.mxu0 %v3669
        %5038 = vmatpush.msra.mxu0 %v3664
        %5039 = vmatpush.msra.mxu0 %v3659
        %5040 = vmatpush.msra.mxu0 %v3654
        %5041 = vmatmul.f32.gmra.mxu0 %v287
        %v5042 = vpop.f32.mrf.mxu0
        %v5043 = vadd.f32 %v5023, %v5042
        %5044 = vdwg.mxu0
        %5045 = vmatpush.msra.mxu0 %v3809
        %5046 = vmatpush.msra.mxu0 %v3804
        %5047 = vmatpush.msra.mxu0 %v3799
        %5048 = vmatpush.msra.mxu0 %v3794
        %5049 = vmatpush.msra.mxu0 %v3789
        %5050 = vmatpush.msra.mxu0 %v3784
        %5051 = vmatpush.msra.mxu0 %v3779
        %5052 = vmatpush.msra.mxu0 %v3774
        %5053 = vmatpush.msra.mxu0 %v3769
        %5054 = vmatpush.msra.mxu0 %v3764
        %5055 = vmatpush.msra.mxu0 %v3759
        %5056 = vmatpush.msra.mxu0 %v3754
        %5057 = vmatpush.msra.mxu0 %v3749
        %5058 = vmatpush.msra.mxu0 %v3744
        %5059 = vmatpush.msra.mxu0 %v3739
        %5060 = vmatpush.msra.mxu0 %v3734
        %5061 = vmatmul.f32.gmra.mxu0 %v288
        %v5062 = vpop.f32.mrf.mxu0
        %v5063 = vadd.f32 %v5043, %v5062
        %5064 = vdwg.mxu0
        %5065 = vmatpush.msra.mxu0 %v3889
        %5066 = vmatpush.msra.mxu0 %v3884
        %5067 = vmatpush.msra.mxu0 %v3879
        %5068 = vmatpush.msra.mxu0 %v3874
        %5069 = vmatpush.msra.mxu0 %v3869
        %5070 = vmatpush.msra.mxu0 %v3864
        %5071 = vmatpush.msra.mxu0 %v3859
        %5072 = vmatpush.msra.mxu0 %v3854
        %5073 = vmatpush.msra.mxu0 %v3849
        %5074 = vmatpush.msra.mxu0 %v3844
        %5075 = vmatpush.msra.mxu0 %v3839
        %5076 = vmatpush.msra.mxu0 %v3834
        %5077 = vmatpush.msra.mxu0 %v3829
        %5078 = vmatpush.msra.mxu0 %v3824
        %5079 = vmatpush.msra.mxu0 %v3819
        %5080 = vmatpush.msra.mxu0 %v3814
        %5081 = vmatmul.f32.gmra.mxu0 %v289
        %v5082 = vpop.f32.mrf.mxu0
        %v5083 = vadd.f32 %v5063, %v5082
        %5084 = vdwg.mxu0
        %5085 = vmatpush.msra.mxu0 %v3969
        %5086 = vmatpush.msra.mxu0 %v3964
        %5087 = vmatpush.msra.mxu0 %v3959
        %5088 = vmatpush.msra.mxu0 %v3954
        %5089 = vmatpush.msra.mxu0 %v3949
        %5090 = vmatpush.msra.mxu0 %v3944
        %5091 = vmatpush.msra.mxu0 %v3939
        %5092 = vmatpush.msra.mxu0 %v3934
        %5093 = vmatpush.msra.mxu0 %v3929
        %5094 = vmatpush.msra.mxu0 %v3924
        %5095 = vmatpush.msra.mxu0 %v3919
        %5096 = vmatpush.msra.mxu0 %v3914
        %5097 = vmatpush.msra.mxu0 %v3909
        %5098 = vmatpush.msra.mxu0 %v3904
        %5099 = vmatpush.msra.mxu0 %v3899
        %5100 = vmatpush.msra.mxu0 %v3894
        %5101 = vmatmul.f32.gmra.mxu0 %v290
        %v5102 = vpop.f32.mrf.mxu0
        %v5103 = vadd.f32 %v5083, %v5102
        %5104 = vdwg.mxu0
        %5105 = vmatpush.msra.mxu0 %v4049
        %5106 = vmatpush.msra.mxu0 %v4044
        %5107 = vmatpush.msra.mxu0 %v4039
        %5108 = vmatpush.msra.mxu0 %v4034
        %5109 = vmatpush.msra.mxu0 %v4029
        %5110 = vmatpush.msra.mxu0 %v4024
        %5111 = vmatpush.msra.mxu0 %v4019
        %5112 = vmatpush.msra.mxu0 %v4014
        %5113 = vmatpush.msra.mxu0 %v4009
        %5114 = vmatpush.msra.mxu0 %v4004
        %5115 = vmatpush.msra.mxu0 %v3999
        %5116 = vmatpush.msra.mxu0 %v3994
        %5117 = vmatpush.msra.mxu0 %v3989
        %5118 = vmatpush.msra.mxu0 %v3984
        %5119 = vmatpush.msra.mxu0 %v3979
        %5120 = vmatpush.msra.mxu0 %v3974
        %5121 = vmatmul.f32.gmra.mxu0 %v291
        %v5122 = vpop.f32.mrf.mxu0
        %v5123 = vadd.f32 %v5103, %v5122
        %5124 = vdwg.mxu0
        %5125 = vmatpush.msra.mxu0 %v4129
        %5126 = vmatpush.msra.mxu0 %v4124
        %5127 = vmatpush.msra.mxu0 %v4119
        %5128 = vmatpush.msra.mxu0 %v4114
        %5129 = vmatpush.msra.mxu0 %v4109
        %5130 = vmatpush.msra.mxu0 %v4104
        %5131 = vmatpush.msra.mxu0 %v4099
        %5132 = vmatpush.msra.mxu0 %v4094
        %5133 = vmatpush.msra.mxu0 %v4089
        %5134 = vmatpush.msra.mxu0 %v4084
        %5135 = vmatpush.msra.mxu0 %v4079
        %5136 = vmatpush.msra.mxu0 %v4074
        %5137 = vmatpush.msra.mxu0 %v4069
        %5138 = vmatpush.msra.mxu0 %v4064
        %5139 = vmatpush.msra.mxu0 %v4059
        %5140 = vmatpush.msra.mxu0 %v4054
        %5141 = vmatmul.f32.gmra.mxu0 %v292
        %v5142 = vpop.f32.mrf.mxu0
        %v5143 = vadd.f32 %v5123, %v5142
        %5144 = vdwg.mxu0
        %5145 = vmatpush.msra.mxu0 0.0
        %5146 = vmatpush.msra.mxu0 0.0
        %5147 = vmatpush.msra.mxu0 0.0
        %5148 = vmatpush.msra.mxu0 0.0
        %5149 = vmatpush.msra.mxu0 0.0
        %5150 = vmatpush.msra.mxu0 0.0
        %5151 = vmatpush.msra.mxu0 0.0
        %5152 = vmatpush.msra.mxu0 0.0
        %5153 = vmatpush.msra.mxu0 0.0
        %5154 = vmatpush.msra.mxu0 %v4164
        %5155 = vmatpush.msra.mxu0 %v4159
        %5156 = vmatpush.msra.mxu0 %v4154
        %5157 = vmatpush.msra.mxu0 %v4149
        %5158 = vmatpush.msra.mxu0 %v4144
        %5159 = vmatpush.msra.mxu0 %v4139
        %5160 = vmatpush.msra.mxu0 %v4134
        %5161 = vmatmul.f32.gmra.mxu0 %v4183
        %v5162 = vpop.f32.mrf.mxu0
        %v5163 = vadd.f32 %v5143, %v5162
        %5164 = vdwg.mxu0
        %5165 = vmatpush.msra.mxu0 %v370
        %5166 = vmatpush.msra.mxu0 %v365
        %5167 = vmatpush.msra.mxu0 %v360
        %5168 = vmatpush.msra.mxu0 %v355
        %5169 = vmatpush.msra.mxu0 %v350
        %5170 = vmatpush.msra.mxu0 %v345
        %5171 = vmatpush.msra.mxu0 %v340
        %5172 = vmatpush.msra.mxu0 %v335
        %5173 = vmatpush.msra.mxu0 %v330
        %5174 = vmatpush.msra.mxu0 %v325
        %5175 = vmatpush.msra.mxu0 %v320
        %5176 = vmatpush.msra.mxu0 %v315
        %5177 = vmatpush.msra.mxu0 %v310
        %5178 = vmatpush.msra.mxu0 %v305
        %5179 = vmatpush.msra.mxu0 %v300
        %5180 = vmatpush.msra.mxu0 %v295
        %5181 = vmatmul.f32.gmra.mxu0 %v245
        %v5182 = vpop.f32.mrf.mxu0
        %v5183 = vadd.f32 %v4172, %v5182
        %5184 = vdwg.mxu0
        %5185 = vmatpush.msra.mxu0 %v450
        %5186 = vmatpush.msra.mxu0 %v445
        %5187 = vmatpush.msra.mxu0 %v440
        %5188 = vmatpush.msra.mxu0 %v435
        %5189 = vmatpush.msra.mxu0 %v430
        %5190 = vmatpush.msra.mxu0 %v425
        %5191 = vmatpush.msra.mxu0 %v420
        %5192 = vmatpush.msra.mxu0 %v415
        %5193 = vmatpush.msra.mxu0 %v410
        %5194 = vmatpush.msra.mxu0 %v405
        %5195 = vmatpush.msra.mxu0 %v400
        %5196 = vmatpush.msra.mxu0 %v395
        %5197 = vmatpush.msra.mxu0 %v390
        %5198 = vmatpush.msra.mxu0 %v385
        %5199 = vmatpush.msra.mxu0 %v380
        %5200 = vmatpush.msra.mxu0 %v375
        %5201 = vmatmul.f32.gmra.mxu0 %v246
        %v5202 = vpop.f32.mrf.mxu0
        %v5203 = vadd.f32 %v5183, %v5202
        %5204 = vdwg.mxu0
        %5205 = vmatpush.msra.mxu0 %v530
        %5206 = vmatpush.msra.mxu0 %v525
        %5207 = vmatpush.msra.mxu0 %v520
        %5208 = vmatpush.msra.mxu0 %v515
        %5209 = vmatpush.msra.mxu0 %v510
        %5210 = vmatpush.msra.mxu0 %v505
        %5211 = vmatpush.msra.mxu0 %v500
        %5212 = vmatpush.msra.mxu0 %v495
        %5213 = vmatpush.msra.mxu0 %v490
        %5214 = vmatpush.msra.mxu0 %v485
        %5215 = vmatpush.msra.mxu0 %v480
        %5216 = vmatpush.msra.mxu0 %v475
        %5217 = vmatpush.msra.mxu0 %v470
        %5218 = vmatpush.msra.mxu0 %v465
        %5219 = vmatpush.msra.mxu0 %v460
        %5220 = vmatpush.msra.mxu0 %v455
        %5221 = vmatmul.f32.gmra.mxu0 %v247
        %v5222 = vpop.f32.mrf.mxu0
        %v5223 = vadd.f32 %v5203, %v5222
        %5224 = vdwg.mxu0
        %5225 = vmatpush.msra.mxu0 %v610
        %5226 = vmatpush.msra.mxu0 %v605
        %5227 = vmatpush.msra.mxu0 %v600
        %5228 = vmatpush.msra.mxu0 %v595
        %5229 = vmatpush.msra.mxu0 %v590
        %5230 = vmatpush.msra.mxu0 %v585
        %5231 = vmatpush.msra.mxu0 %v580
        %5232 = vmatpush.msra.mxu0 %v575
        %5233 = vmatpush.msra.mxu0 %v570
        %5234 = vmatpush.msra.mxu0 %v565
        %5235 = vmatpush.msra.mxu0 %v560
        %5236 = vmatpush.msra.mxu0 %v555
        %5237 = vmatpush.msra.mxu0 %v550
        %5238 = vmatpush.msra.mxu0 %v545
        %5239 = vmatpush.msra.mxu0 %v540
        %5240 = vmatpush.msra.mxu0 %v535
        %5241 = vmatmul.f32.gmra.mxu0 %v248
        %v5242 = vpop.f32.mrf.mxu0
        %v5243 = vadd.f32 %v5223, %v5242
        %5244 = vdwg.mxu0
        %5245 = vmatpush.msra.mxu0 %v690
        %5246 = vmatpush.msra.mxu0 %v685
        %5247 = vmatpush.msra.mxu0 %v680
        %5248 = vmatpush.msra.mxu0 %v675
        %5249 = vmatpush.msra.mxu0 %v670
        %5250 = vmatpush.msra.mxu0 %v665
        %5251 = vmatpush.msra.mxu0 %v660
        %5252 = vmatpush.msra.mxu0 %v655
        %5253 = vmatpush.msra.mxu0 %v650
        %5254 = vmatpush.msra.mxu0 %v645
        %5255 = vmatpush.msra.mxu0 %v640
        %5256 = vmatpush.msra.mxu0 %v635
        %5257 = vmatpush.msra.mxu0 %v630
        %5258 = vmatpush.msra.mxu0 %v625
        %5259 = vmatpush.msra.mxu0 %v620
        %5260 = vmatpush.msra.mxu0 %v615
        %5261 = vmatmul.f32.gmra.mxu0 %v249
        %v5262 = vpop.f32.mrf.mxu0
        %v5263 = vadd.f32 %v5243, %v5262
        %5264 = vdwg.mxu0
        %5265 = vmatpush.msra.mxu0 %v770
        %5266 = vmatpush.msra.mxu0 %v765
        %5267 = vmatpush.msra.mxu0 %v760
        %5268 = vmatpush.msra.mxu0 %v755
        %5269 = vmatpush.msra.mxu0 %v750
        %5270 = vmatpush.msra.mxu0 %v745
        %5271 = vmatpush.msra.mxu0 %v740
        %5272 = vmatpush.msra.mxu0 %v735
        %5273 = vmatpush.msra.mxu0 %v730
        %5274 = vmatpush.msra.mxu0 %v725
        %5275 = vmatpush.msra.mxu0 %v720
        %5276 = vmatpush.msra.mxu0 %v715
        %5277 = vmatpush.msra.mxu0 %v710
        %5278 = vmatpush.msra.mxu0 %v705
        %5279 = vmatpush.msra.mxu0 %v700
        %5280 = vmatpush.msra.mxu0 %v695
        %5281 = vmatmul.f32.gmra.mxu0 %v250
        %v5282 = vpop.f32.mrf.mxu0
        %v5283 = vadd.f32 %v5263, %v5282
        %5284 = vdwg.mxu0
        %5285 = vmatpush.msra.mxu0 %v850
        %5286 = vmatpush.msra.mxu0 %v845
        %5287 = vmatpush.msra.mxu0 %v840
        %5288 = vmatpush.msra.mxu0 %v835
        %5289 = vmatpush.msra.mxu0 %v830
        %5290 = vmatpush.msra.mxu0 %v825
        %5291 = vmatpush.msra.mxu0 %v820
        %5292 = vmatpush.msra.mxu0 %v815
        %5293 = vmatpush.msra.mxu0 %v810
        %5294 = vmatpush.msra.mxu0 %v805
        %5295 = vmatpush.msra.mxu0 %v800
        %5296 = vmatpush.msra.mxu0 %v795
        %5297 = vmatpush.msra.mxu0 %v790
        %5298 = vmatpush.msra.mxu0 %v785
        %5299 = vmatpush.msra.mxu0 %v780
        %5300 = vmatpush.msra.mxu0 %v775
        %5301 = vmatmul.f32.gmra.mxu0 %v251
        %v5302 = vpop.f32.mrf.mxu0
        %v5303 = vadd.f32 %v5283, %v5302
        %5304 = vdwg.mxu0
        %5305 = vmatpush.msra.mxu0 %v930
        %5306 = vmatpush.msra.mxu0 %v925
        %5307 = vmatpush.msra.mxu0 %v920
        %5308 = vmatpush.msra.mxu0 %v915
        %5309 = vmatpush.msra.mxu0 %v910
        %5310 = vmatpush.msra.mxu0 %v905
        %5311 = vmatpush.msra.mxu0 %v900
        %5312 = vmatpush.msra.mxu0 %v895
        %5313 = vmatpush.msra.mxu0 %v890
        %5314 = vmatpush.msra.mxu0 %v885
        %5315 = vmatpush.msra.mxu0 %v880
        %5316 = vmatpush.msra.mxu0 %v875
        %5317 = vmatpush.msra.mxu0 %v870
        %5318 = vmatpush.msra.mxu0 %v865
        %5319 = vmatpush.msra.mxu0 %v860
        %5320 = vmatpush.msra.mxu0 %v855
        %5321 = vmatmul.f32.gmra.mxu0 %v252
        %v5322 = vpop.f32.mrf.mxu0
        %v5323 = vadd.f32 %v5303, %v5322
        %5324 = vdwg.mxu0
        %5325 = vmatpush.msra.mxu0 %v1010
        %5326 = vmatpush.msra.mxu0 %v1005
        %5327 = vmatpush.msra.mxu0 %v1000
        %5328 = vmatpush.msra.mxu0 %v995
        %5329 = vmatpush.msra.mxu0 %v990
        %5330 = vmatpush.msra.mxu0 %v985
        %5331 = vmatpush.msra.mxu0 %v980
        %5332 = vmatpush.msra.mxu0 %v975
        %5333 = vmatpush.msra.mxu0 %v970
        %5334 = vmatpush.msra.mxu0 %v965
        %5335 = vmatpush.msra.mxu0 %v960
        %5336 = vmatpush.msra.mxu0 %v955
        %5337 = vmatpush.msra.mxu0 %v950
        %5338 = vmatpush.msra.mxu0 %v945
        %5339 = vmatpush.msra.mxu0 %v940
        %5340 = vmatpush.msra.mxu0 %v935
        %5341 = vmatmul.f32.gmra.mxu0 %v253
        %v5342 = vpop.f32.mrf.mxu0
        %v5343 = vadd.f32 %v5323, %v5342
        %5344 = vdwg.mxu0
        %5345 = vmatpush.msra.mxu0 %v1090
        %5346 = vmatpush.msra.mxu0 %v1085
        %5347 = vmatpush.msra.mxu0 %v1080
        %5348 = vmatpush.msra.mxu0 %v1075
        %5349 = vmatpush.msra.mxu0 %v1070
        %5350 = vmatpush.msra.mxu0 %v1065
        %5351 = vmatpush.msra.mxu0 %v1060
        %5352 = vmatpush.msra.mxu0 %v1055
        %5353 = vmatpush.msra.mxu0 %v1050
        %5354 = vmatpush.msra.mxu0 %v1045
        %5355 = vmatpush.msra.mxu0 %v1040
        %5356 = vmatpush.msra.mxu0 %v1035
        %5357 = vmatpush.msra.mxu0 %v1030
        %5358 = vmatpush.msra.mxu0 %v1025
        %5359 = vmatpush.msra.mxu0 %v1020
        %5360 = vmatpush.msra.mxu0 %v1015
        %5361 = vmatmul.f32.gmra.mxu0 %v254
        %v5362 = vpop.f32.mrf.mxu0
        %v5363 = vadd.f32 %v5343, %v5362
        %5364 = vdwg.mxu0
        %5365 = vmatpush.msra.mxu0 %v1170
        %5366 = vmatpush.msra.mxu0 %v1165
        %5367 = vmatpush.msra.mxu0 %v1160
        %5368 = vmatpush.msra.mxu0 %v1155
        %5369 = vmatpush.msra.mxu0 %v1150
        %5370 = vmatpush.msra.mxu0 %v1145
        %5371 = vmatpush.msra.mxu0 %v1140
        %5372 = vmatpush.msra.mxu0 %v1135
        %5373 = vmatpush.msra.mxu0 %v1130
        %5374 = vmatpush.msra.mxu0 %v1125
        %5375 = vmatpush.msra.mxu0 %v1120
        %5376 = vmatpush.msra.mxu0 %v1115
        %5377 = vmatpush.msra.mxu0 %v1110
        %5378 = vmatpush.msra.mxu0 %v1105
        %5379 = vmatpush.msra.mxu0 %v1100
        %5380 = vmatpush.msra.mxu0 %v1095
        %5381 = vmatmul.f32.gmra.mxu0 %v255
        %v5382 = vpop.f32.mrf.mxu0
        %v5383 = vadd.f32 %v5363, %v5382
        %5384 = vdwg.mxu0
        %5385 = vmatpush.msra.mxu0 %v1250
        %5386 = vmatpush.msra.mxu0 %v1245
        %5387 = vmatpush.msra.mxu0 %v1240
        %5388 = vmatpush.msra.mxu0 %v1235
        %5389 = vmatpush.msra.mxu0 %v1230
        %5390 = vmatpush.msra.mxu0 %v1225
        %5391 = vmatpush.msra.mxu0 %v1220
        %5392 = vmatpush.msra.mxu0 %v1215
        %5393 = vmatpush.msra.mxu0 %v1210
        %5394 = vmatpush.msra.mxu0 %v1205
        %5395 = vmatpush.msra.mxu0 %v1200
        %5396 = vmatpush.msra.mxu0 %v1195
        %5397 = vmatpush.msra.mxu0 %v1190
        %5398 = vmatpush.msra.mxu0 %v1185
        %5399 = vmatpush.msra.mxu0 %v1180
        %5400 = vmatpush.msra.mxu0 %v1175
        %5401 = vmatmul.f32.gmra.mxu0 %v256
        %v5402 = vpop.f32.mrf.mxu0
        %v5403 = vadd.f32 %v5383, %v5402
        %5404 = vdwg.mxu0
        %5405 = vmatpush.msra.mxu0 %v1330
        %5406 = vmatpush.msra.mxu0 %v1325
        %5407 = vmatpush.msra.mxu0 %v1320
        %5408 = vmatpush.msra.mxu0 %v1315
        %5409 = vmatpush.msra.mxu0 %v1310
        %5410 = vmatpush.msra.mxu0 %v1305
        %5411 = vmatpush.msra.mxu0 %v1300
        %5412 = vmatpush.msra.mxu0 %v1295
        %5413 = vmatpush.msra.mxu0 %v1290
        %5414 = vmatpush.msra.mxu0 %v1285
        %5415 = vmatpush.msra.mxu0 %v1280
        %5416 = vmatpush.msra.mxu0 %v1275
        %5417 = vmatpush.msra.mxu0 %v1270
        %5418 = vmatpush.msra.mxu0 %v1265
        %5419 = vmatpush.msra.mxu0 %v1260
        %5420 = vmatpush.msra.mxu0 %v1255
        %5421 = vmatmul.f32.gmra.mxu0 %v257
        %v5422 = vpop.f32.mrf.mxu0
        %v5423 = vadd.f32 %v5403, %v5422
        %5424 = vdwg.mxu0
        %5425 = vmatpush.msra.mxu0 %v1410
        %5426 = vmatpush.msra.mxu0 %v1405
        %5427 = vmatpush.msra.mxu0 %v1400
        %5428 = vmatpush.msra.mxu0 %v1395
        %5429 = vmatpush.msra.mxu0 %v1390
        %5430 = vmatpush.msra.mxu0 %v1385
        %5431 = vmatpush.msra.mxu0 %v1380
        %5432 = vmatpush.msra.mxu0 %v1375
        %5433 = vmatpush.msra.mxu0 %v1370
        %5434 = vmatpush.msra.mxu0 %v1365
        %5435 = vmatpush.msra.mxu0 %v1360
        %5436 = vmatpush.msra.mxu0 %v1355
        %5437 = vmatpush.msra.mxu0 %v1350
        %5438 = vmatpush.msra.mxu0 %v1345
        %5439 = vmatpush.msra.mxu0 %v1340
        %5440 = vmatpush.msra.mxu0 %v1335
        %5441 = vmatmul.f32.gmra.mxu0 %v258
        %v5442 = vpop.f32.mrf.mxu0
        %v5443 = vadd.f32 %v5423, %v5442
        %5444 = vdwg.mxu0
        %5445 = vmatpush.msra.mxu0 %v1490
        %5446 = vmatpush.msra.mxu0 %v1485
        %5447 = vmatpush.msra.mxu0 %v1480
        %5448 = vmatpush.msra.mxu0 %v1475
        %5449 = vmatpush.msra.mxu0 %v1470
        %5450 = vmatpush.msra.mxu0 %v1465
        %5451 = vmatpush.msra.mxu0 %v1460
        %5452 = vmatpush.msra.mxu0 %v1455
        %5453 = vmatpush.msra.mxu0 %v1450
        %5454 = vmatpush.msra.mxu0 %v1445
        %5455 = vmatpush.msra.mxu0 %v1440
        %5456 = vmatpush.msra.mxu0 %v1435
        %5457 = vmatpush.msra.mxu0 %v1430
        %5458 = vmatpush.msra.mxu0 %v1425
        %5459 = vmatpush.msra.mxu0 %v1420
        %5460 = vmatpush.msra.mxu0 %v1415
        %5461 = vmatmul.f32.gmra.mxu0 %v259
        %v5462 = vpop.f32.mrf.mxu0
        %v5463 = vadd.f32 %v5443, %v5462
        %5464 = vdwg.mxu0
        %5465 = vmatpush.msra.mxu0 %v1570
        %5466 = vmatpush.msra.mxu0 %v1565
        %5467 = vmatpush.msra.mxu0 %v1560
        %5468 = vmatpush.msra.mxu0 %v1555
        %5469 = vmatpush.msra.mxu0 %v1550
        %5470 = vmatpush.msra.mxu0 %v1545
        %5471 = vmatpush.msra.mxu0 %v1540
        %5472 = vmatpush.msra.mxu0 %v1535
        %5473 = vmatpush.msra.mxu0 %v1530
        %5474 = vmatpush.msra.mxu0 %v1525
        %5475 = vmatpush.msra.mxu0 %v1520
        %5476 = vmatpush.msra.mxu0 %v1515
        %5477 = vmatpush.msra.mxu0 %v1510
        %5478 = vmatpush.msra.mxu0 %v1505
        %5479 = vmatpush.msra.mxu0 %v1500
        %5480 = vmatpush.msra.mxu0 %v1495
        %5481 = vmatmul.f32.gmra.mxu0 %v260
        %v5482 = vpop.f32.mrf.mxu0
        %v5483 = vadd.f32 %v5463, %v5482
        %5484 = vdwg.mxu0
        %5485 = vmatpush.msra.mxu0 %v1650
        %5486 = vmatpush.msra.mxu0 %v1645
        %5487 = vmatpush.msra.mxu0 %v1640
        %5488 = vmatpush.msra.mxu0 %v1635
        %5489 = vmatpush.msra.mxu0 %v1630
        %5490 = vmatpush.msra.mxu0 %v1625
        %5491 = vmatpush.msra.mxu0 %v1620
        %5492 = vmatpush.msra.mxu0 %v1615
        %5493 = vmatpush.msra.mxu0 %v1610
        %5494 = vmatpush.msra.mxu0 %v1605
        %5495 = vmatpush.msra.mxu0 %v1600
        %5496 = vmatpush.msra.mxu0 %v1595
        %5497 = vmatpush.msra.mxu0 %v1590
        %5498 = vmatpush.msra.mxu0 %v1585
        %5499 = vmatpush.msra.mxu0 %v1580
        %5500 = vmatpush.msra.mxu0 %v1575
        %5501 = vmatmul.f32.gmra.mxu0 %v261
        %v5502 = vpop.f32.mrf.mxu0
        %v5503 = vadd.f32 %v5483, %v5502
        %5504 = vdwg.mxu0
        %5505 = vmatpush.msra.mxu0 %v1730
        %5506 = vmatpush.msra.mxu0 %v1725
        %5507 = vmatpush.msra.mxu0 %v1720
        %5508 = vmatpush.msra.mxu0 %v1715
        %5509 = vmatpush.msra.mxu0 %v1710
        %5510 = vmatpush.msra.mxu0 %v1705
        %5511 = vmatpush.msra.mxu0 %v1700
        %5512 = vmatpush.msra.mxu0 %v1695
        %5513 = vmatpush.msra.mxu0 %v1690
        %5514 = vmatpush.msra.mxu0 %v1685
        %5515 = vmatpush.msra.mxu0 %v1680
        %5516 = vmatpush.msra.mxu0 %v1675
        %5517 = vmatpush.msra.mxu0 %v1670
        %5518 = vmatpush.msra.mxu0 %v1665
        %5519 = vmatpush.msra.mxu0 %v1660
        %5520 = vmatpush.msra.mxu0 %v1655
        %5521 = vmatmul.f32.gmra.mxu0 %v262
        %v5522 = vpop.f32.mrf.mxu0
        %v5523 = vadd.f32 %v5503, %v5522
        %5524 = vdwg.mxu0
        %5525 = vmatpush.msra.mxu0 %v1810
        %5526 = vmatpush.msra.mxu0 %v1805
        %5527 = vmatpush.msra.mxu0 %v1800
        %5528 = vmatpush.msra.mxu0 %v1795
        %5529 = vmatpush.msra.mxu0 %v1790
        %5530 = vmatpush.msra.mxu0 %v1785
        %5531 = vmatpush.msra.mxu0 %v1780
        %5532 = vmatpush.msra.mxu0 %v1775
        %5533 = vmatpush.msra.mxu0 %v1770
        %5534 = vmatpush.msra.mxu0 %v1765
        %5535 = vmatpush.msra.mxu0 %v1760
        %5536 = vmatpush.msra.mxu0 %v1755
        %5537 = vmatpush.msra.mxu0 %v1750
        %5538 = vmatpush.msra.mxu0 %v1745
        %5539 = vmatpush.msra.mxu0 %v1740
        %5540 = vmatpush.msra.mxu0 %v1735
        %5541 = vmatmul.f32.gmra.mxu0 %v263
        %v5542 = vpop.f32.mrf.mxu0
        %v5543 = vadd.f32 %v5523, %v5542
        %5544 = vdwg.mxu0
        %5545 = vmatpush.msra.mxu0 %v1890
        %5546 = vmatpush.msra.mxu0 %v1885
        %5547 = vmatpush.msra.mxu0 %v1880
        %5548 = vmatpush.msra.mxu0 %v1875
        %5549 = vmatpush.msra.mxu0 %v1870
        %5550 = vmatpush.msra.mxu0 %v1865
        %5551 = vmatpush.msra.mxu0 %v1860
        %5552 = vmatpush.msra.mxu0 %v1855
        %5553 = vmatpush.msra.mxu0 %v1850
        %5554 = vmatpush.msra.mxu0 %v1845
        %5555 = vmatpush.msra.mxu0 %v1840
        %5556 = vmatpush.msra.mxu0 %v1835
        %5557 = vmatpush.msra.mxu0 %v1830
        %5558 = vmatpush.msra.mxu0 %v1825
        %5559 = vmatpush.msra.mxu0 %v1820
        %5560 = vmatpush.msra.mxu0 %v1815
        %5561 = vmatmul.f32.gmra.mxu0 %v264
        %v5562 = vpop.f32.mrf.mxu0
        %v5563 = vadd.f32 %v5543, %v5562
        %5564 = vdwg.mxu0
        %5565 = vmatpush.msra.mxu0 %v1970
        %5566 = vmatpush.msra.mxu0 %v1965
        %5567 = vmatpush.msra.mxu0 %v1960
        %5568 = vmatpush.msra.mxu0 %v1955
        %5569 = vmatpush.msra.mxu0 %v1950
        %5570 = vmatpush.msra.mxu0 %v1945
        %5571 = vmatpush.msra.mxu0 %v1940
        %5572 = vmatpush.msra.mxu0 %v1935
        %5573 = vmatpush.msra.mxu0 %v1930
        %5574 = vmatpush.msra.mxu0 %v1925
        %5575 = vmatpush.msra.mxu0 %v1920
        %5576 = vmatpush.msra.mxu0 %v1915
        %5577 = vmatpush.msra.mxu0 %v1910
        %5578 = vmatpush.msra.mxu0 %v1905
        %5579 = vmatpush.msra.mxu0 %v1900
        %5580 = vmatpush.msra.mxu0 %v1895
        %5581 = vmatmul.f32.gmra.mxu0 %v265
        %v5582 = vpop.f32.mrf.mxu0
        %v5583 = vadd.f32 %v5563, %v5582
        %5584 = vdwg.mxu0
        %5585 = vmatpush.msra.mxu0 %v2050
        %5586 = vmatpush.msra.mxu0 %v2045
        %5587 = vmatpush.msra.mxu0 %v2040
        %5588 = vmatpush.msra.mxu0 %v2035
        %5589 = vmatpush.msra.mxu0 %v2030
        %5590 = vmatpush.msra.mxu0 %v2025
        %5591 = vmatpush.msra.mxu0 %v2020
        %5592 = vmatpush.msra.mxu0 %v2015
        %5593 = vmatpush.msra.mxu0 %v2010
        %5594 = vmatpush.msra.mxu0 %v2005
        %5595 = vmatpush.msra.mxu0 %v2000
        %5596 = vmatpush.msra.mxu0 %v1995
        %5597 = vmatpush.msra.mxu0 %v1990
        %5598 = vmatpush.msra.mxu0 %v1985
        %5599 = vmatpush.msra.mxu0 %v1980
        %5600 = vmatpush.msra.mxu0 %v1975
        %5601 = vmatmul.f32.gmra.mxu0 %v266
        %v5602 = vpop.f32.mrf.mxu0
        %v5603 = vadd.f32 %v5583, %v5602
        %5604 = vdwg.mxu0
        %5605 = vmatpush.msra.mxu0 %v2130
        %5606 = vmatpush.msra.mxu0 %v2125
        %5607 = vmatpush.msra.mxu0 %v2120
        %5608 = vmatpush.msra.mxu0 %v2115
        %5609 = vmatpush.msra.mxu0 %v2110
        %5610 = vmatpush.msra.mxu0 %v2105
        %5611 = vmatpush.msra.mxu0 %v2100
        %5612 = vmatpush.msra.mxu0 %v2095
        %5613 = vmatpush.msra.mxu0 %v2090
        %5614 = vmatpush.msra.mxu0 %v2085
        %5615 = vmatpush.msra.mxu0 %v2080
        %5616 = vmatpush.msra.mxu0 %v2075
        %5617 = vmatpush.msra.mxu0 %v2070
        %5618 = vmatpush.msra.mxu0 %v2065
        %5619 = vmatpush.msra.mxu0 %v2060
        %5620 = vmatpush.msra.mxu0 %v2055
        %5621 = vmatmul.f32.gmra.mxu0 %v267
        %v5622 = vpop.f32.mrf.mxu0
        %v5623 = vadd.f32 %v5603, %v5622
        %5624 = vdwg.mxu0
        %5625 = vmatpush.msra.mxu0 %v2210
        %5626 = vmatpush.msra.mxu0 %v2205
        %5627 = vmatpush.msra.mxu0 %v2200
        %5628 = vmatpush.msra.mxu0 %v2195
        %5629 = vmatpush.msra.mxu0 %v2190
        %5630 = vmatpush.msra.mxu0 %v2185
        %5631 = vmatpush.msra.mxu0 %v2180
        %5632 = vmatpush.msra.mxu0 %v2175
        %5633 = vmatpush.msra.mxu0 %v2170
        %5634 = vmatpush.msra.mxu0 %v2165
        %5635 = vmatpush.msra.mxu0 %v2160
        %5636 = vmatpush.msra.mxu0 %v2155
        %5637 = vmatpush.msra.mxu0 %v2150
        %5638 = vmatpush.msra.mxu0 %v2145
        %5639 = vmatpush.msra.mxu0 %v2140
        %5640 = vmatpush.msra.mxu0 %v2135
        %5641 = vmatmul.f32.gmra.mxu0 %v268
        %v5642 = vpop.f32.mrf.mxu0
        %v5643 = vadd.f32 %v5623, %v5642
        %5644 = vdwg.mxu0
        %5645 = vmatpush.msra.mxu0 %v2290
        %5646 = vmatpush.msra.mxu0 %v2285
        %5647 = vmatpush.msra.mxu0 %v2280
        %5648 = vmatpush.msra.mxu0 %v2275
        %5649 = vmatpush.msra.mxu0 %v2270
        %5650 = vmatpush.msra.mxu0 %v2265
        %5651 = vmatpush.msra.mxu0 %v2260
        %5652 = vmatpush.msra.mxu0 %v2255
        %5653 = vmatpush.msra.mxu0 %v2250
        %5654 = vmatpush.msra.mxu0 %v2245
        %5655 = vmatpush.msra.mxu0 %v2240
        %5656 = vmatpush.msra.mxu0 %v2235
        %5657 = vmatpush.msra.mxu0 %v2230
        %5658 = vmatpush.msra.mxu0 %v2225
        %5659 = vmatpush.msra.mxu0 %v2220
        %5660 = vmatpush.msra.mxu0 %v2215
        %5661 = vmatmul.f32.gmra.mxu0 %v269
        %v5662 = vpop.f32.mrf.mxu0
        %v5663 = vadd.f32 %v5643, %v5662
        %5664 = vdwg.mxu0
        %5665 = vmatpush.msra.mxu0 %v2370
        %5666 = vmatpush.msra.mxu0 %v2365
        %5667 = vmatpush.msra.mxu0 %v2360
        %5668 = vmatpush.msra.mxu0 %v2355
        %5669 = vmatpush.msra.mxu0 %v2350
        %5670 = vmatpush.msra.mxu0 %v2345
        %5671 = vmatpush.msra.mxu0 %v2340
        %5672 = vmatpush.msra.mxu0 %v2335
        %5673 = vmatpush.msra.mxu0 %v2330
        %5674 = vmatpush.msra.mxu0 %v2325
        %5675 = vmatpush.msra.mxu0 %v2320
        %5676 = vmatpush.msra.mxu0 %v2315
        %5677 = vmatpush.msra.mxu0 %v2310
        %5678 = vmatpush.msra.mxu0 %v2305
        %5679 = vmatpush.msra.mxu0 %v2300
        %5680 = vmatpush.msra.mxu0 %v2295
        %5681 = vmatmul.f32.gmra.mxu0 %v270
        %v5682 = vpop.f32.mrf.mxu0
        %v5683 = vadd.f32 %v5663, %v5682
        %5684 = vdwg.mxu0
        %5685 = vmatpush.msra.mxu0 %v2450
        %5686 = vmatpush.msra.mxu0 %v2445
        %5687 = vmatpush.msra.mxu0 %v2440
        %5688 = vmatpush.msra.mxu0 %v2435
        %5689 = vmatpush.msra.mxu0 %v2430
        %5690 = vmatpush.msra.mxu0 %v2425
        %5691 = vmatpush.msra.mxu0 %v2420
        %5692 = vmatpush.msra.mxu0 %v2415
        %5693 = vmatpush.msra.mxu0 %v2410
        %5694 = vmatpush.msra.mxu0 %v2405
        %5695 = vmatpush.msra.mxu0 %v2400
        %5696 = vmatpush.msra.mxu0 %v2395
        %5697 = vmatpush.msra.mxu0 %v2390
        %5698 = vmatpush.msra.mxu0 %v2385
        %5699 = vmatpush.msra.mxu0 %v2380
        %5700 = vmatpush.msra.mxu0 %v2375
        %5701 = vmatmul.f32.gmra.mxu0 %v271
        %v5702 = vpop.f32.mrf.mxu0
        %v5703 = vadd.f32 %v5683, %v5702
        %5704 = vdwg.mxu0
        %5705 = vmatpush.msra.mxu0 %v2530
        %5706 = vmatpush.msra.mxu0 %v2525
        %5707 = vmatpush.msra.mxu0 %v2520
        %5708 = vmatpush.msra.mxu0 %v2515
        %5709 = vmatpush.msra.mxu0 %v2510
        %5710 = vmatpush.msra.mxu0 %v2505
        %5711 = vmatpush.msra.mxu0 %v2500
        %5712 = vmatpush.msra.mxu0 %v2495
        %5713 = vmatpush.msra.mxu0 %v2490
        %5714 = vmatpush.msra.mxu0 %v2485
        %5715 = vmatpush.msra.mxu0 %v2480
        %5716 = vmatpush.msra.mxu0 %v2475
        %5717 = vmatpush.msra.mxu0 %v2470
        %5718 = vmatpush.msra.mxu0 %v2465
        %5719 = vmatpush.msra.mxu0 %v2460
        %5720 = vmatpush.msra.mxu0 %v2455
        %5721 = vmatmul.f32.gmra.mxu0 %v272
        %v5722 = vpop.f32.mrf.mxu0
        %v5723 = vadd.f32 %v5703, %v5722
        %5724 = vdwg.mxu0
        %5725 = vmatpush.msra.mxu0 %v2610
        %5726 = vmatpush.msra.mxu0 %v2605
        %5727 = vmatpush.msra.mxu0 %v2600
        %5728 = vmatpush.msra.mxu0 %v2595
        %5729 = vmatpush.msra.mxu0 %v2590
        %5730 = vmatpush.msra.mxu0 %v2585
        %5731 = vmatpush.msra.mxu0 %v2580
        %5732 = vmatpush.msra.mxu0 %v2575
        %5733 = vmatpush.msra.mxu0 %v2570
        %5734 = vmatpush.msra.mxu0 %v2565
        %5735 = vmatpush.msra.mxu0 %v2560
        %5736 = vmatpush.msra.mxu0 %v2555
        %5737 = vmatpush.msra.mxu0 %v2550
        %5738 = vmatpush.msra.mxu0 %v2545
        %5739 = vmatpush.msra.mxu0 %v2540
        %5740 = vmatpush.msra.mxu0 %v2535
        %5741 = vmatmul.f32.gmra.mxu0 %v273
        %v5742 = vpop.f32.mrf.mxu0
        %v5743 = vadd.f32 %v5723, %v5742
        %5744 = vdwg.mxu0
        %5745 = vmatpush.msra.mxu0 %v2690
        %5746 = vmatpush.msra.mxu0 %v2685
        %5747 = vmatpush.msra.mxu0 %v2680
        %5748 = vmatpush.msra.mxu0 %v2675
        %5749 = vmatpush.msra.mxu0 %v2670
        %5750 = vmatpush.msra.mxu0 %v2665
        %5751 = vmatpush.msra.mxu0 %v2660
        %5752 = vmatpush.msra.mxu0 %v2655
        %5753 = vmatpush.msra.mxu0 %v2650
        %5754 = vmatpush.msra.mxu0 %v2645
        %5755 = vmatpush.msra.mxu0 %v2640
        %5756 = vmatpush.msra.mxu0 %v2635
        %5757 = vmatpush.msra.mxu0 %v2630
        %5758 = vmatpush.msra.mxu0 %v2625
        %5759 = vmatpush.msra.mxu0 %v2620
        %5760 = vmatpush.msra.mxu0 %v2615
        %5761 = vmatmul.f32.gmra.mxu0 %v274
        %v5762 = vpop.f32.mrf.mxu0
        %v5763 = vadd.f32 %v5743, %v5762
        %5764 = vdwg.mxu0
        %5765 = vmatpush.msra.mxu0 %v2770
        %5766 = vmatpush.msra.mxu0 %v2765
        %5767 = vmatpush.msra.mxu0 %v2760
        %5768 = vmatpush.msra.mxu0 %v2755
        %5769 = vmatpush.msra.mxu0 %v2750
        %5770 = vmatpush.msra.mxu0 %v2745
        %5771 = vmatpush.msra.mxu0 %v2740
        %5772 = vmatpush.msra.mxu0 %v2735
        %5773 = vmatpush.msra.mxu0 %v2730
        %5774 = vmatpush.msra.mxu0 %v2725
        %5775 = vmatpush.msra.mxu0 %v2720
        %5776 = vmatpush.msra.mxu0 %v2715
        %5777 = vmatpush.msra.mxu0 %v2710
        %5778 = vmatpush.msra.mxu0 %v2705
        %5779 = vmatpush.msra.mxu0 %v2700
        %5780 = vmatpush.msra.mxu0 %v2695
        %5781 = vmatmul.f32.gmra.mxu0 %v275
        %v5782 = vpop.f32.mrf.mxu0
        %v5783 = vadd.f32 %v5763, %v5782
        %5784 = vdwg.mxu0
        %5785 = vmatpush.msra.mxu0 %v2850
        %5786 = vmatpush.msra.mxu0 %v2845
        %5787 = vmatpush.msra.mxu0 %v2840
        %5788 = vmatpush.msra.mxu0 %v2835
        %5789 = vmatpush.msra.mxu0 %v2830
        %5790 = vmatpush.msra.mxu0 %v2825
        %5791 = vmatpush.msra.mxu0 %v2820
        %5792 = vmatpush.msra.mxu0 %v2815
        %5793 = vmatpush.msra.mxu0 %v2810
        %5794 = vmatpush.msra.mxu0 %v2805
        %5795 = vmatpush.msra.mxu0 %v2800
        %5796 = vmatpush.msra.mxu0 %v2795
        %5797 = vmatpush.msra.mxu0 %v2790
        %5798 = vmatpush.msra.mxu0 %v2785
        %5799 = vmatpush.msra.mxu0 %v2780
        %5800 = vmatpush.msra.mxu0 %v2775
        %5801 = vmatmul.f32.gmra.mxu0 %v276
        %v5802 = vpop.f32.mrf.mxu0
        %v5803 = vadd.f32 %v5783, %v5802
        %5804 = vdwg.mxu0
        %5805 = vmatpush.msra.mxu0 %v2930
        %5806 = vmatpush.msra.mxu0 %v2925
        %5807 = vmatpush.msra.mxu0 %v2920
        %5808 = vmatpush.msra.mxu0 %v2915
        %5809 = vmatpush.msra.mxu0 %v2910
        %5810 = vmatpush.msra.mxu0 %v2905
        %5811 = vmatpush.msra.mxu0 %v2900
        %5812 = vmatpush.msra.mxu0 %v2895
        %5813 = vmatpush.msra.mxu0 %v2890
        %5814 = vmatpush.msra.mxu0 %v2885
        %5815 = vmatpush.msra.mxu0 %v2880
        %5816 = vmatpush.msra.mxu0 %v2875
        %5817 = vmatpush.msra.mxu0 %v2870
        %5818 = vmatpush.msra.mxu0 %v2865
        %5819 = vmatpush.msra.mxu0 %v2860
        %5820 = vmatpush.msra.mxu0 %v2855
        %5821 = vmatmul.f32.gmra.mxu0 %v277
        %v5822 = vpop.f32.mrf.mxu0
        %v5823 = vadd.f32 %v5803, %v5822
        %5824 = vdwg.mxu0
        %5825 = vmatpush.msra.mxu0 %v3010
        %5826 = vmatpush.msra.mxu0 %v3005
        %5827 = vmatpush.msra.mxu0 %v3000
        %5828 = vmatpush.msra.mxu0 %v2995
        %5829 = vmatpush.msra.mxu0 %v2990
        %5830 = vmatpush.msra.mxu0 %v2985
        %5831 = vmatpush.msra.mxu0 %v2980
        %5832 = vmatpush.msra.mxu0 %v2975
        %5833 = vmatpush.msra.mxu0 %v2970
        %5834 = vmatpush.msra.mxu0 %v2965
        %5835 = vmatpush.msra.mxu0 %v2960
        %5836 = vmatpush.msra.mxu0 %v2955
        %5837 = vmatpush.msra.mxu0 %v2950
        %5838 = vmatpush.msra.mxu0 %v2945
        %5839 = vmatpush.msra.mxu0 %v2940
        %5840 = vmatpush.msra.mxu0 %v2935
        %5841 = vmatmul.f32.gmra.mxu0 %v278
        %v5842 = vpop.f32.mrf.mxu0
        %v5843 = vadd.f32 %v5823, %v5842
        %5844 = vdwg.mxu0
        %5845 = vmatpush.msra.mxu0 %v3090
        %5846 = vmatpush.msra.mxu0 %v3085
        %5847 = vmatpush.msra.mxu0 %v3080
        %5848 = vmatpush.msra.mxu0 %v3075
        %5849 = vmatpush.msra.mxu0 %v3070
        %5850 = vmatpush.msra.mxu0 %v3065
        %5851 = vmatpush.msra.mxu0 %v3060
        %5852 = vmatpush.msra.mxu0 %v3055
        %5853 = vmatpush.msra.mxu0 %v3050
        %5854 = vmatpush.msra.mxu0 %v3045
        %5855 = vmatpush.msra.mxu0 %v3040
        %5856 = vmatpush.msra.mxu0 %v3035
        %5857 = vmatpush.msra.mxu0 %v3030
        %5858 = vmatpush.msra.mxu0 %v3025
        %5859 = vmatpush.msra.mxu0 %v3020
        %5860 = vmatpush.msra.mxu0 %v3015
        %5861 = vmatmul.f32.gmra.mxu0 %v279
        %v5862 = vpop.f32.mrf.mxu0
        %v5863 = vadd.f32 %v5843, %v5862
        %5864 = vdwg.mxu0
        %5865 = vmatpush.msra.mxu0 %v3170
        %5866 = vmatpush.msra.mxu0 %v3165
        %5867 = vmatpush.msra.mxu0 %v3160
        %5868 = vmatpush.msra.mxu0 %v3155
        %5869 = vmatpush.msra.mxu0 %v3150
        %5870 = vmatpush.msra.mxu0 %v3145
        %5871 = vmatpush.msra.mxu0 %v3140
        %5872 = vmatpush.msra.mxu0 %v3135
        %5873 = vmatpush.msra.mxu0 %v3130
        %5874 = vmatpush.msra.mxu0 %v3125
        %5875 = vmatpush.msra.mxu0 %v3120
        %5876 = vmatpush.msra.mxu0 %v3115
        %5877 = vmatpush.msra.mxu0 %v3110
        %5878 = vmatpush.msra.mxu0 %v3105
        %5879 = vmatpush.msra.mxu0 %v3100
        %5880 = vmatpush.msra.mxu0 %v3095
        %5881 = vmatmul.f32.gmra.mxu0 %v280
        %v5882 = vpop.f32.mrf.mxu0
        %v5883 = vadd.f32 %v5863, %v5882
        %5884 = vdwg.mxu0
        %5885 = vmatpush.msra.mxu0 %v3250
        %5886 = vmatpush.msra.mxu0 %v3245
        %5887 = vmatpush.msra.mxu0 %v3240
        %5888 = vmatpush.msra.mxu0 %v3235
        %5889 = vmatpush.msra.mxu0 %v3230
        %5890 = vmatpush.msra.mxu0 %v3225
        %5891 = vmatpush.msra.mxu0 %v3220
        %5892 = vmatpush.msra.mxu0 %v3215
        %5893 = vmatpush.msra.mxu0 %v3210
        %5894 = vmatpush.msra.mxu0 %v3205
        %5895 = vmatpush.msra.mxu0 %v3200
        %5896 = vmatpush.msra.mxu0 %v3195
        %5897 = vmatpush.msra.mxu0 %v3190
        %5898 = vmatpush.msra.mxu0 %v3185
        %5899 = vmatpush.msra.mxu0 %v3180
        %5900 = vmatpush.msra.mxu0 %v3175
        %5901 = vmatmul.f32.gmra.mxu0 %v281
        %v5902 = vpop.f32.mrf.mxu0
        %v5903 = vadd.f32 %v5883, %v5902
        %5904 = vdwg.mxu0
        %5905 = vmatpush.msra.mxu0 %v3330
        %5906 = vmatpush.msra.mxu0 %v3325
        %5907 = vmatpush.msra.mxu0 %v3320
        %5908 = vmatpush.msra.mxu0 %v3315
        %5909 = vmatpush.msra.mxu0 %v3310
        %5910 = vmatpush.msra.mxu0 %v3305
        %5911 = vmatpush.msra.mxu0 %v3300
        %5912 = vmatpush.msra.mxu0 %v3295
        %5913 = vmatpush.msra.mxu0 %v3290
        %5914 = vmatpush.msra.mxu0 %v3285
        %5915 = vmatpush.msra.mxu0 %v3280
        %5916 = vmatpush.msra.mxu0 %v3275
        %5917 = vmatpush.msra.mxu0 %v3270
        %5918 = vmatpush.msra.mxu0 %v3265
        %5919 = vmatpush.msra.mxu0 %v3260
        %5920 = vmatpush.msra.mxu0 %v3255
        %5921 = vmatmul.f32.gmra.mxu0 %v282
        %v5922 = vpop.f32.mrf.mxu0
        %v5923 = vadd.f32 %v5903, %v5922
        %5924 = vdwg.mxu0
        %5925 = vmatpush.msra.mxu0 %v3410
        %5926 = vmatpush.msra.mxu0 %v3405
        %5927 = vmatpush.msra.mxu0 %v3400
        %5928 = vmatpush.msra.mxu0 %v3395
        %5929 = vmatpush.msra.mxu0 %v3390
        %5930 = vmatpush.msra.mxu0 %v3385
        %5931 = vmatpush.msra.mxu0 %v3380
        %5932 = vmatpush.msra.mxu0 %v3375
        %5933 = vmatpush.msra.mxu0 %v3370
        %5934 = vmatpush.msra.mxu0 %v3365
        %5935 = vmatpush.msra.mxu0 %v3360
        %5936 = vmatpush.msra.mxu0 %v3355
        %5937 = vmatpush.msra.mxu0 %v3350
        %5938 = vmatpush.msra.mxu0 %v3345
        %5939 = vmatpush.msra.mxu0 %v3340
        %5940 = vmatpush.msra.mxu0 %v3335
        %5941 = vmatmul.f32.gmra.mxu0 %v283
        %v5942 = vpop.f32.mrf.mxu0
        %v5943 = vadd.f32 %v5923, %v5942
        %5944 = vdwg.mxu0
        %5945 = vmatpush.msra.mxu0 %v3490
        %5946 = vmatpush.msra.mxu0 %v3485
        %5947 = vmatpush.msra.mxu0 %v3480
        %5948 = vmatpush.msra.mxu0 %v3475
        %5949 = vmatpush.msra.mxu0 %v3470
        %5950 = vmatpush.msra.mxu0 %v3465
        %5951 = vmatpush.msra.mxu0 %v3460
        %5952 = vmatpush.msra.mxu0 %v3455
        %5953 = vmatpush.msra.mxu0 %v3450
        %5954 = vmatpush.msra.mxu0 %v3445
        %5955 = vmatpush.msra.mxu0 %v3440
        %5956 = vmatpush.msra.mxu0 %v3435
        %5957 = vmatpush.msra.mxu0 %v3430
        %5958 = vmatpush.msra.mxu0 %v3425
        %5959 = vmatpush.msra.mxu0 %v3420
        %5960 = vmatpush.msra.mxu0 %v3415
        %5961 = vmatmul.f32.gmra.mxu0 %v284
        %v5962 = vpop.f32.mrf.mxu0
        %v5963 = vadd.f32 %v5943, %v5962
        %5964 = vdwg.mxu0
        %5965 = vmatpush.msra.mxu0 %v3570
        %5966 = vmatpush.msra.mxu0 %v3565
        %5967 = vmatpush.msra.mxu0 %v3560
        %5968 = vmatpush.msra.mxu0 %v3555
        %5969 = vmatpush.msra.mxu0 %v3550
        %5970 = vmatpush.msra.mxu0 %v3545
        %5971 = vmatpush.msra.mxu0 %v3540
        %5972 = vmatpush.msra.mxu0 %v3535
        %5973 = vmatpush.msra.mxu0 %v3530
        %5974 = vmatpush.msra.mxu0 %v3525
        %5975 = vmatpush.msra.mxu0 %v3520
        %5976 = vmatpush.msra.mxu0 %v3515
        %5977 = vmatpush.msra.mxu0 %v3510
        %5978 = vmatpush.msra.mxu0 %v3505
        %5979 = vmatpush.msra.mxu0 %v3500
        %5980 = vmatpush.msra.mxu0 %v3495
        %5981 = vmatmul.f32.gmra.mxu0 %v285
        %v5982 = vpop.f32.mrf.mxu0
        %v5983 = vadd.f32 %v5963, %v5982
        %5984 = vdwg.mxu0
        %5985 = vmatpush.msra.mxu0 %v3650
        %5986 = vmatpush.msra.mxu0 %v3645
        %5987 = vmatpush.msra.mxu0 %v3640
        %5988 = vmatpush.msra.mxu0 %v3635
        %5989 = vmatpush.msra.mxu0 %v3630
        %5990 = vmatpush.msra.mxu0 %v3625
        %5991 = vmatpush.msra.mxu0 %v3620
        %5992 = vmatpush.msra.mxu0 %v3615
        %5993 = vmatpush.msra.mxu0 %v3610
        %5994 = vmatpush.msra.mxu0 %v3605
        %5995 = vmatpush.msra.mxu0 %v3600
        %5996 = vmatpush.msra.mxu0 %v3595
        %5997 = vmatpush.msra.mxu0 %v3590
        %5998 = vmatpush.msra.mxu0 %v3585
        %5999 = vmatpush.msra.mxu0 %v3580
        %6000 = vmatpush.msra.mxu0 %v3575
        %6001 = vmatmul.f32.gmra.mxu0 %v286
        %v6002 = vpop.f32.mrf.mxu0
        %v6003 = vadd.f32 %v5983, %v6002
        %6004 = vdwg.mxu0
        %6005 = vmatpush.msra.mxu0 %v3730
        %6006 = vmatpush.msra.mxu0 %v3725
        %6007 = vmatpush.msra.mxu0 %v3720
        %6008 = vmatpush.msra.mxu0 %v3715
        %6009 = vmatpush.msra.mxu0 %v3710
        %6010 = vmatpush.msra.mxu0 %v3705
        %6011 = vmatpush.msra.mxu0 %v3700
        %6012 = vmatpush.msra.mxu0 %v3695
        %6013 = vmatpush.msra.mxu0 %v3690
        %6014 = vmatpush.msra.mxu0 %v3685
        %6015 = vmatpush.msra.mxu0 %v3680
        %6016 = vmatpush.msra.mxu0 %v3675
        %6017 = vmatpush.msra.mxu0 %v3670
        %6018 = vmatpush.msra.mxu0 %v3665
        %6019 = vmatpush.msra.mxu0 %v3660
        %6020 = vmatpush.msra.mxu0 %v3655
        %6021 = vmatmul.f32.gmra.mxu0 %v287
        %v6022 = vpop.f32.mrf.mxu0
        %v6023 = vadd.f32 %v6003, %v6022
        %6024 = vdwg.mxu0
        %6025 = vmatpush.msra.mxu0 %v3810
        %6026 = vmatpush.msra.mxu0 %v3805
        %6027 = vmatpush.msra.mxu0 %v3800
        %6028 = vmatpush.msra.mxu0 %v3795
        %6029 = vmatpush.msra.mxu0 %v3790
        %6030 = vmatpush.msra.mxu0 %v3785
        %6031 = vmatpush.msra.mxu0 %v3780
        %6032 = vmatpush.msra.mxu0 %v3775
        %6033 = vmatpush.msra.mxu0 %v3770
        %6034 = vmatpush.msra.mxu0 %v3765
        %6035 = vmatpush.msra.mxu0 %v3760
        %6036 = vmatpush.msra.mxu0 %v3755
        %6037 = vmatpush.msra.mxu0 %v3750
        %6038 = vmatpush.msra.mxu0 %v3745
        %6039 = vmatpush.msra.mxu0 %v3740
        %6040 = vmatpush.msra.mxu0 %v3735
        %6041 = vmatmul.f32.gmra.mxu0 %v288
        %v6042 = vpop.f32.mrf.mxu0
        %v6043 = vadd.f32 %v6023, %v6042
        %6044 = vdwg.mxu0
        %6045 = vmatpush.msra.mxu0 %v3890
        %6046 = vmatpush.msra.mxu0 %v3885
        %6047 = vmatpush.msra.mxu0 %v3880
        %6048 = vmatpush.msra.mxu0 %v3875
        %6049 = vmatpush.msra.mxu0 %v3870
        %6050 = vmatpush.msra.mxu0 %v3865
        %6051 = vmatpush.msra.mxu0 %v3860
        %6052 = vmatpush.msra.mxu0 %v3855
        %6053 = vmatpush.msra.mxu0 %v3850
        %6054 = vmatpush.msra.mxu0 %v3845
        %6055 = vmatpush.msra.mxu0 %v3840
        %6056 = vmatpush.msra.mxu0 %v3835
        %6057 = vmatpush.msra.mxu0 %v3830
        %6058 = vmatpush.msra.mxu0 %v3825
        %6059 = vmatpush.msra.mxu0 %v3820
        %6060 = vmatpush.msra.mxu0 %v3815
        %6061 = vmatmul.f32.gmra.mxu0 %v289
        %v6062 = vpop.f32.mrf.mxu0
        %v6063 = vadd.f32 %v6043, %v6062
        %6064 = vdwg.mxu0
        %6065 = vmatpush.msra.mxu0 %v3970
        %6066 = vmatpush.msra.mxu0 %v3965
        %6067 = vmatpush.msra.mxu0 %v3960
        %6068 = vmatpush.msra.mxu0 %v3955
        %6069 = vmatpush.msra.mxu0 %v3950
        %6070 = vmatpush.msra.mxu0 %v3945
        %6071 = vmatpush.msra.mxu0 %v3940
        %6072 = vmatpush.msra.mxu0 %v3935
        %6073 = vmatpush.msra.mxu0 %v3930
        %6074 = vmatpush.msra.mxu0 %v3925
        %6075 = vmatpush.msra.mxu0 %v3920
        %6076 = vmatpush.msra.mxu0 %v3915
        %6077 = vmatpush.msra.mxu0 %v3910
        %6078 = vmatpush.msra.mxu0 %v3905
        %6079 = vmatpush.msra.mxu0 %v3900
        %6080 = vmatpush.msra.mxu0 %v3895
        %6081 = vmatmul.f32.gmra.mxu0 %v290
        %v6082 = vpop.f32.mrf.mxu0
        %v6083 = vadd.f32 %v6063, %v6082
        %6084 = vdwg.mxu0
        %6085 = vmatpush.msra.mxu0 %v4050
        %6086 = vmatpush.msra.mxu0 %v4045
        %6087 = vmatpush.msra.mxu0 %v4040
        %6088 = vmatpush.msra.mxu0 %v4035
        %6089 = vmatpush.msra.mxu0 %v4030
        %6090 = vmatpush.msra.mxu0 %v4025
        %6091 = vmatpush.msra.mxu0 %v4020
        %6092 = vmatpush.msra.mxu0 %v4015
        %6093 = vmatpush.msra.mxu0 %v4010
        %6094 = vmatpush.msra.mxu0 %v4005
        %6095 = vmatpush.msra.mxu0 %v4000
        %6096 = vmatpush.msra.mxu0 %v3995
        %6097 = vmatpush.msra.mxu0 %v3990
        %6098 = vmatpush.msra.mxu0 %v3985
        %6099 = vmatpush.msra.mxu0 %v3980
        %6100 = vmatpush.msra.mxu0 %v3975
        %6101 = vmatmul.f32.gmra.mxu0 %v291
        %v6102 = vpop.f32.mrf.mxu0
        %v6103 = vadd.f32 %v6083, %v6102
        %6104 = vdwg.mxu0
        %6105 = vmatpush.msra.mxu0 %v4130
        %6106 = vmatpush.msra.mxu0 %v4125
        %6107 = vmatpush.msra.mxu0 %v4120
        %6108 = vmatpush.msra.mxu0 %v4115
        %6109 = vmatpush.msra.mxu0 %v4110
        %6110 = vmatpush.msra.mxu0 %v4105
        %6111 = vmatpush.msra.mxu0 %v4100
        %6112 = vmatpush.msra.mxu0 %v4095
        %6113 = vmatpush.msra.mxu0 %v4090
        %6114 = vmatpush.msra.mxu0 %v4085
        %6115 = vmatpush.msra.mxu0 %v4080
        %6116 = vmatpush.msra.mxu0 %v4075
        %6117 = vmatpush.msra.mxu0 %v4070
        %6118 = vmatpush.msra.mxu0 %v4065
        %6119 = vmatpush.msra.mxu0 %v4060
        %6120 = vmatpush.msra.mxu0 %v4055
        %6121 = vmatmul.f32.gmra.mxu0 %v292
        %v6122 = vpop.f32.mrf.mxu0
        %v6123 = vadd.f32 %v6103, %v6122
        %6124 = vdwg.mxu0
        %6125 = vmatpush.msra.mxu0 0.0
        %6126 = vmatpush.msra.mxu0 0.0
        %6127 = vmatpush.msra.mxu0 0.0
        %6128 = vmatpush.msra.mxu0 0.0
        %6129 = vmatpush.msra.mxu0 0.0
        %6130 = vmatpush.msra.mxu0 0.0
        %6131 = vmatpush.msra.mxu0 0.0
        %6132 = vmatpush.msra.mxu0 0.0
        %6133 = vmatpush.msra.mxu0 0.0
        %6134 = vmatpush.msra.mxu0 %v4165
        %6135 = vmatpush.msra.mxu0 %v4160
        %6136 = vmatpush.msra.mxu0 %v4155
        %6137 = vmatpush.msra.mxu0 %v4150
        %6138 = vmatpush.msra.mxu0 %v4145
        %6139 = vmatpush.msra.mxu0 %v4140
        %6140 = vmatpush.msra.mxu0 %v4135
        %6141 = vmatmul.f32.gmra.mxu0 %v4183
        %v6142 = vpop.f32.mrf.mxu0
        %v6143 = vadd.f32 %v6123, %v6142
        %6144 = vdwg.mxu0
        %6145 = vmatpush.msra.mxu0 %v371
        %6146 = vmatpush.msra.mxu0 %v366
        %6147 = vmatpush.msra.mxu0 %v361
        %6148 = vmatpush.msra.mxu0 %v356
        %6149 = vmatpush.msra.mxu0 %v351
        %6150 = vmatpush.msra.mxu0 %v346
        %6151 = vmatpush.msra.mxu0 %v341
        %6152 = vmatpush.msra.mxu0 %v336
        %6153 = vmatpush.msra.mxu0 %v331
        %6154 = vmatpush.msra.mxu0 %v326
        %6155 = vmatpush.msra.mxu0 %v321
        %6156 = vmatpush.msra.mxu0 %v316
        %6157 = vmatpush.msra.mxu0 %v311
        %6158 = vmatpush.msra.mxu0 %v306
        %6159 = vmatpush.msra.mxu0 %v301
        %6160 = vmatpush.msra.mxu0 %v296
        %6161 = vmatmul.f32.gmra.mxu0 %v245
        %v6162 = vpop.f32.mrf.mxu0
        %v6163 = vadd.f32 %v4173, %v6162
        %6164 = vdwg.mxu0
        %6165 = vmatpush.msra.mxu0 %v451
        %6166 = vmatpush.msra.mxu0 %v446
        %6167 = vmatpush.msra.mxu0 %v441
        %6168 = vmatpush.msra.mxu0 %v436
        %6169 = vmatpush.msra.mxu0 %v431
        %6170 = vmatpush.msra.mxu0 %v426
        %6171 = vmatpush.msra.mxu0 %v421
        %6172 = vmatpush.msra.mxu0 %v416
        %6173 = vmatpush.msra.mxu0 %v411
        %6174 = vmatpush.msra.mxu0 %v406
        %6175 = vmatpush.msra.mxu0 %v401
        %6176 = vmatpush.msra.mxu0 %v396
        %6177 = vmatpush.msra.mxu0 %v391
        %6178 = vmatpush.msra.mxu0 %v386
        %6179 = vmatpush.msra.mxu0 %v381
        %6180 = vmatpush.msra.mxu0 %v376
        %6181 = vmatmul.f32.gmra.mxu0 %v246
        %v6182 = vpop.f32.mrf.mxu0
        %v6183 = vadd.f32 %v6163, %v6182
        %6184 = vdwg.mxu0
        %6185 = vmatpush.msra.mxu0 %v531
        %6186 = vmatpush.msra.mxu0 %v526
        %6187 = vmatpush.msra.mxu0 %v521
        %6188 = vmatpush.msra.mxu0 %v516
        %6189 = vmatpush.msra.mxu0 %v511
        %6190 = vmatpush.msra.mxu0 %v506
        %6191 = vmatpush.msra.mxu0 %v501
        %6192 = vmatpush.msra.mxu0 %v496
        %6193 = vmatpush.msra.mxu0 %v491
        %6194 = vmatpush.msra.mxu0 %v486
        %6195 = vmatpush.msra.mxu0 %v481
        %6196 = vmatpush.msra.mxu0 %v476
        %6197 = vmatpush.msra.mxu0 %v471
        %6198 = vmatpush.msra.mxu0 %v466
        %6199 = vmatpush.msra.mxu0 %v461
        %6200 = vmatpush.msra.mxu0 %v456
        %6201 = vmatmul.f32.gmra.mxu0 %v247
        %v6202 = vpop.f32.mrf.mxu0
        %v6203 = vadd.f32 %v6183, %v6202
        %6204 = vdwg.mxu0
        %6205 = vmatpush.msra.mxu0 %v611
        %6206 = vmatpush.msra.mxu0 %v606
        %6207 = vmatpush.msra.mxu0 %v601
        %6208 = vmatpush.msra.mxu0 %v596
        %6209 = vmatpush.msra.mxu0 %v591
        %6210 = vmatpush.msra.mxu0 %v586
        %6211 = vmatpush.msra.mxu0 %v581
        %6212 = vmatpush.msra.mxu0 %v576
        %6213 = vmatpush.msra.mxu0 %v571
        %6214 = vmatpush.msra.mxu0 %v566
        %6215 = vmatpush.msra.mxu0 %v561
        %6216 = vmatpush.msra.mxu0 %v556
        %6217 = vmatpush.msra.mxu0 %v551
        %6218 = vmatpush.msra.mxu0 %v546
        %6219 = vmatpush.msra.mxu0 %v541
        %6220 = vmatpush.msra.mxu0 %v536
        %6221 = vmatmul.f32.gmra.mxu0 %v248
        %v6222 = vpop.f32.mrf.mxu0
        %v6223 = vadd.f32 %v6203, %v6222
        %6224 = vdwg.mxu0
        %6225 = vmatpush.msra.mxu0 %v691
        %6226 = vmatpush.msra.mxu0 %v686
        %6227 = vmatpush.msra.mxu0 %v681
        %6228 = vmatpush.msra.mxu0 %v676
        %6229 = vmatpush.msra.mxu0 %v671
        %6230 = vmatpush.msra.mxu0 %v666
        %6231 = vmatpush.msra.mxu0 %v661
        %6232 = vmatpush.msra.mxu0 %v656
        %6233 = vmatpush.msra.mxu0 %v651
        %6234 = vmatpush.msra.mxu0 %v646
        %6235 = vmatpush.msra.mxu0 %v641
        %6236 = vmatpush.msra.mxu0 %v636
        %6237 = vmatpush.msra.mxu0 %v631
        %6238 = vmatpush.msra.mxu0 %v626
        %6239 = vmatpush.msra.mxu0 %v621
        %6240 = vmatpush.msra.mxu0 %v616
        %6241 = vmatmul.f32.gmra.mxu0 %v249
        %v6242 = vpop.f32.mrf.mxu0
        %v6243 = vadd.f32 %v6223, %v6242
        %6244 = vdwg.mxu0
        %6245 = vmatpush.msra.mxu0 %v771
        %6246 = vmatpush.msra.mxu0 %v766
        %6247 = vmatpush.msra.mxu0 %v761
        %6248 = vmatpush.msra.mxu0 %v756
        %6249 = vmatpush.msra.mxu0 %v751
        %6250 = vmatpush.msra.mxu0 %v746
        %6251 = vmatpush.msra.mxu0 %v741
        %6252 = vmatpush.msra.mxu0 %v736
        %6253 = vmatpush.msra.mxu0 %v731
        %6254 = vmatpush.msra.mxu0 %v726
        %6255 = vmatpush.msra.mxu0 %v721
        %6256 = vmatpush.msra.mxu0 %v716
        %6257 = vmatpush.msra.mxu0 %v711
        %6258 = vmatpush.msra.mxu0 %v706
        %6259 = vmatpush.msra.mxu0 %v701
        %6260 = vmatpush.msra.mxu0 %v696
        %6261 = vmatmul.f32.gmra.mxu0 %v250
        %v6262 = vpop.f32.mrf.mxu0
        %v6263 = vadd.f32 %v6243, %v6262
        %6264 = vdwg.mxu0
        %6265 = vmatpush.msra.mxu0 %v851
        %6266 = vmatpush.msra.mxu0 %v846
        %6267 = vmatpush.msra.mxu0 %v841
        %6268 = vmatpush.msra.mxu0 %v836
        %6269 = vmatpush.msra.mxu0 %v831
        %6270 = vmatpush.msra.mxu0 %v826
        %6271 = vmatpush.msra.mxu0 %v821
        %6272 = vmatpush.msra.mxu0 %v816
        %6273 = vmatpush.msra.mxu0 %v811
        %6274 = vmatpush.msra.mxu0 %v806
        %6275 = vmatpush.msra.mxu0 %v801
        %6276 = vmatpush.msra.mxu0 %v796
        %6277 = vmatpush.msra.mxu0 %v791
        %6278 = vmatpush.msra.mxu0 %v786
        %6279 = vmatpush.msra.mxu0 %v781
        %6280 = vmatpush.msra.mxu0 %v776
        %6281 = vmatmul.f32.gmra.mxu0 %v251
        %v6282 = vpop.f32.mrf.mxu0
        %v6283 = vadd.f32 %v6263, %v6282
        %6284 = vdwg.mxu0
        %6285 = vmatpush.msra.mxu0 %v931
        %6286 = vmatpush.msra.mxu0 %v926
        %6287 = vmatpush.msra.mxu0 %v921
        %6288 = vmatpush.msra.mxu0 %v916
        %6289 = vmatpush.msra.mxu0 %v911
        %6290 = vmatpush.msra.mxu0 %v906
        %6291 = vmatpush.msra.mxu0 %v901
        %6292 = vmatpush.msra.mxu0 %v896
        %6293 = vmatpush.msra.mxu0 %v891
        %6294 = vmatpush.msra.mxu0 %v886
        %6295 = vmatpush.msra.mxu0 %v881
        %6296 = vmatpush.msra.mxu0 %v876
        %6297 = vmatpush.msra.mxu0 %v871
        %6298 = vmatpush.msra.mxu0 %v866
        %6299 = vmatpush.msra.mxu0 %v861
        %6300 = vmatpush.msra.mxu0 %v856
        %6301 = vmatmul.f32.gmra.mxu0 %v252
        %v6302 = vpop.f32.mrf.mxu0
        %v6303 = vadd.f32 %v6283, %v6302
        %6304 = vdwg.mxu0
        %6305 = vmatpush.msra.mxu0 %v1011
        %6306 = vmatpush.msra.mxu0 %v1006
        %6307 = vmatpush.msra.mxu0 %v1001
        %6308 = vmatpush.msra.mxu0 %v996
        %6309 = vmatpush.msra.mxu0 %v991
        %6310 = vmatpush.msra.mxu0 %v986
        %6311 = vmatpush.msra.mxu0 %v981
        %6312 = vmatpush.msra.mxu0 %v976
        %6313 = vmatpush.msra.mxu0 %v971
        %6314 = vmatpush.msra.mxu0 %v966
        %6315 = vmatpush.msra.mxu0 %v961
        %6316 = vmatpush.msra.mxu0 %v956
        %6317 = vmatpush.msra.mxu0 %v951
        %6318 = vmatpush.msra.mxu0 %v946
        %6319 = vmatpush.msra.mxu0 %v941
        %6320 = vmatpush.msra.mxu0 %v936
        %6321 = vmatmul.f32.gmra.mxu0 %v253
        %v6322 = vpop.f32.mrf.mxu0
        %v6323 = vadd.f32 %v6303, %v6322
        %6324 = vdwg.mxu0
        %6325 = vmatpush.msra.mxu0 %v1091
        %6326 = vmatpush.msra.mxu0 %v1086
        %6327 = vmatpush.msra.mxu0 %v1081
        %6328 = vmatpush.msra.mxu0 %v1076
        %6329 = vmatpush.msra.mxu0 %v1071
        %6330 = vmatpush.msra.mxu0 %v1066
        %6331 = vmatpush.msra.mxu0 %v1061
        %6332 = vmatpush.msra.mxu0 %v1056
        %6333 = vmatpush.msra.mxu0 %v1051
        %6334 = vmatpush.msra.mxu0 %v1046
        %6335 = vmatpush.msra.mxu0 %v1041
        %6336 = vmatpush.msra.mxu0 %v1036
        %6337 = vmatpush.msra.mxu0 %v1031
        %6338 = vmatpush.msra.mxu0 %v1026
        %6339 = vmatpush.msra.mxu0 %v1021
        %6340 = vmatpush.msra.mxu0 %v1016
        %6341 = vmatmul.f32.gmra.mxu0 %v254
        %v6342 = vpop.f32.mrf.mxu0
        %v6343 = vadd.f32 %v6323, %v6342
        %6344 = vdwg.mxu0
        %6345 = vmatpush.msra.mxu0 %v1171
        %6346 = vmatpush.msra.mxu0 %v1166
        %6347 = vmatpush.msra.mxu0 %v1161
        %6348 = vmatpush.msra.mxu0 %v1156
        %6349 = vmatpush.msra.mxu0 %v1151
        %6350 = vmatpush.msra.mxu0 %v1146
        %6351 = vmatpush.msra.mxu0 %v1141
        %6352 = vmatpush.msra.mxu0 %v1136
        %6353 = vmatpush.msra.mxu0 %v1131
        %6354 = vmatpush.msra.mxu0 %v1126
        %6355 = vmatpush.msra.mxu0 %v1121
        %6356 = vmatpush.msra.mxu0 %v1116
        %6357 = vmatpush.msra.mxu0 %v1111
        %6358 = vmatpush.msra.mxu0 %v1106
        %6359 = vmatpush.msra.mxu0 %v1101
        %6360 = vmatpush.msra.mxu0 %v1096
        %6361 = vmatmul.f32.gmra.mxu0 %v255
        %v6362 = vpop.f32.mrf.mxu0
        %v6363 = vadd.f32 %v6343, %v6362
        %6364 = vdwg.mxu0
        %6365 = vmatpush.msra.mxu0 %v1251
        %6366 = vmatpush.msra.mxu0 %v1246
        %6367 = vmatpush.msra.mxu0 %v1241
        %6368 = vmatpush.msra.mxu0 %v1236
        %6369 = vmatpush.msra.mxu0 %v1231
        %6370 = vmatpush.msra.mxu0 %v1226
        %6371 = vmatpush.msra.mxu0 %v1221
        %6372 = vmatpush.msra.mxu0 %v1216
        %6373 = vmatpush.msra.mxu0 %v1211
        %6374 = vmatpush.msra.mxu0 %v1206
        %6375 = vmatpush.msra.mxu0 %v1201
        %6376 = vmatpush.msra.mxu0 %v1196
        %6377 = vmatpush.msra.mxu0 %v1191
        %6378 = vmatpush.msra.mxu0 %v1186
        %6379 = vmatpush.msra.mxu0 %v1181
        %6380 = vmatpush.msra.mxu0 %v1176
        %6381 = vmatmul.f32.gmra.mxu0 %v256
        %v6382 = vpop.f32.mrf.mxu0
        %v6383 = vadd.f32 %v6363, %v6382
        %6384 = vdwg.mxu0
        %6385 = vmatpush.msra.mxu0 %v1331
        %6386 = vmatpush.msra.mxu0 %v1326
        %6387 = vmatpush.msra.mxu0 %v1321
        %6388 = vmatpush.msra.mxu0 %v1316
        %6389 = vmatpush.msra.mxu0 %v1311
        %6390 = vmatpush.msra.mxu0 %v1306
        %6391 = vmatpush.msra.mxu0 %v1301
        %6392 = vmatpush.msra.mxu0 %v1296
        %6393 = vmatpush.msra.mxu0 %v1291
        %6394 = vmatpush.msra.mxu0 %v1286
        %6395 = vmatpush.msra.mxu0 %v1281
        %6396 = vmatpush.msra.mxu0 %v1276
        %6397 = vmatpush.msra.mxu0 %v1271
        %6398 = vmatpush.msra.mxu0 %v1266
        %6399 = vmatpush.msra.mxu0 %v1261
        %6400 = vmatpush.msra.mxu0 %v1256
        %6401 = vmatmul.f32.gmra.mxu0 %v257
        %v6402 = vpop.f32.mrf.mxu0
        %v6403 = vadd.f32 %v6383, %v6402
        %6404 = vdwg.mxu0
        %6405 = vmatpush.msra.mxu0 %v1411
        %6406 = vmatpush.msra.mxu0 %v1406
        %6407 = vmatpush.msra.mxu0 %v1401
        %6408 = vmatpush.msra.mxu0 %v1396
        %6409 = vmatpush.msra.mxu0 %v1391
        %6410 = vmatpush.msra.mxu0 %v1386
        %6411 = vmatpush.msra.mxu0 %v1381
        %6412 = vmatpush.msra.mxu0 %v1376
        %6413 = vmatpush.msra.mxu0 %v1371
        %6414 = vmatpush.msra.mxu0 %v1366
        %6415 = vmatpush.msra.mxu0 %v1361
        %6416 = vmatpush.msra.mxu0 %v1356
        %6417 = vmatpush.msra.mxu0 %v1351
        %6418 = vmatpush.msra.mxu0 %v1346
        %6419 = vmatpush.msra.mxu0 %v1341
        %6420 = vmatpush.msra.mxu0 %v1336
        %6421 = vmatmul.f32.gmra.mxu0 %v258
        %v6422 = vpop.f32.mrf.mxu0
        %v6423 = vadd.f32 %v6403, %v6422
        %6424 = vdwg.mxu0
        %6425 = vmatpush.msra.mxu0 %v1491
        %6426 = vmatpush.msra.mxu0 %v1486
        %6427 = vmatpush.msra.mxu0 %v1481
        %6428 = vmatpush.msra.mxu0 %v1476
        %6429 = vmatpush.msra.mxu0 %v1471
        %6430 = vmatpush.msra.mxu0 %v1466
        %6431 = vmatpush.msra.mxu0 %v1461
        %6432 = vmatpush.msra.mxu0 %v1456
        %6433 = vmatpush.msra.mxu0 %v1451
        %6434 = vmatpush.msra.mxu0 %v1446
        %6435 = vmatpush.msra.mxu0 %v1441
        %6436 = vmatpush.msra.mxu0 %v1436
        %6437 = vmatpush.msra.mxu0 %v1431
        %6438 = vmatpush.msra.mxu0 %v1426
        %6439 = vmatpush.msra.mxu0 %v1421
        %6440 = vmatpush.msra.mxu0 %v1416
        %6441 = vmatmul.f32.gmra.mxu0 %v259
        %v6442 = vpop.f32.mrf.mxu0
        %v6443 = vadd.f32 %v6423, %v6442
        %6444 = vdwg.mxu0
        %6445 = vmatpush.msra.mxu0 %v1571
        %6446 = vmatpush.msra.mxu0 %v1566
        %6447 = vmatpush.msra.mxu0 %v1561
        %6448 = vmatpush.msra.mxu0 %v1556
        %6449 = vmatpush.msra.mxu0 %v1551
        %6450 = vmatpush.msra.mxu0 %v1546
        %6451 = vmatpush.msra.mxu0 %v1541
        %6452 = vmatpush.msra.mxu0 %v1536
        %6453 = vmatpush.msra.mxu0 %v1531
        %6454 = vmatpush.msra.mxu0 %v1526
        %6455 = vmatpush.msra.mxu0 %v1521
        %6456 = vmatpush.msra.mxu0 %v1516
        %6457 = vmatpush.msra.mxu0 %v1511
        %6458 = vmatpush.msra.mxu0 %v1506
        %6459 = vmatpush.msra.mxu0 %v1501
        %6460 = vmatpush.msra.mxu0 %v1496
        %6461 = vmatmul.f32.gmra.mxu0 %v260
        %v6462 = vpop.f32.mrf.mxu0
        %v6463 = vadd.f32 %v6443, %v6462
        %6464 = vdwg.mxu0
        %6465 = vmatpush.msra.mxu0 %v1651
        %6466 = vmatpush.msra.mxu0 %v1646
        %6467 = vmatpush.msra.mxu0 %v1641
        %6468 = vmatpush.msra.mxu0 %v1636
        %6469 = vmatpush.msra.mxu0 %v1631
        %6470 = vmatpush.msra.mxu0 %v1626
        %6471 = vmatpush.msra.mxu0 %v1621
        %6472 = vmatpush.msra.mxu0 %v1616
        %6473 = vmatpush.msra.mxu0 %v1611
        %6474 = vmatpush.msra.mxu0 %v1606
        %6475 = vmatpush.msra.mxu0 %v1601
        %6476 = vmatpush.msra.mxu0 %v1596
        %6477 = vmatpush.msra.mxu0 %v1591
        %6478 = vmatpush.msra.mxu0 %v1586
        %6479 = vmatpush.msra.mxu0 %v1581
        %6480 = vmatpush.msra.mxu0 %v1576
        %6481 = vmatmul.f32.gmra.mxu0 %v261
        %v6482 = vpop.f32.mrf.mxu0
        %v6483 = vadd.f32 %v6463, %v6482
        %6484 = vdwg.mxu0
        %6485 = vmatpush.msra.mxu0 %v1731
        %6486 = vmatpush.msra.mxu0 %v1726
        %6487 = vmatpush.msra.mxu0 %v1721
        %6488 = vmatpush.msra.mxu0 %v1716
        %6489 = vmatpush.msra.mxu0 %v1711
        %6490 = vmatpush.msra.mxu0 %v1706
        %6491 = vmatpush.msra.mxu0 %v1701
        %6492 = vmatpush.msra.mxu0 %v1696
        %6493 = vmatpush.msra.mxu0 %v1691
        %6494 = vmatpush.msra.mxu0 %v1686
        %6495 = vmatpush.msra.mxu0 %v1681
        %6496 = vmatpush.msra.mxu0 %v1676
        %6497 = vmatpush.msra.mxu0 %v1671
        %6498 = vmatpush.msra.mxu0 %v1666
        %6499 = vmatpush.msra.mxu0 %v1661
        %6500 = vmatpush.msra.mxu0 %v1656
        %6501 = vmatmul.f32.gmra.mxu0 %v262
        %v6502 = vpop.f32.mrf.mxu0
        %v6503 = vadd.f32 %v6483, %v6502
        %6504 = vdwg.mxu0
        %6505 = vmatpush.msra.mxu0 %v1811
        %6506 = vmatpush.msra.mxu0 %v1806
        %6507 = vmatpush.msra.mxu0 %v1801
        %6508 = vmatpush.msra.mxu0 %v1796
        %6509 = vmatpush.msra.mxu0 %v1791
        %6510 = vmatpush.msra.mxu0 %v1786
        %6511 = vmatpush.msra.mxu0 %v1781
        %6512 = vmatpush.msra.mxu0 %v1776
        %6513 = vmatpush.msra.mxu0 %v1771
        %6514 = vmatpush.msra.mxu0 %v1766
        %6515 = vmatpush.msra.mxu0 %v1761
        %6516 = vmatpush.msra.mxu0 %v1756
        %6517 = vmatpush.msra.mxu0 %v1751
        %6518 = vmatpush.msra.mxu0 %v1746
        %6519 = vmatpush.msra.mxu0 %v1741
        %6520 = vmatpush.msra.mxu0 %v1736
        %6521 = vmatmul.f32.gmra.mxu0 %v263
        %v6522 = vpop.f32.mrf.mxu0
        %v6523 = vadd.f32 %v6503, %v6522
        %6524 = vdwg.mxu0
        %6525 = vmatpush.msra.mxu0 %v1891
        %6526 = vmatpush.msra.mxu0 %v1886
        %6527 = vmatpush.msra.mxu0 %v1881
        %6528 = vmatpush.msra.mxu0 %v1876
        %6529 = vmatpush.msra.mxu0 %v1871
        %6530 = vmatpush.msra.mxu0 %v1866
        %6531 = vmatpush.msra.mxu0 %v1861
        %6532 = vmatpush.msra.mxu0 %v1856
        %6533 = vmatpush.msra.mxu0 %v1851
        %6534 = vmatpush.msra.mxu0 %v1846
        %6535 = vmatpush.msra.mxu0 %v1841
        %6536 = vmatpush.msra.mxu0 %v1836
        %6537 = vmatpush.msra.mxu0 %v1831
        %6538 = vmatpush.msra.mxu0 %v1826
        %6539 = vmatpush.msra.mxu0 %v1821
        %6540 = vmatpush.msra.mxu0 %v1816
        %6541 = vmatmul.f32.gmra.mxu0 %v264
        %v6542 = vpop.f32.mrf.mxu0
        %v6543 = vadd.f32 %v6523, %v6542
        %6544 = vdwg.mxu0
        %6545 = vmatpush.msra.mxu0 %v1971
        %6546 = vmatpush.msra.mxu0 %v1966
        %6547 = vmatpush.msra.mxu0 %v1961
        %6548 = vmatpush.msra.mxu0 %v1956
        %6549 = vmatpush.msra.mxu0 %v1951
        %6550 = vmatpush.msra.mxu0 %v1946
        %6551 = vmatpush.msra.mxu0 %v1941
        %6552 = vmatpush.msra.mxu0 %v1936
        %6553 = vmatpush.msra.mxu0 %v1931
        %6554 = vmatpush.msra.mxu0 %v1926
        %6555 = vmatpush.msra.mxu0 %v1921
        %6556 = vmatpush.msra.mxu0 %v1916
        %6557 = vmatpush.msra.mxu0 %v1911
        %6558 = vmatpush.msra.mxu0 %v1906
        %6559 = vmatpush.msra.mxu0 %v1901
        %6560 = vmatpush.msra.mxu0 %v1896
        %6561 = vmatmul.f32.gmra.mxu0 %v265
        %v6562 = vpop.f32.mrf.mxu0
        %v6563 = vadd.f32 %v6543, %v6562
        %6564 = vdwg.mxu0
        %6565 = vmatpush.msra.mxu0 %v2051
        %6566 = vmatpush.msra.mxu0 %v2046
        %6567 = vmatpush.msra.mxu0 %v2041
        %6568 = vmatpush.msra.mxu0 %v2036
        %6569 = vmatpush.msra.mxu0 %v2031
        %6570 = vmatpush.msra.mxu0 %v2026
        %6571 = vmatpush.msra.mxu0 %v2021
        %6572 = vmatpush.msra.mxu0 %v2016
        %6573 = vmatpush.msra.mxu0 %v2011
        %6574 = vmatpush.msra.mxu0 %v2006
        %6575 = vmatpush.msra.mxu0 %v2001
        %6576 = vmatpush.msra.mxu0 %v1996
        %6577 = vmatpush.msra.mxu0 %v1991
        %6578 = vmatpush.msra.mxu0 %v1986
        %6579 = vmatpush.msra.mxu0 %v1981
        %6580 = vmatpush.msra.mxu0 %v1976
        %6581 = vmatmul.f32.gmra.mxu0 %v266
        %v6582 = vpop.f32.mrf.mxu0
        %v6583 = vadd.f32 %v6563, %v6582
        %6584 = vdwg.mxu0
        %6585 = vmatpush.msra.mxu0 %v2131
        %6586 = vmatpush.msra.mxu0 %v2126
        %6587 = vmatpush.msra.mxu0 %v2121
        %6588 = vmatpush.msra.mxu0 %v2116
        %6589 = vmatpush.msra.mxu0 %v2111
        %6590 = vmatpush.msra.mxu0 %v2106
        %6591 = vmatpush.msra.mxu0 %v2101
        %6592 = vmatpush.msra.mxu0 %v2096
        %6593 = vmatpush.msra.mxu0 %v2091
        %6594 = vmatpush.msra.mxu0 %v2086
        %6595 = vmatpush.msra.mxu0 %v2081
        %6596 = vmatpush.msra.mxu0 %v2076
        %6597 = vmatpush.msra.mxu0 %v2071
        %6598 = vmatpush.msra.mxu0 %v2066
        %6599 = vmatpush.msra.mxu0 %v2061
        %6600 = vmatpush.msra.mxu0 %v2056
        %6601 = vmatmul.f32.gmra.mxu0 %v267
        %v6602 = vpop.f32.mrf.mxu0
        %v6603 = vadd.f32 %v6583, %v6602
        %6604 = vdwg.mxu0
        %6605 = vmatpush.msra.mxu0 %v2211
        %6606 = vmatpush.msra.mxu0 %v2206
        %6607 = vmatpush.msra.mxu0 %v2201
        %6608 = vmatpush.msra.mxu0 %v2196
        %6609 = vmatpush.msra.mxu0 %v2191
        %6610 = vmatpush.msra.mxu0 %v2186
        %6611 = vmatpush.msra.mxu0 %v2181
        %6612 = vmatpush.msra.mxu0 %v2176
        %6613 = vmatpush.msra.mxu0 %v2171
        %6614 = vmatpush.msra.mxu0 %v2166
        %6615 = vmatpush.msra.mxu0 %v2161
        %6616 = vmatpush.msra.mxu0 %v2156
        %6617 = vmatpush.msra.mxu0 %v2151
        %6618 = vmatpush.msra.mxu0 %v2146
        %6619 = vmatpush.msra.mxu0 %v2141
        %6620 = vmatpush.msra.mxu0 %v2136
        %6621 = vmatmul.f32.gmra.mxu0 %v268
        %v6622 = vpop.f32.mrf.mxu0
        %v6623 = vadd.f32 %v6603, %v6622
        %6624 = vdwg.mxu0
        %6625 = vmatpush.msra.mxu0 %v2291
        %6626 = vmatpush.msra.mxu0 %v2286
        %6627 = vmatpush.msra.mxu0 %v2281
        %6628 = vmatpush.msra.mxu0 %v2276
        %6629 = vmatpush.msra.mxu0 %v2271
        %6630 = vmatpush.msra.mxu0 %v2266
        %6631 = vmatpush.msra.mxu0 %v2261
        %6632 = vmatpush.msra.mxu0 %v2256
        %6633 = vmatpush.msra.mxu0 %v2251
        %6634 = vmatpush.msra.mxu0 %v2246
        %6635 = vmatpush.msra.mxu0 %v2241
        %6636 = vmatpush.msra.mxu0 %v2236
        %6637 = vmatpush.msra.mxu0 %v2231
        %6638 = vmatpush.msra.mxu0 %v2226
        %6639 = vmatpush.msra.mxu0 %v2221
        %6640 = vmatpush.msra.mxu0 %v2216
        %6641 = vmatmul.f32.gmra.mxu0 %v269
        %v6642 = vpop.f32.mrf.mxu0
        %v6643 = vadd.f32 %v6623, %v6642
        %6644 = vdwg.mxu0
        %6645 = vmatpush.msra.mxu0 %v2371
        %6646 = vmatpush.msra.mxu0 %v2366
        %6647 = vmatpush.msra.mxu0 %v2361
        %6648 = vmatpush.msra.mxu0 %v2356
        %6649 = vmatpush.msra.mxu0 %v2351
        %6650 = vmatpush.msra.mxu0 %v2346
        %6651 = vmatpush.msra.mxu0 %v2341
        %6652 = vmatpush.msra.mxu0 %v2336
        %6653 = vmatpush.msra.mxu0 %v2331
        %6654 = vmatpush.msra.mxu0 %v2326
        %6655 = vmatpush.msra.mxu0 %v2321
        %6656 = vmatpush.msra.mxu0 %v2316
        %6657 = vmatpush.msra.mxu0 %v2311
        %6658 = vmatpush.msra.mxu0 %v2306
        %6659 = vmatpush.msra.mxu0 %v2301
        %6660 = vmatpush.msra.mxu0 %v2296
        %6661 = vmatmul.f32.gmra.mxu0 %v270
        %v6662 = vpop.f32.mrf.mxu0
        %v6663 = vadd.f32 %v6643, %v6662
        %6664 = vdwg.mxu0
        %6665 = vmatpush.msra.mxu0 %v2451
        %6666 = vmatpush.msra.mxu0 %v2446
        %6667 = vmatpush.msra.mxu0 %v2441
        %6668 = vmatpush.msra.mxu0 %v2436
        %6669 = vmatpush.msra.mxu0 %v2431
        %6670 = vmatpush.msra.mxu0 %v2426
        %6671 = vmatpush.msra.mxu0 %v2421
        %6672 = vmatpush.msra.mxu0 %v2416
        %6673 = vmatpush.msra.mxu0 %v2411
        %6674 = vmatpush.msra.mxu0 %v2406
        %6675 = vmatpush.msra.mxu0 %v2401
        %6676 = vmatpush.msra.mxu0 %v2396
        %6677 = vmatpush.msra.mxu0 %v2391
        %6678 = vmatpush.msra.mxu0 %v2386
        %6679 = vmatpush.msra.mxu0 %v2381
        %6680 = vmatpush.msra.mxu0 %v2376
        %6681 = vmatmul.f32.gmra.mxu0 %v271
        %v6682 = vpop.f32.mrf.mxu0
        %v6683 = vadd.f32 %v6663, %v6682
        %6684 = vdwg.mxu0
        %6685 = vmatpush.msra.mxu0 %v2531
        %6686 = vmatpush.msra.mxu0 %v2526
        %6687 = vmatpush.msra.mxu0 %v2521
        %6688 = vmatpush.msra.mxu0 %v2516
        %6689 = vmatpush.msra.mxu0 %v2511
        %6690 = vmatpush.msra.mxu0 %v2506
        %6691 = vmatpush.msra.mxu0 %v2501
        %6692 = vmatpush.msra.mxu0 %v2496
        %6693 = vmatpush.msra.mxu0 %v2491
        %6694 = vmatpush.msra.mxu0 %v2486
        %6695 = vmatpush.msra.mxu0 %v2481
        %6696 = vmatpush.msra.mxu0 %v2476
        %6697 = vmatpush.msra.mxu0 %v2471
        %6698 = vmatpush.msra.mxu0 %v2466
        %6699 = vmatpush.msra.mxu0 %v2461
        %6700 = vmatpush.msra.mxu0 %v2456
        %6701 = vmatmul.f32.gmra.mxu0 %v272
        %v6702 = vpop.f32.mrf.mxu0
        %v6703 = vadd.f32 %v6683, %v6702
        %6704 = vdwg.mxu0
        %6705 = vmatpush.msra.mxu0 %v2611
        %6706 = vmatpush.msra.mxu0 %v2606
        %6707 = vmatpush.msra.mxu0 %v2601
        %6708 = vmatpush.msra.mxu0 %v2596
        %6709 = vmatpush.msra.mxu0 %v2591
        %6710 = vmatpush.msra.mxu0 %v2586
        %6711 = vmatpush.msra.mxu0 %v2581
        %6712 = vmatpush.msra.mxu0 %v2576
        %6713 = vmatpush.msra.mxu0 %v2571
        %6714 = vmatpush.msra.mxu0 %v2566
        %6715 = vmatpush.msra.mxu0 %v2561
        %6716 = vmatpush.msra.mxu0 %v2556
        %6717 = vmatpush.msra.mxu0 %v2551
        %6718 = vmatpush.msra.mxu0 %v2546
        %6719 = vmatpush.msra.mxu0 %v2541
        %6720 = vmatpush.msra.mxu0 %v2536
        %6721 = vmatmul.f32.gmra.mxu0 %v273
        %v6722 = vpop.f32.mrf.mxu0
        %v6723 = vadd.f32 %v6703, %v6722
        %6724 = vdwg.mxu0
        %6725 = vmatpush.msra.mxu0 %v2691
        %6726 = vmatpush.msra.mxu0 %v2686
        %6727 = vmatpush.msra.mxu0 %v2681
        %6728 = vmatpush.msra.mxu0 %v2676
        %6729 = vmatpush.msra.mxu0 %v2671
        %6730 = vmatpush.msra.mxu0 %v2666
        %6731 = vmatpush.msra.mxu0 %v2661
        %6732 = vmatpush.msra.mxu0 %v2656
        %6733 = vmatpush.msra.mxu0 %v2651
        %6734 = vmatpush.msra.mxu0 %v2646
        %6735 = vmatpush.msra.mxu0 %v2641
        %6736 = vmatpush.msra.mxu0 %v2636
        %6737 = vmatpush.msra.mxu0 %v2631
        %6738 = vmatpush.msra.mxu0 %v2626
        %6739 = vmatpush.msra.mxu0 %v2621
        %6740 = vmatpush.msra.mxu0 %v2616
        %6741 = vmatmul.f32.gmra.mxu0 %v274
        %v6742 = vpop.f32.mrf.mxu0
        %v6743 = vadd.f32 %v6723, %v6742
        %6744 = vdwg.mxu0
        %6745 = vmatpush.msra.mxu0 %v2771
        %6746 = vmatpush.msra.mxu0 %v2766
        %6747 = vmatpush.msra.mxu0 %v2761
        %6748 = vmatpush.msra.mxu0 %v2756
        %6749 = vmatpush.msra.mxu0 %v2751
        %6750 = vmatpush.msra.mxu0 %v2746
        %6751 = vmatpush.msra.mxu0 %v2741
        %6752 = vmatpush.msra.mxu0 %v2736
        %6753 = vmatpush.msra.mxu0 %v2731
        %6754 = vmatpush.msra.mxu0 %v2726
        %6755 = vmatpush.msra.mxu0 %v2721
        %6756 = vmatpush.msra.mxu0 %v2716
        %6757 = vmatpush.msra.mxu0 %v2711
        %6758 = vmatpush.msra.mxu0 %v2706
        %6759 = vmatpush.msra.mxu0 %v2701
        %6760 = vmatpush.msra.mxu0 %v2696
        %6761 = vmatmul.f32.gmra.mxu0 %v275
        %v6762 = vpop.f32.mrf.mxu0
        %v6763 = vadd.f32 %v6743, %v6762
        %6764 = vdwg.mxu0
        %6765 = vmatpush.msra.mxu0 %v2851
        %6766 = vmatpush.msra.mxu0 %v2846
        %6767 = vmatpush.msra.mxu0 %v2841
        %6768 = vmatpush.msra.mxu0 %v2836
        %6769 = vmatpush.msra.mxu0 %v2831
        %6770 = vmatpush.msra.mxu0 %v2826
        %6771 = vmatpush.msra.mxu0 %v2821
        %6772 = vmatpush.msra.mxu0 %v2816
        %6773 = vmatpush.msra.mxu0 %v2811
        %6774 = vmatpush.msra.mxu0 %v2806
        %6775 = vmatpush.msra.mxu0 %v2801
        %6776 = vmatpush.msra.mxu0 %v2796
        %6777 = vmatpush.msra.mxu0 %v2791
        %6778 = vmatpush.msra.mxu0 %v2786
        %6779 = vmatpush.msra.mxu0 %v2781
        %6780 = vmatpush.msra.mxu0 %v2776
        %6781 = vmatmul.f32.gmra.mxu0 %v276
        %v6782 = vpop.f32.mrf.mxu0
        %v6783 = vadd.f32 %v6763, %v6782
        %6784 = vdwg.mxu0
        %6785 = vmatpush.msra.mxu0 %v2931
        %6786 = vmatpush.msra.mxu0 %v2926
        %6787 = vmatpush.msra.mxu0 %v2921
        %6788 = vmatpush.msra.mxu0 %v2916
        %6789 = vmatpush.msra.mxu0 %v2911
        %6790 = vmatpush.msra.mxu0 %v2906
        %6791 = vmatpush.msra.mxu0 %v2901
        %6792 = vmatpush.msra.mxu0 %v2896
        %6793 = vmatpush.msra.mxu0 %v2891
        %6794 = vmatpush.msra.mxu0 %v2886
        %6795 = vmatpush.msra.mxu0 %v2881
        %6796 = vmatpush.msra.mxu0 %v2876
        %6797 = vmatpush.msra.mxu0 %v2871
        %6798 = vmatpush.msra.mxu0 %v2866
        %6799 = vmatpush.msra.mxu0 %v2861
        %6800 = vmatpush.msra.mxu0 %v2856
        %6801 = vmatmul.f32.gmra.mxu0 %v277
        %v6802 = vpop.f32.mrf.mxu0
        %v6803 = vadd.f32 %v6783, %v6802
        %6804 = vdwg.mxu0
        %6805 = vmatpush.msra.mxu0 %v3011
        %6806 = vmatpush.msra.mxu0 %v3006
        %6807 = vmatpush.msra.mxu0 %v3001
        %6808 = vmatpush.msra.mxu0 %v2996
        %6809 = vmatpush.msra.mxu0 %v2991
        %6810 = vmatpush.msra.mxu0 %v2986
        %6811 = vmatpush.msra.mxu0 %v2981
        %6812 = vmatpush.msra.mxu0 %v2976
        %6813 = vmatpush.msra.mxu0 %v2971
        %6814 = vmatpush.msra.mxu0 %v2966
        %6815 = vmatpush.msra.mxu0 %v2961
        %6816 = vmatpush.msra.mxu0 %v2956
        %6817 = vmatpush.msra.mxu0 %v2951
        %6818 = vmatpush.msra.mxu0 %v2946
        %6819 = vmatpush.msra.mxu0 %v2941
        %6820 = vmatpush.msra.mxu0 %v2936
        %6821 = vmatmul.f32.gmra.mxu0 %v278
        %v6822 = vpop.f32.mrf.mxu0
        %v6823 = vadd.f32 %v6803, %v6822
        %6824 = vdwg.mxu0
        %6825 = vmatpush.msra.mxu0 %v3091
        %6826 = vmatpush.msra.mxu0 %v3086
        %6827 = vmatpush.msra.mxu0 %v3081
        %6828 = vmatpush.msra.mxu0 %v3076
        %6829 = vmatpush.msra.mxu0 %v3071
        %6830 = vmatpush.msra.mxu0 %v3066
        %6831 = vmatpush.msra.mxu0 %v3061
        %6832 = vmatpush.msra.mxu0 %v3056
        %6833 = vmatpush.msra.mxu0 %v3051
        %6834 = vmatpush.msra.mxu0 %v3046
        %6835 = vmatpush.msra.mxu0 %v3041
        %6836 = vmatpush.msra.mxu0 %v3036
        %6837 = vmatpush.msra.mxu0 %v3031
        %6838 = vmatpush.msra.mxu0 %v3026
        %6839 = vmatpush.msra.mxu0 %v3021
        %6840 = vmatpush.msra.mxu0 %v3016
        %6841 = vmatmul.f32.gmra.mxu0 %v279
        %v6842 = vpop.f32.mrf.mxu0
        %v6843 = vadd.f32 %v6823, %v6842
        %6844 = vdwg.mxu0
        %6845 = vmatpush.msra.mxu0 %v3171
        %6846 = vmatpush.msra.mxu0 %v3166
        %6847 = vmatpush.msra.mxu0 %v3161
        %6848 = vmatpush.msra.mxu0 %v3156
        %6849 = vmatpush.msra.mxu0 %v3151
        %6850 = vmatpush.msra.mxu0 %v3146
        %6851 = vmatpush.msra.mxu0 %v3141
        %6852 = vmatpush.msra.mxu0 %v3136
        %6853 = vmatpush.msra.mxu0 %v3131
        %6854 = vmatpush.msra.mxu0 %v3126
        %6855 = vmatpush.msra.mxu0 %v3121
        %6856 = vmatpush.msra.mxu0 %v3116
        %6857 = vmatpush.msra.mxu0 %v3111
        %6858 = vmatpush.msra.mxu0 %v3106
        %6859 = vmatpush.msra.mxu0 %v3101
        %6860 = vmatpush.msra.mxu0 %v3096
        %6861 = vmatmul.f32.gmra.mxu0 %v280
        %v6862 = vpop.f32.mrf.mxu0
        %v6863 = vadd.f32 %v6843, %v6862
        %6864 = vdwg.mxu0
        %6865 = vmatpush.msra.mxu0 %v3251
        %6866 = vmatpush.msra.mxu0 %v3246
        %6867 = vmatpush.msra.mxu0 %v3241
        %6868 = vmatpush.msra.mxu0 %v3236
        %6869 = vmatpush.msra.mxu0 %v3231
        %6870 = vmatpush.msra.mxu0 %v3226
        %6871 = vmatpush.msra.mxu0 %v3221
        %6872 = vmatpush.msra.mxu0 %v3216
        %6873 = vmatpush.msra.mxu0 %v3211
        %6874 = vmatpush.msra.mxu0 %v3206
        %6875 = vmatpush.msra.mxu0 %v3201
        %6876 = vmatpush.msra.mxu0 %v3196
        %6877 = vmatpush.msra.mxu0 %v3191
        %6878 = vmatpush.msra.mxu0 %v3186
        %6879 = vmatpush.msra.mxu0 %v3181
        %6880 = vmatpush.msra.mxu0 %v3176
        %6881 = vmatmul.f32.gmra.mxu0 %v281
        %v6882 = vpop.f32.mrf.mxu0
        %v6883 = vadd.f32 %v6863, %v6882
        %6884 = vdwg.mxu0
        %6885 = vmatpush.msra.mxu0 %v3331
        %6886 = vmatpush.msra.mxu0 %v3326
        %6887 = vmatpush.msra.mxu0 %v3321
        %6888 = vmatpush.msra.mxu0 %v3316
        %6889 = vmatpush.msra.mxu0 %v3311
        %6890 = vmatpush.msra.mxu0 %v3306
        %6891 = vmatpush.msra.mxu0 %v3301
        %6892 = vmatpush.msra.mxu0 %v3296
        %6893 = vmatpush.msra.mxu0 %v3291
        %6894 = vmatpush.msra.mxu0 %v3286
        %6895 = vmatpush.msra.mxu0 %v3281
        %6896 = vmatpush.msra.mxu0 %v3276
        %6897 = vmatpush.msra.mxu0 %v3271
        %6898 = vmatpush.msra.mxu0 %v3266
        %6899 = vmatpush.msra.mxu0 %v3261
        %6900 = vmatpush.msra.mxu0 %v3256
        %6901 = vmatmul.f32.gmra.mxu0 %v282
        %v6902 = vpop.f32.mrf.mxu0
        %v6903 = vadd.f32 %v6883, %v6902
        %6904 = vdwg.mxu0
        %6905 = vmatpush.msra.mxu0 %v3411
        %6906 = vmatpush.msra.mxu0 %v3406
        %6907 = vmatpush.msra.mxu0 %v3401
        %6908 = vmatpush.msra.mxu0 %v3396
        %6909 = vmatpush.msra.mxu0 %v3391
        %6910 = vmatpush.msra.mxu0 %v3386
        %6911 = vmatpush.msra.mxu0 %v3381
        %6912 = vmatpush.msra.mxu0 %v3376
        %6913 = vmatpush.msra.mxu0 %v3371
        %6914 = vmatpush.msra.mxu0 %v3366
        %6915 = vmatpush.msra.mxu0 %v3361
        %6916 = vmatpush.msra.mxu0 %v3356
        %6917 = vmatpush.msra.mxu0 %v3351
        %6918 = vmatpush.msra.mxu0 %v3346
        %6919 = vmatpush.msra.mxu0 %v3341
        %6920 = vmatpush.msra.mxu0 %v3336
        %6921 = vmatmul.f32.gmra.mxu0 %v283
        %v6922 = vpop.f32.mrf.mxu0
        %v6923 = vadd.f32 %v6903, %v6922
        %6924 = vdwg.mxu0
        %6925 = vmatpush.msra.mxu0 %v3491
        %6926 = vmatpush.msra.mxu0 %v3486
        %6927 = vmatpush.msra.mxu0 %v3481
        %6928 = vmatpush.msra.mxu0 %v3476
        %6929 = vmatpush.msra.mxu0 %v3471
        %6930 = vmatpush.msra.mxu0 %v3466
        %6931 = vmatpush.msra.mxu0 %v3461
        %6932 = vmatpush.msra.mxu0 %v3456
        %6933 = vmatpush.msra.mxu0 %v3451
        %6934 = vmatpush.msra.mxu0 %v3446
        %6935 = vmatpush.msra.mxu0 %v3441
        %6936 = vmatpush.msra.mxu0 %v3436
        %6937 = vmatpush.msra.mxu0 %v3431
        %6938 = vmatpush.msra.mxu0 %v3426
        %6939 = vmatpush.msra.mxu0 %v3421
        %6940 = vmatpush.msra.mxu0 %v3416
        %6941 = vmatmul.f32.gmra.mxu0 %v284
        %v6942 = vpop.f32.mrf.mxu0
        %v6943 = vadd.f32 %v6923, %v6942
        %6944 = vdwg.mxu0
        %6945 = vmatpush.msra.mxu0 %v3571
        %6946 = vmatpush.msra.mxu0 %v3566
        %6947 = vmatpush.msra.mxu0 %v3561
        %6948 = vmatpush.msra.mxu0 %v3556
        %6949 = vmatpush.msra.mxu0 %v3551
        %6950 = vmatpush.msra.mxu0 %v3546
        %6951 = vmatpush.msra.mxu0 %v3541
        %6952 = vmatpush.msra.mxu0 %v3536
        %6953 = vmatpush.msra.mxu0 %v3531
        %6954 = vmatpush.msra.mxu0 %v3526
        %6955 = vmatpush.msra.mxu0 %v3521
        %6956 = vmatpush.msra.mxu0 %v3516
        %6957 = vmatpush.msra.mxu0 %v3511
        %6958 = vmatpush.msra.mxu0 %v3506
        %6959 = vmatpush.msra.mxu0 %v3501
        %6960 = vmatpush.msra.mxu0 %v3496
        %6961 = vmatmul.f32.gmra.mxu0 %v285
        %v6962 = vpop.f32.mrf.mxu0
        %v6963 = vadd.f32 %v6943, %v6962
        %6964 = vdwg.mxu0
        %6965 = vmatpush.msra.mxu0 %v3651
        %6966 = vmatpush.msra.mxu0 %v3646
        %6967 = vmatpush.msra.mxu0 %v3641
        %6968 = vmatpush.msra.mxu0 %v3636
        %6969 = vmatpush.msra.mxu0 %v3631
        %6970 = vmatpush.msra.mxu0 %v3626
        %6971 = vmatpush.msra.mxu0 %v3621
        %6972 = vmatpush.msra.mxu0 %v3616
        %6973 = vmatpush.msra.mxu0 %v3611
        %6974 = vmatpush.msra.mxu0 %v3606
        %6975 = vmatpush.msra.mxu0 %v3601
        %6976 = vmatpush.msra.mxu0 %v3596
        %6977 = vmatpush.msra.mxu0 %v3591
        %6978 = vmatpush.msra.mxu0 %v3586
        %6979 = vmatpush.msra.mxu0 %v3581
        %6980 = vmatpush.msra.mxu0 %v3576
        %6981 = vmatmul.f32.gmra.mxu0 %v286
        %v6982 = vpop.f32.mrf.mxu0
        %v6983 = vadd.f32 %v6963, %v6982
        %6984 = vdwg.mxu0
        %6985 = vmatpush.msra.mxu0 %v3731
        %6986 = vmatpush.msra.mxu0 %v3726
        %6987 = vmatpush.msra.mxu0 %v3721
        %6988 = vmatpush.msra.mxu0 %v3716
        %6989 = vmatpush.msra.mxu0 %v3711
        %6990 = vmatpush.msra.mxu0 %v3706
        %6991 = vmatpush.msra.mxu0 %v3701
        %6992 = vmatpush.msra.mxu0 %v3696
        %6993 = vmatpush.msra.mxu0 %v3691
        %6994 = vmatpush.msra.mxu0 %v3686
        %6995 = vmatpush.msra.mxu0 %v3681
        %6996 = vmatpush.msra.mxu0 %v3676
        %6997 = vmatpush.msra.mxu0 %v3671
        %6998 = vmatpush.msra.mxu0 %v3666
        %6999 = vmatpush.msra.mxu0 %v3661
        %7000 = vmatpush.msra.mxu0 %v3656
        %7001 = vmatmul.f32.gmra.mxu0 %v287
        %v7002 = vpop.f32.mrf.mxu0
        %v7003 = vadd.f32 %v6983, %v7002
        %7004 = vdwg.mxu0
        %7005 = vmatpush.msra.mxu0 %v3811
        %7006 = vmatpush.msra.mxu0 %v3806
        %7007 = vmatpush.msra.mxu0 %v3801
        %7008 = vmatpush.msra.mxu0 %v3796
        %7009 = vmatpush.msra.mxu0 %v3791
        %7010 = vmatpush.msra.mxu0 %v3786
        %7011 = vmatpush.msra.mxu0 %v3781
        %7012 = vmatpush.msra.mxu0 %v3776
        %7013 = vmatpush.msra.mxu0 %v3771
        %7014 = vmatpush.msra.mxu0 %v3766
        %7015 = vmatpush.msra.mxu0 %v3761
        %7016 = vmatpush.msra.mxu0 %v3756
        %7017 = vmatpush.msra.mxu0 %v3751
        %7018 = vmatpush.msra.mxu0 %v3746
        %7019 = vmatpush.msra.mxu0 %v3741
        %7020 = vmatpush.msra.mxu0 %v3736
        %7021 = vmatmul.f32.gmra.mxu0 %v288
        %v7022 = vpop.f32.mrf.mxu0
        %v7023 = vadd.f32 %v7003, %v7022
        %7024 = vdwg.mxu0
        %7025 = vmatpush.msra.mxu0 %v3891
        %7026 = vmatpush.msra.mxu0 %v3886
        %7027 = vmatpush.msra.mxu0 %v3881
        %7028 = vmatpush.msra.mxu0 %v3876
        %7029 = vmatpush.msra.mxu0 %v3871
        %7030 = vmatpush.msra.mxu0 %v3866
        %7031 = vmatpush.msra.mxu0 %v3861
        %7032 = vmatpush.msra.mxu0 %v3856
        %7033 = vmatpush.msra.mxu0 %v3851
        %7034 = vmatpush.msra.mxu0 %v3846
        %7035 = vmatpush.msra.mxu0 %v3841
        %7036 = vmatpush.msra.mxu0 %v3836
        %7037 = vmatpush.msra.mxu0 %v3831
        %7038 = vmatpush.msra.mxu0 %v3826
        %7039 = vmatpush.msra.mxu0 %v3821
        %7040 = vmatpush.msra.mxu0 %v3816
        %7041 = vmatmul.f32.gmra.mxu0 %v289
        %v7042 = vpop.f32.mrf.mxu0
        %v7043 = vadd.f32 %v7023, %v7042
        %7044 = vdwg.mxu0
        %7045 = vmatpush.msra.mxu0 %v3971
        %7046 = vmatpush.msra.mxu0 %v3966
        %7047 = vmatpush.msra.mxu0 %v3961
        %7048 = vmatpush.msra.mxu0 %v3956
        %7049 = vmatpush.msra.mxu0 %v3951
        %7050 = vmatpush.msra.mxu0 %v3946
        %7051 = vmatpush.msra.mxu0 %v3941
        %7052 = vmatpush.msra.mxu0 %v3936
        %7053 = vmatpush.msra.mxu0 %v3931
        %7054 = vmatpush.msra.mxu0 %v3926
        %7055 = vmatpush.msra.mxu0 %v3921
        %7056 = vmatpush.msra.mxu0 %v3916
        %7057 = vmatpush.msra.mxu0 %v3911
        %7058 = vmatpush.msra.mxu0 %v3906
        %7059 = vmatpush.msra.mxu0 %v3901
        %7060 = vmatpush.msra.mxu0 %v3896
        %7061 = vmatmul.f32.gmra.mxu0 %v290
        %v7062 = vpop.f32.mrf.mxu0
        %v7063 = vadd.f32 %v7043, %v7062
        %7064 = vdwg.mxu0
        %7065 = vmatpush.msra.mxu0 %v4051
        %7066 = vmatpush.msra.mxu0 %v4046
        %7067 = vmatpush.msra.mxu0 %v4041
        %7068 = vmatpush.msra.mxu0 %v4036
        %7069 = vmatpush.msra.mxu0 %v4031
        %7070 = vmatpush.msra.mxu0 %v4026
        %7071 = vmatpush.msra.mxu0 %v4021
        %7072 = vmatpush.msra.mxu0 %v4016
        %7073 = vmatpush.msra.mxu0 %v4011
        %7074 = vmatpush.msra.mxu0 %v4006
        %7075 = vmatpush.msra.mxu0 %v4001
        %7076 = vmatpush.msra.mxu0 %v3996
        %7077 = vmatpush.msra.mxu0 %v3991
        %7078 = vmatpush.msra.mxu0 %v3986
        %7079 = vmatpush.msra.mxu0 %v3981
        %7080 = vmatpush.msra.mxu0 %v3976
        %7081 = vmatmul.f32.gmra.mxu0 %v291
        %v7082 = vpop.f32.mrf.mxu0
        %v7083 = vadd.f32 %v7063, %v7082
        %7084 = vdwg.mxu0
        %7085 = vmatpush.msra.mxu0 %v4131
        %7086 = vmatpush.msra.mxu0 %v4126
        %7087 = vmatpush.msra.mxu0 %v4121
        %7088 = vmatpush.msra.mxu0 %v4116
        %7089 = vmatpush.msra.mxu0 %v4111
        %7090 = vmatpush.msra.mxu0 %v4106
        %7091 = vmatpush.msra.mxu0 %v4101
        %7092 = vmatpush.msra.mxu0 %v4096
        %7093 = vmatpush.msra.mxu0 %v4091
        %7094 = vmatpush.msra.mxu0 %v4086
        %7095 = vmatpush.msra.mxu0 %v4081
        %7096 = vmatpush.msra.mxu0 %v4076
        %7097 = vmatpush.msra.mxu0 %v4071
        %7098 = vmatpush.msra.mxu0 %v4066
        %7099 = vmatpush.msra.mxu0 %v4061
        %7100 = vmatpush.msra.mxu0 %v4056
        %7101 = vmatmul.f32.gmra.mxu0 %v292
        %v7102 = vpop.f32.mrf.mxu0
        %v7103 = vadd.f32 %v7083, %v7102
        %7104 = vdwg.mxu0
        %7105 = vmatpush.msra.mxu0 0.0
        %7106 = vmatpush.msra.mxu0 0.0
        %7107 = vmatpush.msra.mxu0 0.0
        %7108 = vmatpush.msra.mxu0 0.0
        %7109 = vmatpush.msra.mxu0 0.0
        %7110 = vmatpush.msra.mxu0 0.0
        %7111 = vmatpush.msra.mxu0 0.0
        %7112 = vmatpush.msra.mxu0 0.0
        %7113 = vmatpush.msra.mxu0 0.0
        %7114 = vmatpush.msra.mxu0 %v4166
        %7115 = vmatpush.msra.mxu0 %v4161
        %7116 = vmatpush.msra.mxu0 %v4156
        %7117 = vmatpush.msra.mxu0 %v4151
        %7118 = vmatpush.msra.mxu0 %v4146
        %7119 = vmatpush.msra.mxu0 %v4141
        %7120 = vmatpush.msra.mxu0 %v4136
        %7121 = vmatmul.f32.gmra.mxu0 %v4183
        %v7122 = vpop.f32.mrf.mxu0
        %v7123 = vadd.f32 %v7103, %v7122
        %7124 = vdwg.mxu0
        %7125 = vmatpush.msra.mxu0 %v372
        %7126 = vmatpush.msra.mxu0 %v367
        %7127 = vmatpush.msra.mxu0 %v362
        %7128 = vmatpush.msra.mxu0 %v357
        %7129 = vmatpush.msra.mxu0 %v352
        %7130 = vmatpush.msra.mxu0 %v347
        %7131 = vmatpush.msra.mxu0 %v342
        %7132 = vmatpush.msra.mxu0 %v337
        %7133 = vmatpush.msra.mxu0 %v332
        %7134 = vmatpush.msra.mxu0 %v327
        %7135 = vmatpush.msra.mxu0 %v322
        %7136 = vmatpush.msra.mxu0 %v317
        %7137 = vmatpush.msra.mxu0 %v312
        %7138 = vmatpush.msra.mxu0 %v307
        %7139 = vmatpush.msra.mxu0 %v302
        %7140 = vmatpush.msra.mxu0 %v297
        %7141 = vmatmul.f32.gmra.mxu0 %v245
        %v7142 = vpop.f32.mrf.mxu0
        %v7143 = vadd.f32 %v4174, %v7142
        %7144 = vdwg.mxu0
        %7145 = vmatpush.msra.mxu0 %v452
        %7146 = vmatpush.msra.mxu0 %v447
        %7147 = vmatpush.msra.mxu0 %v442
        %7148 = vmatpush.msra.mxu0 %v437
        %7149 = vmatpush.msra.mxu0 %v432
        %7150 = vmatpush.msra.mxu0 %v427
        %7151 = vmatpush.msra.mxu0 %v422
        %7152 = vmatpush.msra.mxu0 %v417
        %7153 = vmatpush.msra.mxu0 %v412
        %7154 = vmatpush.msra.mxu0 %v407
        %7155 = vmatpush.msra.mxu0 %v402
        %7156 = vmatpush.msra.mxu0 %v397
        %7157 = vmatpush.msra.mxu0 %v392
        %7158 = vmatpush.msra.mxu0 %v387
        %7159 = vmatpush.msra.mxu0 %v382
        %7160 = vmatpush.msra.mxu0 %v377
        %7161 = vmatmul.f32.gmra.mxu0 %v246
        %v7162 = vpop.f32.mrf.mxu0
        %v7163 = vadd.f32 %v7143, %v7162
        %7164 = vdwg.mxu0
        %7165 = vmatpush.msra.mxu0 %v532
        %7166 = vmatpush.msra.mxu0 %v527
        %7167 = vmatpush.msra.mxu0 %v522
        %7168 = vmatpush.msra.mxu0 %v517
        %7169 = vmatpush.msra.mxu0 %v512
        %7170 = vmatpush.msra.mxu0 %v507
        %7171 = vmatpush.msra.mxu0 %v502
        %7172 = vmatpush.msra.mxu0 %v497
        %7173 = vmatpush.msra.mxu0 %v492
        %7174 = vmatpush.msra.mxu0 %v487
        %7175 = vmatpush.msra.mxu0 %v482
        %7176 = vmatpush.msra.mxu0 %v477
        %7177 = vmatpush.msra.mxu0 %v472
        %7178 = vmatpush.msra.mxu0 %v467
        %7179 = vmatpush.msra.mxu0 %v462
        %7180 = vmatpush.msra.mxu0 %v457
        %7181 = vmatmul.f32.gmra.mxu0 %v247
        %v7182 = vpop.f32.mrf.mxu0
        %v7183 = vadd.f32 %v7163, %v7182
        %7184 = vdwg.mxu0
        %7185 = vmatpush.msra.mxu0 %v612
        %7186 = vmatpush.msra.mxu0 %v607
        %7187 = vmatpush.msra.mxu0 %v602
        %7188 = vmatpush.msra.mxu0 %v597
        %7189 = vmatpush.msra.mxu0 %v592
        %7190 = vmatpush.msra.mxu0 %v587
        %7191 = vmatpush.msra.mxu0 %v582
        %7192 = vmatpush.msra.mxu0 %v577
        %7193 = vmatpush.msra.mxu0 %v572
        %7194 = vmatpush.msra.mxu0 %v567
        %7195 = vmatpush.msra.mxu0 %v562
        %7196 = vmatpush.msra.mxu0 %v557
        %7197 = vmatpush.msra.mxu0 %v552
        %7198 = vmatpush.msra.mxu0 %v547
        %7199 = vmatpush.msra.mxu0 %v542
        %7200 = vmatpush.msra.mxu0 %v537
        %7201 = vmatmul.f32.gmra.mxu0 %v248
        %v7202 = vpop.f32.mrf.mxu0
        %v7203 = vadd.f32 %v7183, %v7202
        %7204 = vdwg.mxu0
        %7205 = vmatpush.msra.mxu0 %v692
        %7206 = vmatpush.msra.mxu0 %v687
        %7207 = vmatpush.msra.mxu0 %v682
        %7208 = vmatpush.msra.mxu0 %v677
        %7209 = vmatpush.msra.mxu0 %v672
        %7210 = vmatpush.msra.mxu0 %v667
        %7211 = vmatpush.msra.mxu0 %v662
        %7212 = vmatpush.msra.mxu0 %v657
        %7213 = vmatpush.msra.mxu0 %v652
        %7214 = vmatpush.msra.mxu0 %v647
        %7215 = vmatpush.msra.mxu0 %v642
        %7216 = vmatpush.msra.mxu0 %v637
        %7217 = vmatpush.msra.mxu0 %v632
        %7218 = vmatpush.msra.mxu0 %v627
        %7219 = vmatpush.msra.mxu0 %v622
        %7220 = vmatpush.msra.mxu0 %v617
        %7221 = vmatmul.f32.gmra.mxu0 %v249
        %v7222 = vpop.f32.mrf.mxu0
        %v7223 = vadd.f32 %v7203, %v7222
        %7224 = vdwg.mxu0
        %7225 = vmatpush.msra.mxu0 %v772
        %7226 = vmatpush.msra.mxu0 %v767
        %7227 = vmatpush.msra.mxu0 %v762
        %7228 = vmatpush.msra.mxu0 %v757
        %7229 = vmatpush.msra.mxu0 %v752
        %7230 = vmatpush.msra.mxu0 %v747
        %7231 = vmatpush.msra.mxu0 %v742
        %7232 = vmatpush.msra.mxu0 %v737
        %7233 = vmatpush.msra.mxu0 %v732
        %7234 = vmatpush.msra.mxu0 %v727
        %7235 = vmatpush.msra.mxu0 %v722
        %7236 = vmatpush.msra.mxu0 %v717
        %7237 = vmatpush.msra.mxu0 %v712
        %7238 = vmatpush.msra.mxu0 %v707
        %7239 = vmatpush.msra.mxu0 %v702
        %7240 = vmatpush.msra.mxu0 %v697
        %7241 = vmatmul.f32.gmra.mxu0 %v250
        %v7242 = vpop.f32.mrf.mxu0
        %v7243 = vadd.f32 %v7223, %v7242
        %7244 = vdwg.mxu0
        %7245 = vmatpush.msra.mxu0 %v852
        %7246 = vmatpush.msra.mxu0 %v847
        %7247 = vmatpush.msra.mxu0 %v842
        %7248 = vmatpush.msra.mxu0 %v837
        %7249 = vmatpush.msra.mxu0 %v832
        %7250 = vmatpush.msra.mxu0 %v827
        %7251 = vmatpush.msra.mxu0 %v822
        %7252 = vmatpush.msra.mxu0 %v817
        %7253 = vmatpush.msra.mxu0 %v812
        %7254 = vmatpush.msra.mxu0 %v807
        %7255 = vmatpush.msra.mxu0 %v802
        %7256 = vmatpush.msra.mxu0 %v797
        %7257 = vmatpush.msra.mxu0 %v792
        %7258 = vmatpush.msra.mxu0 %v787
        %7259 = vmatpush.msra.mxu0 %v782
        %7260 = vmatpush.msra.mxu0 %v777
        %7261 = vmatmul.f32.gmra.mxu0 %v251
        %v7262 = vpop.f32.mrf.mxu0
        %v7263 = vadd.f32 %v7243, %v7262
        %7264 = vdwg.mxu0
        %7265 = vmatpush.msra.mxu0 %v932
        %7266 = vmatpush.msra.mxu0 %v927
        %7267 = vmatpush.msra.mxu0 %v922
        %7268 = vmatpush.msra.mxu0 %v917
        %7269 = vmatpush.msra.mxu0 %v912
        %7270 = vmatpush.msra.mxu0 %v907
        %7271 = vmatpush.msra.mxu0 %v902
        %7272 = vmatpush.msra.mxu0 %v897
        %7273 = vmatpush.msra.mxu0 %v892
        %7274 = vmatpush.msra.mxu0 %v887
        %7275 = vmatpush.msra.mxu0 %v882
        %7276 = vmatpush.msra.mxu0 %v877
        %7277 = vmatpush.msra.mxu0 %v872
        %7278 = vmatpush.msra.mxu0 %v867
        %7279 = vmatpush.msra.mxu0 %v862
        %7280 = vmatpush.msra.mxu0 %v857
        %7281 = vmatmul.f32.gmra.mxu0 %v252
        %v7282 = vpop.f32.mrf.mxu0
        %v7283 = vadd.f32 %v7263, %v7282
        %7284 = vdwg.mxu0
        %7285 = vmatpush.msra.mxu0 %v1012
        %7286 = vmatpush.msra.mxu0 %v1007
        %7287 = vmatpush.msra.mxu0 %v1002
        %7288 = vmatpush.msra.mxu0 %v997
        %7289 = vmatpush.msra.mxu0 %v992
        %7290 = vmatpush.msra.mxu0 %v987
        %7291 = vmatpush.msra.mxu0 %v982
        %7292 = vmatpush.msra.mxu0 %v977
        %7293 = vmatpush.msra.mxu0 %v972
        %7294 = vmatpush.msra.mxu0 %v967
        %7295 = vmatpush.msra.mxu0 %v962
        %7296 = vmatpush.msra.mxu0 %v957
        %7297 = vmatpush.msra.mxu0 %v952
        %7298 = vmatpush.msra.mxu0 %v947
        %7299 = vmatpush.msra.mxu0 %v942
        %7300 = vmatpush.msra.mxu0 %v937
        %7301 = vmatmul.f32.gmra.mxu0 %v253
        %v7302 = vpop.f32.mrf.mxu0
        %v7303 = vadd.f32 %v7283, %v7302
        %7304 = vdwg.mxu0
        %7305 = vmatpush.msra.mxu0 %v1092
        %7306 = vmatpush.msra.mxu0 %v1087
        %7307 = vmatpush.msra.mxu0 %v1082
        %7308 = vmatpush.msra.mxu0 %v1077
        %7309 = vmatpush.msra.mxu0 %v1072
        %7310 = vmatpush.msra.mxu0 %v1067
        %7311 = vmatpush.msra.mxu0 %v1062
        %7312 = vmatpush.msra.mxu0 %v1057
        %7313 = vmatpush.msra.mxu0 %v1052
        %7314 = vmatpush.msra.mxu0 %v1047
        %7315 = vmatpush.msra.mxu0 %v1042
        %7316 = vmatpush.msra.mxu0 %v1037
        %7317 = vmatpush.msra.mxu0 %v1032
        %7318 = vmatpush.msra.mxu0 %v1027
        %7319 = vmatpush.msra.mxu0 %v1022
        %7320 = vmatpush.msra.mxu0 %v1017
        %7321 = vmatmul.f32.gmra.mxu0 %v254
        %v7322 = vpop.f32.mrf.mxu0
        %v7323 = vadd.f32 %v7303, %v7322
        %7324 = vdwg.mxu0
        %7325 = vmatpush.msra.mxu0 %v1172
        %7326 = vmatpush.msra.mxu0 %v1167
        %7327 = vmatpush.msra.mxu0 %v1162
        %7328 = vmatpush.msra.mxu0 %v1157
        %7329 = vmatpush.msra.mxu0 %v1152
        %7330 = vmatpush.msra.mxu0 %v1147
        %7331 = vmatpush.msra.mxu0 %v1142
        %7332 = vmatpush.msra.mxu0 %v1137
        %7333 = vmatpush.msra.mxu0 %v1132
        %7334 = vmatpush.msra.mxu0 %v1127
        %7335 = vmatpush.msra.mxu0 %v1122
        %7336 = vmatpush.msra.mxu0 %v1117
        %7337 = vmatpush.msra.mxu0 %v1112
        %7338 = vmatpush.msra.mxu0 %v1107
        %7339 = vmatpush.msra.mxu0 %v1102
        %7340 = vmatpush.msra.mxu0 %v1097
        %7341 = vmatmul.f32.gmra.mxu0 %v255
        %v7342 = vpop.f32.mrf.mxu0
        %v7343 = vadd.f32 %v7323, %v7342
        %7344 = vdwg.mxu0
        %7345 = vmatpush.msra.mxu0 %v1252
        %7346 = vmatpush.msra.mxu0 %v1247
        %7347 = vmatpush.msra.mxu0 %v1242
        %7348 = vmatpush.msra.mxu0 %v1237
        %7349 = vmatpush.msra.mxu0 %v1232
        %7350 = vmatpush.msra.mxu0 %v1227
        %7351 = vmatpush.msra.mxu0 %v1222
        %7352 = vmatpush.msra.mxu0 %v1217
        %7353 = vmatpush.msra.mxu0 %v1212
        %7354 = vmatpush.msra.mxu0 %v1207
        %7355 = vmatpush.msra.mxu0 %v1202
        %7356 = vmatpush.msra.mxu0 %v1197
        %7357 = vmatpush.msra.mxu0 %v1192
        %7358 = vmatpush.msra.mxu0 %v1187
        %7359 = vmatpush.msra.mxu0 %v1182
        %7360 = vmatpush.msra.mxu0 %v1177
        %7361 = vmatmul.f32.gmra.mxu0 %v256
        %v7362 = vpop.f32.mrf.mxu0
        %v7363 = vadd.f32 %v7343, %v7362
        %7364 = vdwg.mxu0
        %7365 = vmatpush.msra.mxu0 %v1332
        %7366 = vmatpush.msra.mxu0 %v1327
        %7367 = vmatpush.msra.mxu0 %v1322
        %7368 = vmatpush.msra.mxu0 %v1317
        %7369 = vmatpush.msra.mxu0 %v1312
        %7370 = vmatpush.msra.mxu0 %v1307
        %7371 = vmatpush.msra.mxu0 %v1302
        %7372 = vmatpush.msra.mxu0 %v1297
        %7373 = vmatpush.msra.mxu0 %v1292
        %7374 = vmatpush.msra.mxu0 %v1287
        %7375 = vmatpush.msra.mxu0 %v1282
        %7376 = vmatpush.msra.mxu0 %v1277
        %7377 = vmatpush.msra.mxu0 %v1272
        %7378 = vmatpush.msra.mxu0 %v1267
        %7379 = vmatpush.msra.mxu0 %v1262
        %7380 = vmatpush.msra.mxu0 %v1257
        %7381 = vmatmul.f32.gmra.mxu0 %v257
        %v7382 = vpop.f32.mrf.mxu0
        %v7383 = vadd.f32 %v7363, %v7382
        %7384 = vdwg.mxu0
        %7385 = vmatpush.msra.mxu0 %v1412
        %7386 = vmatpush.msra.mxu0 %v1407
        %7387 = vmatpush.msra.mxu0 %v1402
        %7388 = vmatpush.msra.mxu0 %v1397
        %7389 = vmatpush.msra.mxu0 %v1392
        %7390 = vmatpush.msra.mxu0 %v1387
        %7391 = vmatpush.msra.mxu0 %v1382
        %7392 = vmatpush.msra.mxu0 %v1377
        %7393 = vmatpush.msra.mxu0 %v1372
        %7394 = vmatpush.msra.mxu0 %v1367
        %7395 = vmatpush.msra.mxu0 %v1362
        %7396 = vmatpush.msra.mxu0 %v1357
        %7397 = vmatpush.msra.mxu0 %v1352
        %7398 = vmatpush.msra.mxu0 %v1347
        %7399 = vmatpush.msra.mxu0 %v1342
        %7400 = vmatpush.msra.mxu0 %v1337
        %7401 = vmatmul.f32.gmra.mxu0 %v258
        %v7402 = vpop.f32.mrf.mxu0
        %v7403 = vadd.f32 %v7383, %v7402
        %7404 = vdwg.mxu0
        %7405 = vmatpush.msra.mxu0 %v1492
        %7406 = vmatpush.msra.mxu0 %v1487
        %7407 = vmatpush.msra.mxu0 %v1482
        %7408 = vmatpush.msra.mxu0 %v1477
        %7409 = vmatpush.msra.mxu0 %v1472
        %7410 = vmatpush.msra.mxu0 %v1467
        %7411 = vmatpush.msra.mxu0 %v1462
        %7412 = vmatpush.msra.mxu0 %v1457
        %7413 = vmatpush.msra.mxu0 %v1452
        %7414 = vmatpush.msra.mxu0 %v1447
        %7415 = vmatpush.msra.mxu0 %v1442
        %7416 = vmatpush.msra.mxu0 %v1437
        %7417 = vmatpush.msra.mxu0 %v1432
        %7418 = vmatpush.msra.mxu0 %v1427
        %7419 = vmatpush.msra.mxu0 %v1422
        %7420 = vmatpush.msra.mxu0 %v1417
        %7421 = vmatmul.f32.gmra.mxu0 %v259
        %v7422 = vpop.f32.mrf.mxu0
        %v7423 = vadd.f32 %v7403, %v7422
        %7424 = vdwg.mxu0
        %7425 = vmatpush.msra.mxu0 %v1572
        %7426 = vmatpush.msra.mxu0 %v1567
        %7427 = vmatpush.msra.mxu0 %v1562
        %7428 = vmatpush.msra.mxu0 %v1557
        %7429 = vmatpush.msra.mxu0 %v1552
        %7430 = vmatpush.msra.mxu0 %v1547
        %7431 = vmatpush.msra.mxu0 %v1542
        %7432 = vmatpush.msra.mxu0 %v1537
        %7433 = vmatpush.msra.mxu0 %v1532
        %7434 = vmatpush.msra.mxu0 %v1527
        %7435 = vmatpush.msra.mxu0 %v1522
        %7436 = vmatpush.msra.mxu0 %v1517
        %7437 = vmatpush.msra.mxu0 %v1512
        %7438 = vmatpush.msra.mxu0 %v1507
        %7439 = vmatpush.msra.mxu0 %v1502
        %7440 = vmatpush.msra.mxu0 %v1497
        %7441 = vmatmul.f32.gmra.mxu0 %v260
        %v7442 = vpop.f32.mrf.mxu0
        %v7443 = vadd.f32 %v7423, %v7442
        %7444 = vdwg.mxu0
        %7445 = vmatpush.msra.mxu0 %v1652
        %7446 = vmatpush.msra.mxu0 %v1647
        %7447 = vmatpush.msra.mxu0 %v1642
        %7448 = vmatpush.msra.mxu0 %v1637
        %7449 = vmatpush.msra.mxu0 %v1632
        %7450 = vmatpush.msra.mxu0 %v1627
        %7451 = vmatpush.msra.mxu0 %v1622
        %7452 = vmatpush.msra.mxu0 %v1617
        %7453 = vmatpush.msra.mxu0 %v1612
        %7454 = vmatpush.msra.mxu0 %v1607
        %7455 = vmatpush.msra.mxu0 %v1602
        %7456 = vmatpush.msra.mxu0 %v1597
        %7457 = vmatpush.msra.mxu0 %v1592
        %7458 = vmatpush.msra.mxu0 %v1587
        %7459 = vmatpush.msra.mxu0 %v1582
        %7460 = vmatpush.msra.mxu0 %v1577
        %7461 = vmatmul.f32.gmra.mxu0 %v261
        %v7462 = vpop.f32.mrf.mxu0
        %v7463 = vadd.f32 %v7443, %v7462
        %7464 = vdwg.mxu0
        %7465 = vmatpush.msra.mxu0 %v1732
        %7466 = vmatpush.msra.mxu0 %v1727
        %7467 = vmatpush.msra.mxu0 %v1722
        %7468 = vmatpush.msra.mxu0 %v1717
        %7469 = vmatpush.msra.mxu0 %v1712
        %7470 = vmatpush.msra.mxu0 %v1707
        %7471 = vmatpush.msra.mxu0 %v1702
        %7472 = vmatpush.msra.mxu0 %v1697
        %7473 = vmatpush.msra.mxu0 %v1692
        %7474 = vmatpush.msra.mxu0 %v1687
        %7475 = vmatpush.msra.mxu0 %v1682
        %7476 = vmatpush.msra.mxu0 %v1677
        %7477 = vmatpush.msra.mxu0 %v1672
        %7478 = vmatpush.msra.mxu0 %v1667
        %7479 = vmatpush.msra.mxu0 %v1662
        %7480 = vmatpush.msra.mxu0 %v1657
        %7481 = vmatmul.f32.gmra.mxu0 %v262
        %v7482 = vpop.f32.mrf.mxu0
        %v7483 = vadd.f32 %v7463, %v7482
        %7484 = vdwg.mxu0
        %7485 = vmatpush.msra.mxu0 %v1812
        %7486 = vmatpush.msra.mxu0 %v1807
        %7487 = vmatpush.msra.mxu0 %v1802
        %7488 = vmatpush.msra.mxu0 %v1797
        %7489 = vmatpush.msra.mxu0 %v1792
        %7490 = vmatpush.msra.mxu0 %v1787
        %7491 = vmatpush.msra.mxu0 %v1782
        %7492 = vmatpush.msra.mxu0 %v1777
        %7493 = vmatpush.msra.mxu0 %v1772
        %7494 = vmatpush.msra.mxu0 %v1767
        %7495 = vmatpush.msra.mxu0 %v1762
        %7496 = vmatpush.msra.mxu0 %v1757
        %7497 = vmatpush.msra.mxu0 %v1752
        %7498 = vmatpush.msra.mxu0 %v1747
        %7499 = vmatpush.msra.mxu0 %v1742
        %7500 = vmatpush.msra.mxu0 %v1737
        %7501 = vmatmul.f32.gmra.mxu0 %v263
        %v7502 = vpop.f32.mrf.mxu0
        %v7503 = vadd.f32 %v7483, %v7502
        %7504 = vdwg.mxu0
        %7505 = vmatpush.msra.mxu0 %v1892
        %7506 = vmatpush.msra.mxu0 %v1887
        %7507 = vmatpush.msra.mxu0 %v1882
        %7508 = vmatpush.msra.mxu0 %v1877
        %7509 = vmatpush.msra.mxu0 %v1872
        %7510 = vmatpush.msra.mxu0 %v1867
        %7511 = vmatpush.msra.mxu0 %v1862
        %7512 = vmatpush.msra.mxu0 %v1857
        %7513 = vmatpush.msra.mxu0 %v1852
        %7514 = vmatpush.msra.mxu0 %v1847
        %7515 = vmatpush.msra.mxu0 %v1842
        %7516 = vmatpush.msra.mxu0 %v1837
        %7517 = vmatpush.msra.mxu0 %v1832
        %7518 = vmatpush.msra.mxu0 %v1827
        %7519 = vmatpush.msra.mxu0 %v1822
        %7520 = vmatpush.msra.mxu0 %v1817
        %7521 = vmatmul.f32.gmra.mxu0 %v264
        %v7522 = vpop.f32.mrf.mxu0
        %v7523 = vadd.f32 %v7503, %v7522
        %7524 = vdwg.mxu0
        %7525 = vmatpush.msra.mxu0 %v1972
        %7526 = vmatpush.msra.mxu0 %v1967
        %7527 = vmatpush.msra.mxu0 %v1962
        %7528 = vmatpush.msra.mxu0 %v1957
        %7529 = vmatpush.msra.mxu0 %v1952
        %7530 = vmatpush.msra.mxu0 %v1947
        %7531 = vmatpush.msra.mxu0 %v1942
        %7532 = vmatpush.msra.mxu0 %v1937
        %7533 = vmatpush.msra.mxu0 %v1932
        %7534 = vmatpush.msra.mxu0 %v1927
        %7535 = vmatpush.msra.mxu0 %v1922
        %7536 = vmatpush.msra.mxu0 %v1917
        %7537 = vmatpush.msra.mxu0 %v1912
        %7538 = vmatpush.msra.mxu0 %v1907
        %7539 = vmatpush.msra.mxu0 %v1902
        %7540 = vmatpush.msra.mxu0 %v1897
        %7541 = vmatmul.f32.gmra.mxu0 %v265
        %v7542 = vpop.f32.mrf.mxu0
        %v7543 = vadd.f32 %v7523, %v7542
        %7544 = vdwg.mxu0
        %7545 = vmatpush.msra.mxu0 %v2052
        %7546 = vmatpush.msra.mxu0 %v2047
        %7547 = vmatpush.msra.mxu0 %v2042
        %7548 = vmatpush.msra.mxu0 %v2037
        %7549 = vmatpush.msra.mxu0 %v2032
        %7550 = vmatpush.msra.mxu0 %v2027
        %7551 = vmatpush.msra.mxu0 %v2022
        %7552 = vmatpush.msra.mxu0 %v2017
        %7553 = vmatpush.msra.mxu0 %v2012
        %7554 = vmatpush.msra.mxu0 %v2007
        %7555 = vmatpush.msra.mxu0 %v2002
        %7556 = vmatpush.msra.mxu0 %v1997
        %7557 = vmatpush.msra.mxu0 %v1992
        %7558 = vmatpush.msra.mxu0 %v1987
        %7559 = vmatpush.msra.mxu0 %v1982
        %7560 = vmatpush.msra.mxu0 %v1977
        %7561 = vmatmul.f32.gmra.mxu0 %v266
        %v7562 = vpop.f32.mrf.mxu0
        %v7563 = vadd.f32 %v7543, %v7562
        %7564 = vdwg.mxu0
        %7565 = vmatpush.msra.mxu0 %v2132
        %7566 = vmatpush.msra.mxu0 %v2127
        %7567 = vmatpush.msra.mxu0 %v2122
        %7568 = vmatpush.msra.mxu0 %v2117
        %7569 = vmatpush.msra.mxu0 %v2112
        %7570 = vmatpush.msra.mxu0 %v2107
        %7571 = vmatpush.msra.mxu0 %v2102
        %7572 = vmatpush.msra.mxu0 %v2097
        %7573 = vmatpush.msra.mxu0 %v2092
        %7574 = vmatpush.msra.mxu0 %v2087
        %7575 = vmatpush.msra.mxu0 %v2082
        %7576 = vmatpush.msra.mxu0 %v2077
        %7577 = vmatpush.msra.mxu0 %v2072
        %7578 = vmatpush.msra.mxu0 %v2067
        %7579 = vmatpush.msra.mxu0 %v2062
        %7580 = vmatpush.msra.mxu0 %v2057
        %7581 = vmatmul.f32.gmra.mxu0 %v267
        %v7582 = vpop.f32.mrf.mxu0
        %v7583 = vadd.f32 %v7563, %v7582
        %7584 = vdwg.mxu0
        %7585 = vmatpush.msra.mxu0 %v2212
        %7586 = vmatpush.msra.mxu0 %v2207
        %7587 = vmatpush.msra.mxu0 %v2202
        %7588 = vmatpush.msra.mxu0 %v2197
        %7589 = vmatpush.msra.mxu0 %v2192
        %7590 = vmatpush.msra.mxu0 %v2187
        %7591 = vmatpush.msra.mxu0 %v2182
        %7592 = vmatpush.msra.mxu0 %v2177
        %7593 = vmatpush.msra.mxu0 %v2172
        %7594 = vmatpush.msra.mxu0 %v2167
        %7595 = vmatpush.msra.mxu0 %v2162
        %7596 = vmatpush.msra.mxu0 %v2157
        %7597 = vmatpush.msra.mxu0 %v2152
        %7598 = vmatpush.msra.mxu0 %v2147
        %7599 = vmatpush.msra.mxu0 %v2142
        %7600 = vmatpush.msra.mxu0 %v2137
        %7601 = vmatmul.f32.gmra.mxu0 %v268
        %v7602 = vpop.f32.mrf.mxu0
        %v7603 = vadd.f32 %v7583, %v7602
        %7604 = vdwg.mxu0
        %7605 = vmatpush.msra.mxu0 %v2292
        %7606 = vmatpush.msra.mxu0 %v2287
        %7607 = vmatpush.msra.mxu0 %v2282
        %7608 = vmatpush.msra.mxu0 %v2277
        %7609 = vmatpush.msra.mxu0 %v2272
        %7610 = vmatpush.msra.mxu0 %v2267
        %7611 = vmatpush.msra.mxu0 %v2262
        %7612 = vmatpush.msra.mxu0 %v2257
        %7613 = vmatpush.msra.mxu0 %v2252
        %7614 = vmatpush.msra.mxu0 %v2247
        %7615 = vmatpush.msra.mxu0 %v2242
        %7616 = vmatpush.msra.mxu0 %v2237
        %7617 = vmatpush.msra.mxu0 %v2232
        %7618 = vmatpush.msra.mxu0 %v2227
        %7619 = vmatpush.msra.mxu0 %v2222
        %7620 = vmatpush.msra.mxu0 %v2217
        %7621 = vmatmul.f32.gmra.mxu0 %v269
        %v7622 = vpop.f32.mrf.mxu0
        %v7623 = vadd.f32 %v7603, %v7622
        %7624 = vdwg.mxu0
        %7625 = vmatpush.msra.mxu0 %v2372
        %7626 = vmatpush.msra.mxu0 %v2367
        %7627 = vmatpush.msra.mxu0 %v2362
        %7628 = vmatpush.msra.mxu0 %v2357
        %7629 = vmatpush.msra.mxu0 %v2352
        %7630 = vmatpush.msra.mxu0 %v2347
        %7631 = vmatpush.msra.mxu0 %v2342
        %7632 = vmatpush.msra.mxu0 %v2337
        %7633 = vmatpush.msra.mxu0 %v2332
        %7634 = vmatpush.msra.mxu0 %v2327
        %7635 = vmatpush.msra.mxu0 %v2322
        %7636 = vmatpush.msra.mxu0 %v2317
        %7637 = vmatpush.msra.mxu0 %v2312
        %7638 = vmatpush.msra.mxu0 %v2307
        %7639 = vmatpush.msra.mxu0 %v2302
        %7640 = vmatpush.msra.mxu0 %v2297
        %7641 = vmatmul.f32.gmra.mxu0 %v270
        %v7642 = vpop.f32.mrf.mxu0
        %v7643 = vadd.f32 %v7623, %v7642
        %7644 = vdwg.mxu0
        %7645 = vmatpush.msra.mxu0 %v2452
        %7646 = vmatpush.msra.mxu0 %v2447
        %7647 = vmatpush.msra.mxu0 %v2442
        %7648 = vmatpush.msra.mxu0 %v2437
        %7649 = vmatpush.msra.mxu0 %v2432
        %7650 = vmatpush.msra.mxu0 %v2427
        %7651 = vmatpush.msra.mxu0 %v2422
        %7652 = vmatpush.msra.mxu0 %v2417
        %7653 = vmatpush.msra.mxu0 %v2412
        %7654 = vmatpush.msra.mxu0 %v2407
        %7655 = vmatpush.msra.mxu0 %v2402
        %7656 = vmatpush.msra.mxu0 %v2397
        %7657 = vmatpush.msra.mxu0 %v2392
        %7658 = vmatpush.msra.mxu0 %v2387
        %7659 = vmatpush.msra.mxu0 %v2382
        %7660 = vmatpush.msra.mxu0 %v2377
        %7661 = vmatmul.f32.gmra.mxu0 %v271
        %v7662 = vpop.f32.mrf.mxu0
        %v7663 = vadd.f32 %v7643, %v7662
        %7664 = vdwg.mxu0
        %7665 = vmatpush.msra.mxu0 %v2532
        %7666 = vmatpush.msra.mxu0 %v2527
        %7667 = vmatpush.msra.mxu0 %v2522
        %7668 = vmatpush.msra.mxu0 %v2517
        %7669 = vmatpush.msra.mxu0 %v2512
        %7670 = vmatpush.msra.mxu0 %v2507
        %7671 = vmatpush.msra.mxu0 %v2502
        %7672 = vmatpush.msra.mxu0 %v2497
        %7673 = vmatpush.msra.mxu0 %v2492
        %7674 = vmatpush.msra.mxu0 %v2487
        %7675 = vmatpush.msra.mxu0 %v2482
        %7676 = vmatpush.msra.mxu0 %v2477
        %7677 = vmatpush.msra.mxu0 %v2472
        %7678 = vmatpush.msra.mxu0 %v2467
        %7679 = vmatpush.msra.mxu0 %v2462
        %7680 = vmatpush.msra.mxu0 %v2457
        %7681 = vmatmul.f32.gmra.mxu0 %v272
        %v7682 = vpop.f32.mrf.mxu0
        %v7683 = vadd.f32 %v7663, %v7682
        %7684 = vdwg.mxu0
        %7685 = vmatpush.msra.mxu0 %v2612
        %7686 = vmatpush.msra.mxu0 %v2607
        %7687 = vmatpush.msra.mxu0 %v2602
        %7688 = vmatpush.msra.mxu0 %v2597
        %7689 = vmatpush.msra.mxu0 %v2592
        %7690 = vmatpush.msra.mxu0 %v2587
        %7691 = vmatpush.msra.mxu0 %v2582
        %7692 = vmatpush.msra.mxu0 %v2577
        %7693 = vmatpush.msra.mxu0 %v2572
        %7694 = vmatpush.msra.mxu0 %v2567
        %7695 = vmatpush.msra.mxu0 %v2562
        %7696 = vmatpush.msra.mxu0 %v2557
        %7697 = vmatpush.msra.mxu0 %v2552
        %7698 = vmatpush.msra.mxu0 %v2547
        %7699 = vmatpush.msra.mxu0 %v2542
        %7700 = vmatpush.msra.mxu0 %v2537
        %7701 = vmatmul.f32.gmra.mxu0 %v273
        %v7702 = vpop.f32.mrf.mxu0
        %v7703 = vadd.f32 %v7683, %v7702
        %7704 = vdwg.mxu0
        %7705 = vmatpush.msra.mxu0 %v2692
        %7706 = vmatpush.msra.mxu0 %v2687
        %7707 = vmatpush.msra.mxu0 %v2682
        %7708 = vmatpush.msra.mxu0 %v2677
        %7709 = vmatpush.msra.mxu0 %v2672
        %7710 = vmatpush.msra.mxu0 %v2667
        %7711 = vmatpush.msra.mxu0 %v2662
        %7712 = vmatpush.msra.mxu0 %v2657
        %7713 = vmatpush.msra.mxu0 %v2652
        %7714 = vmatpush.msra.mxu0 %v2647
        %7715 = vmatpush.msra.mxu0 %v2642
        %7716 = vmatpush.msra.mxu0 %v2637
        %7717 = vmatpush.msra.mxu0 %v2632
        %7718 = vmatpush.msra.mxu0 %v2627
        %7719 = vmatpush.msra.mxu0 %v2622
        %7720 = vmatpush.msra.mxu0 %v2617
        %7721 = vmatmul.f32.gmra.mxu0 %v274
        %v7722 = vpop.f32.mrf.mxu0
        %v7723 = vadd.f32 %v7703, %v7722
        %7724 = vdwg.mxu0
        %7725 = vmatpush.msra.mxu0 %v2772
        %7726 = vmatpush.msra.mxu0 %v2767
        %7727 = vmatpush.msra.mxu0 %v2762
        %7728 = vmatpush.msra.mxu0 %v2757
        %7729 = vmatpush.msra.mxu0 %v2752
        %7730 = vmatpush.msra.mxu0 %v2747
        %7731 = vmatpush.msra.mxu0 %v2742
        %7732 = vmatpush.msra.mxu0 %v2737
        %7733 = vmatpush.msra.mxu0 %v2732
        %7734 = vmatpush.msra.mxu0 %v2727
        %7735 = vmatpush.msra.mxu0 %v2722
        %7736 = vmatpush.msra.mxu0 %v2717
        %7737 = vmatpush.msra.mxu0 %v2712
        %7738 = vmatpush.msra.mxu0 %v2707
        %7739 = vmatpush.msra.mxu0 %v2702
        %7740 = vmatpush.msra.mxu0 %v2697
        %7741 = vmatmul.f32.gmra.mxu0 %v275
        %v7742 = vpop.f32.mrf.mxu0
        %v7743 = vadd.f32 %v7723, %v7742
        %7744 = vdwg.mxu0
        %7745 = vmatpush.msra.mxu0 %v2852
        %7746 = vmatpush.msra.mxu0 %v2847
        %7747 = vmatpush.msra.mxu0 %v2842
        %7748 = vmatpush.msra.mxu0 %v2837
        %7749 = vmatpush.msra.mxu0 %v2832
        %7750 = vmatpush.msra.mxu0 %v2827
        %7751 = vmatpush.msra.mxu0 %v2822
        %7752 = vmatpush.msra.mxu0 %v2817
        %7753 = vmatpush.msra.mxu0 %v2812
        %7754 = vmatpush.msra.mxu0 %v2807
        %7755 = vmatpush.msra.mxu0 %v2802
        %7756 = vmatpush.msra.mxu0 %v2797
        %7757 = vmatpush.msra.mxu0 %v2792
        %7758 = vmatpush.msra.mxu0 %v2787
        %7759 = vmatpush.msra.mxu0 %v2782
        %7760 = vmatpush.msra.mxu0 %v2777
        %7761 = vmatmul.f32.gmra.mxu0 %v276
        %v7762 = vpop.f32.mrf.mxu0
        %v7763 = vadd.f32 %v7743, %v7762
        %7764 = vdwg.mxu0
        %7765 = vmatpush.msra.mxu0 %v2932
        %7766 = vmatpush.msra.mxu0 %v2927
        %7767 = vmatpush.msra.mxu0 %v2922
        %7768 = vmatpush.msra.mxu0 %v2917
        %7769 = vmatpush.msra.mxu0 %v2912
        %7770 = vmatpush.msra.mxu0 %v2907
        %7771 = vmatpush.msra.mxu0 %v2902
        %7772 = vmatpush.msra.mxu0 %v2897
        %7773 = vmatpush.msra.mxu0 %v2892
        %7774 = vmatpush.msra.mxu0 %v2887
        %7775 = vmatpush.msra.mxu0 %v2882
        %7776 = vmatpush.msra.mxu0 %v2877
        %7777 = vmatpush.msra.mxu0 %v2872
        %7778 = vmatpush.msra.mxu0 %v2867
        %7779 = vmatpush.msra.mxu0 %v2862
        %7780 = vmatpush.msra.mxu0 %v2857
        %7781 = vmatmul.f32.gmra.mxu0 %v277
        %v7782 = vpop.f32.mrf.mxu0
        %v7783 = vadd.f32 %v7763, %v7782
        %7784 = vdwg.mxu0
        %7785 = vmatpush.msra.mxu0 %v3012
        %7786 = vmatpush.msra.mxu0 %v3007
        %7787 = vmatpush.msra.mxu0 %v3002
        %7788 = vmatpush.msra.mxu0 %v2997
        %7789 = vmatpush.msra.mxu0 %v2992
        %7790 = vmatpush.msra.mxu0 %v2987
        %7791 = vmatpush.msra.mxu0 %v2982
        %7792 = vmatpush.msra.mxu0 %v2977
        %7793 = vmatpush.msra.mxu0 %v2972
        %7794 = vmatpush.msra.mxu0 %v2967
        %7795 = vmatpush.msra.mxu0 %v2962
        %7796 = vmatpush.msra.mxu0 %v2957
        %7797 = vmatpush.msra.mxu0 %v2952
        %7798 = vmatpush.msra.mxu0 %v2947
        %7799 = vmatpush.msra.mxu0 %v2942
        %7800 = vmatpush.msra.mxu0 %v2937
        %7801 = vmatmul.f32.gmra.mxu0 %v278
        %v7802 = vpop.f32.mrf.mxu0
        %v7803 = vadd.f32 %v7783, %v7802
        %7804 = vdwg.mxu0
        %7805 = vmatpush.msra.mxu0 %v3092
        %7806 = vmatpush.msra.mxu0 %v3087
        %7807 = vmatpush.msra.mxu0 %v3082
        %7808 = vmatpush.msra.mxu0 %v3077
        %7809 = vmatpush.msra.mxu0 %v3072
        %7810 = vmatpush.msra.mxu0 %v3067
        %7811 = vmatpush.msra.mxu0 %v3062
        %7812 = vmatpush.msra.mxu0 %v3057
        %7813 = vmatpush.msra.mxu0 %v3052
        %7814 = vmatpush.msra.mxu0 %v3047
        %7815 = vmatpush.msra.mxu0 %v3042
        %7816 = vmatpush.msra.mxu0 %v3037
        %7817 = vmatpush.msra.mxu0 %v3032
        %7818 = vmatpush.msra.mxu0 %v3027
        %7819 = vmatpush.msra.mxu0 %v3022
        %7820 = vmatpush.msra.mxu0 %v3017
        %7821 = vmatmul.f32.gmra.mxu0 %v279
        %v7822 = vpop.f32.mrf.mxu0
        %v7823 = vadd.f32 %v7803, %v7822
        %7824 = vdwg.mxu0
        %7825 = vmatpush.msra.mxu0 %v3172
        %7826 = vmatpush.msra.mxu0 %v3167
        %7827 = vmatpush.msra.mxu0 %v3162
        %7828 = vmatpush.msra.mxu0 %v3157
        %7829 = vmatpush.msra.mxu0 %v3152
        %7830 = vmatpush.msra.mxu0 %v3147
        %7831 = vmatpush.msra.mxu0 %v3142
        %7832 = vmatpush.msra.mxu0 %v3137
        %7833 = vmatpush.msra.mxu0 %v3132
        %7834 = vmatpush.msra.mxu0 %v3127
        %7835 = vmatpush.msra.mxu0 %v3122
        %7836 = vmatpush.msra.mxu0 %v3117
        %7837 = vmatpush.msra.mxu0 %v3112
        %7838 = vmatpush.msra.mxu0 %v3107
        %7839 = vmatpush.msra.mxu0 %v3102
        %7840 = vmatpush.msra.mxu0 %v3097
        %7841 = vmatmul.f32.gmra.mxu0 %v280
        %v7842 = vpop.f32.mrf.mxu0
        %v7843 = vadd.f32 %v7823, %v7842
        %7844 = vdwg.mxu0
        %7845 = vmatpush.msra.mxu0 %v3252
        %7846 = vmatpush.msra.mxu0 %v3247
        %7847 = vmatpush.msra.mxu0 %v3242
        %7848 = vmatpush.msra.mxu0 %v3237
        %7849 = vmatpush.msra.mxu0 %v3232
        %7850 = vmatpush.msra.mxu0 %v3227
        %7851 = vmatpush.msra.mxu0 %v3222
        %7852 = vmatpush.msra.mxu0 %v3217
        %7853 = vmatpush.msra.mxu0 %v3212
        %7854 = vmatpush.msra.mxu0 %v3207
        %7855 = vmatpush.msra.mxu0 %v3202
        %7856 = vmatpush.msra.mxu0 %v3197
        %7857 = vmatpush.msra.mxu0 %v3192
        %7858 = vmatpush.msra.mxu0 %v3187
        %7859 = vmatpush.msra.mxu0 %v3182
        %7860 = vmatpush.msra.mxu0 %v3177
        %7861 = vmatmul.f32.gmra.mxu0 %v281
        %v7862 = vpop.f32.mrf.mxu0
        %v7863 = vadd.f32 %v7843, %v7862
        %7864 = vdwg.mxu0
        %7865 = vmatpush.msra.mxu0 %v3332
        %7866 = vmatpush.msra.mxu0 %v3327
        %7867 = vmatpush.msra.mxu0 %v3322
        %7868 = vmatpush.msra.mxu0 %v3317
        %7869 = vmatpush.msra.mxu0 %v3312
        %7870 = vmatpush.msra.mxu0 %v3307
        %7871 = vmatpush.msra.mxu0 %v3302
        %7872 = vmatpush.msra.mxu0 %v3297
        %7873 = vmatpush.msra.mxu0 %v3292
        %7874 = vmatpush.msra.mxu0 %v3287
        %7875 = vmatpush.msra.mxu0 %v3282
        %7876 = vmatpush.msra.mxu0 %v3277
        %7877 = vmatpush.msra.mxu0 %v3272
        %7878 = vmatpush.msra.mxu0 %v3267
        %7879 = vmatpush.msra.mxu0 %v3262
        %7880 = vmatpush.msra.mxu0 %v3257
        %7881 = vmatmul.f32.gmra.mxu0 %v282
        %v7882 = vpop.f32.mrf.mxu0
        %v7883 = vadd.f32 %v7863, %v7882
        %7884 = vdwg.mxu0
        %7885 = vmatpush.msra.mxu0 %v3412
        %7886 = vmatpush.msra.mxu0 %v3407
        %7887 = vmatpush.msra.mxu0 %v3402
        %7888 = vmatpush.msra.mxu0 %v3397
        %7889 = vmatpush.msra.mxu0 %v3392
        %7890 = vmatpush.msra.mxu0 %v3387
        %7891 = vmatpush.msra.mxu0 %v3382
        %7892 = vmatpush.msra.mxu0 %v3377
        %7893 = vmatpush.msra.mxu0 %v3372
        %7894 = vmatpush.msra.mxu0 %v3367
        %7895 = vmatpush.msra.mxu0 %v3362
        %7896 = vmatpush.msra.mxu0 %v3357
        %7897 = vmatpush.msra.mxu0 %v3352
        %7898 = vmatpush.msra.mxu0 %v3347
        %7899 = vmatpush.msra.mxu0 %v3342
        %7900 = vmatpush.msra.mxu0 %v3337
        %7901 = vmatmul.f32.gmra.mxu0 %v283
        %v7902 = vpop.f32.mrf.mxu0
        %v7903 = vadd.f32 %v7883, %v7902
        %7904 = vdwg.mxu0
        %7905 = vmatpush.msra.mxu0 %v3492
        %7906 = vmatpush.msra.mxu0 %v3487
        %7907 = vmatpush.msra.mxu0 %v3482
        %7908 = vmatpush.msra.mxu0 %v3477
        %7909 = vmatpush.msra.mxu0 %v3472
        %7910 = vmatpush.msra.mxu0 %v3467
        %7911 = vmatpush.msra.mxu0 %v3462
        %7912 = vmatpush.msra.mxu0 %v3457
        %7913 = vmatpush.msra.mxu0 %v3452
        %7914 = vmatpush.msra.mxu0 %v3447
        %7915 = vmatpush.msra.mxu0 %v3442
        %7916 = vmatpush.msra.mxu0 %v3437
        %7917 = vmatpush.msra.mxu0 %v3432
        %7918 = vmatpush.msra.mxu0 %v3427
        %7919 = vmatpush.msra.mxu0 %v3422
        %7920 = vmatpush.msra.mxu0 %v3417
        %7921 = vmatmul.f32.gmra.mxu0 %v284
        %v7922 = vpop.f32.mrf.mxu0
        %v7923 = vadd.f32 %v7903, %v7922
        %7924 = vdwg.mxu0
        %7925 = vmatpush.msra.mxu0 %v3572
        %7926 = vmatpush.msra.mxu0 %v3567
        %7927 = vmatpush.msra.mxu0 %v3562
        %7928 = vmatpush.msra.mxu0 %v3557
        %7929 = vmatpush.msra.mxu0 %v3552
        %7930 = vmatpush.msra.mxu0 %v3547
        %7931 = vmatpush.msra.mxu0 %v3542
        %7932 = vmatpush.msra.mxu0 %v3537
        %7933 = vmatpush.msra.mxu0 %v3532
        %7934 = vmatpush.msra.mxu0 %v3527
        %7935 = vmatpush.msra.mxu0 %v3522
        %7936 = vmatpush.msra.mxu0 %v3517
        %7937 = vmatpush.msra.mxu0 %v3512
        %7938 = vmatpush.msra.mxu0 %v3507
        %7939 = vmatpush.msra.mxu0 %v3502
        %7940 = vmatpush.msra.mxu0 %v3497
        %7941 = vmatmul.f32.gmra.mxu0 %v285
        %v7942 = vpop.f32.mrf.mxu0
        %v7943 = vadd.f32 %v7923, %v7942
        %7944 = vdwg.mxu0
        %7945 = vmatpush.msra.mxu0 %v3652
        %7946 = vmatpush.msra.mxu0 %v3647
        %7947 = vmatpush.msra.mxu0 %v3642
        %7948 = vmatpush.msra.mxu0 %v3637
        %7949 = vmatpush.msra.mxu0 %v3632
        %7950 = vmatpush.msra.mxu0 %v3627
        %7951 = vmatpush.msra.mxu0 %v3622
        %7952 = vmatpush.msra.mxu0 %v3617
        %7953 = vmatpush.msra.mxu0 %v3612
        %7954 = vmatpush.msra.mxu0 %v3607
        %7955 = vmatpush.msra.mxu0 %v3602
        %7956 = vmatpush.msra.mxu0 %v3597
        %7957 = vmatpush.msra.mxu0 %v3592
        %7958 = vmatpush.msra.mxu0 %v3587
        %7959 = vmatpush.msra.mxu0 %v3582
        %7960 = vmatpush.msra.mxu0 %v3577
        %7961 = vmatmul.f32.gmra.mxu0 %v286
        %v7962 = vpop.f32.mrf.mxu0
        %v7963 = vadd.f32 %v7943, %v7962
        %7964 = vdwg.mxu0
        %7965 = vmatpush.msra.mxu0 %v3732
        %7966 = vmatpush.msra.mxu0 %v3727
        %7967 = vmatpush.msra.mxu0 %v3722
        %7968 = vmatpush.msra.mxu0 %v3717
        %7969 = vmatpush.msra.mxu0 %v3712
        %7970 = vmatpush.msra.mxu0 %v3707
        %7971 = vmatpush.msra.mxu0 %v3702
        %7972 = vmatpush.msra.mxu0 %v3697
        %7973 = vmatpush.msra.mxu0 %v3692
        %7974 = vmatpush.msra.mxu0 %v3687
        %7975 = vmatpush.msra.mxu0 %v3682
        %7976 = vmatpush.msra.mxu0 %v3677
        %7977 = vmatpush.msra.mxu0 %v3672
        %7978 = vmatpush.msra.mxu0 %v3667
        %7979 = vmatpush.msra.mxu0 %v3662
        %7980 = vmatpush.msra.mxu0 %v3657
        %7981 = vmatmul.f32.gmra.mxu0 %v287
        %v7982 = vpop.f32.mrf.mxu0
        %v7983 = vadd.f32 %v7963, %v7982
        %7984 = vdwg.mxu0
        %7985 = vmatpush.msra.mxu0 %v3812
        %7986 = vmatpush.msra.mxu0 %v3807
        %7987 = vmatpush.msra.mxu0 %v3802
        %7988 = vmatpush.msra.mxu0 %v3797
        %7989 = vmatpush.msra.mxu0 %v3792
        %7990 = vmatpush.msra.mxu0 %v3787
        %7991 = vmatpush.msra.mxu0 %v3782
        %7992 = vmatpush.msra.mxu0 %v3777
        %7993 = vmatpush.msra.mxu0 %v3772
        %7994 = vmatpush.msra.mxu0 %v3767
        %7995 = vmatpush.msra.mxu0 %v3762
        %7996 = vmatpush.msra.mxu0 %v3757
        %7997 = vmatpush.msra.mxu0 %v3752
        %7998 = vmatpush.msra.mxu0 %v3747
        %7999 = vmatpush.msra.mxu0 %v3742
        %8000 = vmatpush.msra.mxu0 %v3737
        %8001 = vmatmul.f32.gmra.mxu0 %v288
        %v8002 = vpop.f32.mrf.mxu0
        %v8003 = vadd.f32 %v7983, %v8002
        %8004 = vdwg.mxu0
        %8005 = vmatpush.msra.mxu0 %v3892
        %8006 = vmatpush.msra.mxu0 %v3887
        %8007 = vmatpush.msra.mxu0 %v3882
        %8008 = vmatpush.msra.mxu0 %v3877
        %8009 = vmatpush.msra.mxu0 %v3872
        %8010 = vmatpush.msra.mxu0 %v3867
        %8011 = vmatpush.msra.mxu0 %v3862
        %8012 = vmatpush.msra.mxu0 %v3857
        %8013 = vmatpush.msra.mxu0 %v3852
        %8014 = vmatpush.msra.mxu0 %v3847
        %8015 = vmatpush.msra.mxu0 %v3842
        %8016 = vmatpush.msra.mxu0 %v3837
        %8017 = vmatpush.msra.mxu0 %v3832
        %8018 = vmatpush.msra.mxu0 %v3827
        %8019 = vmatpush.msra.mxu0 %v3822
        %8020 = vmatpush.msra.mxu0 %v3817
        %8021 = vmatmul.f32.gmra.mxu0 %v289
        %v8022 = vpop.f32.mrf.mxu0
        %v8023 = vadd.f32 %v8003, %v8022
        %8024 = vdwg.mxu0
        %8025 = vmatpush.msra.mxu0 %v3972
        %8026 = vmatpush.msra.mxu0 %v3967
        %8027 = vmatpush.msra.mxu0 %v3962
        %8028 = vmatpush.msra.mxu0 %v3957
        %8029 = vmatpush.msra.mxu0 %v3952
        %8030 = vmatpush.msra.mxu0 %v3947
        %8031 = vmatpush.msra.mxu0 %v3942
        %8032 = vmatpush.msra.mxu0 %v3937
        %8033 = vmatpush.msra.mxu0 %v3932
        %8034 = vmatpush.msra.mxu0 %v3927
        %8035 = vmatpush.msra.mxu0 %v3922
        %8036 = vmatpush.msra.mxu0 %v3917
        %8037 = vmatpush.msra.mxu0 %v3912
        %8038 = vmatpush.msra.mxu0 %v3907
        %8039 = vmatpush.msra.mxu0 %v3902
        %8040 = vmatpush.msra.mxu0 %v3897
        %8041 = vmatmul.f32.gmra.mxu0 %v290
        %v8042 = vpop.f32.mrf.mxu0
        %v8043 = vadd.f32 %v8023, %v8042
        %8044 = vdwg.mxu0
        %8045 = vmatpush.msra.mxu0 %v4052
        %8046 = vmatpush.msra.mxu0 %v4047
        %8047 = vmatpush.msra.mxu0 %v4042
        %8048 = vmatpush.msra.mxu0 %v4037
        %8049 = vmatpush.msra.mxu0 %v4032
        %8050 = vmatpush.msra.mxu0 %v4027
        %8051 = vmatpush.msra.mxu0 %v4022
        %8052 = vmatpush.msra.mxu0 %v4017
        %8053 = vmatpush.msra.mxu0 %v4012
        %8054 = vmatpush.msra.mxu0 %v4007
        %8055 = vmatpush.msra.mxu0 %v4002
        %8056 = vmatpush.msra.mxu0 %v3997
        %8057 = vmatpush.msra.mxu0 %v3992
        %8058 = vmatpush.msra.mxu0 %v3987
        %8059 = vmatpush.msra.mxu0 %v3982
        %8060 = vmatpush.msra.mxu0 %v3977
        %8061 = vmatmul.f32.gmra.mxu0 %v291
        %v8062 = vpop.f32.mrf.mxu0
        %v8063 = vadd.f32 %v8043, %v8062
        %8064 = vdwg.mxu0
        %8065 = vmatpush.msra.mxu0 %v4132
        %8066 = vmatpush.msra.mxu0 %v4127
        %8067 = vmatpush.msra.mxu0 %v4122
        %8068 = vmatpush.msra.mxu0 %v4117
        %8069 = vmatpush.msra.mxu0 %v4112
        %8070 = vmatpush.msra.mxu0 %v4107
        %8071 = vmatpush.msra.mxu0 %v4102
        %8072 = vmatpush.msra.mxu0 %v4097
        %8073 = vmatpush.msra.mxu0 %v4092
        %8074 = vmatpush.msra.mxu0 %v4087
        %8075 = vmatpush.msra.mxu0 %v4082
        %8076 = vmatpush.msra.mxu0 %v4077
        %8077 = vmatpush.msra.mxu0 %v4072
        %8078 = vmatpush.msra.mxu0 %v4067
        %8079 = vmatpush.msra.mxu0 %v4062
        %8080 = vmatpush.msra.mxu0 %v4057
        %8081 = vmatmul.f32.gmra.mxu0 %v292
        %v8082 = vpop.f32.mrf.mxu0
        %v8083 = vadd.f32 %v8063, %v8082
        %8084 = vdwg.mxu0
        %8085 = vmatpush.msra.mxu0 0.0
        %8086 = vmatpush.msra.mxu0 0.0
        %8087 = vmatpush.msra.mxu0 0.0
        %8088 = vmatpush.msra.mxu0 0.0
        %8089 = vmatpush.msra.mxu0 0.0
        %8090 = vmatpush.msra.mxu0 0.0
        %8091 = vmatpush.msra.mxu0 0.0
        %8092 = vmatpush.msra.mxu0 0.0
        %8093 = vmatpush.msra.mxu0 0.0
        %8094 = vmatpush.msra.mxu0 %v4167
        %8095 = vmatpush.msra.mxu0 %v4162
        %8096 = vmatpush.msra.mxu0 %v4157
        %8097 = vmatpush.msra.mxu0 %v4152
        %8098 = vmatpush.msra.mxu0 %v4147
        %8099 = vmatpush.msra.mxu0 %v4142
        %8100 = vmatpush.msra.mxu0 %v4137
        %8101 = vmatmul.f32.gmra.mxu0 %v4183
        %v8102 = vpop.f32.mrf.mxu0
        %v8103 = vadd.f32 %v8083, %v8102
        %8104 = vdwg.mxu0
        %8105 = vmatpush.msra.mxu0 %v373
        %8106 = vmatpush.msra.mxu0 %v368
        %8107 = vmatpush.msra.mxu0 %v363
        %8108 = vmatpush.msra.mxu0 %v358
        %8109 = vmatpush.msra.mxu0 %v353
        %8110 = vmatpush.msra.mxu0 %v348
        %8111 = vmatpush.msra.mxu0 %v343
        %8112 = vmatpush.msra.mxu0 %v338
        %8113 = vmatpush.msra.mxu0 %v333
        %8114 = vmatpush.msra.mxu0 %v328
        %8115 = vmatpush.msra.mxu0 %v323
        %8116 = vmatpush.msra.mxu0 %v318
        %8117 = vmatpush.msra.mxu0 %v313
        %8118 = vmatpush.msra.mxu0 %v308
        %8119 = vmatpush.msra.mxu0 %v303
        %8120 = vmatpush.msra.mxu0 %v298
        %8121 = vmatmul.f32.gmra.mxu0 %v245
        %v8122 = vpop.f32.mrf.mxu0
        %v8123 = vadd.f32 %v4175, %v8122
        %8124 = vdwg.mxu0
        %8125 = vmatpush.msra.mxu0 %v453
        %8126 = vmatpush.msra.mxu0 %v448
        %8127 = vmatpush.msra.mxu0 %v443
        %8128 = vmatpush.msra.mxu0 %v438
        %8129 = vmatpush.msra.mxu0 %v433
        %8130 = vmatpush.msra.mxu0 %v428
        %8131 = vmatpush.msra.mxu0 %v423
        %8132 = vmatpush.msra.mxu0 %v418
        %8133 = vmatpush.msra.mxu0 %v413
        %8134 = vmatpush.msra.mxu0 %v408
        %8135 = vmatpush.msra.mxu0 %v403
        %8136 = vmatpush.msra.mxu0 %v398
        %8137 = vmatpush.msra.mxu0 %v393
        %8138 = vmatpush.msra.mxu0 %v388
        %8139 = vmatpush.msra.mxu0 %v383
        %8140 = vmatpush.msra.mxu0 %v378
        %8141 = vmatmul.f32.gmra.mxu0 %v246
        %v8142 = vpop.f32.mrf.mxu0
        %v8143 = vadd.f32 %v8123, %v8142
        %8144 = vdwg.mxu0
        %8145 = vmatpush.msra.mxu0 %v533
        %8146 = vmatpush.msra.mxu0 %v528
        %8147 = vmatpush.msra.mxu0 %v523
        %8148 = vmatpush.msra.mxu0 %v518
        %8149 = vmatpush.msra.mxu0 %v513
        %8150 = vmatpush.msra.mxu0 %v508
        %8151 = vmatpush.msra.mxu0 %v503
        %8152 = vmatpush.msra.mxu0 %v498
        %8153 = vmatpush.msra.mxu0 %v493
        %8154 = vmatpush.msra.mxu0 %v488
        %8155 = vmatpush.msra.mxu0 %v483
        %8156 = vmatpush.msra.mxu0 %v478
        %8157 = vmatpush.msra.mxu0 %v473
        %8158 = vmatpush.msra.mxu0 %v468
        %8159 = vmatpush.msra.mxu0 %v463
        %8160 = vmatpush.msra.mxu0 %v458
        %8161 = vmatmul.f32.gmra.mxu0 %v247
        %v8162 = vpop.f32.mrf.mxu0
        %v8163 = vadd.f32 %v8143, %v8162
        %8164 = vdwg.mxu0
        %8165 = vmatpush.msra.mxu0 %v613
        %8166 = vmatpush.msra.mxu0 %v608
        %8167 = vmatpush.msra.mxu0 %v603
        %8168 = vmatpush.msra.mxu0 %v598
        %8169 = vmatpush.msra.mxu0 %v593
        %8170 = vmatpush.msra.mxu0 %v588
        %8171 = vmatpush.msra.mxu0 %v583
        %8172 = vmatpush.msra.mxu0 %v578
        %8173 = vmatpush.msra.mxu0 %v573
        %8174 = vmatpush.msra.mxu0 %v568
        %8175 = vmatpush.msra.mxu0 %v563
        %8176 = vmatpush.msra.mxu0 %v558
        %8177 = vmatpush.msra.mxu0 %v553
        %8178 = vmatpush.msra.mxu0 %v548
        %8179 = vmatpush.msra.mxu0 %v543
        %8180 = vmatpush.msra.mxu0 %v538
        %8181 = vmatmul.f32.gmra.mxu0 %v248
        %v8182 = vpop.f32.mrf.mxu0
        %v8183 = vadd.f32 %v8163, %v8182
        %8184 = vdwg.mxu0
        %8185 = vmatpush.msra.mxu0 %v693
        %8186 = vmatpush.msra.mxu0 %v688
        %8187 = vmatpush.msra.mxu0 %v683
        %8188 = vmatpush.msra.mxu0 %v678
        %8189 = vmatpush.msra.mxu0 %v673
        %8190 = vmatpush.msra.mxu0 %v668
        %8191 = vmatpush.msra.mxu0 %v663
        %8192 = vmatpush.msra.mxu0 %v658
        %8193 = vmatpush.msra.mxu0 %v653
        %8194 = vmatpush.msra.mxu0 %v648
        %8195 = vmatpush.msra.mxu0 %v643
        %8196 = vmatpush.msra.mxu0 %v638
        %8197 = vmatpush.msra.mxu0 %v633
        %8198 = vmatpush.msra.mxu0 %v628
        %8199 = vmatpush.msra.mxu0 %v623
        %8200 = vmatpush.msra.mxu0 %v618
        %8201 = vmatmul.f32.gmra.mxu0 %v249
        %v8202 = vpop.f32.mrf.mxu0
        %v8203 = vadd.f32 %v8183, %v8202
        %8204 = vdwg.mxu0
        %8205 = vmatpush.msra.mxu0 %v773
        %8206 = vmatpush.msra.mxu0 %v768
        %8207 = vmatpush.msra.mxu0 %v763
        %8208 = vmatpush.msra.mxu0 %v758
        %8209 = vmatpush.msra.mxu0 %v753
        %8210 = vmatpush.msra.mxu0 %v748
        %8211 = vmatpush.msra.mxu0 %v743
        %8212 = vmatpush.msra.mxu0 %v738
        %8213 = vmatpush.msra.mxu0 %v733
        %8214 = vmatpush.msra.mxu0 %v728
        %8215 = vmatpush.msra.mxu0 %v723
        %8216 = vmatpush.msra.mxu0 %v718
        %8217 = vmatpush.msra.mxu0 %v713
        %8218 = vmatpush.msra.mxu0 %v708
        %8219 = vmatpush.msra.mxu0 %v703
        %8220 = vmatpush.msra.mxu0 %v698
        %8221 = vmatmul.f32.gmra.mxu0 %v250
        %v8222 = vpop.f32.mrf.mxu0
        %v8223 = vadd.f32 %v8203, %v8222
        %8224 = vdwg.mxu0
        %8225 = vmatpush.msra.mxu0 %v853
        %8226 = vmatpush.msra.mxu0 %v848
        %8227 = vmatpush.msra.mxu0 %v843
        %8228 = vmatpush.msra.mxu0 %v838
        %8229 = vmatpush.msra.mxu0 %v833
        %8230 = vmatpush.msra.mxu0 %v828
        %8231 = vmatpush.msra.mxu0 %v823
        %8232 = vmatpush.msra.mxu0 %v818
        %8233 = vmatpush.msra.mxu0 %v813
        %8234 = vmatpush.msra.mxu0 %v808
        %8235 = vmatpush.msra.mxu0 %v803
        %8236 = vmatpush.msra.mxu0 %v798
        %8237 = vmatpush.msra.mxu0 %v793
        %8238 = vmatpush.msra.mxu0 %v788
        %8239 = vmatpush.msra.mxu0 %v783
        %8240 = vmatpush.msra.mxu0 %v778
        %8241 = vmatmul.f32.gmra.mxu0 %v251
        %v8242 = vpop.f32.mrf.mxu0
        %v8243 = vadd.f32 %v8223, %v8242
        %8244 = vdwg.mxu0
        %8245 = vmatpush.msra.mxu0 %v933
        %8246 = vmatpush.msra.mxu0 %v928
        %8247 = vmatpush.msra.mxu0 %v923
        %8248 = vmatpush.msra.mxu0 %v918
        %8249 = vmatpush.msra.mxu0 %v913
        %8250 = vmatpush.msra.mxu0 %v908
        %8251 = vmatpush.msra.mxu0 %v903
        %8252 = vmatpush.msra.mxu0 %v898
        %8253 = vmatpush.msra.mxu0 %v893
        %8254 = vmatpush.msra.mxu0 %v888
        %8255 = vmatpush.msra.mxu0 %v883
        %8256 = vmatpush.msra.mxu0 %v878
        %8257 = vmatpush.msra.mxu0 %v873
        %8258 = vmatpush.msra.mxu0 %v868
        %8259 = vmatpush.msra.mxu0 %v863
        %8260 = vmatpush.msra.mxu0 %v858
        %8261 = vmatmul.f32.gmra.mxu0 %v252
        %v8262 = vpop.f32.mrf.mxu0
        %v8263 = vadd.f32 %v8243, %v8262
        %8264 = vdwg.mxu0
        %8265 = vmatpush.msra.mxu0 %v1013
        %8266 = vmatpush.msra.mxu0 %v1008
        %8267 = vmatpush.msra.mxu0 %v1003
        %8268 = vmatpush.msra.mxu0 %v998
        %8269 = vmatpush.msra.mxu0 %v993
        %8270 = vmatpush.msra.mxu0 %v988
        %8271 = vmatpush.msra.mxu0 %v983
        %8272 = vmatpush.msra.mxu0 %v978
        %8273 = vmatpush.msra.mxu0 %v973
        %8274 = vmatpush.msra.mxu0 %v968
        %8275 = vmatpush.msra.mxu0 %v963
        %8276 = vmatpush.msra.mxu0 %v958
        %8277 = vmatpush.msra.mxu0 %v953
        %8278 = vmatpush.msra.mxu0 %v948
        %8279 = vmatpush.msra.mxu0 %v943
        %8280 = vmatpush.msra.mxu0 %v938
        %8281 = vmatmul.f32.gmra.mxu0 %v253
        %v8282 = vpop.f32.mrf.mxu0
        %v8283 = vadd.f32 %v8263, %v8282
        %8284 = vdwg.mxu0
        %8285 = vmatpush.msra.mxu0 %v1093
        %8286 = vmatpush.msra.mxu0 %v1088
        %8287 = vmatpush.msra.mxu0 %v1083
        %8288 = vmatpush.msra.mxu0 %v1078
        %8289 = vmatpush.msra.mxu0 %v1073
        %8290 = vmatpush.msra.mxu0 %v1068
        %8291 = vmatpush.msra.mxu0 %v1063
        %8292 = vmatpush.msra.mxu0 %v1058
        %8293 = vmatpush.msra.mxu0 %v1053
        %8294 = vmatpush.msra.mxu0 %v1048
        %8295 = vmatpush.msra.mxu0 %v1043
        %8296 = vmatpush.msra.mxu0 %v1038
        %8297 = vmatpush.msra.mxu0 %v1033
        %8298 = vmatpush.msra.mxu0 %v1028
        %8299 = vmatpush.msra.mxu0 %v1023
        %8300 = vmatpush.msra.mxu0 %v1018
        %8301 = vmatmul.f32.gmra.mxu0 %v254
        %v8302 = vpop.f32.mrf.mxu0
        %v8303 = vadd.f32 %v8283, %v8302
        %8304 = vdwg.mxu0
        %8305 = vmatpush.msra.mxu0 %v1173
        %8306 = vmatpush.msra.mxu0 %v1168
        %8307 = vmatpush.msra.mxu0 %v1163
        %8308 = vmatpush.msra.mxu0 %v1158
        %8309 = vmatpush.msra.mxu0 %v1153
        %8310 = vmatpush.msra.mxu0 %v1148
        %8311 = vmatpush.msra.mxu0 %v1143
        %8312 = vmatpush.msra.mxu0 %v1138
        %8313 = vmatpush.msra.mxu0 %v1133
        %8314 = vmatpush.msra.mxu0 %v1128
        %8315 = vmatpush.msra.mxu0 %v1123
        %8316 = vmatpush.msra.mxu0 %v1118
        %8317 = vmatpush.msra.mxu0 %v1113
        %8318 = vmatpush.msra.mxu0 %v1108
        %8319 = vmatpush.msra.mxu0 %v1103
        %8320 = vmatpush.msra.mxu0 %v1098
        %8321 = vmatmul.f32.gmra.mxu0 %v255
        %v8322 = vpop.f32.mrf.mxu0
        %v8323 = vadd.f32 %v8303, %v8322
        %8324 = vdwg.mxu0
        %8325 = vmatpush.msra.mxu0 %v1253
        %8326 = vmatpush.msra.mxu0 %v1248
        %8327 = vmatpush.msra.mxu0 %v1243
        %8328 = vmatpush.msra.mxu0 %v1238
        %8329 = vmatpush.msra.mxu0 %v1233
        %8330 = vmatpush.msra.mxu0 %v1228
        %8331 = vmatpush.msra.mxu0 %v1223
        %8332 = vmatpush.msra.mxu0 %v1218
        %8333 = vmatpush.msra.mxu0 %v1213
        %8334 = vmatpush.msra.mxu0 %v1208
        %8335 = vmatpush.msra.mxu0 %v1203
        %8336 = vmatpush.msra.mxu0 %v1198
        %8337 = vmatpush.msra.mxu0 %v1193
        %8338 = vmatpush.msra.mxu0 %v1188
        %8339 = vmatpush.msra.mxu0 %v1183
        %8340 = vmatpush.msra.mxu0 %v1178
        %8341 = vmatmul.f32.gmra.mxu0 %v256
        %v8342 = vpop.f32.mrf.mxu0
        %v8343 = vadd.f32 %v8323, %v8342
        %8344 = vdwg.mxu0
        %8345 = vmatpush.msra.mxu0 %v1333
        %8346 = vmatpush.msra.mxu0 %v1328
        %8347 = vmatpush.msra.mxu0 %v1323
        %8348 = vmatpush.msra.mxu0 %v1318
        %8349 = vmatpush.msra.mxu0 %v1313
        %8350 = vmatpush.msra.mxu0 %v1308
        %8351 = vmatpush.msra.mxu0 %v1303
        %8352 = vmatpush.msra.mxu0 %v1298
        %8353 = vmatpush.msra.mxu0 %v1293
        %8354 = vmatpush.msra.mxu0 %v1288
        %8355 = vmatpush.msra.mxu0 %v1283
        %8356 = vmatpush.msra.mxu0 %v1278
        %8357 = vmatpush.msra.mxu0 %v1273
        %8358 = vmatpush.msra.mxu0 %v1268
        %8359 = vmatpush.msra.mxu0 %v1263
        %8360 = vmatpush.msra.mxu0 %v1258
        %8361 = vmatmul.f32.gmra.mxu0 %v257
        %v8362 = vpop.f32.mrf.mxu0
        %v8363 = vadd.f32 %v8343, %v8362
        %8364 = vdwg.mxu0
        %8365 = vmatpush.msra.mxu0 %v1413
        %8366 = vmatpush.msra.mxu0 %v1408
        %8367 = vmatpush.msra.mxu0 %v1403
        %8368 = vmatpush.msra.mxu0 %v1398
        %8369 = vmatpush.msra.mxu0 %v1393
        %8370 = vmatpush.msra.mxu0 %v1388
        %8371 = vmatpush.msra.mxu0 %v1383
        %8372 = vmatpush.msra.mxu0 %v1378
        %8373 = vmatpush.msra.mxu0 %v1373
        %8374 = vmatpush.msra.mxu0 %v1368
        %8375 = vmatpush.msra.mxu0 %v1363
        %8376 = vmatpush.msra.mxu0 %v1358
        %8377 = vmatpush.msra.mxu0 %v1353
        %8378 = vmatpush.msra.mxu0 %v1348
        %8379 = vmatpush.msra.mxu0 %v1343
        %8380 = vmatpush.msra.mxu0 %v1338
        %8381 = vmatmul.f32.gmra.mxu0 %v258
        %v8382 = vpop.f32.mrf.mxu0
        %v8383 = vadd.f32 %v8363, %v8382
        %8384 = vdwg.mxu0
        %8385 = vmatpush.msra.mxu0 %v1493
        %8386 = vmatpush.msra.mxu0 %v1488
        %8387 = vmatpush.msra.mxu0 %v1483
        %8388 = vmatpush.msra.mxu0 %v1478
        %8389 = vmatpush.msra.mxu0 %v1473
        %8390 = vmatpush.msra.mxu0 %v1468
        %8391 = vmatpush.msra.mxu0 %v1463
        %8392 = vmatpush.msra.mxu0 %v1458
        %8393 = vmatpush.msra.mxu0 %v1453
        %8394 = vmatpush.msra.mxu0 %v1448
        %8395 = vmatpush.msra.mxu0 %v1443
        %8396 = vmatpush.msra.mxu0 %v1438
        %8397 = vmatpush.msra.mxu0 %v1433
        %8398 = vmatpush.msra.mxu0 %v1428
        %8399 = vmatpush.msra.mxu0 %v1423
        %8400 = vmatpush.msra.mxu0 %v1418
        %8401 = vmatmul.f32.gmra.mxu0 %v259
        %v8402 = vpop.f32.mrf.mxu0
        %v8403 = vadd.f32 %v8383, %v8402
        %8404 = vdwg.mxu0
        %8405 = vmatpush.msra.mxu0 %v1573
        %8406 = vmatpush.msra.mxu0 %v1568
        %8407 = vmatpush.msra.mxu0 %v1563
        %8408 = vmatpush.msra.mxu0 %v1558
        %8409 = vmatpush.msra.mxu0 %v1553
        %8410 = vmatpush.msra.mxu0 %v1548
        %8411 = vmatpush.msra.mxu0 %v1543
        %8412 = vmatpush.msra.mxu0 %v1538
        %8413 = vmatpush.msra.mxu0 %v1533
        %8414 = vmatpush.msra.mxu0 %v1528
        %8415 = vmatpush.msra.mxu0 %v1523
        %8416 = vmatpush.msra.mxu0 %v1518
        %8417 = vmatpush.msra.mxu0 %v1513
        %8418 = vmatpush.msra.mxu0 %v1508
        %8419 = vmatpush.msra.mxu0 %v1503
        %8420 = vmatpush.msra.mxu0 %v1498
        %8421 = vmatmul.f32.gmra.mxu0 %v260
        %v8422 = vpop.f32.mrf.mxu0
        %v8423 = vadd.f32 %v8403, %v8422
        %8424 = vdwg.mxu0
        %8425 = vmatpush.msra.mxu0 %v1653
        %8426 = vmatpush.msra.mxu0 %v1648
        %8427 = vmatpush.msra.mxu0 %v1643
        %8428 = vmatpush.msra.mxu0 %v1638
        %8429 = vmatpush.msra.mxu0 %v1633
        %8430 = vmatpush.msra.mxu0 %v1628
        %8431 = vmatpush.msra.mxu0 %v1623
        %8432 = vmatpush.msra.mxu0 %v1618
        %8433 = vmatpush.msra.mxu0 %v1613
        %8434 = vmatpush.msra.mxu0 %v1608
        %8435 = vmatpush.msra.mxu0 %v1603
        %8436 = vmatpush.msra.mxu0 %v1598
        %8437 = vmatpush.msra.mxu0 %v1593
        %8438 = vmatpush.msra.mxu0 %v1588
        %8439 = vmatpush.msra.mxu0 %v1583
        %8440 = vmatpush.msra.mxu0 %v1578
        %8441 = vmatmul.f32.gmra.mxu0 %v261
        %v8442 = vpop.f32.mrf.mxu0
        %v8443 = vadd.f32 %v8423, %v8442
        %8444 = vdwg.mxu0
        %8445 = vmatpush.msra.mxu0 %v1733
        %8446 = vmatpush.msra.mxu0 %v1728
        %8447 = vmatpush.msra.mxu0 %v1723
        %8448 = vmatpush.msra.mxu0 %v1718
        %8449 = vmatpush.msra.mxu0 %v1713
        %8450 = vmatpush.msra.mxu0 %v1708
        %8451 = vmatpush.msra.mxu0 %v1703
        %8452 = vmatpush.msra.mxu0 %v1698
        %8453 = vmatpush.msra.mxu0 %v1693
        %8454 = vmatpush.msra.mxu0 %v1688
        %8455 = vmatpush.msra.mxu0 %v1683
        %8456 = vmatpush.msra.mxu0 %v1678
        %8457 = vmatpush.msra.mxu0 %v1673
        %8458 = vmatpush.msra.mxu0 %v1668
        %8459 = vmatpush.msra.mxu0 %v1663
        %8460 = vmatpush.msra.mxu0 %v1658
        %8461 = vmatmul.f32.gmra.mxu0 %v262
        %v8462 = vpop.f32.mrf.mxu0
        %v8463 = vadd.f32 %v8443, %v8462
        %8464 = vdwg.mxu0
        %8465 = vmatpush.msra.mxu0 %v1813
        %8466 = vmatpush.msra.mxu0 %v1808
        %8467 = vmatpush.msra.mxu0 %v1803
        %8468 = vmatpush.msra.mxu0 %v1798
        %8469 = vmatpush.msra.mxu0 %v1793
        %8470 = vmatpush.msra.mxu0 %v1788
        %8471 = vmatpush.msra.mxu0 %v1783
        %8472 = vmatpush.msra.mxu0 %v1778
        %8473 = vmatpush.msra.mxu0 %v1773
        %8474 = vmatpush.msra.mxu0 %v1768
        %8475 = vmatpush.msra.mxu0 %v1763
        %8476 = vmatpush.msra.mxu0 %v1758
        %8477 = vmatpush.msra.mxu0 %v1753
        %8478 = vmatpush.msra.mxu0 %v1748
        %8479 = vmatpush.msra.mxu0 %v1743
        %8480 = vmatpush.msra.mxu0 %v1738
        %8481 = vmatmul.f32.gmra.mxu0 %v263
        %v8482 = vpop.f32.mrf.mxu0
        %v8483 = vadd.f32 %v8463, %v8482
        %8484 = vdwg.mxu0
        %8485 = vmatpush.msra.mxu0 %v1893
        %8486 = vmatpush.msra.mxu0 %v1888
        %8487 = vmatpush.msra.mxu0 %v1883
        %8488 = vmatpush.msra.mxu0 %v1878
        %8489 = vmatpush.msra.mxu0 %v1873
        %8490 = vmatpush.msra.mxu0 %v1868
        %8491 = vmatpush.msra.mxu0 %v1863
        %8492 = vmatpush.msra.mxu0 %v1858
        %8493 = vmatpush.msra.mxu0 %v1853
        %8494 = vmatpush.msra.mxu0 %v1848
        %8495 = vmatpush.msra.mxu0 %v1843
        %8496 = vmatpush.msra.mxu0 %v1838
        %8497 = vmatpush.msra.mxu0 %v1833
        %8498 = vmatpush.msra.mxu0 %v1828
        %8499 = vmatpush.msra.mxu0 %v1823
        %8500 = vmatpush.msra.mxu0 %v1818
        %8501 = vmatmul.f32.gmra.mxu0 %v264
        %v8502 = vpop.f32.mrf.mxu0
        %v8503 = vadd.f32 %v8483, %v8502
        %8504 = vdwg.mxu0
        %8505 = vmatpush.msra.mxu0 %v1973
        %8506 = vmatpush.msra.mxu0 %v1968
        %8507 = vmatpush.msra.mxu0 %v1963
        %8508 = vmatpush.msra.mxu0 %v1958
        %8509 = vmatpush.msra.mxu0 %v1953
        %8510 = vmatpush.msra.mxu0 %v1948
        %8511 = vmatpush.msra.mxu0 %v1943
        %8512 = vmatpush.msra.mxu0 %v1938
        %8513 = vmatpush.msra.mxu0 %v1933
        %8514 = vmatpush.msra.mxu0 %v1928
        %8515 = vmatpush.msra.mxu0 %v1923
        %8516 = vmatpush.msra.mxu0 %v1918
        %8517 = vmatpush.msra.mxu0 %v1913
        %8518 = vmatpush.msra.mxu0 %v1908
        %8519 = vmatpush.msra.mxu0 %v1903
        %8520 = vmatpush.msra.mxu0 %v1898
        %8521 = vmatmul.f32.gmra.mxu0 %v265
        %v8522 = vpop.f32.mrf.mxu0
        %v8523 = vadd.f32 %v8503, %v8522
        %8524 = vdwg.mxu0
        %8525 = vmatpush.msra.mxu0 %v2053
        %8526 = vmatpush.msra.mxu0 %v2048
        %8527 = vmatpush.msra.mxu0 %v2043
        %8528 = vmatpush.msra.mxu0 %v2038
        %8529 = vmatpush.msra.mxu0 %v2033
        %8530 = vmatpush.msra.mxu0 %v2028
        %8531 = vmatpush.msra.mxu0 %v2023
        %8532 = vmatpush.msra.mxu0 %v2018
        %8533 = vmatpush.msra.mxu0 %v2013
        %8534 = vmatpush.msra.mxu0 %v2008
        %8535 = vmatpush.msra.mxu0 %v2003
        %8536 = vmatpush.msra.mxu0 %v1998
        %8537 = vmatpush.msra.mxu0 %v1993
        %8538 = vmatpush.msra.mxu0 %v1988
        %8539 = vmatpush.msra.mxu0 %v1983
        %8540 = vmatpush.msra.mxu0 %v1978
        %8541 = vmatmul.f32.gmra.mxu0 %v266
        %v8542 = vpop.f32.mrf.mxu0
        %v8543 = vadd.f32 %v8523, %v8542
        %8544 = vdwg.mxu0
        %8545 = vmatpush.msra.mxu0 %v2133
        %8546 = vmatpush.msra.mxu0 %v2128
        %8547 = vmatpush.msra.mxu0 %v2123
        %8548 = vmatpush.msra.mxu0 %v2118
        %8549 = vmatpush.msra.mxu0 %v2113
        %8550 = vmatpush.msra.mxu0 %v2108
        %8551 = vmatpush.msra.mxu0 %v2103
        %8552 = vmatpush.msra.mxu0 %v2098
        %8553 = vmatpush.msra.mxu0 %v2093
        %8554 = vmatpush.msra.mxu0 %v2088
        %8555 = vmatpush.msra.mxu0 %v2083
        %8556 = vmatpush.msra.mxu0 %v2078
        %8557 = vmatpush.msra.mxu0 %v2073
        %8558 = vmatpush.msra.mxu0 %v2068
        %8559 = vmatpush.msra.mxu0 %v2063
        %8560 = vmatpush.msra.mxu0 %v2058
        %8561 = vmatmul.f32.gmra.mxu0 %v267
        %v8562 = vpop.f32.mrf.mxu0
        %v8563 = vadd.f32 %v8543, %v8562
        %8564 = vdwg.mxu0
        %8565 = vmatpush.msra.mxu0 %v2213
        %8566 = vmatpush.msra.mxu0 %v2208
        %8567 = vmatpush.msra.mxu0 %v2203
        %8568 = vmatpush.msra.mxu0 %v2198
        %8569 = vmatpush.msra.mxu0 %v2193
        %8570 = vmatpush.msra.mxu0 %v2188
        %8571 = vmatpush.msra.mxu0 %v2183
        %8572 = vmatpush.msra.mxu0 %v2178
        %8573 = vmatpush.msra.mxu0 %v2173
        %8574 = vmatpush.msra.mxu0 %v2168
        %8575 = vmatpush.msra.mxu0 %v2163
        %8576 = vmatpush.msra.mxu0 %v2158
        %8577 = vmatpush.msra.mxu0 %v2153
        %8578 = vmatpush.msra.mxu0 %v2148
        %8579 = vmatpush.msra.mxu0 %v2143
        %8580 = vmatpush.msra.mxu0 %v2138
        %8581 = vmatmul.f32.gmra.mxu0 %v268
        %v8582 = vpop.f32.mrf.mxu0
        %v8583 = vadd.f32 %v8563, %v8582
        %8584 = vdwg.mxu0
        %8585 = vmatpush.msra.mxu0 %v2293
        %8586 = vmatpush.msra.mxu0 %v2288
        %8587 = vmatpush.msra.mxu0 %v2283
        %8588 = vmatpush.msra.mxu0 %v2278
        %8589 = vmatpush.msra.mxu0 %v2273
        %8590 = vmatpush.msra.mxu0 %v2268
        %8591 = vmatpush.msra.mxu0 %v2263
        %8592 = vmatpush.msra.mxu0 %v2258
        %8593 = vmatpush.msra.mxu0 %v2253
        %8594 = vmatpush.msra.mxu0 %v2248
        %8595 = vmatpush.msra.mxu0 %v2243
        %8596 = vmatpush.msra.mxu0 %v2238
        %8597 = vmatpush.msra.mxu0 %v2233
        %8598 = vmatpush.msra.mxu0 %v2228
        %8599 = vmatpush.msra.mxu0 %v2223
        %8600 = vmatpush.msra.mxu0 %v2218
        %8601 = vmatmul.f32.gmra.mxu0 %v269
        %v8602 = vpop.f32.mrf.mxu0
        %v8603 = vadd.f32 %v8583, %v8602
        %8604 = vdwg.mxu0
        %8605 = vmatpush.msra.mxu0 %v2373
        %8606 = vmatpush.msra.mxu0 %v2368
        %8607 = vmatpush.msra.mxu0 %v2363
        %8608 = vmatpush.msra.mxu0 %v2358
        %8609 = vmatpush.msra.mxu0 %v2353
        %8610 = vmatpush.msra.mxu0 %v2348
        %8611 = vmatpush.msra.mxu0 %v2343
        %8612 = vmatpush.msra.mxu0 %v2338
        %8613 = vmatpush.msra.mxu0 %v2333
        %8614 = vmatpush.msra.mxu0 %v2328
        %8615 = vmatpush.msra.mxu0 %v2323
        %8616 = vmatpush.msra.mxu0 %v2318
        %8617 = vmatpush.msra.mxu0 %v2313
        %8618 = vmatpush.msra.mxu0 %v2308
        %8619 = vmatpush.msra.mxu0 %v2303
        %8620 = vmatpush.msra.mxu0 %v2298
        %8621 = vmatmul.f32.gmra.mxu0 %v270
        %v8622 = vpop.f32.mrf.mxu0
        %v8623 = vadd.f32 %v8603, %v8622
        %8624 = vdwg.mxu0
        %8625 = vmatpush.msra.mxu0 %v2453
        %8626 = vmatpush.msra.mxu0 %v2448
        %8627 = vmatpush.msra.mxu0 %v2443
        %8628 = vmatpush.msra.mxu0 %v2438
        %8629 = vmatpush.msra.mxu0 %v2433
        %8630 = vmatpush.msra.mxu0 %v2428
        %8631 = vmatpush.msra.mxu0 %v2423
        %8632 = vmatpush.msra.mxu0 %v2418
        %8633 = vmatpush.msra.mxu0 %v2413
        %8634 = vmatpush.msra.mxu0 %v2408
        %8635 = vmatpush.msra.mxu0 %v2403
        %8636 = vmatpush.msra.mxu0 %v2398
        %8637 = vmatpush.msra.mxu0 %v2393
        %8638 = vmatpush.msra.mxu0 %v2388
        %8639 = vmatpush.msra.mxu0 %v2383
        %8640 = vmatpush.msra.mxu0 %v2378
        %8641 = vmatmul.f32.gmra.mxu0 %v271
        %v8642 = vpop.f32.mrf.mxu0
        %v8643 = vadd.f32 %v8623, %v8642
        %8644 = vdwg.mxu0
        %8645 = vmatpush.msra.mxu0 %v2533
        %8646 = vmatpush.msra.mxu0 %v2528
        %8647 = vmatpush.msra.mxu0 %v2523
        %8648 = vmatpush.msra.mxu0 %v2518
        %8649 = vmatpush.msra.mxu0 %v2513
        %8650 = vmatpush.msra.mxu0 %v2508
        %8651 = vmatpush.msra.mxu0 %v2503
        %8652 = vmatpush.msra.mxu0 %v2498
        %8653 = vmatpush.msra.mxu0 %v2493
        %8654 = vmatpush.msra.mxu0 %v2488
        %8655 = vmatpush.msra.mxu0 %v2483
        %8656 = vmatpush.msra.mxu0 %v2478
        %8657 = vmatpush.msra.mxu0 %v2473
        %8658 = vmatpush.msra.mxu0 %v2468
        %8659 = vmatpush.msra.mxu0 %v2463
        %8660 = vmatpush.msra.mxu0 %v2458
        %8661 = vmatmul.f32.gmra.mxu0 %v272
        %v8662 = vpop.f32.mrf.mxu0
        %v8663 = vadd.f32 %v8643, %v8662
        %8664 = vdwg.mxu0
        %8665 = vmatpush.msra.mxu0 %v2613
        %8666 = vmatpush.msra.mxu0 %v2608
        %8667 = vmatpush.msra.mxu0 %v2603
        %8668 = vmatpush.msra.mxu0 %v2598
        %8669 = vmatpush.msra.mxu0 %v2593
        %8670 = vmatpush.msra.mxu0 %v2588
        %8671 = vmatpush.msra.mxu0 %v2583
        %8672 = vmatpush.msra.mxu0 %v2578
        %8673 = vmatpush.msra.mxu0 %v2573
        %8674 = vmatpush.msra.mxu0 %v2568
        %8675 = vmatpush.msra.mxu0 %v2563
        %8676 = vmatpush.msra.mxu0 %v2558
        %8677 = vmatpush.msra.mxu0 %v2553
        %8678 = vmatpush.msra.mxu0 %v2548
        %8679 = vmatpush.msra.mxu0 %v2543
        %8680 = vmatpush.msra.mxu0 %v2538
        %8681 = vmatmul.f32.gmra.mxu0 %v273
        %v8682 = vpop.f32.mrf.mxu0
        %v8683 = vadd.f32 %v8663, %v8682
        %8684 = vdwg.mxu0
        %8685 = vmatpush.msra.mxu0 %v2693
        %8686 = vmatpush.msra.mxu0 %v2688
        %8687 = vmatpush.msra.mxu0 %v2683
        %8688 = vmatpush.msra.mxu0 %v2678
        %8689 = vmatpush.msra.mxu0 %v2673
        %8690 = vmatpush.msra.mxu0 %v2668
        %8691 = vmatpush.msra.mxu0 %v2663
        %8692 = vmatpush.msra.mxu0 %v2658
        %8693 = vmatpush.msra.mxu0 %v2653
        %8694 = vmatpush.msra.mxu0 %v2648
        %8695 = vmatpush.msra.mxu0 %v2643
        %8696 = vmatpush.msra.mxu0 %v2638
        %8697 = vmatpush.msra.mxu0 %v2633
        %8698 = vmatpush.msra.mxu0 %v2628
        %8699 = vmatpush.msra.mxu0 %v2623
        %8700 = vmatpush.msra.mxu0 %v2618
        %8701 = vmatmul.f32.gmra.mxu0 %v274
        %v8702 = vpop.f32.mrf.mxu0
        %v8703 = vadd.f32 %v8683, %v8702
        %8704 = vdwg.mxu0
        %8705 = vmatpush.msra.mxu0 %v2773
        %8706 = vmatpush.msra.mxu0 %v2768
        %8707 = vmatpush.msra.mxu0 %v2763
        %8708 = vmatpush.msra.mxu0 %v2758
        %8709 = vmatpush.msra.mxu0 %v2753
        %8710 = vmatpush.msra.mxu0 %v2748
        %8711 = vmatpush.msra.mxu0 %v2743
        %8712 = vmatpush.msra.mxu0 %v2738
        %8713 = vmatpush.msra.mxu0 %v2733
        %8714 = vmatpush.msra.mxu0 %v2728
        %8715 = vmatpush.msra.mxu0 %v2723
        %8716 = vmatpush.msra.mxu0 %v2718
        %8717 = vmatpush.msra.mxu0 %v2713
        %8718 = vmatpush.msra.mxu0 %v2708
        %8719 = vmatpush.msra.mxu0 %v2703
        %8720 = vmatpush.msra.mxu0 %v2698
        %8721 = vmatmul.f32.gmra.mxu0 %v275
        %v8722 = vpop.f32.mrf.mxu0
        %v8723 = vadd.f32 %v8703, %v8722
        %8724 = vdwg.mxu0
        %8725 = vmatpush.msra.mxu0 %v2853
        %8726 = vmatpush.msra.mxu0 %v2848
        %8727 = vmatpush.msra.mxu0 %v2843
        %8728 = vmatpush.msra.mxu0 %v2838
        %8729 = vmatpush.msra.mxu0 %v2833
        %8730 = vmatpush.msra.mxu0 %v2828
        %8731 = vmatpush.msra.mxu0 %v2823
        %8732 = vmatpush.msra.mxu0 %v2818
        %8733 = vmatpush.msra.mxu0 %v2813
        %8734 = vmatpush.msra.mxu0 %v2808
        %8735 = vmatpush.msra.mxu0 %v2803
        %8736 = vmatpush.msra.mxu0 %v2798
        %8737 = vmatpush.msra.mxu0 %v2793
        %8738 = vmatpush.msra.mxu0 %v2788
        %8739 = vmatpush.msra.mxu0 %v2783
        %8740 = vmatpush.msra.mxu0 %v2778
        %8741 = vmatmul.f32.gmra.mxu0 %v276
        %v8742 = vpop.f32.mrf.mxu0
        %v8743 = vadd.f32 %v8723, %v8742
        %8744 = vdwg.mxu0
        %8745 = vmatpush.msra.mxu0 %v2933
        %8746 = vmatpush.msra.mxu0 %v2928
        %8747 = vmatpush.msra.mxu0 %v2923
        %8748 = vmatpush.msra.mxu0 %v2918
        %8749 = vmatpush.msra.mxu0 %v2913
        %8750 = vmatpush.msra.mxu0 %v2908
        %8751 = vmatpush.msra.mxu0 %v2903
        %8752 = vmatpush.msra.mxu0 %v2898
        %8753 = vmatpush.msra.mxu0 %v2893
        %8754 = vmatpush.msra.mxu0 %v2888
        %8755 = vmatpush.msra.mxu0 %v2883
        %8756 = vmatpush.msra.mxu0 %v2878
        %8757 = vmatpush.msra.mxu0 %v2873
        %8758 = vmatpush.msra.mxu0 %v2868
        %8759 = vmatpush.msra.mxu0 %v2863
        %8760 = vmatpush.msra.mxu0 %v2858
        %8761 = vmatmul.f32.gmra.mxu0 %v277
        %v8762 = vpop.f32.mrf.mxu0
        %v8763 = vadd.f32 %v8743, %v8762
        %8764 = vdwg.mxu0
        %8765 = vmatpush.msra.mxu0 %v3013
        %8766 = vmatpush.msra.mxu0 %v3008
        %8767 = vmatpush.msra.mxu0 %v3003
        %8768 = vmatpush.msra.mxu0 %v2998
        %8769 = vmatpush.msra.mxu0 %v2993
        %8770 = vmatpush.msra.mxu0 %v2988
        %8771 = vmatpush.msra.mxu0 %v2983
        %8772 = vmatpush.msra.mxu0 %v2978
        %8773 = vmatpush.msra.mxu0 %v2973
        %8774 = vmatpush.msra.mxu0 %v2968
        %8775 = vmatpush.msra.mxu0 %v2963
        %8776 = vmatpush.msra.mxu0 %v2958
        %8777 = vmatpush.msra.mxu0 %v2953
        %8778 = vmatpush.msra.mxu0 %v2948
        %8779 = vmatpush.msra.mxu0 %v2943
        %8780 = vmatpush.msra.mxu0 %v2938
        %8781 = vmatmul.f32.gmra.mxu0 %v278
        %v8782 = vpop.f32.mrf.mxu0
        %v8783 = vadd.f32 %v8763, %v8782
        %8784 = vdwg.mxu0
        %8785 = vmatpush.msra.mxu0 %v3093
        %8786 = vmatpush.msra.mxu0 %v3088
        %8787 = vmatpush.msra.mxu0 %v3083
        %8788 = vmatpush.msra.mxu0 %v3078
        %8789 = vmatpush.msra.mxu0 %v3073
        %8790 = vmatpush.msra.mxu0 %v3068
        %8791 = vmatpush.msra.mxu0 %v3063
        %8792 = vmatpush.msra.mxu0 %v3058
        %8793 = vmatpush.msra.mxu0 %v3053
        %8794 = vmatpush.msra.mxu0 %v3048
        %8795 = vmatpush.msra.mxu0 %v3043
        %8796 = vmatpush.msra.mxu0 %v3038
        %8797 = vmatpush.msra.mxu0 %v3033
        %8798 = vmatpush.msra.mxu0 %v3028
        %8799 = vmatpush.msra.mxu0 %v3023
        %8800 = vmatpush.msra.mxu0 %v3018
        %8801 = vmatmul.f32.gmra.mxu0 %v279
        %v8802 = vpop.f32.mrf.mxu0
        %v8803 = vadd.f32 %v8783, %v8802
        %8804 = vdwg.mxu0
        %8805 = vmatpush.msra.mxu0 %v3173
        %8806 = vmatpush.msra.mxu0 %v3168
        %8807 = vmatpush.msra.mxu0 %v3163
        %8808 = vmatpush.msra.mxu0 %v3158
        %8809 = vmatpush.msra.mxu0 %v3153
        %8810 = vmatpush.msra.mxu0 %v3148
        %8811 = vmatpush.msra.mxu0 %v3143
        %8812 = vmatpush.msra.mxu0 %v3138
        %8813 = vmatpush.msra.mxu0 %v3133
        %8814 = vmatpush.msra.mxu0 %v3128
        %8815 = vmatpush.msra.mxu0 %v3123
        %8816 = vmatpush.msra.mxu0 %v3118
        %8817 = vmatpush.msra.mxu0 %v3113
        %8818 = vmatpush.msra.mxu0 %v3108
        %8819 = vmatpush.msra.mxu0 %v3103
        %8820 = vmatpush.msra.mxu0 %v3098
        %8821 = vmatmul.f32.gmra.mxu0 %v280
        %v8822 = vpop.f32.mrf.mxu0
        %v8823 = vadd.f32 %v8803, %v8822
        %8824 = vdwg.mxu0
        %8825 = vmatpush.msra.mxu0 %v3253
        %8826 = vmatpush.msra.mxu0 %v3248
        %8827 = vmatpush.msra.mxu0 %v3243
        %8828 = vmatpush.msra.mxu0 %v3238
        %8829 = vmatpush.msra.mxu0 %v3233
        %8830 = vmatpush.msra.mxu0 %v3228
        %8831 = vmatpush.msra.mxu0 %v3223
        %8832 = vmatpush.msra.mxu0 %v3218
        %8833 = vmatpush.msra.mxu0 %v3213
        %8834 = vmatpush.msra.mxu0 %v3208
        %8835 = vmatpush.msra.mxu0 %v3203
        %8836 = vmatpush.msra.mxu0 %v3198
        %8837 = vmatpush.msra.mxu0 %v3193
        %8838 = vmatpush.msra.mxu0 %v3188
        %8839 = vmatpush.msra.mxu0 %v3183
        %8840 = vmatpush.msra.mxu0 %v3178
        %8841 = vmatmul.f32.gmra.mxu0 %v281
        %v8842 = vpop.f32.mrf.mxu0
        %v8843 = vadd.f32 %v8823, %v8842
        %8844 = vdwg.mxu0
        %8845 = vmatpush.msra.mxu0 %v3333
        %8846 = vmatpush.msra.mxu0 %v3328
        %8847 = vmatpush.msra.mxu0 %v3323
        %8848 = vmatpush.msra.mxu0 %v3318
        %8849 = vmatpush.msra.mxu0 %v3313
        %8850 = vmatpush.msra.mxu0 %v3308
        %8851 = vmatpush.msra.mxu0 %v3303
        %8852 = vmatpush.msra.mxu0 %v3298
        %8853 = vmatpush.msra.mxu0 %v3293
        %8854 = vmatpush.msra.mxu0 %v3288
        %8855 = vmatpush.msra.mxu0 %v3283
        %8856 = vmatpush.msra.mxu0 %v3278
        %8857 = vmatpush.msra.mxu0 %v3273
        %8858 = vmatpush.msra.mxu0 %v3268
        %8859 = vmatpush.msra.mxu0 %v3263
        %8860 = vmatpush.msra.mxu0 %v3258
        %8861 = vmatmul.f32.gmra.mxu0 %v282
        %v8862 = vpop.f32.mrf.mxu0
        %v8863 = vadd.f32 %v8843, %v8862
        %8864 = vdwg.mxu0
        %8865 = vmatpush.msra.mxu0 %v3413
        %8866 = vmatpush.msra.mxu0 %v3408
        %8867 = vmatpush.msra.mxu0 %v3403
        %8868 = vmatpush.msra.mxu0 %v3398
        %8869 = vmatpush.msra.mxu0 %v3393
        %8870 = vmatpush.msra.mxu0 %v3388
        %8871 = vmatpush.msra.mxu0 %v3383
        %8872 = vmatpush.msra.mxu0 %v3378
        %8873 = vmatpush.msra.mxu0 %v3373
        %8874 = vmatpush.msra.mxu0 %v3368
        %8875 = vmatpush.msra.mxu0 %v3363
        %8876 = vmatpush.msra.mxu0 %v3358
        %8877 = vmatpush.msra.mxu0 %v3353
        %8878 = vmatpush.msra.mxu0 %v3348
        %8879 = vmatpush.msra.mxu0 %v3343
        %8880 = vmatpush.msra.mxu0 %v3338
        %8881 = vmatmul.f32.gmra.mxu0 %v283
        %v8882 = vpop.f32.mrf.mxu0
        %v8883 = vadd.f32 %v8863, %v8882
        %8884 = vdwg.mxu0
        %8885 = vmatpush.msra.mxu0 %v3493
        %8886 = vmatpush.msra.mxu0 %v3488
        %8887 = vmatpush.msra.mxu0 %v3483
        %8888 = vmatpush.msra.mxu0 %v3478
        %8889 = vmatpush.msra.mxu0 %v3473
        %8890 = vmatpush.msra.mxu0 %v3468
        %8891 = vmatpush.msra.mxu0 %v3463
        %8892 = vmatpush.msra.mxu0 %v3458
        %8893 = vmatpush.msra.mxu0 %v3453
        %8894 = vmatpush.msra.mxu0 %v3448
        %8895 = vmatpush.msra.mxu0 %v3443
        %8896 = vmatpush.msra.mxu0 %v3438
        %8897 = vmatpush.msra.mxu0 %v3433
        %8898 = vmatpush.msra.mxu0 %v3428
        %8899 = vmatpush.msra.mxu0 %v3423
        %8900 = vmatpush.msra.mxu0 %v3418
        %8901 = vmatmul.f32.gmra.mxu0 %v284
        %v8902 = vpop.f32.mrf.mxu0
        %v8903 = vadd.f32 %v8883, %v8902
        %8904 = vdwg.mxu0
        %8905 = vmatpush.msra.mxu0 %v3573
        %8906 = vmatpush.msra.mxu0 %v3568
        %8907 = vmatpush.msra.mxu0 %v3563
        %8908 = vmatpush.msra.mxu0 %v3558
        %8909 = vmatpush.msra.mxu0 %v3553
        %8910 = vmatpush.msra.mxu0 %v3548
        %8911 = vmatpush.msra.mxu0 %v3543
        %8912 = vmatpush.msra.mxu0 %v3538
        %8913 = vmatpush.msra.mxu0 %v3533
        %8914 = vmatpush.msra.mxu0 %v3528
        %8915 = vmatpush.msra.mxu0 %v3523
        %8916 = vmatpush.msra.mxu0 %v3518
        %8917 = vmatpush.msra.mxu0 %v3513
        %8918 = vmatpush.msra.mxu0 %v3508
        %8919 = vmatpush.msra.mxu0 %v3503
        %8920 = vmatpush.msra.mxu0 %v3498
        %8921 = vmatmul.f32.gmra.mxu0 %v285
        %v8922 = vpop.f32.mrf.mxu0
        %v8923 = vadd.f32 %v8903, %v8922
        %8924 = vdwg.mxu0
        %8925 = vmatpush.msra.mxu0 %v3653
        %8926 = vmatpush.msra.mxu0 %v3648
        %8927 = vmatpush.msra.mxu0 %v3643
        %8928 = vmatpush.msra.mxu0 %v3638
        %8929 = vmatpush.msra.mxu0 %v3633
        %8930 = vmatpush.msra.mxu0 %v3628
        %8931 = vmatpush.msra.mxu0 %v3623
        %8932 = vmatpush.msra.mxu0 %v3618
        %8933 = vmatpush.msra.mxu0 %v3613
        %8934 = vmatpush.msra.mxu0 %v3608
        %8935 = vmatpush.msra.mxu0 %v3603
        %8936 = vmatpush.msra.mxu0 %v3598
        %8937 = vmatpush.msra.mxu0 %v3593
        %8938 = vmatpush.msra.mxu0 %v3588
        %8939 = vmatpush.msra.mxu0 %v3583
        %8940 = vmatpush.msra.mxu0 %v3578
        %8941 = vmatmul.f32.gmra.mxu0 %v286
        %v8942 = vpop.f32.mrf.mxu0
        %v8943 = vadd.f32 %v8923, %v8942
        %8944 = vdwg.mxu0
        %8945 = vmatpush.msra.mxu0 %v3733
        %8946 = vmatpush.msra.mxu0 %v3728
        %8947 = vmatpush.msra.mxu0 %v3723
        %8948 = vmatpush.msra.mxu0 %v3718
        %8949 = vmatpush.msra.mxu0 %v3713
        %8950 = vmatpush.msra.mxu0 %v3708
        %8951 = vmatpush.msra.mxu0 %v3703
        %8952 = vmatpush.msra.mxu0 %v3698
        %8953 = vmatpush.msra.mxu0 %v3693
        %8954 = vmatpush.msra.mxu0 %v3688
        %8955 = vmatpush.msra.mxu0 %v3683
        %8956 = vmatpush.msra.mxu0 %v3678
        %8957 = vmatpush.msra.mxu0 %v3673
        %8958 = vmatpush.msra.mxu0 %v3668
        %8959 = vmatpush.msra.mxu0 %v3663
        %8960 = vmatpush.msra.mxu0 %v3658
        %8961 = vmatmul.f32.gmra.mxu0 %v287
        %v8962 = vpop.f32.mrf.mxu0
        %v8963 = vadd.f32 %v8943, %v8962
        %8964 = vdwg.mxu0
        %8965 = vmatpush.msra.mxu0 %v3813
        %8966 = vmatpush.msra.mxu0 %v3808
        %8967 = vmatpush.msra.mxu0 %v3803
        %8968 = vmatpush.msra.mxu0 %v3798
        %8969 = vmatpush.msra.mxu0 %v3793
        %8970 = vmatpush.msra.mxu0 %v3788
        %8971 = vmatpush.msra.mxu0 %v3783
        %8972 = vmatpush.msra.mxu0 %v3778
        %8973 = vmatpush.msra.mxu0 %v3773
        %8974 = vmatpush.msra.mxu0 %v3768
        %8975 = vmatpush.msra.mxu0 %v3763
        %8976 = vmatpush.msra.mxu0 %v3758
        %8977 = vmatpush.msra.mxu0 %v3753
        %8978 = vmatpush.msra.mxu0 %v3748
        %8979 = vmatpush.msra.mxu0 %v3743
        %8980 = vmatpush.msra.mxu0 %v3738
        %8981 = vmatmul.f32.gmra.mxu0 %v288
        %v8982 = vpop.f32.mrf.mxu0
        %v8983 = vadd.f32 %v8963, %v8982
        %8984 = vdwg.mxu0
        %8985 = vmatpush.msra.mxu0 %v3893
        %8986 = vmatpush.msra.mxu0 %v3888
        %8987 = vmatpush.msra.mxu0 %v3883
        %8988 = vmatpush.msra.mxu0 %v3878
        %8989 = vmatpush.msra.mxu0 %v3873
        %8990 = vmatpush.msra.mxu0 %v3868
        %8991 = vmatpush.msra.mxu0 %v3863
        %8992 = vmatpush.msra.mxu0 %v3858
        %8993 = vmatpush.msra.mxu0 %v3853
        %8994 = vmatpush.msra.mxu0 %v3848
        %8995 = vmatpush.msra.mxu0 %v3843
        %8996 = vmatpush.msra.mxu0 %v3838
        %8997 = vmatpush.msra.mxu0 %v3833
        %8998 = vmatpush.msra.mxu0 %v3828
        %8999 = vmatpush.msra.mxu0 %v3823
        %9000 = vmatpush.msra.mxu0 %v3818
        %9001 = vmatmul.f32.gmra.mxu0 %v289
        %v9002 = vpop.f32.mrf.mxu0
        %v9003 = vadd.f32 %v8983, %v9002
        %9004 = vdwg.mxu0
        %9005 = vmatpush.msra.mxu0 %v3973
        %9006 = vmatpush.msra.mxu0 %v3968
        %9007 = vmatpush.msra.mxu0 %v3963
        %9008 = vmatpush.msra.mxu0 %v3958
        %9009 = vmatpush.msra.mxu0 %v3953
        %9010 = vmatpush.msra.mxu0 %v3948
        %9011 = vmatpush.msra.mxu0 %v3943
        %9012 = vmatpush.msra.mxu0 %v3938
        %9013 = vmatpush.msra.mxu0 %v3933
        %9014 = vmatpush.msra.mxu0 %v3928
        %9015 = vmatpush.msra.mxu0 %v3923
        %9016 = vmatpush.msra.mxu0 %v3918
        %9017 = vmatpush.msra.mxu0 %v3913
        %9018 = vmatpush.msra.mxu0 %v3908
        %9019 = vmatpush.msra.mxu0 %v3903
        %9020 = vmatpush.msra.mxu0 %v3898
        %9021 = vmatmul.f32.gmra.mxu0 %v290
        %v9022 = vpop.f32.mrf.mxu0
        %v9023 = vadd.f32 %v9003, %v9022
        %9024 = vdwg.mxu0
        %9025 = vmatpush.msra.mxu0 %v4053
        %9026 = vmatpush.msra.mxu0 %v4048
        %9027 = vmatpush.msra.mxu0 %v4043
        %9028 = vmatpush.msra.mxu0 %v4038
        %9029 = vmatpush.msra.mxu0 %v4033
        %9030 = vmatpush.msra.mxu0 %v4028
        %9031 = vmatpush.msra.mxu0 %v4023
        %9032 = vmatpush.msra.mxu0 %v4018
        %9033 = vmatpush.msra.mxu0 %v4013
        %9034 = vmatpush.msra.mxu0 %v4008
        %9035 = vmatpush.msra.mxu0 %v4003
        %9036 = vmatpush.msra.mxu0 %v3998
        %9037 = vmatpush.msra.mxu0 %v3993
        %9038 = vmatpush.msra.mxu0 %v3988
        %9039 = vmatpush.msra.mxu0 %v3983
        %9040 = vmatpush.msra.mxu0 %v3978
        %9041 = vmatmul.f32.gmra.mxu0 %v291
        %v9042 = vpop.f32.mrf.mxu0
        %v9043 = vadd.f32 %v9023, %v9042
        %9044 = vdwg.mxu0
        %9045 = vmatpush.msra.mxu0 %v4133
        %9046 = vmatpush.msra.mxu0 %v4128
        %9047 = vmatpush.msra.mxu0 %v4123
        %9048 = vmatpush.msra.mxu0 %v4118
        %9049 = vmatpush.msra.mxu0 %v4113
        %9050 = vmatpush.msra.mxu0 %v4108
        %9051 = vmatpush.msra.mxu0 %v4103
        %9052 = vmatpush.msra.mxu0 %v4098
        %9053 = vmatpush.msra.mxu0 %v4093
        %9054 = vmatpush.msra.mxu0 %v4088
        %9055 = vmatpush.msra.mxu0 %v4083
        %9056 = vmatpush.msra.mxu0 %v4078
        %9057 = vmatpush.msra.mxu0 %v4073
        %9058 = vmatpush.msra.mxu0 %v4068
        %9059 = vmatpush.msra.mxu0 %v4063
        %9060 = vmatpush.msra.mxu0 %v4058
        %9061 = vmatmul.f32.gmra.mxu0 %v292
        %v9062 = vpop.f32.mrf.mxu0
        %v9063 = vadd.f32 %v9043, %v9062
        %9064 = vdwg.mxu0
        %9065 = vmatpush.msra.mxu0 0.0
        %9066 = vmatpush.msra.mxu0 0.0
        %9067 = vmatpush.msra.mxu0 0.0
        %9068 = vmatpush.msra.mxu0 0.0
        %9069 = vmatpush.msra.mxu0 0.0
        %9070 = vmatpush.msra.mxu0 0.0
        %9071 = vmatpush.msra.mxu0 0.0
        %9072 = vmatpush.msra.mxu0 0.0
        %9073 = vmatpush.msra.mxu0 0.0
        %9074 = vmatpush.msra.mxu0 %v4168
        %9075 = vmatpush.msra.mxu0 %v4163
        %9076 = vmatpush.msra.mxu0 %v4158
        %9077 = vmatpush.msra.mxu0 %v4153
        %9078 = vmatpush.msra.mxu0 %v4148
        %9079 = vmatpush.msra.mxu0 %v4143
        %9080 = vmatpush.msra.mxu0 %v4138
        %9081 = vmatmul.f32.gmra.mxu0 %v4183
        %v9082 = vpop.f32.mrf.mxu0
        %v9083 = vadd.f32 %v9063, %v9082
        %9084 = vdwg.mxu0
        %9085 = vst [vmem:[%s241] sm:$0xff] %v5163
        %9086 = vst [vmem:[%s241 + $0x8] sm:$0xff] %v6143
        %9087 = vst [vmem:[%s241 + $0x10] sm:$0xff] %v7123
        %9088 = vst [vmem:[%s241 + $0x18] sm:$0xff] %v8103
        %9089 = vst [vmem:[%s241 + $0x20] sm:$0xff] %v9083
        %s9090 = sand.u32 %s102, 1
        %s9091 = scalar_lea.sflag [#allocation4], %s9090
        %s9092 = sand.u32 %s102, 1
        %s9093 = smul.addr %s9092, 40
        %s9094 = scalar_lea.vmem [#allocation8], %s9093
        // Predicated region
        $region45: #{tpu_custom_call.1} parent=31 // pred_check
          %p9095 = pneg %p112
        $region46: #{tpu_custom_call.1} parent=31 // pred_check_branch
          %9097 = sbr.rel (%p9095) target = $region48
        $region47: #{tpu_custom_call.1} parent=31 // pred_region
          %s9098 = smul.u32 5, %s21
          %9100 = vsyncadd %s9091, 0
          %s9101 = smul.addr %s9098, 8
          %s9102 = scalar_lea.hbm %s3, %s9101
          %s9104 = sshll.u32 %s9094, 4
          %s9105 = int_to_ptr.vmem [resolvable:$true] %s9104
          %s9106 = sshll.u32 %s9102, 4
          %s9107 = int_to_ptr.hbm [resolvable:$true] %s9106
          %9109 = dma.vmem_to_hbm [thread:$0]  %s9105, 640, %s9107, %s9091
        $region48: #{tpu_custom_call.1} parent=31 // pred_fallthru
          _
      $region32: #{tpu_custom_call.1} parent=5 // pred_fallthru
        _
      %p9110 = scmp.le.s32.totalorder 2, %s16
      // Predicated region
      $region49: #{tpu_custom_call.1} parent=5 // pred_check
        %p9111 = pneg %p9110
      $region50: #{tpu_custom_call.1} parent=5 // pred_check_branch
        %9113 = sbr.rel (%p9111) target = $region52
      $region51: #{tpu_custom_call.1} parent=5 // pred_region
        %s9114 = ssub.s32 %s16, 2
        // Predicated region
        $region53: #{tpu_custom_call.1} parent=51 // pred_check
          %p9115 = pneg %p118
        $region54: #{tpu_custom_call.1} parent=51 // pred_check_branch
          %9117 = sbr.rel (%p9115) target = $region56
        $region55: #{tpu_custom_call.1} parent=51 // pred_region
          %s9118 = sand.u32 %s103, 1
          %s9119 = scalar_lea.sflag [#allocation4], %s9118
          %s9120 = sand.u32 %s103, 1
          %s9121 = smul.addr %s9120, 40
          %s9122 = scalar_lea.vmem [#allocation8], %s9121
          %9124 = dma.done %s9119, 640
        $region56: #{tpu_custom_call.1} parent=51 // pred_fallthru
          _
      $region52: #{tpu_custom_call.1} parent=5 // pred_fallthru
        _
    $region6: #{tpu_custom_call.1} parent=1 // loop_footer
      %s20 = sadd.s32 1, %s16
    $region7: #{tpu_custom_call.1} parent=1 // loop_footer_branch
      %15 = sbr.rel target = $region3
    $region8: #{tpu_custom_call.1} parent=1 // loop_exit
      _
    %9125 = vsyncpa [#allocation3], 1
    %s9126 = scalar_lea.sflag [#allocation3], 1
    %9127 = vsyncpa %s9126, 1
    %9128 = vsyncpa [#allocation6], 1
    %s9129 = scalar_lea.sflag [#allocation6], 1
    %9130 = vsyncpa %s9129, 1
    %9131 = vsyncpa [#allocation4], 1
    %s9132 = scalar_lea.sflag [#allocation4], 1
    %9133 = vsyncpa %s9132, 1

</llo_original>
